<compile_context>
chip_gen: v7x
topology: tpu7x:2x2x1
jax: 0.10.0
libtpu: 0.0.40
codegen_flags: <defaults>
</compile_context>

<pallas_src>
import numpy as np
import jax
import jax.numpy as jnp
from jax.experimental import pallas as pl
from jax.experimental.pallas import tpu as pltpu

d_k = d_v = 64
d_model = 512
n_heads = 8
d_ff = 2048
n_layers = 1
IN_FEATURES = 5
LN_EPS = 1e-5


# ----------------------------- fused kernel -----------------------------

def _layer_norm_f32(y):
    # LayerNorm(d_model) with default gamma=1, beta=0 (fresh LN in forward()).
    mean = jnp.mean(y, axis=-1, keepdims=True)
    var = jnp.mean(jnp.square(y - mean), axis=-1, keepdims=True)
    return (y - mean) * jax.lax.rsqrt(var + LN_EPS)


def _make_fused_kernel(batch, seq_len):
    """Whole forward over the flattened (batch*seq_len, ...) token slab."""
    bs = batch * seq_len

    def kernel(x_ref, posb_ref, emb_w_ref, wv_ref, wo_ref,
               w1_ref, w2_ref, proj_ref, logits_ref):
        x = x_ref[...]                                           # (BS, 5) f32

        # --- src_emb Linear(5,512)+bias, + positional table ----------------
        # (bias folded into posb host-side; Dropout(p=0.1) is identity).
        emb = jnp.dot(x.astype(jnp.bfloat16), emb_w_ref[...],
                      preferred_element_type=jnp.float32)
        emb = emb + posb_ref[...]                                # (BS, 512) f32

        # --- MultiHeadAttention --------------------------------------------
        # get_attn_pad_mask returns torch.ones(B,S,S): every score is
        # masked_fill'ed to -1e9, so softmax rows are exactly uniform (1/S)
        # and context[b, q, :] = mean_k V[b, k, :] for every query / head.
        # Q and K therefore cannot affect the output; their weights are never
        # loaded and only the V projection is computed.
        v = jnp.dot(emb.astype(jnp.bfloat16), wv_ref[...],
                    preferred_element_type=jnp.float32)          # (BS, 512)
        v3 = v.reshape(batch, seq_len, d_model)
        ctx = jnp.broadcast_to(
            jnp.mean(v3, axis=1, keepdims=True),                 # per-batch key-mean
            (batch, seq_len, d_model)).reshape(bs, d_model)      # (BS, 512) f32

        # output fc (no bias) + residual + LayerNorm
        mha_out = jnp.dot(ctx.astype(jnp.bfloat16), wo_ref[...],
                          preferred_element_type=jnp.float32)
        h1 = _layer_norm_f32(mha_out + emb)                      # (BS, 512) f32

        # --- PoswiseFeedForwardNet: 512 -> 2048 -> ReLU -> 512, residual+LN -
        h = jnp.dot(h1.astype(jnp.bfloat16), w1_ref[...],
                    preferred_element_type=jnp.float32)
        h = jnp.maximum(h, 0.0)
        ffn_out = jnp.dot(h.astype(jnp.bfloat16), w2_ref[...],
                          preferred_element_type=jnp.float32)
        h2 = _layer_norm_f32(ffn_out + h1)                       # (BS, 512) f32

        # --- final projection Linear(512, 1, bias=False) --------------------
        # VPU multiply + lane reduction (keeps the N=1 matmul off the MXU);
        # at BS=16 the (BS,1) store is a single vreg either way and directly
        # matches the reference's dec_logits.view(-1, 1).
        logits = jnp.sum(h2 * proj_ref[...], axis=-1, keepdims=True)   # (BS, 1)
        logits_ref[...] = logits.astype(logits_ref.dtype)

    return kernel


# ----------------------------- model glue -----------------------------

def positional_table(seq_len, dm):
    pos = np.arange(seq_len, dtype=np.float64)[:, None]
    i = np.arange(dm, dtype=np.float64)[None, :]
    angle = pos / np.power(10000.0, 2.0 * i / dm)
    tab = np.zeros_like(angle)
    # TODO(synk): the reference's `pos_tabel[:,0::2]=np.sin(pos_tabel[1:,0::2])`
    # is a shape-mismatch bug (cannot execute); standard sin/cos encoding used.
    tab[:, 0::2] = np.sin(angle[:, 0::2])
    tab[:, 1::2] = np.cos(angle[:, 1::2])
    tab[0, :] = 0.0  # the reference builds the pos==0 row as zeros
    return jnp.asarray(tab, dtype=jnp.float32)


def init_params(key):
    def uni(k, fan_in, shape, dtype=jnp.bfloat16):
        bound = 1.0 / np.sqrt(fan_in)
        w = jax.random.uniform(k, shape, jnp.float32, -bound, bound)
        return w.astype(dtype)

    keys = jax.random.split(key, 3 + n_layers)
    layers = []
    for li in range(n_layers):          # distinct params per layer (no aliasing)
        lk = jax.random.split(keys[3 + li], 6)
        layers.append({
            # W_Q / W_K exist in the reference module but cannot affect the
            # output (all-ones pad mask => uniform attention); they are kept in
            # the param tree for fidelity but never passed to the kernel, so
            # their weights are never DMA'd.
            "wq": uni(lk[0], d_model, (d_model, n_heads * d_k)),
            "wk": uni(lk[1], d_model, (d_model, n_heads * d_k)),
            "wv": uni(lk[2], d_model, (d_model, n_heads * d_v)),
            "wo": uni(lk[3], n_heads * d_v, (n_heads * d_v, d_model)),
            "ffn_w1": uni(lk[4], d_model, (d_model, d_ff)),
            "ffn_w2": uni(lk[5], d_ff, (d_ff, d_model)),
        })
    return {
        "src_emb_w": uni(keys[0], IN_FEATURES, (IN_FEATURES, d_model)),
        "src_emb_b": uni(keys[1], IN_FEATURES, (d_model,), jnp.float32),
        "proj_w": uni(keys[2], d_model, (1, d_model), jnp.float32),
        "layers": layers,
    }


def transformer_forward(params, enc_inputs):
    B, S, F = enc_inputs.shape
    # n_layers == 1 in the reference; the whole forward fits in one fused call.
    assert len(params["layers"]) == 1 and F == IN_FEATURES
    layer = params["layers"][0]
    BS = B * S

    # Flatten the batch into the matmul M dimension: one grid-free call,
    # single-buffered weights, no per-core weight duplication.
    x_flat = enc_inputs.reshape(BS, IN_FEATURES)

    # Fold the src_emb bias into the positional table and tile it per batch
    # element so it lines up with the flattened token slab. (BS, 512) f32.
    pos = positional_table(S, d_model)
    posb = jnp.tile(pos + params["src_emb_b"][None, :], (B, 1))

    # advisory cost hint for the XLA scheduler (dead Q/K removed)
    flops = 2 * BS * (IN_FEATURES * d_model        # src_emb
                      + d_model * d_model          # V projection
                      + d_model * d_model          # attention output fc
                      + 2 * d_model * d_ff         # FFN
                      + d_model)                   # final projection
    w_bytes = 2 * (IN_FEATURES * d_model + 2 * d_model * d_model
                   + 2 * d_model * d_ff) + 4 * d_model
    bytes_accessed = int(w_bytes + BS * d_model * 4      # pos+bias table
                         + BS * IN_FEATURES * 4          # inputs
                         + BS * 4)                       # logits
    cost = pl.CostEstimate(flops=int(flops), transcendentals=int(2 * BS),
                           bytes_accessed=bytes_accessed)

    logits = pl.pallas_call(
        _make_fused_kernel(B, S),
        out_shape=jax.ShapeDtypeStruct((BS, 1), jnp.float32),
        compiler_params=pltpu.CompilerParams(
            vmem_limit_bytes=32 * 1024 * 1024),   # ample headroom on v5e/v6e/v7x
        cost_estimate=cost,
    )(x_flat, posb, params["src_emb_w"], layer["wv"], layer["wo"],
      layer["ffn_w1"], layer["ffn_w2"], params["proj_w"])

    # All-ones pad mask => every softmax row is exactly uniform: the returned
    # attention tensor is a compile-time constant, emitted outside the kernel.
    attn = jnp.full((B, n_heads, S, S), 1.0 / S, dtype=jnp.float32)
    return logits, [attn]


if __name__ == "__main__":
    key = jax.random.PRNGKey(0)
    pkey, dkey = jax.random.split(key)
    params = init_params(pkey)

    B, S = 2, 8
    enc_inputs = jax.random.normal(dkey, (B, S, IN_FEATURES), jnp.float32)

    logits, attns = jax.jit(transformer_forward)(params, enc_inputs)
    jax.block_until_ready(logits)
    jax.block_until_ready(attns[0])

    assert logits.shape == (B * S, 1)
    assert attns[0].shape == (B, n_heads, S, S)
    assert bool(jnp.all(jnp.isfinite(logits)))
    # all-ones pad mask => uniform attention rows (exactly 1/S)
    assert bool(jnp.allclose(attns[0], 1.0 / S, atol=1e-6))
    print("KERNEL_OK")
</pallas_src>

<mosaic_0001>
module attributes {stable_mosaic.version = 11 : i64} {
  func.func @kernel(%arg0: memref<16x5xf32, #tpu.memory_space<vmem>>, %arg1: memref<16x512xf32, #tpu.memory_space<vmem>>, %arg2: memref<5x512xbf16, #tpu.memory_space<vmem>>, %arg3: memref<512x512xbf16, #tpu.memory_space<vmem>>, %arg4: memref<512x512xbf16, #tpu.memory_space<vmem>>, %arg5: memref<512x2048xbf16, #tpu.memory_space<vmem>>, %arg6: memref<2048x512xbf16, #tpu.memory_space<vmem>>, %arg7: memref<1x512xf32, #tpu.memory_space<vmem>>, %arg8: memref<16x1xf32, #tpu.memory_space<vmem>>) attributes {dimension_semantics = [], scalar_prefetch = 0 : i64, scratch_operands = 0 : i64, tpu.core_type = #tpu.core_type<tc>} {
    %c0 = arith.constant 0 : index
    %c0_0 = arith.constant 0 : index
    %0 = vector.load %arg0[%c0, %c0_0] : memref<16x5xf32, #tpu.memory_space<vmem>>, vector<16x5xf32>
    %1 = arith.truncf %0 : vector<16x5xf32> to vector<16x5xbf16>
    %c0_1 = arith.constant 0 : index
    %c0_2 = arith.constant 0 : index
    %2 = vector.load %arg2[%c0_1, %c0_2] : memref<5x512xbf16, #tpu.memory_space<vmem>>, vector<5x512xbf16>
    %cst = arith.constant dense<0.000000e+00> : vector<16x512xf32>
    %3 = tpu.matmul %1, %2, %cst {dimension_numbers = #tpu.dot_dimension_numbers<[1], [0], [0], [1], [0, 0, 1, 1], [], []>} : vector<16x5xbf16>, vector<5x512xbf16>, vector<16x512xf32> -> vector<16x512xf32>
    %c0_3 = arith.constant 0 : index
    %c0_4 = arith.constant 0 : index
    %4 = vector.load %arg1[%c0_3, %c0_4] : memref<16x512xf32, #tpu.memory_space<vmem>>, vector<16x512xf32>
    %5 = arith.addf %3, %4 : vector<16x512xf32>
    %6 = arith.truncf %5 : vector<16x512xf32> to vector<16x512xbf16>
    %c0_5 = arith.constant 0 : index
    %c0_6 = arith.constant 0 : index
    %7 = vector.load %arg3[%c0_5, %c0_6] : memref<512x512xbf16, #tpu.memory_space<vmem>>, vector<512x512xbf16>
    %cst_7 = arith.constant dense<0.000000e+00> : vector<16x512xf32>
    %8 = tpu.matmul %6, %7, %cst_7 {dimension_numbers = #tpu.dot_dimension_numbers<[1], [0], [0], [1], [0, 0, 1, 1], [], []>} : vector<16x512xbf16>, vector<512x512xbf16>, vector<16x512xf32> -> vector<16x512xf32>
    %9 = vector.shape_cast %8 : vector<16x512xf32> to vector<2x8x512xf32>
    %cst_8 = arith.constant dense<0.000000e+00> : vector<2x512xf32>
    %10 = vector.multi_reduction <add>, %9, %cst_8 [1] : vector<2x8x512xf32> to vector<2x512xf32>
    %11 = vector.shape_cast %10 : vector<2x512xf32> to vector<2x1x512xf32>
    %cst_9 = arith.constant 8.000000e+00 : f32
    %12 = vector.broadcast %cst_9 : f32 to vector<2x1x512xf32>
    %13 = arith.divf %11, %12 : vector<2x1x512xf32>
    %14 = vector.shape_cast %13 : vector<2x1x512xf32> to vector<2x1x512xf32>
    %15 = vector.broadcast %14 : vector<2x1x512xf32> to vector<2x8x512xf32>
    %16 = vector.shape_cast %15 : vector<2x8x512xf32> to vector<16x512xf32>
    %17 = arith.truncf %16 : vector<16x512xf32> to vector<16x512xbf16>
    %c0_10 = arith.constant 0 : index
    %c0_11 = arith.constant 0 : index
    %18 = vector.load %arg4[%c0_10, %c0_11] : memref<512x512xbf16, #tpu.memory_space<vmem>>, vector<512x512xbf16>
    %cst_12 = arith.constant dense<0.000000e+00> : vector<16x512xf32>
    %19 = tpu.matmul %17, %18, %cst_12 {dimension_numbers = #tpu.dot_dimension_numbers<[1], [0], [0], [1], [0, 0, 1, 1], [], []>} : vector<16x512xbf16>, vector<512x512xbf16>, vector<16x512xf32> -> vector<16x512xf32>
    %20 = arith.addf %19, %5 : vector<16x512xf32>
    %cst_13 = arith.constant dense<0.000000e+00> : vector<16xf32>
    %21 = vector.multi_reduction <add>, %20, %cst_13 [1] : vector<16x512xf32> to vector<16xf32>
    %22 = vector.shape_cast %21 : vector<16xf32> to vector<16x1xf32>
    %cst_14 = arith.constant 5.120000e+02 : f32
    %23 = vector.broadcast %cst_14 : f32 to vector<16x1xf32>
    %24 = arith.divf %22, %23 : vector<16x1xf32>
    %25 = vector.broadcast %24 : vector<16x1xf32> to vector<16x512xf32>
    %26 = arith.subf %20, %25 : vector<16x512xf32>
    %27 = arith.mulf %26, %26 : vector<16x512xf32>
    %cst_15 = arith.constant dense<0.000000e+00> : vector<16xf32>
    %28 = vector.multi_reduction <add>, %27, %cst_15 [1] : vector<16x512xf32> to vector<16xf32>
    %29 = vector.shape_cast %28 : vector<16xf32> to vector<16x1xf32>
    %cst_16 = arith.constant 5.120000e+02 : f32
    %30 = vector.broadcast %cst_16 : f32 to vector<16x1xf32>
    %31 = arith.divf %29, %30 : vector<16x1xf32>
    %32 = vector.broadcast %24 : vector<16x1xf32> to vector<16x512xf32>
    %33 = arith.subf %20, %32 : vector<16x512xf32>
    %cst_17 = arith.constant 9.99999974E-6 : f32
    %34 = vector.broadcast %cst_17 : f32 to vector<16x1xf32>
    %35 = arith.addf %31, %34 : vector<16x1xf32>
    %36 = math.rsqrt %35 : vector<16x1xf32>
    %37 = vector.broadcast %36 : vector<16x1xf32> to vector<16x512xf32>
    %38 = arith.mulf %33, %37 : vector<16x512xf32>
    %39 = arith.truncf %38 : vector<16x512xf32> to vector<16x512xbf16>
    %c0_18 = arith.constant 0 : index
    %c0_19 = arith.constant 0 : index
    %40 = vector.load %arg5[%c0_18, %c0_19] : memref<512x2048xbf16, #tpu.memory_space<vmem>>, vector<512x2048xbf16>
    %cst_20 = arith.constant dense<0.000000e+00> : vector<16x2048xf32>
    %41 = tpu.matmul %39, %40, %cst_20 {dimension_numbers = #tpu.dot_dimension_numbers<[1], [0], [0], [1], [0, 0, 1, 1], [], []>} : vector<16x512xbf16>, vector<512x2048xbf16>, vector<16x2048xf32> -> vector<16x2048xf32>
    %cst_21 = arith.constant 0.000000e+00 : f32
    %42 = vector.broadcast %cst_21 : f32 to vector<16x2048xf32>
    %43 = arith.maximumf %41, %42 : vector<16x2048xf32>
    %44 = arith.truncf %43 : vector<16x2048xf32> to vector<16x2048xbf16>
    %c0_22 = arith.constant 0 : index
    %c0_23 = arith.constant 0 : index
    %45 = vector.load %arg6[%c0_22, %c0_23] : memref<2048x512xbf16, #tpu.memory_space<vmem>>, vector<2048x512xbf16>
    %cst_24 = arith.constant dense<0.000000e+00> : vector<16x512xf32>
    %46 = tpu.matmul %44, %45, %cst_24 {dimension_numbers = #tpu.dot_dimension_numbers<[1], [0], [0], [1], [0, 0, 1, 1], [], []>} : vector<16x2048xbf16>, vector<2048x512xbf16>, vector<16x512xf32> -> vector<16x512xf32>
    %47 = arith.addf %46, %38 : vector<16x512xf32>
    %cst_25 = arith.constant dense<0.000000e+00> : vector<16xf32>
    %48 = vector.multi_reduction <add>, %47, %cst_25 [1] : vector<16x512xf32> to vector<16xf32>
    %49 = vector.shape_cast %48 : vector<16xf32> to vector<16x1xf32>
    %cst_26 = arith.constant 5.120000e+02 : f32
    %50 = vector.broadcast %cst_26 : f32 to vector<16x1xf32>
    %51 = arith.divf %49, %50 : vector<16x1xf32>
    %52 = vector.broadcast %51 : vector<16x1xf32> to vector<16x512xf32>
    %53 = arith.subf %47, %52 : vector<16x512xf32>
    %54 = arith.mulf %53, %53 : vector<16x512xf32>
    %cst_27 = arith.constant dense<0.000000e+00> : vector<16xf32>
    %55 = vector.multi_reduction <add>, %54, %cst_27 [1] : vector<16x512xf32> to vector<16xf32>
    %56 = vector.shape_cast %55 : vector<16xf32> to vector<16x1xf32>
    %cst_28 = arith.constant 5.120000e+02 : f32
    %57 = vector.broadcast %cst_28 : f32 to vector<16x1xf32>
    %58 = arith.divf %56, %57 : vector<16x1xf32>
    %59 = vector.broadcast %51 : vector<16x1xf32> to vector<16x512xf32>
    %60 = arith.subf %47, %59 : vector<16x512xf32>
    %cst_29 = arith.constant 9.99999974E-6 : f32
    %61 = vector.broadcast %cst_29 : f32 to vector<16x1xf32>
    %62 = arith.addf %58, %61 : vector<16x1xf32>
    %63 = math.rsqrt %62 : vector<16x1xf32>
    %64 = vector.broadcast %63 : vector<16x1xf32> to vector<16x512xf32>
    %65 = arith.mulf %60, %64 : vector<16x512xf32>
    %c0_30 = arith.constant 0 : index
    %c0_31 = arith.constant 0 : index
    %66 = vector.load %arg7[%c0_30, %c0_31] : memref<1x512xf32, #tpu.memory_space<vmem>>, vector<1x512xf32>
    %67 = vector.broadcast %66 : vector<1x512xf32> to vector<16x512xf32>
    %68 = arith.mulf %65, %67 : vector<16x512xf32>
    %cst_32 = arith.constant dense<0.000000e+00> : vector<16xf32>
    %69 = vector.multi_reduction <add>, %68, %cst_32 [1] : vector<16x512xf32> to vector<16xf32>
    %70 = vector.shape_cast %69 : vector<16xf32> to vector<16x1xf32>
    %c0_33 = arith.constant 0 : index
    %c0_34 = arith.constant 0 : index
    %71 = vector.load %arg8[%c0_33, %c0_34] : memref<16x1xf32, #tpu.memory_space<vmem>>, vector<16x1xf32>
    tpu.vector_store %arg8[%c0_33, %c0_34], %70 {strides = array<i32>} : memref<16x1xf32, #tpu.memory_space<vmem>>, vector<16x1xf32>,
    return
  }
}

</mosaic_0001>

<llo_original>
// kernel: transformer_forward.1
$region0: #{transformer_forward.1}
  #allocation0 [shape = 'u32[]', space=smem, size = 0x4, offset = 0x4, fixed_abs, tag = 'smem constant byte address 0x4 - core index']
  #allocation1 [shape = 'u32[144,128]{1,0:T(1,128)}', space=vmem, size = 0x12000, scoped, tag = 'internal scratch']
  %s0 = inlined_call_operand.vmem [shape: f32[16,5], index: 0, kind: input, shape index: {}]
  %s1 = inlined_call_operand.vmem [shape: f32[16,512], index: 1, kind: input, shape index: {}]
  %s2 = inlined_call_operand.hbm [shape: bf16[5,512], index: 2, kind: input, shape index: {}]
  %s3 = inlined_call_operand.hbm [shape: bf16[512,512], index: 3, kind: input, shape index: {}]
  %s4 = inlined_call_operand.hbm [shape: bf16[512,512], index: 4, kind: input, shape index: {}]
  %s5 = inlined_call_operand.hbm [shape: bf16[512,2048], index: 5, kind: input, shape index: {}]
  %s6 = inlined_call_operand.hbm [shape: bf16[2048,512], index: 6, kind: input, shape index: {}]
  %s7 = inlined_call_operand.hbm [shape: f32[1,512], index: 7, kind: input, shape index: {}]
  %s8 = inlined_call_operand.vmem [shape: f32[16,1], index: 8, kind: output, shape index: {}]
  %s9 = sld [smem:[#allocation0]]
  $region66: #{transformer_forward.1} parent=0
    _
  %s11 = ssub.s32 1, %s9
  %s12 = scalar_select 0, %s11, %s9
  $region1: #{transformer_forward.1} parent=0
    #allocation2 [shape = 'u8[8192]{0}', space=vmem, size = 0x2000, scoped, tag = 'input window, operand 2, single buffered']
    #allocation3 [shape = 's32[1]{0}', space=sflag, size = 0x4, scoped, tag = 'scoped memory for transformer_forward.1']
    #allocation4 [shape = 'u8[524288]{0}', space=vmem, size = 0x80000, scoped, tag = 'input window, operand 3, single buffered']
    #allocation5 [shape = 's32[1]{0}', space=sflag, size = 0x4, scoped, tag = 'scoped memory for transformer_forward.1']
    #allocation6 [shape = 'u8[524288]{0}', space=vmem, size = 0x80000, scoped, tag = 'input window, operand 4, single buffered']
    #allocation7 [shape = 'u8[2097152]{0}', space=vmem, size = 0x200000, scoped, tag = 'input window, operand 5, single buffered']
    #allocation8 [shape = 's32[1]{0}', space=sflag, size = 0x4, scoped, tag = 'scoped memory for transformer_forward.1']
    #allocation9 [shape = 'u8[2097152]{0}', space=vmem, size = 0x200000, scoped, tag = 'input window, operand 6, single buffered']
    #allocation10 [shape = 'u8[2048]{0}', space=vmem, size = 0x800, scoped, tag = 'input window, operand 7, single buffered']
    #allocation11 [shape = 's32[1]{0}', space=sflag, size = 0x4, scoped, tag = 'scoped memory for transformer_forward.1']
    %13 = vsyncpa [#allocation3], 0
    %14 = vsyncpa [#allocation5], 0
    %15 = vsyncpa [#allocation8], 0
    %16 = vsyncpa [#allocation11], 0
    // Predicated region
    $region2: #{transformer_forward.1} parent=1 // pred_check
      _
    $region3: #{transformer_forward.1} parent=1 // pred_check_branch
      %18 = sbr.rel (0) target = $region5
    $region4: #{transformer_forward.1} parent=1 // pred_region
      _
    $region5: #{transformer_forward.1} parent=1 // pred_fallthru
      _
    // Predicated region
    $region6: #{transformer_forward.1} parent=1 // pred_check
      _
    $region7: #{transformer_forward.1} parent=1 // pred_check_branch
      %20 = sbr.rel (0) target = $region9
    $region8: #{transformer_forward.1} parent=1 // pred_region
      _
    $region9: #{transformer_forward.1} parent=1 // pred_fallthru
      _
    // Predicated region
    $region10: #{transformer_forward.1} parent=1 // pred_check
      _
    $region11: #{transformer_forward.1} parent=1 // pred_check_branch
      %22 = sbr.rel (0) target = $region13
    $region12: #{transformer_forward.1} parent=1 // pred_region
      %s24 = ssub.s32 256, 256
      %25 = vsyncadd [#allocation3], %s24
      %s27 = sshll.u32 [#allocation2], 4
      %s28 = int_to_ptr.vmem [resolvable:$true] %s27
      %30 = dma.hbm_to_vmem [thread:$0]  %s2, 256, %s28, [#allocation3]
    $region13: #{transformer_forward.1} parent=1 // pred_fallthru
      _
    // Predicated region
    $region14: #{transformer_forward.1} parent=1 // pred_check
      _
    $region15: #{transformer_forward.1} parent=1 // pred_check_branch
      %32 = sbr.rel (0) target = $region17
    $region16: #{transformer_forward.1} parent=1 // pred_region
      %s34 = ssub.s32 16384, 16384
      %35 = vsyncadd [#allocation5], %s34
      %s36 = sshll.u32 [#allocation4], 4
      %s37 = int_to_ptr.vmem [resolvable:$true] %s36
      %42 = dma.hbm_to_vmem [thread:$0]  %s3, 16384, %s37, [#allocation5], 256, 256, 16
    $region17: #{transformer_forward.1} parent=1 // pred_fallthru
      _
    // Predicated region
    $region18: #{transformer_forward.1} parent=1 // pred_check
      _
    $region19: #{transformer_forward.1} parent=1 // pred_check_branch
      %44 = sbr.rel (0) target = $region21
    $region20: #{transformer_forward.1} parent=1 // pred_region
      %s46 = ssub.s32 16384, 16384
      %47 = vsyncadd [#allocation5], %s46
      %s48 = sshll.u32 [#allocation6], 4
      %s49 = int_to_ptr.vmem [resolvable:$true] %s48
      %54 = dma.hbm_to_vmem [thread:$0]  %s4, 16384, %s49, [#allocation5], 256, 256, 16
    $region21: #{transformer_forward.1} parent=1 // pred_fallthru
      _
    // Predicated region
    $region22: #{transformer_forward.1} parent=1 // pred_check
      _
    $region23: #{transformer_forward.1} parent=1 // pred_check_branch
      %56 = sbr.rel (0) target = $region25
    $region24: #{transformer_forward.1} parent=1 // pred_region
      %s58 = ssub.s32 65536, 65536
      %59 = vsyncadd [#allocation8], %s58
      %s60 = sshll.u32 [#allocation7], 4
      %s61 = int_to_ptr.vmem [resolvable:$true] %s60
      %66 = dma.hbm_to_vmem [thread:$0]  %s5, 65536, %s61, [#allocation8], 1024, 1024, 64
    $region25: #{transformer_forward.1} parent=1 // pred_fallthru
      _
    // Predicated region
    $region26: #{transformer_forward.1} parent=1 // pred_check
      _
    $region27: #{transformer_forward.1} parent=1 // pred_check_branch
      %68 = sbr.rel (0) target = $region29
    $region28: #{transformer_forward.1} parent=1 // pred_region
      %s70 = ssub.s32 65536, 65536
      %71 = vsyncadd [#allocation8], %s70
      %s72 = sshll.u32 [#allocation9], 4
      %s73 = int_to_ptr.vmem [resolvable:$true] %s72
      %78 = dma.hbm_to_vmem [thread:$0]  %s6, 65536, %s73, [#allocation8], 256, 256, 16
    $region29: #{transformer_forward.1} parent=1 // pred_fallthru
      _
    // Predicated region
    $region30: #{transformer_forward.1} parent=1 // pred_check
      _
    $region31: #{transformer_forward.1} parent=1 // pred_check_branch
      %80 = sbr.rel (0) target = $region33
    $region32: #{transformer_forward.1} parent=1 // pred_region
      %s82 = ssub.s32 64, 64
      %83 = vsyncadd [#allocation11], %s82
      %s85 = sshll.u32 [#allocation10], 4
      %s86 = int_to_ptr.vmem [resolvable:$true] %s85
      %88 = dma.hbm_to_vmem [thread:$0]  %s7, 64, %s86, [#allocation11]
    $region33: #{transformer_forward.1} parent=1 // pred_fallthru
      _
    // Predicated region
    $region34: #{transformer_forward.1} parent=1 // pred_check
      _
    $region35: #{transformer_forward.1} parent=1 // pred_check_branch
      %90 = sbr.rel (0) target = $region37
    $region36: #{transformer_forward.1} parent=1 // pred_region
      %91 = dma.done [#allocation3], 256
    $region37: #{transformer_forward.1} parent=1 // pred_fallthru
      _
    // Predicated region
    $region38: #{transformer_forward.1} parent=1 // pred_check
      _
    $region39: #{transformer_forward.1} parent=1 // pred_check_branch
      %93 = sbr.rel (0) target = $region41
    $region40: #{transformer_forward.1} parent=1 // pred_region
      %94 = dma.done [#allocation5], 16384
    $region41: #{transformer_forward.1} parent=1 // pred_fallthru
      _
    // Predicated region
    $region42: #{transformer_forward.1} parent=1 // pred_check
      _
    $region43: #{transformer_forward.1} parent=1 // pred_check_branch
      %96 = sbr.rel (0) target = $region45
    $region44: #{transformer_forward.1} parent=1 // pred_region
      %97 = dma.done [#allocation5], 16384
    $region45: #{transformer_forward.1} parent=1 // pred_fallthru
      _
    // Predicated region
    $region46: #{transformer_forward.1} parent=1 // pred_check
      _
    $region47: #{transformer_forward.1} parent=1 // pred_check_branch
      %99 = sbr.rel (0) target = $region49
    $region48: #{transformer_forward.1} parent=1 // pred_region
      %100 = dma.done [#allocation8], 65536
    $region49: #{transformer_forward.1} parent=1 // pred_fallthru
      _
    // Predicated region
    $region50: #{transformer_forward.1} parent=1 // pred_check
      _
    $region51: #{transformer_forward.1} parent=1 // pred_check_branch
      %102 = sbr.rel (0) target = $region53
    $region52: #{transformer_forward.1} parent=1 // pred_region
      %103 = dma.done [#allocation8], 65536
    $region53: #{transformer_forward.1} parent=1 // pred_fallthru
      _
    // Predicated region
    $region54: #{transformer_forward.1} parent=1 // pred_check
      _
    $region55: #{transformer_forward.1} parent=1 // pred_check_branch
      %105 = sbr.rel (0) target = $region57
    $region56: #{transformer_forward.1} parent=1 // pred_region
      %106 = dma.done [#allocation11], 64
    $region57: #{transformer_forward.1} parent=1 // pred_fallthru
      _
    %v108 = vld [vmem:[%s0] sm:$0xff]
    %v109 = vld [vmem:[%s0 + $0x8] sm:$0xff]
    %v110 = vpack.c.bf16 %v109, %v108
    %v111 = vld [vmem:[#allocation2] sm:$0x77]
    %v112 = vld [vmem:[#allocation2 + $0x8] sm:$0x77]
    %v113 = vld [vmem:[%s1] sm:$0xff]
    %v114 = vld [vmem:[%s1 + $0x8] sm:$0xff]
    %v115 = vld [vmem:[%s1 + $0x10] sm:$0xff]
    %v116 = vld [vmem:[%s1 + $0x18] sm:$0xff]
    %v117 = vld [vmem:[%s1 + $0x20] sm:$0xff]
    %v118 = vld [vmem:[%s1 + $0x28] sm:$0xff]
    %v119 = vld [vmem:[%s1 + $0x30] sm:$0xff]
    %v120 = vld [vmem:[%s1 + $0x38] sm:$0xff]
    %v123 = vunpack.c.l.b16 %v111
    %v124 = vunpack.c.h.b16 %v111
    %v125 = vunpack.c.l.b16 %v112
    %v126 = vunpack.c.h.b16 %v112
    %v127 = vpack.c.b16 %v123, %v123
    %v128 = vpack.c.b16 %v124, %v124
    %v129 = vpack.c.b16 %v125, %v125
    %v130 = vpack.c.b16 %v126, %v126
    %vm131 = vcmask 39936
    %v133 = vsel %vm131, %v110, 0
    %vm135 = vcmask 1041408
    %vm136 = vcmask 1042432
    %v137 = vsel %vm135, 4294967295, 65535
    %v138 = vsel %vm136, %v137, 0
    %v140 = vand.u32 %v127, %v138
    %v143 = vand.u32 %v128, %v138
    %v146 = vand.u32 %v129, %v138
    %v149 = vand.u32 %v130, %v138
    %151 = vmatprep.subr.bf16.mxu0 %v143
    %152 = vmatpush1.bf16.msra.mxu0 %v140
    %153 = vmatprep.subr.bf16.mxu0 0
    %154 = vmatpush1.bf16.msra.mxu0 0
    %155 = vmatprep.subr.bf16.mxu0 0
    %156 = vmatpush1.bf16.msra.mxu0 0
    %157 = vmatprep.subr.bf16.mxu0 0
    %158 = vmatpush1.bf16.msra.mxu0 0
    %159 = vmatprep.subr.bf16.mxu0 0
    %160 = vmatpush1.bf16.msra.mxu0 0
    %161 = vmatprep.subr.bf16.mxu0 0
    %162 = vmatpush1.bf16.msra.mxu0 0
    %163 = vmatprep.subr.bf16.mxu0 0
    %164 = vmatpush1.bf16.msra.mxu0 0
    %165 = vmatprep.subr.bf16.mxu0 0
    %166 = vmatpush1.bf16.msra.mxu0 0
    %167 = vmatprep.subr.bf16.mxu0 0
    %168 = vmatpush1.bf16.msra.mxu0 0
    %169 = vmatprep.subr.bf16.mxu0 0
    %170 = vmatpush1.bf16.msra.mxu0 0
    %171 = vmatprep.subr.bf16.mxu0 0
    %172 = vmatpush1.bf16.msra.mxu0 0
    %173 = vmatprep.subr.bf16.mxu0 0
    %174 = vmatpush1.bf16.msra.mxu0 0
    %175 = vmatprep.subr.bf16.mxu0 0
    %176 = vmatpush1.bf16.msra.mxu0 0
    %177 = vmatprep.subr.bf16.mxu0 0
    %178 = vmatpush1.bf16.msra.mxu0 0
    %179 = vmatprep.subr.bf16.mxu0 0
    %180 = vmatpush1.bf16.msra.mxu0 0
    %181 = vmatprep.subr.bf16.mxu0 0
    %182 = vmatpush1.bf16.msra.mxu0 0
    %183 = vmatprep.mubr.bf16.mxu0 0
    %184 = vmatmul.mubr.bf16.gmra.mrb[0].mxu0 %v133
    %v185 = vpop.f32.mrb[0].mxu0
    %v186 = vadd.f32 %v113, %v185
    %v187 = vpop.f32.mrb[0].mxu0
    %v188 = vadd.f32 %v114, %v187
    %v189 = vpop.f32.mrb[0].mxu0
    %v190 = vadd.f32 %v117, %v189
    %v191 = vpop.f32.mrb[0].mxu0
    %v192 = vadd.f32 %v118, %v191
    %193 = vdwg.mxu0
    %194 = vmatprep.subr.bf16.mxu0 %v149
    %195 = vmatpush1.bf16.msra.mxu0 %v146
    %196 = vmatprep.subr.bf16.mxu0 0
    %197 = vmatpush1.bf16.msra.mxu0 0
    %198 = vmatprep.subr.bf16.mxu0 0
    %199 = vmatpush1.bf16.msra.mxu0 0
    %200 = vmatprep.subr.bf16.mxu0 0
    %201 = vmatpush1.bf16.msra.mxu0 0
    %202 = vmatprep.subr.bf16.mxu0 0
    %203 = vmatpush1.bf16.msra.mxu0 0
    %204 = vmatprep.subr.bf16.mxu0 0
    %205 = vmatpush1.bf16.msra.mxu0 0
    %206 = vmatprep.subr.bf16.mxu0 0
    %207 = vmatpush1.bf16.msra.mxu0 0
    %208 = vmatprep.subr.bf16.mxu0 0
    %209 = vmatpush1.bf16.msra.mxu0 0
    %210 = vmatprep.subr.bf16.mxu0 0
    %211 = vmatpush1.bf16.msra.mxu0 0
    %212 = vmatprep.subr.bf16.mxu0 0
    %213 = vmatpush1.bf16.msra.mxu0 0
    %214 = vmatprep.subr.bf16.mxu0 0
    %215 = vmatpush1.bf16.msra.mxu0 0
    %216 = vmatprep.subr.bf16.mxu0 0
    %217 = vmatpush1.bf16.msra.mxu0 0
    %218 = vmatprep.subr.bf16.mxu0 0
    %219 = vmatpush1.bf16.msra.mxu0 0
    %220 = vmatprep.subr.bf16.mxu0 0
    %221 = vmatpush1.bf16.msra.mxu0 0
    %222 = vmatprep.subr.bf16.mxu0 0
    %223 = vmatpush1.bf16.msra.mxu0 0
    %224 = vmatprep.subr.bf16.mxu0 0
    %225 = vmatpush1.bf16.msra.mxu0 0
    %226 = vmatprep.mubr.bf16.mxu0 0
    %227 = vmatmul.mubr.bf16.gmra.mrb[0].mxu0 %v133
    %v228 = vpop.f32.mrb[0].mxu0
    %v229 = vadd.f32 %v115, %v228
    %v230 = vpop.f32.mrb[0].mxu0
    %v231 = vadd.f32 %v116, %v230
    %v232 = vpop.f32.mrb[0].mxu0
    %v233 = vadd.f32 %v119, %v232
    %v234 = vpop.f32.mrb[0].mxu0
    %v235 = vadd.f32 %v120, %v234
    %236 = vdwg.mxu0
    %v237 = vpack.c.bf16 %v190, %v186
    %v238 = vpack.c.bf16 %v192, %v188
    %v239 = vpack.c.bf16 %v233, %v229
    %v240 = vpack.c.bf16 %v235, %v231
    %v241 = vld [vmem:[#allocation4] sm:$0xff]
    %v242 = vld [vmem:[#allocation4 + $0x8] sm:$0xff]
    %v243 = vld [vmem:[#allocation4 + $0x10] sm:$0xff]
    %v244 = vld [vmem:[#allocation4 + $0x18] sm:$0xff]
    %v245 = vld [vmem:[#allocation4 + $0x20] sm:$0xff]
    %v246 = vld [vmem:[#allocation4 + $0x28] sm:$0xff]
    %v247 = vld [vmem:[#allocation4 + $0x30] sm:$0xff]
    %v248 = vld [vmem:[#allocation4 + $0x38] sm:$0xff]
    %v249 = vld [vmem:[#allocation4 + $0x40] sm:$0xff]
    %v250 = vld [vmem:[#allocation4 + $0x48] sm:$0xff]
    %v251 = vld [vmem:[#allocation4 + $0x50] sm:$0xff]
    %v252 = vld [vmem:[#allocation4 + $0x58] sm:$0xff]
    %v253 = vld [vmem:[#allocation4 + $0x60] sm:$0xff]
    %v254 = vld [vmem:[#allocation4 + $0x68] sm:$0xff]
    %v255 = vld [vmem:[#allocation4 + $0x70] sm:$0xff]
    %v256 = vld [vmem:[#allocation4 + $0x78] sm:$0xff]
    %v257 = vld [vmem:[#allocation4 + $0x80] sm:$0xff]
    %v258 = vld [vmem:[#allocation4 + $0x88] sm:$0xff]
    %v259 = vld [vmem:[#allocation4 + $0x90] sm:$0xff]
    %v260 = vld [vmem:[#allocation4 + $0x98] sm:$0xff]
    %v261 = vld [vmem:[#allocation4 + $0xa0] sm:$0xff]
    %v262 = vld [vmem:[#allocation4 + $0xa8] sm:$0xff]
    %v263 = vld [vmem:[#allocation4 + $0xb0] sm:$0xff]
    %v264 = vld [vmem:[#allocation4 + $0xb8] sm:$0xff]
    %v265 = vld [vmem:[#allocation4 + $0xc0] sm:$0xff]
    %v266 = vld [vmem:[#allocation4 + $0xc8] sm:$0xff]
    %v267 = vld [vmem:[#allocation4 + $0xd0] sm:$0xff]
    %v268 = vld [vmem:[#allocation4 + $0xd8] sm:$0xff]
    %v269 = vld [vmem:[#allocation4 + $0xe0] sm:$0xff]
    %v270 = vld [vmem:[#allocation4 + $0xe8] sm:$0xff]
    %v271 = vld [vmem:[#allocation4 + $0xf0] sm:$0xff]
    %v272 = vld [vmem:[#allocation4 + $0xf8] sm:$0xff]
    %v273 = vld [vmem:[#allocation4 + $0x100] sm:$0xff]
    %v274 = vld [vmem:[#allocation4 + $0x108] sm:$0xff]
    %v275 = vld [vmem:[#allocation4 + $0x110] sm:$0xff]
    %v276 = vld [vmem:[#allocation4 + $0x118] sm:$0xff]
    %v277 = vld [vmem:[#allocation4 + $0x120] sm:$0xff]
    %v278 = vld [vmem:[#allocation4 + $0x128] sm:$0xff]
    %v279 = vld [vmem:[#allocation4 + $0x130] sm:$0xff]
    %v280 = vld [vmem:[#allocation4 + $0x138] sm:$0xff]
    %v281 = vld [vmem:[#allocation4 + $0x140] sm:$0xff]
    %v282 = vld [vmem:[#allocation4 + $0x148] sm:$0xff]
    %v283 = vld [vmem:[#allocation4 + $0x150] sm:$0xff]
    %v284 = vld [vmem:[#allocation4 + $0x158] sm:$0xff]
    %v285 = vld [vmem:[#allocation4 + $0x160] sm:$0xff]
    %v286 = vld [vmem:[#allocation4 + $0x168] sm:$0xff]
    %v287 = vld [vmem:[#allocation4 + $0x170] sm:$0xff]
    %v288 = vld [vmem:[#allocation4 + $0x178] sm:$0xff]
    %v289 = vld [vmem:[#allocation4 + $0x180] sm:$0xff]
    %v290 = vld [vmem:[#allocation4 + $0x188] sm:$0xff]
    %v291 = vld [vmem:[#allocation4 + $0x190] sm:$0xff]
    %v292 = vld [vmem:[#allocation4 + $0x198] sm:$0xff]
    %v293 = vld [vmem:[#allocation4 + $0x1a0] sm:$0xff]
    %v294 = vld [vmem:[#allocation4 + $0x1a8] sm:$0xff]
    %v295 = vld [vmem:[#allocation4 + $0x1b0] sm:$0xff]
    %v296 = vld [vmem:[#allocation4 + $0x1b8] sm:$0xff]
    %v297 = vld [vmem:[#allocation4 + $0x1c0] sm:$0xff]
    %v298 = vld [vmem:[#allocation4 + $0x1c8] sm:$0xff]
    %v299 = vld [vmem:[#allocation4 + $0x1d0] sm:$0xff]
    %v300 = vld [vmem:[#allocation4 + $0x1d8] sm:$0xff]
    %v301 = vld [vmem:[#allocation4 + $0x1e0] sm:$0xff]
    %v302 = vld [vmem:[#allocation4 + $0x1e8] sm:$0xff]
    %v303 = vld [vmem:[#allocation4 + $0x1f0] sm:$0xff]
    %v304 = vld [vmem:[#allocation4 + $0x1f8] sm:$0xff]
    %v305 = vld [vmem:[#allocation4 + $0x200] sm:$0xff]
    %v306 = vld [vmem:[#allocation4 + $0x208] sm:$0xff]
    %v307 = vld [vmem:[#allocation4 + $0x210] sm:$0xff]
    %v308 = vld [vmem:[#allocation4 + $0x218] sm:$0xff]
    %v309 = vld [vmem:[#allocation4 + $0x220] sm:$0xff]
    %v310 = vld [vmem:[#allocation4 + $0x228] sm:$0xff]
    %v311 = vld [vmem:[#allocation4 + $0x230] sm:$0xff]
    %v312 = vld [vmem:[#allocation4 + $0x238] sm:$0xff]
    %v313 = vld [vmem:[#allocation4 + $0x240] sm:$0xff]
    %v314 = vld [vmem:[#allocation4 + $0x248] sm:$0xff]
    %v315 = vld [vmem:[#allocation4 + $0x250] sm:$0xff]
    %v316 = vld [vmem:[#allocation4 + $0x258] sm:$0xff]
    %v317 = vld [vmem:[#allocation4 + $0x260] sm:$0xff]
    %v318 = vld [vmem:[#allocation4 + $0x268] sm:$0xff]
    %v319 = vld [vmem:[#allocation4 + $0x270] sm:$0xff]
    %v320 = vld [vmem:[#allocation4 + $0x278] sm:$0xff]
    %v321 = vld [vmem:[#allocation4 + $0x280] sm:$0xff]
    %v322 = vld [vmem:[#allocation4 + $0x288] sm:$0xff]
    %v323 = vld [vmem:[#allocation4 + $0x290] sm:$0xff]
    %v324 = vld [vmem:[#allocation4 + $0x298] sm:$0xff]
    %v325 = vld [vmem:[#allocation4 + $0x2a0] sm:$0xff]
    %v326 = vld [vmem:[#allocation4 + $0x2a8] sm:$0xff]
    %v327 = vld [vmem:[#allocation4 + $0x2b0] sm:$0xff]
    %v328 = vld [vmem:[#allocation4 + $0x2b8] sm:$0xff]
    %v329 = vld [vmem:[#allocation4 + $0x2c0] sm:$0xff]
    %v330 = vld [vmem:[#allocation4 + $0x2c8] sm:$0xff]
    %v331 = vld [vmem:[#allocation4 + $0x2d0] sm:$0xff]
    %v332 = vld [vmem:[#allocation4 + $0x2d8] sm:$0xff]
    %v333 = vld [vmem:[#allocation4 + $0x2e0] sm:$0xff]
    %v334 = vld [vmem:[#allocation4 + $0x2e8] sm:$0xff]
    %v335 = vld [vmem:[#allocation4 + $0x2f0] sm:$0xff]
    %v336 = vld [vmem:[#allocation4 + $0x2f8] sm:$0xff]
    %v337 = vld [vmem:[#allocation4 + $0x300] sm:$0xff]
    %v338 = vld [vmem:[#allocation4 + $0x308] sm:$0xff]
    %v339 = vld [vmem:[#allocation4 + $0x310] sm:$0xff]
    %v340 = vld [vmem:[#allocation4 + $0x318] sm:$0xff]
    %v341 = vld [vmem:[#allocation4 + $0x320] sm:$0xff]
    %v342 = vld [vmem:[#allocation4 + $0x328] sm:$0xff]
    %v343 = vld [vmem:[#allocation4 + $0x330] sm:$0xff]
    %v344 = vld [vmem:[#allocation4 + $0x338] sm:$0xff]
    %v345 = vld [vmem:[#allocation4 + $0x340] sm:$0xff]
    %v346 = vld [vmem:[#allocation4 + $0x348] sm:$0xff]
    %v347 = vld [vmem:[#allocation4 + $0x350] sm:$0xff]
    %v348 = vld [vmem:[#allocation4 + $0x358] sm:$0xff]
    %v349 = vld [vmem:[#allocation4 + $0x360] sm:$0xff]
    %v350 = vld [vmem:[#allocation4 + $0x368] sm:$0xff]
    %v351 = vld [vmem:[#allocation4 + $0x370] sm:$0xff]
    %v352 = vld [vmem:[#allocation4 + $0x378] sm:$0xff]
    %v353 = vld [vmem:[#allocation4 + $0x380] sm:$0xff]
    %v354 = vld [vmem:[#allocation4 + $0x388] sm:$0xff]
    %v355 = vld [vmem:[#allocation4 + $0x390] sm:$0xff]
    %v356 = vld [vmem:[#allocation4 + $0x398] sm:$0xff]
    %v357 = vld [vmem:[#allocation4 + $0x3a0] sm:$0xff]
    %v358 = vld [vmem:[#allocation4 + $0x3a8] sm:$0xff]
    %v359 = vld [vmem:[#allocation4 + $0x3b0] sm:$0xff]
    %v360 = vld [vmem:[#allocation4 + $0x3b8] sm:$0xff]
    %v361 = vld [vmem:[#allocation4 + $0x3c0] sm:$0xff]
    %v362 = vld [vmem:[#allocation4 + $0x3c8] sm:$0xff]
    %v363 = vld [vmem:[#allocation4 + $0x3d0] sm:$0xff]
    %v364 = vld [vmem:[#allocation4 + $0x3d8] sm:$0xff]
    %v365 = vld [vmem:[#allocation4 + $0x3e0] sm:$0xff]
    %v366 = vld [vmem:[#allocation4 + $0x3e8] sm:$0xff]
    %v367 = vld [vmem:[#allocation4 + $0x3f0] sm:$0xff]
    %v368 = vld [vmem:[#allocation4 + $0x3f8] sm:$0xff]
    %v497 = vunpack.c.l.b16 %v241
    %v498 = vunpack.c.h.b16 %v241
    %v499 = vunpack.c.l.b16 %v242
    %v500 = vunpack.c.h.b16 %v242
    %v501 = vunpack.c.l.b16 %v243
    %v502 = vunpack.c.h.b16 %v243
    %v503 = vunpack.c.l.b16 %v244
    %v504 = vunpack.c.h.b16 %v244
    %v505 = vunpack.c.l.b16 %v245
    %v506 = vunpack.c.h.b16 %v245
    %v507 = vunpack.c.l.b16 %v246
    %v508 = vunpack.c.h.b16 %v246
    %v509 = vunpack.c.l.b16 %v247
    %v510 = vunpack.c.h.b16 %v247
    %v511 = vunpack.c.l.b16 %v248
    %v512 = vunpack.c.h.b16 %v248
    %v513 = vunpack.c.l.b16 %v249
    %v514 = vunpack.c.h.b16 %v249
    %v515 = vunpack.c.l.b16 %v250
    %v516 = vunpack.c.h.b16 %v250
    %v517 = vunpack.c.l.b16 %v251
    %v518 = vunpack.c.h.b16 %v251
    %v519 = vunpack.c.l.b16 %v252
    %v520 = vunpack.c.h.b16 %v252
    %v521 = vunpack.c.l.b16 %v253
    %v522 = vunpack.c.h.b16 %v253
    %v523 = vunpack.c.l.b16 %v254
    %v524 = vunpack.c.h.b16 %v254
    %v525 = vunpack.c.l.b16 %v255
    %v526 = vunpack.c.h.b16 %v255
    %v527 = vunpack.c.l.b16 %v256
    %v528 = vunpack.c.h.b16 %v256
    %v529 = vunpack.c.l.b16 %v257
    %v530 = vunpack.c.h.b16 %v257
    %v531 = vunpack.c.l.b16 %v258
    %v532 = vunpack.c.h.b16 %v258
    %v533 = vunpack.c.l.b16 %v259
    %v534 = vunpack.c.h.b16 %v259
    %v535 = vunpack.c.l.b16 %v260
    %v536 = vunpack.c.h.b16 %v260
    %v537 = vunpack.c.l.b16 %v261
    %v538 = vunpack.c.h.b16 %v261
    %v539 = vunpack.c.l.b16 %v262
    %v540 = vunpack.c.h.b16 %v262
    %v541 = vunpack.c.l.b16 %v263
    %v542 = vunpack.c.h.b16 %v263
    %v543 = vunpack.c.l.b16 %v264
    %v544 = vunpack.c.h.b16 %v264
    %v545 = vunpack.c.l.b16 %v265
    %v546 = vunpack.c.h.b16 %v265
    %v547 = vunpack.c.l.b16 %v266
    %v548 = vunpack.c.h.b16 %v266
    %v549 = vunpack.c.l.b16 %v267
    %v550 = vunpack.c.h.b16 %v267
    %v551 = vunpack.c.l.b16 %v268
    %v552 = vunpack.c.h.b16 %v268
    %v553 = vunpack.c.l.b16 %v269
    %v554 = vunpack.c.h.b16 %v269
    %v555 = vunpack.c.l.b16 %v270
    %v556 = vunpack.c.h.b16 %v270
    %v557 = vunpack.c.l.b16 %v271
    %v558 = vunpack.c.h.b16 %v271
    %v559 = vunpack.c.l.b16 %v272
    %v560 = vunpack.c.h.b16 %v272
    %v561 = vunpack.c.l.b16 %v273
    %v562 = vunpack.c.h.b16 %v273
    %v563 = vunpack.c.l.b16 %v274
    %v564 = vunpack.c.h.b16 %v274
    %v565 = vunpack.c.l.b16 %v275
    %v566 = vunpack.c.h.b16 %v275
    %v567 = vunpack.c.l.b16 %v276
    %v568 = vunpack.c.h.b16 %v276
    %v569 = vunpack.c.l.b16 %v277
    %v570 = vunpack.c.h.b16 %v277
    %v571 = vunpack.c.l.b16 %v278
    %v572 = vunpack.c.h.b16 %v278
    %v573 = vunpack.c.l.b16 %v279
    %v574 = vunpack.c.h.b16 %v279
    %v575 = vunpack.c.l.b16 %v280
    %v576 = vunpack.c.h.b16 %v280
    %v577 = vunpack.c.l.b16 %v281
    %v578 = vunpack.c.h.b16 %v281
    %v579 = vunpack.c.l.b16 %v282
    %v580 = vunpack.c.h.b16 %v282
    %v581 = vunpack.c.l.b16 %v283
    %v582 = vunpack.c.h.b16 %v283
    %v583 = vunpack.c.l.b16 %v284
    %v584 = vunpack.c.h.b16 %v284
    %v585 = vunpack.c.l.b16 %v285
    %v586 = vunpack.c.h.b16 %v285
    %v587 = vunpack.c.l.b16 %v286
    %v588 = vunpack.c.h.b16 %v286
    %v589 = vunpack.c.l.b16 %v287
    %v590 = vunpack.c.h.b16 %v287
    %v591 = vunpack.c.l.b16 %v288
    %v592 = vunpack.c.h.b16 %v288
    %v593 = vunpack.c.l.b16 %v289
    %v594 = vunpack.c.h.b16 %v289
    %v595 = vunpack.c.l.b16 %v290
    %v596 = vunpack.c.h.b16 %v290
    %v597 = vunpack.c.l.b16 %v291
    %v598 = vunpack.c.h.b16 %v291
    %v599 = vunpack.c.l.b16 %v292
    %v600 = vunpack.c.h.b16 %v292
    %v601 = vunpack.c.l.b16 %v293
    %v602 = vunpack.c.h.b16 %v293
    %v603 = vunpack.c.l.b16 %v294
    %v604 = vunpack.c.h.b16 %v294
    %v605 = vunpack.c.l.b16 %v295
    %v606 = vunpack.c.h.b16 %v295
    %v607 = vunpack.c.l.b16 %v296
    %v608 = vunpack.c.h.b16 %v296
    %v609 = vunpack.c.l.b16 %v297
    %v610 = vunpack.c.h.b16 %v297
    %v611 = vunpack.c.l.b16 %v298
    %v612 = vunpack.c.h.b16 %v298
    %v613 = vunpack.c.l.b16 %v299
    %v614 = vunpack.c.h.b16 %v299
    %v615 = vunpack.c.l.b16 %v300
    %v616 = vunpack.c.h.b16 %v300
    %v617 = vunpack.c.l.b16 %v301
    %v618 = vunpack.c.h.b16 %v301
    %v619 = vunpack.c.l.b16 %v302
    %v620 = vunpack.c.h.b16 %v302
    %v621 = vunpack.c.l.b16 %v303
    %v622 = vunpack.c.h.b16 %v303
    %v623 = vunpack.c.l.b16 %v304
    %v624 = vunpack.c.h.b16 %v304
    %v625 = vunpack.c.l.b16 %v305
    %v626 = vunpack.c.h.b16 %v305
    %v627 = vunpack.c.l.b16 %v306
    %v628 = vunpack.c.h.b16 %v306
    %v629 = vunpack.c.l.b16 %v307
    %v630 = vunpack.c.h.b16 %v307
    %v631 = vunpack.c.l.b16 %v308
    %v632 = vunpack.c.h.b16 %v308
    %v633 = vunpack.c.l.b16 %v309
    %v634 = vunpack.c.h.b16 %v309
    %v635 = vunpack.c.l.b16 %v310
    %v636 = vunpack.c.h.b16 %v310
    %v637 = vunpack.c.l.b16 %v311
    %v638 = vunpack.c.h.b16 %v311
    %v639 = vunpack.c.l.b16 %v312
    %v640 = vunpack.c.h.b16 %v312
    %v641 = vunpack.c.l.b16 %v313
    %v642 = vunpack.c.h.b16 %v313
    %v643 = vunpack.c.l.b16 %v314
    %v644 = vunpack.c.h.b16 %v314
    %v645 = vunpack.c.l.b16 %v315
    %v646 = vunpack.c.h.b16 %v315
    %v647 = vunpack.c.l.b16 %v316
    %v648 = vunpack.c.h.b16 %v316
    %v649 = vunpack.c.l.b16 %v317
    %v650 = vunpack.c.h.b16 %v317
    %v651 = vunpack.c.l.b16 %v318
    %v652 = vunpack.c.h.b16 %v318
    %v653 = vunpack.c.l.b16 %v319
    %v654 = vunpack.c.h.b16 %v319
    %v655 = vunpack.c.l.b16 %v320
    %v656 = vunpack.c.h.b16 %v320
    %v657 = vunpack.c.l.b16 %v321
    %v658 = vunpack.c.h.b16 %v321
    %v659 = vunpack.c.l.b16 %v322
    %v660 = vunpack.c.h.b16 %v322
    %v661 = vunpack.c.l.b16 %v323
    %v662 = vunpack.c.h.b16 %v323
    %v663 = vunpack.c.l.b16 %v324
    %v664 = vunpack.c.h.b16 %v324
    %v665 = vunpack.c.l.b16 %v325
    %v666 = vunpack.c.h.b16 %v325
    %v667 = vunpack.c.l.b16 %v326
    %v668 = vunpack.c.h.b16 %v326
    %v669 = vunpack.c.l.b16 %v327
    %v670 = vunpack.c.h.b16 %v327
    %v671 = vunpack.c.l.b16 %v328
    %v672 = vunpack.c.h.b16 %v328
    %v673 = vunpack.c.l.b16 %v329
    %v674 = vunpack.c.h.b16 %v329
    %v675 = vunpack.c.l.b16 %v330
    %v676 = vunpack.c.h.b16 %v330
    %v677 = vunpack.c.l.b16 %v331
    %v678 = vunpack.c.h.b16 %v331
    %v679 = vunpack.c.l.b16 %v332
    %v680 = vunpack.c.h.b16 %v332
    %v681 = vunpack.c.l.b16 %v333
    %v682 = vunpack.c.h.b16 %v333
    %v683 = vunpack.c.l.b16 %v334
    %v684 = vunpack.c.h.b16 %v334
    %v685 = vunpack.c.l.b16 %v335
    %v686 = vunpack.c.h.b16 %v335
    %v687 = vunpack.c.l.b16 %v336
    %v688 = vunpack.c.h.b16 %v336
    %v689 = vunpack.c.l.b16 %v337
    %v690 = vunpack.c.h.b16 %v337
    %v691 = vunpack.c.l.b16 %v338
    %v692 = vunpack.c.h.b16 %v338
    %v693 = vunpack.c.l.b16 %v339
    %v694 = vunpack.c.h.b16 %v339
    %v695 = vunpack.c.l.b16 %v340
    %v696 = vunpack.c.h.b16 %v340
    %v697 = vunpack.c.l.b16 %v341
    %v698 = vunpack.c.h.b16 %v341
    %v699 = vunpack.c.l.b16 %v342
    %v700 = vunpack.c.h.b16 %v342
    %v701 = vunpack.c.l.b16 %v343
    %v702 = vunpack.c.h.b16 %v343
    %v703 = vunpack.c.l.b16 %v344
    %v704 = vunpack.c.h.b16 %v344
    %v705 = vunpack.c.l.b16 %v345
    %v706 = vunpack.c.h.b16 %v345
    %v707 = vunpack.c.l.b16 %v346
    %v708 = vunpack.c.h.b16 %v346
    %v709 = vunpack.c.l.b16 %v347
    %v710 = vunpack.c.h.b16 %v347
    %v711 = vunpack.c.l.b16 %v348
    %v712 = vunpack.c.h.b16 %v348
    %v713 = vunpack.c.l.b16 %v349
    %v714 = vunpack.c.h.b16 %v349
    %v715 = vunpack.c.l.b16 %v350
    %v716 = vunpack.c.h.b16 %v350
    %v717 = vunpack.c.l.b16 %v351
    %v718 = vunpack.c.h.b16 %v351
    %v719 = vunpack.c.l.b16 %v352
    %v720 = vunpack.c.h.b16 %v352
    %v721 = vunpack.c.l.b16 %v353
    %v722 = vunpack.c.h.b16 %v353
    %v723 = vunpack.c.l.b16 %v354
    %v724 = vunpack.c.h.b16 %v354
    %v725 = vunpack.c.l.b16 %v355
    %v726 = vunpack.c.h.b16 %v355
    %v727 = vunpack.c.l.b16 %v356
    %v728 = vunpack.c.h.b16 %v356
    %v729 = vunpack.c.l.b16 %v357
    %v730 = vunpack.c.h.b16 %v357
    %v731 = vunpack.c.l.b16 %v358
    %v732 = vunpack.c.h.b16 %v358
    %v733 = vunpack.c.l.b16 %v359
    %v734 = vunpack.c.h.b16 %v359
    %v735 = vunpack.c.l.b16 %v360
    %v736 = vunpack.c.h.b16 %v360
    %v737 = vunpack.c.l.b16 %v361
    %v738 = vunpack.c.h.b16 %v361
    %v739 = vunpack.c.l.b16 %v362
    %v740 = vunpack.c.h.b16 %v362
    %v741 = vunpack.c.l.b16 %v363
    %v742 = vunpack.c.h.b16 %v363
    %v743 = vunpack.c.l.b16 %v364
    %v744 = vunpack.c.h.b16 %v364
    %v745 = vunpack.c.l.b16 %v365
    %v746 = vunpack.c.h.b16 %v365
    %v747 = vunpack.c.l.b16 %v366
    %v748 = vunpack.c.h.b16 %v366
    %v749 = vunpack.c.l.b16 %v367
    %v750 = vunpack.c.h.b16 %v367
    %v751 = vunpack.c.l.b16 %v368
    %v752 = vunpack.c.h.b16 %v368
    %v753 = vpack.c.b16 %v501, %v497
    %v754 = vpack.c.b16 %v502, %v498
    %v755 = vpack.c.b16 %v503, %v499
    %v756 = vpack.c.b16 %v504, %v500
    %v757 = vpack.c.b16 %v509, %v505
    %v758 = vpack.c.b16 %v510, %v506
    %v759 = vpack.c.b16 %v511, %v507
    %v760 = vpack.c.b16 %v512, %v508
    %v761 = vpack.c.b16 %v517, %v513
    %v762 = vpack.c.b16 %v518, %v514
    %v763 = vpack.c.b16 %v519, %v515
    %v764 = vpack.c.b16 %v520, %v516
    %v765 = vpack.c.b16 %v525, %v521
    %v766 = vpack.c.b16 %v526, %v522
    %v767 = vpack.c.b16 %v527, %v523
    %v768 = vpack.c.b16 %v528, %v524
    %v769 = vpack.c.b16 %v533, %v529
    %v770 = vpack.c.b16 %v534, %v530
    %v771 = vpack.c.b16 %v535, %v531
    %v772 = vpack.c.b16 %v536, %v532
    %v773 = vpack.c.b16 %v541, %v537
    %v774 = vpack.c.b16 %v542, %v538
    %v775 = vpack.c.b16 %v543, %v539
    %v776 = vpack.c.b16 %v544, %v540
    %v777 = vpack.c.b16 %v549, %v545
    %v778 = vpack.c.b16 %v550, %v546
    %v779 = vpack.c.b16 %v551, %v547
    %v780 = vpack.c.b16 %v552, %v548
    %v781 = vpack.c.b16 %v557, %v553
    %v782 = vpack.c.b16 %v558, %v554
    %v783 = vpack.c.b16 %v559, %v555
    %v784 = vpack.c.b16 %v560, %v556
    %v785 = vpack.c.b16 %v565, %v561
    %v786 = vpack.c.b16 %v566, %v562
    %v787 = vpack.c.b16 %v567, %v563
    %v788 = vpack.c.b16 %v568, %v564
    %v789 = vpack.c.b16 %v573, %v569
    %v790 = vpack.c.b16 %v574, %v570
    %v791 = vpack.c.b16 %v575, %v571
    %v792 = vpack.c.b16 %v576, %v572
    %v793 = vpack.c.b16 %v581, %v577
    %v794 = vpack.c.b16 %v582, %v578
    %v795 = vpack.c.b16 %v583, %v579
    %v796 = vpack.c.b16 %v584, %v580
    %v797 = vpack.c.b16 %v589, %v585
    %v798 = vpack.c.b16 %v590, %v586
    %v799 = vpack.c.b16 %v591, %v587
    %v800 = vpack.c.b16 %v592, %v588
    %v801 = vpack.c.b16 %v597, %v593
    %v802 = vpack.c.b16 %v598, %v594
    %v803 = vpack.c.b16 %v599, %v595
    %v804 = vpack.c.b16 %v600, %v596
    %v805 = vpack.c.b16 %v605, %v601
    %v806 = vpack.c.b16 %v606, %v602
    %v807 = vpack.c.b16 %v607, %v603
    %v808 = vpack.c.b16 %v608, %v604
    %v809 = vpack.c.b16 %v613, %v609
    %v810 = vpack.c.b16 %v614, %v610
    %v811 = vpack.c.b16 %v615, %v611
    %v812 = vpack.c.b16 %v616, %v612
    %v813 = vpack.c.b16 %v621, %v617
    %v814 = vpack.c.b16 %v622, %v618
    %v815 = vpack.c.b16 %v623, %v619
    %v816 = vpack.c.b16 %v624, %v620
    %v817 = vpack.c.b16 %v629, %v625
    %v818 = vpack.c.b16 %v630, %v626
    %v819 = vpack.c.b16 %v631, %v627
    %v820 = vpack.c.b16 %v632, %v628
    %v821 = vpack.c.b16 %v637, %v633
    %v822 = vpack.c.b16 %v638, %v634
    %v823 = vpack.c.b16 %v639, %v635
    %v824 = vpack.c.b16 %v640, %v636
    %v825 = vpack.c.b16 %v645, %v641
    %v826 = vpack.c.b16 %v646, %v642
    %v827 = vpack.c.b16 %v647, %v643
    %v828 = vpack.c.b16 %v648, %v644
    %v829 = vpack.c.b16 %v653, %v649
    %v830 = vpack.c.b16 %v654, %v650
    %v831 = vpack.c.b16 %v655, %v651
    %v832 = vpack.c.b16 %v656, %v652
    %v833 = vpack.c.b16 %v661, %v657
    %v834 = vpack.c.b16 %v662, %v658
    %v835 = vpack.c.b16 %v663, %v659
    %v836 = vpack.c.b16 %v664, %v660
    %v837 = vpack.c.b16 %v669, %v665
    %v838 = vpack.c.b16 %v670, %v666
    %v839 = vpack.c.b16 %v671, %v667
    %v840 = vpack.c.b16 %v672, %v668
    %v841 = vpack.c.b16 %v677, %v673
    %v842 = vpack.c.b16 %v678, %v674
    %v843 = vpack.c.b16 %v679, %v675
    %v844 = vpack.c.b16 %v680, %v676
    %v845 = vpack.c.b16 %v685, %v681
    %v846 = vpack.c.b16 %v686, %v682
    %v847 = vpack.c.b16 %v687, %v683
    %v848 = vpack.c.b16 %v688, %v684
    %v849 = vpack.c.b16 %v693, %v689
    %v850 = vpack.c.b16 %v694, %v690
    %v851 = vpack.c.b16 %v695, %v691
    %v852 = vpack.c.b16 %v696, %v692
    %v853 = vpack.c.b16 %v701, %v697
    %v854 = vpack.c.b16 %v702, %v698
    %v855 = vpack.c.b16 %v703, %v699
    %v856 = vpack.c.b16 %v704, %v700
    %v857 = vpack.c.b16 %v709, %v705
    %v858 = vpack.c.b16 %v710, %v706
    %v859 = vpack.c.b16 %v711, %v707
    %v860 = vpack.c.b16 %v712, %v708
    %v861 = vpack.c.b16 %v717, %v713
    %v862 = vpack.c.b16 %v718, %v714
    %v863 = vpack.c.b16 %v719, %v715
    %v864 = vpack.c.b16 %v720, %v716
    %v865 = vpack.c.b16 %v725, %v721
    %v866 = vpack.c.b16 %v726, %v722
    %v867 = vpack.c.b16 %v727, %v723
    %v868 = vpack.c.b16 %v728, %v724
    %v869 = vpack.c.b16 %v733, %v729
    %v870 = vpack.c.b16 %v734, %v730
    %v871 = vpack.c.b16 %v735, %v731
    %v872 = vpack.c.b16 %v736, %v732
    %v873 = vpack.c.b16 %v741, %v737
    %v874 = vpack.c.b16 %v742, %v738
    %v875 = vpack.c.b16 %v743, %v739
    %v876 = vpack.c.b16 %v744, %v740
    %v877 = vpack.c.b16 %v749, %v745
    %v878 = vpack.c.b16 %v750, %v746
    %v879 = vpack.c.b16 %v751, %v747
    %v880 = vpack.c.b16 %v752, %v748
    %1009 = vmatprep.subr.bf16.mxu0 %v754
    %1010 = vmatpush1.bf16.msra.mxu0 %v753
    %1011 = vmatprep.subr.bf16.mxu0 %v758
    %1012 = vmatpush1.bf16.msra.mxu0 %v757
    %1013 = vmatprep.subr.bf16.mxu0 %v762
    %1014 = vmatpush1.bf16.msra.mxu0 %v761
    %1015 = vmatprep.subr.bf16.mxu0 %v766
    %1016 = vmatpush1.bf16.msra.mxu0 %v765
    %1017 = vmatprep.subr.bf16.mxu0 %v770
    %1018 = vmatpush1.bf16.msra.mxu0 %v769
    %1019 = vmatprep.subr.bf16.mxu0 %v774
    %1020 = vmatpush1.bf16.msra.mxu0 %v773
    %1021 = vmatprep.subr.bf16.mxu0 %v778
    %1022 = vmatpush1.bf16.msra.mxu0 %v777
    %1023 = vmatprep.subr.bf16.mxu0 %v782
    %1024 = vmatpush1.bf16.msra.mxu0 %v781
    %1025 = vmatprep.subr.bf16.mxu0 %v786
    %1026 = vmatpush1.bf16.msra.mxu0 %v785
    %1027 = vmatprep.subr.bf16.mxu0 %v790
    %1028 = vmatpush1.bf16.msra.mxu0 %v789
    %1029 = vmatprep.subr.bf16.mxu0 %v794
    %1030 = vmatpush1.bf16.msra.mxu0 %v793
    %1031 = vmatprep.subr.bf16.mxu0 %v798
    %1032 = vmatpush1.bf16.msra.mxu0 %v797
    %1033 = vmatprep.subr.bf16.mxu0 %v802
    %1034 = vmatpush1.bf16.msra.mxu0 %v801
    %1035 = vmatprep.subr.bf16.mxu0 %v806
    %1036 = vmatpush1.bf16.msra.mxu0 %v805
    %1037 = vmatprep.subr.bf16.mxu0 %v810
    %1038 = vmatpush1.bf16.msra.mxu0 %v809
    %1039 = vmatprep.subr.bf16.mxu0 %v814
    %1040 = vmatpush1.bf16.msra.mxu0 %v813
    %1041 = vmatprep.mubr.bf16.mxu0 %v238
    %1042 = vmatmul.mubr.bf16.gmra.mrb[0].mxu0 %v237
    %v1043 = vpop.f32.mrb[0].mxu0
    %v1044 = vadd.f32 0.0, %v1043
    %v1045 = vpop.f32.mrb[0].mxu0
    %v1046 = vadd.f32 0.0, %v1045
    %v1047 = vpop.f32.mrb[0].mxu0
    %v1048 = vadd.f32 0.0, %v1047
    %v1049 = vpop.f32.mrb[0].mxu0
    %v1050 = vadd.f32 0.0, %v1049
    %1051 = vdwg.mxu0
    %1052 = vmatprep.subr.bf16.mxu0 %v818
    %1053 = vmatpush1.bf16.msra.mxu0 %v817
    %1054 = vmatprep.subr.bf16.mxu0 %v822
    %1055 = vmatpush1.bf16.msra.mxu0 %v821
    %1056 = vmatprep.subr.bf16.mxu0 %v826
    %1057 = vmatpush1.bf16.msra.mxu0 %v825
    %1058 = vmatprep.subr.bf16.mxu0 %v830
    %1059 = vmatpush1.bf16.msra.mxu0 %v829
    %1060 = vmatprep.subr.bf16.mxu0 %v834
    %1061 = vmatpush1.bf16.msra.mxu0 %v833
    %1062 = vmatprep.subr.bf16.mxu0 %v838
    %1063 = vmatpush1.bf16.msra.mxu0 %v837
    %1064 = vmatprep.subr.bf16.mxu0 %v842
    %1065 = vmatpush1.bf16.msra.mxu0 %v841
    %1066 = vmatprep.subr.bf16.mxu0 %v846
    %1067 = vmatpush1.bf16.msra.mxu0 %v845
    %1068 = vmatprep.subr.bf16.mxu0 %v850
    %1069 = vmatpush1.bf16.msra.mxu0 %v849
    %1070 = vmatprep.subr.bf16.mxu0 %v854
    %1071 = vmatpush1.bf16.msra.mxu0 %v853
    %1072 = vmatprep.subr.bf16.mxu0 %v858
    %1073 = vmatpush1.bf16.msra.mxu0 %v857
    %1074 = vmatprep.subr.bf16.mxu0 %v862
    %1075 = vmatpush1.bf16.msra.mxu0 %v861
    %1076 = vmatprep.subr.bf16.mxu0 %v866
    %1077 = vmatpush1.bf16.msra.mxu0 %v865
    %1078 = vmatprep.subr.bf16.mxu0 %v870
    %1079 = vmatpush1.bf16.msra.mxu0 %v869
    %1080 = vmatprep.subr.bf16.mxu0 %v874
    %1081 = vmatpush1.bf16.msra.mxu0 %v873
    %1082 = vmatprep.subr.bf16.mxu0 %v878
    %1083 = vmatpush1.bf16.msra.mxu0 %v877
    %1084 = vmatprep.mubr.bf16.mxu0 %v240
    %1085 = vmatmul.mubr.bf16.gmra.mrb[0].mxu0 %v239
    %v1086 = vpop.f32.mrb[0].mxu0
    %v1087 = vadd.f32 %v1044, %v1086
    %v1088 = vpop.f32.mrb[0].mxu0
    %v1089 = vadd.f32 %v1046, %v1088
    %v1090 = vpop.f32.mrb[0].mxu0
    %v1091 = vadd.f32 %v1048, %v1090
    %v1092 = vpop.f32.mrb[0].mxu0
    %v1093 = vadd.f32 %v1050, %v1092
    %1094 = vdwg.mxu0
    %1095 = vmatprep.subr.bf16.mxu0 %v756
    %1096 = vmatpush1.bf16.msra.mxu0 %v755
    %1097 = vmatprep.subr.bf16.mxu0 %v760
    %1098 = vmatpush1.bf16.msra.mxu0 %v759
    %1099 = vmatprep.subr.bf16.mxu0 %v764
    %1100 = vmatpush1.bf16.msra.mxu0 %v763
    %1101 = vmatprep.subr.bf16.mxu0 %v768
    %1102 = vmatpush1.bf16.msra.mxu0 %v767
    %1103 = vmatprep.subr.bf16.mxu0 %v772
    %1104 = vmatpush1.bf16.msra.mxu0 %v771
    %1105 = vmatprep.subr.bf16.mxu0 %v776
    %1106 = vmatpush1.bf16.msra.mxu0 %v775
    %1107 = vmatprep.subr.bf16.mxu0 %v780
    %1108 = vmatpush1.bf16.msra.mxu0 %v779
    %1109 = vmatprep.subr.bf16.mxu0 %v784
    %1110 = vmatpush1.bf16.msra.mxu0 %v783
    %1111 = vmatprep.subr.bf16.mxu0 %v788
    %1112 = vmatpush1.bf16.msra.mxu0 %v787
    %1113 = vmatprep.subr.bf16.mxu0 %v792
    %1114 = vmatpush1.bf16.msra.mxu0 %v791
    %1115 = vmatprep.subr.bf16.mxu0 %v796
    %1116 = vmatpush1.bf16.msra.mxu0 %v795
    %1117 = vmatprep.subr.bf16.mxu0 %v800
    %1118 = vmatpush1.bf16.msra.mxu0 %v799
    %1119 = vmatprep.subr.bf16.mxu0 %v804
    %1120 = vmatpush1.bf16.msra.mxu0 %v803
    %1121 = vmatprep.subr.bf16.mxu0 %v808
    %1122 = vmatpush1.bf16.msra.mxu0 %v807
    %1123 = vmatprep.subr.bf16.mxu0 %v812
    %1124 = vmatpush1.bf16.msra.mxu0 %v811
    %1125 = vmatprep.subr.bf16.mxu0 %v816
    %1126 = vmatpush1.bf16.msra.mxu0 %v815
    %1127 = vmatprep.mubr.bf16.mxu0 %v238
    %1128 = vmatmul.mubr.bf16.gmra.mrb[0].mxu0 %v237
    %v1129 = vpop.f32.mrb[0].mxu0
    %v1130 = vadd.f32 0.0, %v1129
    %v1131 = vpop.f32.mrb[0].mxu0
    %v1132 = vadd.f32 0.0, %v1131
    %v1133 = vpop.f32.mrb[0].mxu0
    %v1134 = vadd.f32 0.0, %v1133
    %v1135 = vpop.f32.mrb[0].mxu0
    %v1136 = vadd.f32 0.0, %v1135
    %1137 = vdwg.mxu0
    %1138 = vmatprep.subr.bf16.mxu0 %v820
    %1139 = vmatpush1.bf16.msra.mxu0 %v819
    %1140 = vmatprep.subr.bf16.mxu0 %v824
    %1141 = vmatpush1.bf16.msra.mxu0 %v823
    %1142 = vmatprep.subr.bf16.mxu0 %v828
    %1143 = vmatpush1.bf16.msra.mxu0 %v827
    %1144 = vmatprep.subr.bf16.mxu0 %v832
    %1145 = vmatpush1.bf16.msra.mxu0 %v831
    %1146 = vmatprep.subr.bf16.mxu0 %v836
    %1147 = vmatpush1.bf16.msra.mxu0 %v835
    %1148 = vmatprep.subr.bf16.mxu0 %v840
    %1149 = vmatpush1.bf16.msra.mxu0 %v839
    %1150 = vmatprep.subr.bf16.mxu0 %v844
    %1151 = vmatpush1.bf16.msra.mxu0 %v843
    %1152 = vmatprep.subr.bf16.mxu0 %v848
    %1153 = vmatpush1.bf16.msra.mxu0 %v847
    %1154 = vmatprep.subr.bf16.mxu0 %v852
    %1155 = vmatpush1.bf16.msra.mxu0 %v851
    %1156 = vmatprep.subr.bf16.mxu0 %v856
    %1157 = vmatpush1.bf16.msra.mxu0 %v855
    %1158 = vmatprep.subr.bf16.mxu0 %v860
    %1159 = vmatpush1.bf16.msra.mxu0 %v859
    %1160 = vmatprep.subr.bf16.mxu0 %v864
    %1161 = vmatpush1.bf16.msra.mxu0 %v863
    %1162 = vmatprep.subr.bf16.mxu0 %v868
    %1163 = vmatpush1.bf16.msra.mxu0 %v867
    %1164 = vmatprep.subr.bf16.mxu0 %v872
    %1165 = vmatpush1.bf16.msra.mxu0 %v871
    %1166 = vmatprep.subr.bf16.mxu0 %v876
    %1167 = vmatpush1.bf16.msra.mxu0 %v875
    %1168 = vmatprep.subr.bf16.mxu0 %v880
    %1169 = vmatpush1.bf16.msra.mxu0 %v879
    %1170 = vmatprep.mubr.bf16.mxu0 %v240
    %1171 = vmatmul.mubr.bf16.gmra.mrb[0].mxu0 %v239
    %v1172 = vpop.f32.mrb[0].mxu0
    %v1173 = vadd.f32 %v1130, %v1172
    %v1174 = vpop.f32.mrb[0].mxu0
    %v1175 = vadd.f32 %v1132, %v1174
    %v1176 = vpop.f32.mrb[0].mxu0
    %v1177 = vadd.f32 %v1134, %v1176
    %v1178 = vpop.f32.mrb[0].mxu0
    %v1179 = vadd.f32 %v1136, %v1178
    %1180 = vdwg.mxu0
    %v1181 = vrot.slane %v1087, 4
    %v1182 = vadd.f32 %v1087, %v1181
    %v1183 = vrot.slane %v1182, 2
    %v1184 = vadd.f32 %v1182, %v1183
    %v1185 = vrot.slane %v1184, 1
    %v1186 = vadd.f32 %v1184, %v1185
    %v1187 = vrot.slane %v1089, 4
    %v1188 = vadd.f32 %v1089, %v1187
    %v1189 = vrot.slane %v1188, 2
    %v1190 = vadd.f32 %v1188, %v1189
    %v1191 = vrot.slane %v1190, 1
    %v1192 = vadd.f32 %v1190, %v1191
    %v1193 = vrot.slane %v1173, 4
    %v1194 = vadd.f32 %v1173, %v1193
    %v1195 = vrot.slane %v1194, 2
    %v1196 = vadd.f32 %v1194, %v1195
    %v1197 = vrot.slane %v1196, 1
    %v1198 = vadd.f32 %v1196, %v1197
    %v1199 = vrot.slane %v1175, 4
    %v1200 = vadd.f32 %v1175, %v1199
    %v1201 = vrot.slane %v1200, 2
    %v1202 = vadd.f32 %v1200, %v1201
    %v1203 = vrot.slane %v1202, 1
    %v1204 = vadd.f32 %v1202, %v1203
    %v1205 = vrot.slane %v1091, 4
    %v1206 = vadd.f32 %v1091, %v1205
    %v1207 = vrot.slane %v1206, 2
    %v1208 = vadd.f32 %v1206, %v1207
    %v1209 = vrot.slane %v1208, 1
    %v1210 = vadd.f32 %v1208, %v1209
    %v1211 = vrot.slane %v1093, 4
    %v1212 = vadd.f32 %v1093, %v1211
    %v1213 = vrot.slane %v1212, 2
    %v1214 = vadd.f32 %v1212, %v1213
    %v1215 = vrot.slane %v1214, 1
    %v1216 = vadd.f32 %v1214, %v1215
    %v1217 = vrot.slane %v1177, 4
    %v1218 = vadd.f32 %v1177, %v1217
    %v1219 = vrot.slane %v1218, 2
    %v1220 = vadd.f32 %v1218, %v1219
    %v1221 = vrot.slane %v1220, 1
    %v1222 = vadd.f32 %v1220, %v1221
    %v1223 = vrot.slane %v1179, 4
    %v1224 = vadd.f32 %v1179, %v1223
    %v1225 = vrot.slane %v1224, 2
    %v1226 = vadd.f32 %v1224, %v1225
    %v1227 = vrot.slane %v1226, 1
    %v1228 = vadd.f32 %v1226, %v1227
    %v1229 = vrcp.pop 8.0
    %v1230 = vmul.f32 %v1186, %v1229
    %v1231 = vmul.f32 %v1192, %v1229
    %v1232 = vmul.f32 %v1198, %v1229
    %v1233 = vmul.f32 %v1204, %v1229
    %v1234 = vmul.f32 %v1210, %v1229
    %v1235 = vmul.f32 %v1216, %v1229
    %v1236 = vmul.f32 %v1222, %v1229
    %v1237 = vmul.f32 %v1228, %v1229
    %v1238 = vpack.c.bf16 %v1234, %v1230
    %v1239 = vpack.c.bf16 %v1235, %v1231
    %v1240 = vpack.c.bf16 %v1236, %v1232
    %v1241 = vpack.c.bf16 %v1237, %v1233
    %v1242 = vld [vmem:[#allocation6] sm:$0xff]
    %v1243 = vld [vmem:[#allocation6 + $0x8] sm:$0xff]
    %v1244 = vld [vmem:[#allocation6 + $0x10] sm:$0xff]
    %v1245 = vld [vmem:[#allocation6 + $0x18] sm:$0xff]
    %v1246 = vld [vmem:[#allocation6 + $0x20] sm:$0xff]
    %v1247 = vld [vmem:[#allocation6 + $0x28] sm:$0xff]
    %v1248 = vld [vmem:[#allocation6 + $0x30] sm:$0xff]
    %v1249 = vld [vmem:[#allocation6 + $0x38] sm:$0xff]
    %v1250 = vld [vmem:[#allocation6 + $0x40] sm:$0xff]
    %v1251 = vld [vmem:[#allocation6 + $0x48] sm:$0xff]
    %v1252 = vld [vmem:[#allocation6 + $0x50] sm:$0xff]
    %v1253 = vld [vmem:[#allocation6 + $0x58] sm:$0xff]
    %v1254 = vld [vmem:[#allocation6 + $0x60] sm:$0xff]
    %v1255 = vld [vmem:[#allocation6 + $0x68] sm:$0xff]
    %v1256 = vld [vmem:[#allocation6 + $0x70] sm:$0xff]
    %v1257 = vld [vmem:[#allocation6 + $0x78] sm:$0xff]
    %v1258 = vld [vmem:[#allocation6 + $0x80] sm:$0xff]
    %v1259 = vld [vmem:[#allocation6 + $0x88] sm:$0xff]
    %v1260 = vld [vmem:[#allocation6 + $0x90] sm:$0xff]
    %v1261 = vld [vmem:[#allocation6 + $0x98] sm:$0xff]
    %v1262 = vld [vmem:[#allocation6 + $0xa0] sm:$0xff]
    %v1263 = vld [vmem:[#allocation6 + $0xa8] sm:$0xff]
    %v1264 = vld [vmem:[#allocation6 + $0xb0] sm:$0xff]
    %v1265 = vld [vmem:[#allocation6 + $0xb8] sm:$0xff]
    %v1266 = vld [vmem:[#allocation6 + $0xc0] sm:$0xff]
    %v1267 = vld [vmem:[#allocation6 + $0xc8] sm:$0xff]
    %v1268 = vld [vmem:[#allocation6 + $0xd0] sm:$0xff]
    %v1269 = vld [vmem:[#allocation6 + $0xd8] sm:$0xff]
    %v1270 = vld [vmem:[#allocation6 + $0xe0] sm:$0xff]
    %v1271 = vld [vmem:[#allocation6 + $0xe8] sm:$0xff]
    %v1272 = vld [vmem:[#allocation6 + $0xf0] sm:$0xff]
    %v1273 = vld [vmem:[#allocation6 + $0xf8] sm:$0xff]
    %v1274 = vld [vmem:[#allocation6 + $0x100] sm:$0xff]
    %v1275 = vld [vmem:[#allocation6 + $0x108] sm:$0xff]
    %v1276 = vld [vmem:[#allocation6 + $0x110] sm:$0xff]
    %v1277 = vld [vmem:[#allocation6 + $0x118] sm:$0xff]
    %v1278 = vld [vmem:[#allocation6 + $0x120] sm:$0xff]
    %v1279 = vld [vmem:[#allocation6 + $0x128] sm:$0xff]
    %v1280 = vld [vmem:[#allocation6 + $0x130] sm:$0xff]
    %v1281 = vld [vmem:[#allocation6 + $0x138] sm:$0xff]
    %v1282 = vld [vmem:[#allocation6 + $0x140] sm:$0xff]
    %v1283 = vld [vmem:[#allocation6 + $0x148] sm:$0xff]
    %v1284 = vld [vmem:[#allocation6 + $0x150] sm:$0xff]
    %v1285 = vld [vmem:[#allocation6 + $0x158] sm:$0xff]
    %v1286 = vld [vmem:[#allocation6 + $0x160] sm:$0xff]
    %v1287 = vld [vmem:[#allocation6 + $0x168] sm:$0xff]
    %v1288 = vld [vmem:[#allocation6 + $0x170] sm:$0xff]
    %v1289 = vld [vmem:[#allocation6 + $0x178] sm:$0xff]
    %v1290 = vld [vmem:[#allocation6 + $0x180] sm:$0xff]
    %v1291 = vld [vmem:[#allocation6 + $0x188] sm:$0xff]
    %v1292 = vld [vmem:[#allocation6 + $0x190] sm:$0xff]
    %v1293 = vld [vmem:[#allocation6 + $0x198] sm:$0xff]
    %v1294 = vld [vmem:[#allocation6 + $0x1a0] sm:$0xff]
    %v1295 = vld [vmem:[#allocation6 + $0x1a8] sm:$0xff]
    %v1296 = vld [vmem:[#allocation6 + $0x1b0] sm:$0xff]
    %v1297 = vld [vmem:[#allocation6 + $0x1b8] sm:$0xff]
    %v1298 = vld [vmem:[#allocation6 + $0x1c0] sm:$0xff]
    %v1299 = vld [vmem:[#allocation6 + $0x1c8] sm:$0xff]
    %v1300 = vld [vmem:[#allocation6 + $0x1d0] sm:$0xff]
    %v1301 = vld [vmem:[#allocation6 + $0x1d8] sm:$0xff]
    %v1302 = vld [vmem:[#allocation6 + $0x1e0] sm:$0xff]
    %v1303 = vld [vmem:[#allocation6 + $0x1e8] sm:$0xff]
    %v1304 = vld [vmem:[#allocation6 + $0x1f0] sm:$0xff]
    %v1305 = vld [vmem:[#allocation6 + $0x1f8] sm:$0xff]
    %v1306 = vld [vmem:[#allocation6 + $0x200] sm:$0xff]
    %v1307 = vld [vmem:[#allocation6 + $0x208] sm:$0xff]
    %v1308 = vld [vmem:[#allocation6 + $0x210] sm:$0xff]
    %v1309 = vld [vmem:[#allocation6 + $0x218] sm:$0xff]
    %v1310 = vld [vmem:[#allocation6 + $0x220] sm:$0xff]
    %v1311 = vld [vmem:[#allocation6 + $0x228] sm:$0xff]
    %v1312 = vld [vmem:[#allocation6 + $0x230] sm:$0xff]
    %v1313 = vld [vmem:[#allocation6 + $0x238] sm:$0xff]
    %v1314 = vld [vmem:[#allocation6 + $0x240] sm:$0xff]
    %v1315 = vld [vmem:[#allocation6 + $0x248] sm:$0xff]
    %v1316 = vld [vmem:[#allocation6 + $0x250] sm:$0xff]
    %v1317 = vld [vmem:[#allocation6 + $0x258] sm:$0xff]
    %v1318 = vld [vmem:[#allocation6 + $0x260] sm:$0xff]
    %v1319 = vld [vmem:[#allocation6 + $0x268] sm:$0xff]
    %v1320 = vld [vmem:[#allocation6 + $0x270] sm:$0xff]
    %v1321 = vld [vmem:[#allocation6 + $0x278] sm:$0xff]
    %v1322 = vld [vmem:[#allocation6 + $0x280] sm:$0xff]
    %v1323 = vld [vmem:[#allocation6 + $0x288] sm:$0xff]
    %v1324 = vld [vmem:[#allocation6 + $0x290] sm:$0xff]
    %v1325 = vld [vmem:[#allocation6 + $0x298] sm:$0xff]
    %v1326 = vld [vmem:[#allocation6 + $0x2a0] sm:$0xff]
    %v1327 = vld [vmem:[#allocation6 + $0x2a8] sm:$0xff]
    %v1328 = vld [vmem:[#allocation6 + $0x2b0] sm:$0xff]
    %v1329 = vld [vmem:[#allocation6 + $0x2b8] sm:$0xff]
    %v1330 = vld [vmem:[#allocation6 + $0x2c0] sm:$0xff]
    %v1331 = vld [vmem:[#allocation6 + $0x2c8] sm:$0xff]
    %v1332 = vld [vmem:[#allocation6 + $0x2d0] sm:$0xff]
    %v1333 = vld [vmem:[#allocation6 + $0x2d8] sm:$0xff]
    %v1334 = vld [vmem:[#allocation6 + $0x2e0] sm:$0xff]
    %v1335 = vld [vmem:[#allocation6 + $0x2e8] sm:$0xff]
    %v1336 = vld [vmem:[#allocation6 + $0x2f0] sm:$0xff]
    %v1337 = vld [vmem:[#allocation6 + $0x2f8] sm:$0xff]
    %v1338 = vld [vmem:[#allocation6 + $0x300] sm:$0xff]
    %v1339 = vld [vmem:[#allocation6 + $0x308] sm:$0xff]
    %v1340 = vld [vmem:[#allocation6 + $0x310] sm:$0xff]
    %v1341 = vld [vmem:[#allocation6 + $0x318] sm:$0xff]
    %v1342 = vld [vmem:[#allocation6 + $0x320] sm:$0xff]
    %v1343 = vld [vmem:[#allocation6 + $0x328] sm:$0xff]
    %v1344 = vld [vmem:[#allocation6 + $0x330] sm:$0xff]
    %v1345 = vld [vmem:[#allocation6 + $0x338] sm:$0xff]
    %v1346 = vld [vmem:[#allocation6 + $0x340] sm:$0xff]
    %v1347 = vld [vmem:[#allocation6 + $0x348] sm:$0xff]
    %v1348 = vld [vmem:[#allocation6 + $0x350] sm:$0xff]
    %v1349 = vld [vmem:[#allocation6 + $0x358] sm:$0xff]
    %v1350 = vld [vmem:[#allocation6 + $0x360] sm:$0xff]
    %v1351 = vld [vmem:[#allocation6 + $0x368] sm:$0xff]
    %v1352 = vld [vmem:[#allocation6 + $0x370] sm:$0xff]
    %v1353 = vld [vmem:[#allocation6 + $0x378] sm:$0xff]
    %v1354 = vld [vmem:[#allocation6 + $0x380] sm:$0xff]
    %v1355 = vld [vmem:[#allocation6 + $0x388] sm:$0xff]
    %v1356 = vld [vmem:[#allocation6 + $0x390] sm:$0xff]
    %v1357 = vld [vmem:[#allocation6 + $0x398] sm:$0xff]
    %v1358 = vld [vmem:[#allocation6 + $0x3a0] sm:$0xff]
    %v1359 = vld [vmem:[#allocation6 + $0x3a8] sm:$0xff]
    %v1360 = vld [vmem:[#allocation6 + $0x3b0] sm:$0xff]
    %v1361 = vld [vmem:[#allocation6 + $0x3b8] sm:$0xff]
    %v1362 = vld [vmem:[#allocation6 + $0x3c0] sm:$0xff]
    %v1363 = vld [vmem:[#allocation6 + $0x3c8] sm:$0xff]
    %v1364 = vld [vmem:[#allocation6 + $0x3d0] sm:$0xff]
    %v1365 = vld [vmem:[#allocation6 + $0x3d8] sm:$0xff]
    %v1366 = vld [vmem:[#allocation6 + $0x3e0] sm:$0xff]
    %v1367 = vld [vmem:[#allocation6 + $0x3e8] sm:$0xff]
    %v1368 = vld [vmem:[#allocation6 + $0x3f0] sm:$0xff]
    %v1369 = vld [vmem:[#allocation6 + $0x3f8] sm:$0xff]
    %v1498 = vunpack.c.l.b16 %v1242
    %v1499 = vunpack.c.h.b16 %v1242
    %v1500 = vunpack.c.l.b16 %v1243
    %v1501 = vunpack.c.h.b16 %v1243
    %v1502 = vunpack.c.l.b16 %v1244
    %v1503 = vunpack.c.h.b16 %v1244
    %v1504 = vunpack.c.l.b16 %v1245
    %v1505 = vunpack.c.h.b16 %v1245
    %v1506 = vunpack.c.l.b16 %v1246
    %v1507 = vunpack.c.h.b16 %v1246
    %v1508 = vunpack.c.l.b16 %v1247
    %v1509 = vunpack.c.h.b16 %v1247
    %v1510 = vunpack.c.l.b16 %v1248
    %v1511 = vunpack.c.h.b16 %v1248
    %v1512 = vunpack.c.l.b16 %v1249
    %v1513 = vunpack.c.h.b16 %v1249
    %v1514 = vunpack.c.l.b16 %v1250
    %v1515 = vunpack.c.h.b16 %v1250
    %v1516 = vunpack.c.l.b16 %v1251
    %v1517 = vunpack.c.h.b16 %v1251
    %v1518 = vunpack.c.l.b16 %v1252
    %v1519 = vunpack.c.h.b16 %v1252
    %v1520 = vunpack.c.l.b16 %v1253
    %v1521 = vunpack.c.h.b16 %v1253
    %v1522 = vunpack.c.l.b16 %v1254
    %v1523 = vunpack.c.h.b16 %v1254
    %v1524 = vunpack.c.l.b16 %v1255
    %v1525 = vunpack.c.h.b16 %v1255
    %v1526 = vunpack.c.l.b16 %v1256
    %v1527 = vunpack.c.h.b16 %v1256
    %v1528 = vunpack.c.l.b16 %v1257
    %v1529 = vunpack.c.h.b16 %v1257
    %v1530 = vunpack.c.l.b16 %v1258
    %v1531 = vunpack.c.h.b16 %v1258
    %v1532 = vunpack.c.l.b16 %v1259
    %v1533 = vunpack.c.h.b16 %v1259
    %v1534 = vunpack.c.l.b16 %v1260
    %v1535 = vunpack.c.h.b16 %v1260
    %v1536 = vunpack.c.l.b16 %v1261
    %v1537 = vunpack.c.h.b16 %v1261
    %v1538 = vunpack.c.l.b16 %v1262
    %v1539 = vunpack.c.h.b16 %v1262
    %v1540 = vunpack.c.l.b16 %v1263
    %v1541 = vunpack.c.h.b16 %v1263
    %v1542 = vunpack.c.l.b16 %v1264
    %v1543 = vunpack.c.h.b16 %v1264
    %v1544 = vunpack.c.l.b16 %v1265
    %v1545 = vunpack.c.h.b16 %v1265
    %v1546 = vunpack.c.l.b16 %v1266
    %v1547 = vunpack.c.h.b16 %v1266
    %v1548 = vunpack.c.l.b16 %v1267
    %v1549 = vunpack.c.h.b16 %v1267
    %v1550 = vunpack.c.l.b16 %v1268
    %v1551 = vunpack.c.h.b16 %v1268
    %v1552 = vunpack.c.l.b16 %v1269
    %v1553 = vunpack.c.h.b16 %v1269
    %v1554 = vunpack.c.l.b16 %v1270
    %v1555 = vunpack.c.h.b16 %v1270
    %v1556 = vunpack.c.l.b16 %v1271
    %v1557 = vunpack.c.h.b16 %v1271
    %v1558 = vunpack.c.l.b16 %v1272
    %v1559 = vunpack.c.h.b16 %v1272
    %v1560 = vunpack.c.l.b16 %v1273
    %v1561 = vunpack.c.h.b16 %v1273
    %v1562 = vunpack.c.l.b16 %v1274
    %v1563 = vunpack.c.h.b16 %v1274
    %v1564 = vunpack.c.l.b16 %v1275
    %v1565 = vunpack.c.h.b16 %v1275
    %v1566 = vunpack.c.l.b16 %v1276
    %v1567 = vunpack.c.h.b16 %v1276
    %v1568 = vunpack.c.l.b16 %v1277
    %v1569 = vunpack.c.h.b16 %v1277
    %v1570 = vunpack.c.l.b16 %v1278
    %v1571 = vunpack.c.h.b16 %v1278
    %v1572 = vunpack.c.l.b16 %v1279
    %v1573 = vunpack.c.h.b16 %v1279
    %v1574 = vunpack.c.l.b16 %v1280
    %v1575 = vunpack.c.h.b16 %v1280
    %v1576 = vunpack.c.l.b16 %v1281
    %v1577 = vunpack.c.h.b16 %v1281
    %v1578 = vunpack.c.l.b16 %v1282
    %v1579 = vunpack.c.h.b16 %v1282
    %v1580 = vunpack.c.l.b16 %v1283
    %v1581 = vunpack.c.h.b16 %v1283
    %v1582 = vunpack.c.l.b16 %v1284
    %v1583 = vunpack.c.h.b16 %v1284
    %v1584 = vunpack.c.l.b16 %v1285
    %v1585 = vunpack.c.h.b16 %v1285
    %v1586 = vunpack.c.l.b16 %v1286
    %v1587 = vunpack.c.h.b16 %v1286
    %v1588 = vunpack.c.l.b16 %v1287
    %v1589 = vunpack.c.h.b16 %v1287
    %v1590 = vunpack.c.l.b16 %v1288
    %v1591 = vunpack.c.h.b16 %v1288
    %v1592 = vunpack.c.l.b16 %v1289
    %v1593 = vunpack.c.h.b16 %v1289
    %v1594 = vunpack.c.l.b16 %v1290
    %v1595 = vunpack.c.h.b16 %v1290
    %v1596 = vunpack.c.l.b16 %v1291
    %v1597 = vunpack.c.h.b16 %v1291
    %v1598 = vunpack.c.l.b16 %v1292
    %v1599 = vunpack.c.h.b16 %v1292
    %v1600 = vunpack.c.l.b16 %v1293
    %v1601 = vunpack.c.h.b16 %v1293
    %v1602 = vunpack.c.l.b16 %v1294
    %v1603 = vunpack.c.h.b16 %v1294
    %v1604 = vunpack.c.l.b16 %v1295
    %v1605 = vunpack.c.h.b16 %v1295
    %v1606 = vunpack.c.l.b16 %v1296
    %v1607 = vunpack.c.h.b16 %v1296
    %v1608 = vunpack.c.l.b16 %v1297
    %v1609 = vunpack.c.h.b16 %v1297
    %v1610 = vunpack.c.l.b16 %v1298
    %v1611 = vunpack.c.h.b16 %v1298
    %v1612 = vunpack.c.l.b16 %v1299
    %v1613 = vunpack.c.h.b16 %v1299
    %v1614 = vunpack.c.l.b16 %v1300
    %v1615 = vunpack.c.h.b16 %v1300
    %v1616 = vunpack.c.l.b16 %v1301
    %v1617 = vunpack.c.h.b16 %v1301
    %v1618 = vunpack.c.l.b16 %v1302
    %v1619 = vunpack.c.h.b16 %v1302
    %v1620 = vunpack.c.l.b16 %v1303
    %v1621 = vunpack.c.h.b16 %v1303
    %v1622 = vunpack.c.l.b16 %v1304
    %v1623 = vunpack.c.h.b16 %v1304
    %v1624 = vunpack.c.l.b16 %v1305
    %v1625 = vunpack.c.h.b16 %v1305
    %v1626 = vunpack.c.l.b16 %v1306
    %v1627 = vunpack.c.h.b16 %v1306
    %v1628 = vunpack.c.l.b16 %v1307
    %v1629 = vunpack.c.h.b16 %v1307
    %v1630 = vunpack.c.l.b16 %v1308
    %v1631 = vunpack.c.h.b16 %v1308
    %v1632 = vunpack.c.l.b16 %v1309
    %v1633 = vunpack.c.h.b16 %v1309
    %v1634 = vunpack.c.l.b16 %v1310
    %v1635 = vunpack.c.h.b16 %v1310
    %v1636 = vunpack.c.l.b16 %v1311
    %v1637 = vunpack.c.h.b16 %v1311
    %v1638 = vunpack.c.l.b16 %v1312
    %v1639 = vunpack.c.h.b16 %v1312
    %v1640 = vunpack.c.l.b16 %v1313
    %v1641 = vunpack.c.h.b16 %v1313
    %v1642 = vunpack.c.l.b16 %v1314
    %v1643 = vunpack.c.h.b16 %v1314
    %v1644 = vunpack.c.l.b16 %v1315
    %v1645 = vunpack.c.h.b16 %v1315
    %v1646 = vunpack.c.l.b16 %v1316
    %v1647 = vunpack.c.h.b16 %v1316
    %v1648 = vunpack.c.l.b16 %v1317
    %v1649 = vunpack.c.h.b16 %v1317
    %v1650 = vunpack.c.l.b16 %v1318
    %v1651 = vunpack.c.h.b16 %v1318
    %v1652 = vunpack.c.l.b16 %v1319
    %v1653 = vunpack.c.h.b16 %v1319
    %v1654 = vunpack.c.l.b16 %v1320
    %v1655 = vunpack.c.h.b16 %v1320
    %v1656 = vunpack.c.l.b16 %v1321
    %v1657 = vunpack.c.h.b16 %v1321
    %v1658 = vunpack.c.l.b16 %v1322
    %v1659 = vunpack.c.h.b16 %v1322
    %v1660 = vunpack.c.l.b16 %v1323
    %v1661 = vunpack.c.h.b16 %v1323
    %v1662 = vunpack.c.l.b16 %v1324
    %v1663 = vunpack.c.h.b16 %v1324
    %v1664 = vunpack.c.l.b16 %v1325
    %v1665 = vunpack.c.h.b16 %v1325
    %v1666 = vunpack.c.l.b16 %v1326
    %v1667 = vunpack.c.h.b16 %v1326
    %v1668 = vunpack.c.l.b16 %v1327
    %v1669 = vunpack.c.h.b16 %v1327
    %v1670 = vunpack.c.l.b16 %v1328
    %v1671 = vunpack.c.h.b16 %v1328
    %v1672 = vunpack.c.l.b16 %v1329
    %v1673 = vunpack.c.h.b16 %v1329
    %v1674 = vunpack.c.l.b16 %v1330
    %v1675 = vunpack.c.h.b16 %v1330
    %v1676 = vunpack.c.l.b16 %v1331
    %v1677 = vunpack.c.h.b16 %v1331
    %v1678 = vunpack.c.l.b16 %v1332
    %v1679 = vunpack.c.h.b16 %v1332
    %v1680 = vunpack.c.l.b16 %v1333
    %v1681 = vunpack.c.h.b16 %v1333
    %v1682 = vunpack.c.l.b16 %v1334
    %v1683 = vunpack.c.h.b16 %v1334
    %v1684 = vunpack.c.l.b16 %v1335
    %v1685 = vunpack.c.h.b16 %v1335
    %v1686 = vunpack.c.l.b16 %v1336
    %v1687 = vunpack.c.h.b16 %v1336
    %v1688 = vunpack.c.l.b16 %v1337
    %v1689 = vunpack.c.h.b16 %v1337
    %v1690 = vunpack.c.l.b16 %v1338
    %v1691 = vunpack.c.h.b16 %v1338
    %v1692 = vunpack.c.l.b16 %v1339
    %v1693 = vunpack.c.h.b16 %v1339
    %v1694 = vunpack.c.l.b16 %v1340
    %v1695 = vunpack.c.h.b16 %v1340
    %v1696 = vunpack.c.l.b16 %v1341
    %v1697 = vunpack.c.h.b16 %v1341
    %v1698 = vunpack.c.l.b16 %v1342
    %v1699 = vunpack.c.h.b16 %v1342
    %v1700 = vunpack.c.l.b16 %v1343
    %v1701 = vunpack.c.h.b16 %v1343
    %v1702 = vunpack.c.l.b16 %v1344
    %v1703 = vunpack.c.h.b16 %v1344
    %v1704 = vunpack.c.l.b16 %v1345
    %v1705 = vunpack.c.h.b16 %v1345
    %v1706 = vunpack.c.l.b16 %v1346
    %v1707 = vunpack.c.h.b16 %v1346
    %v1708 = vunpack.c.l.b16 %v1347
    %v1709 = vunpack.c.h.b16 %v1347
    %v1710 = vunpack.c.l.b16 %v1348
    %v1711 = vunpack.c.h.b16 %v1348
    %v1712 = vunpack.c.l.b16 %v1349
    %v1713 = vunpack.c.h.b16 %v1349
    %v1714 = vunpack.c.l.b16 %v1350
    %v1715 = vunpack.c.h.b16 %v1350
    %v1716 = vunpack.c.l.b16 %v1351
    %v1717 = vunpack.c.h.b16 %v1351
    %v1718 = vunpack.c.l.b16 %v1352
    %v1719 = vunpack.c.h.b16 %v1352
    %v1720 = vunpack.c.l.b16 %v1353
    %v1721 = vunpack.c.h.b16 %v1353
    %v1722 = vunpack.c.l.b16 %v1354
    %v1723 = vunpack.c.h.b16 %v1354
    %v1724 = vunpack.c.l.b16 %v1355
    %v1725 = vunpack.c.h.b16 %v1355
    %v1726 = vunpack.c.l.b16 %v1356
    %v1727 = vunpack.c.h.b16 %v1356
    %v1728 = vunpack.c.l.b16 %v1357
    %v1729 = vunpack.c.h.b16 %v1357
    %v1730 = vunpack.c.l.b16 %v1358
    %v1731 = vunpack.c.h.b16 %v1358
    %v1732 = vunpack.c.l.b16 %v1359
    %v1733 = vunpack.c.h.b16 %v1359
    %v1734 = vunpack.c.l.b16 %v1360
    %v1735 = vunpack.c.h.b16 %v1360
    %v1736 = vunpack.c.l.b16 %v1361
    %v1737 = vunpack.c.h.b16 %v1361
    %v1738 = vunpack.c.l.b16 %v1362
    %v1739 = vunpack.c.h.b16 %v1362
    %v1740 = vunpack.c.l.b16 %v1363
    %v1741 = vunpack.c.h.b16 %v1363
    %v1742 = vunpack.c.l.b16 %v1364
    %v1743 = vunpack.c.h.b16 %v1364
    %v1744 = vunpack.c.l.b16 %v1365
    %v1745 = vunpack.c.h.b16 %v1365
    %v1746 = vunpack.c.l.b16 %v1366
    %v1747 = vunpack.c.h.b16 %v1366
    %v1748 = vunpack.c.l.b16 %v1367
    %v1749 = vunpack.c.h.b16 %v1367
    %v1750 = vunpack.c.l.b16 %v1368
    %v1751 = vunpack.c.h.b16 %v1368
    %v1752 = vunpack.c.l.b16 %v1369
    %v1753 = vunpack.c.h.b16 %v1369
    %v1754 = vpack.c.b16 %v1502, %v1498
    %v1755 = vpack.c.b16 %v1503, %v1499
    %v1756 = vpack.c.b16 %v1504, %v1500
    %v1757 = vpack.c.b16 %v1505, %v1501
    %v1758 = vpack.c.b16 %v1510, %v1506
    %v1759 = vpack.c.b16 %v1511, %v1507
    %v1760 = vpack.c.b16 %v1512, %v1508
    %v1761 = vpack.c.b16 %v1513, %v1509
    %v1762 = vpack.c.b16 %v1518, %v1514
    %v1763 = vpack.c.b16 %v1519, %v1515
    %v1764 = vpack.c.b16 %v1520, %v1516
    %v1765 = vpack.c.b16 %v1521, %v1517
    %v1766 = vpack.c.b16 %v1526, %v1522
    %v1767 = vpack.c.b16 %v1527, %v1523
    %v1768 = vpack.c.b16 %v1528, %v1524
    %v1769 = vpack.c.b16 %v1529, %v1525
    %v1770 = vpack.c.b16 %v1534, %v1530
    %v1771 = vpack.c.b16 %v1535, %v1531
    %v1772 = vpack.c.b16 %v1536, %v1532
    %v1773 = vpack.c.b16 %v1537, %v1533
    %v1774 = vpack.c.b16 %v1542, %v1538
    %v1775 = vpack.c.b16 %v1543, %v1539
    %v1776 = vpack.c.b16 %v1544, %v1540
    %v1777 = vpack.c.b16 %v1545, %v1541
    %v1778 = vpack.c.b16 %v1550, %v1546
    %v1779 = vpack.c.b16 %v1551, %v1547
    %v1780 = vpack.c.b16 %v1552, %v1548
    %v1781 = vpack.c.b16 %v1553, %v1549
    %v1782 = vpack.c.b16 %v1558, %v1554
    %v1783 = vpack.c.b16 %v1559, %v1555
    %v1784 = vpack.c.b16 %v1560, %v1556
    %v1785 = vpack.c.b16 %v1561, %v1557
    %v1786 = vpack.c.b16 %v1566, %v1562
    %v1787 = vpack.c.b16 %v1567, %v1563
    %v1788 = vpack.c.b16 %v1568, %v1564
    %v1789 = vpack.c.b16 %v1569, %v1565
    %v1790 = vpack.c.b16 %v1574, %v1570
    %v1791 = vpack.c.b16 %v1575, %v1571
    %v1792 = vpack.c.b16 %v1576, %v1572
    %v1793 = vpack.c.b16 %v1577, %v1573
    %v1794 = vpack.c.b16 %v1582, %v1578
    %v1795 = vpack.c.b16 %v1583, %v1579
    %v1796 = vpack.c.b16 %v1584, %v1580
    %v1797 = vpack.c.b16 %v1585, %v1581
    %v1798 = vpack.c.b16 %v1590, %v1586
    %v1799 = vpack.c.b16 %v1591, %v1587
    %v1800 = vpack.c.b16 %v1592, %v1588
    %v1801 = vpack.c.b16 %v1593, %v1589
    %v1802 = vpack.c.b16 %v1598, %v1594
    %v1803 = vpack.c.b16 %v1599, %v1595
    %v1804 = vpack.c.b16 %v1600, %v1596
    %v1805 = vpack.c.b16 %v1601, %v1597
    %v1806 = vpack.c.b16 %v1606, %v1602
    %v1807 = vpack.c.b16 %v1607, %v1603
    %v1808 = vpack.c.b16 %v1608, %v1604
    %v1809 = vpack.c.b16 %v1609, %v1605
    %v1810 = vpack.c.b16 %v1614, %v1610
    %v1811 = vpack.c.b16 %v1615, %v1611
    %v1812 = vpack.c.b16 %v1616, %v1612
    %v1813 = vpack.c.b16 %v1617, %v1613
    %v1814 = vpack.c.b16 %v1622, %v1618
    %v1815 = vpack.c.b16 %v1623, %v1619
    %v1816 = vpack.c.b16 %v1624, %v1620
    %v1817 = vpack.c.b16 %v1625, %v1621
    %v1818 = vpack.c.b16 %v1630, %v1626
    %v1819 = vpack.c.b16 %v1631, %v1627
    %v1820 = vpack.c.b16 %v1632, %v1628
    %v1821 = vpack.c.b16 %v1633, %v1629
    %v1822 = vpack.c.b16 %v1638, %v1634
    %v1823 = vpack.c.b16 %v1639, %v1635
    %v1824 = vpack.c.b16 %v1640, %v1636
    %v1825 = vpack.c.b16 %v1641, %v1637
    %v1826 = vpack.c.b16 %v1646, %v1642
    %v1827 = vpack.c.b16 %v1647, %v1643
    %v1828 = vpack.c.b16 %v1648, %v1644
    %v1829 = vpack.c.b16 %v1649, %v1645
    %v1830 = vpack.c.b16 %v1654, %v1650
    %v1831 = vpack.c.b16 %v1655, %v1651
    %v1832 = vpack.c.b16 %v1656, %v1652
    %v1833 = vpack.c.b16 %v1657, %v1653
    %v1834 = vpack.c.b16 %v1662, %v1658
    %v1835 = vpack.c.b16 %v1663, %v1659
    %v1836 = vpack.c.b16 %v1664, %v1660
    %v1837 = vpack.c.b16 %v1665, %v1661
    %v1838 = vpack.c.b16 %v1670, %v1666
    %v1839 = vpack.c.b16 %v1671, %v1667
    %v1840 = vpack.c.b16 %v1672, %v1668
    %v1841 = vpack.c.b16 %v1673, %v1669
    %v1842 = vpack.c.b16 %v1678, %v1674
    %v1843 = vpack.c.b16 %v1679, %v1675
    %v1844 = vpack.c.b16 %v1680, %v1676
    %v1845 = vpack.c.b16 %v1681, %v1677
    %v1846 = vpack.c.b16 %v1686, %v1682
    %v1847 = vpack.c.b16 %v1687, %v1683
    %v1848 = vpack.c.b16 %v1688, %v1684
    %v1849 = vpack.c.b16 %v1689, %v1685
    %v1850 = vpack.c.b16 %v1694, %v1690
    %v1851 = vpack.c.b16 %v1695, %v1691
    %v1852 = vpack.c.b16 %v1696, %v1692
    %v1853 = vpack.c.b16 %v1697, %v1693
    %v1854 = vpack.c.b16 %v1702, %v1698
    %v1855 = vpack.c.b16 %v1703, %v1699
    %v1856 = vpack.c.b16 %v1704, %v1700
    %v1857 = vpack.c.b16 %v1705, %v1701
    %v1858 = vpack.c.b16 %v1710, %v1706
    %v1859 = vpack.c.b16 %v1711, %v1707
    %v1860 = vpack.c.b16 %v1712, %v1708
    %v1861 = vpack.c.b16 %v1713, %v1709
    %v1862 = vpack.c.b16 %v1718, %v1714
    %v1863 = vpack.c.b16 %v1719, %v1715
    %v1864 = vpack.c.b16 %v1720, %v1716
    %v1865 = vpack.c.b16 %v1721, %v1717
    %v1866 = vpack.c.b16 %v1726, %v1722
    %v1867 = vpack.c.b16 %v1727, %v1723
    %v1868 = vpack.c.b16 %v1728, %v1724
    %v1869 = vpack.c.b16 %v1729, %v1725
    %v1870 = vpack.c.b16 %v1734, %v1730
    %v1871 = vpack.c.b16 %v1735, %v1731
    %v1872 = vpack.c.b16 %v1736, %v1732
    %v1873 = vpack.c.b16 %v1737, %v1733
    %v1874 = vpack.c.b16 %v1742, %v1738
    %v1875 = vpack.c.b16 %v1743, %v1739
    %v1876 = vpack.c.b16 %v1744, %v1740
    %v1877 = vpack.c.b16 %v1745, %v1741
    %v1878 = vpack.c.b16 %v1750, %v1746
    %v1879 = vpack.c.b16 %v1751, %v1747
    %v1880 = vpack.c.b16 %v1752, %v1748
    %v1881 = vpack.c.b16 %v1753, %v1749
    %2010 = vmatprep.subr.bf16.mxu0 %v1755
    %2011 = vmatpush1.bf16.msra.mxu0 %v1754
    %2012 = vmatprep.subr.bf16.mxu0 %v1759
    %2013 = vmatpush1.bf16.msra.mxu0 %v1758
    %2014 = vmatprep.subr.bf16.mxu0 %v1763
    %2015 = vmatpush1.bf16.msra.mxu0 %v1762
    %2016 = vmatprep.subr.bf16.mxu0 %v1767
    %2017 = vmatpush1.bf16.msra.mxu0 %v1766
    %2018 = vmatprep.subr.bf16.mxu0 %v1771
    %2019 = vmatpush1.bf16.msra.mxu0 %v1770
    %2020 = vmatprep.subr.bf16.mxu0 %v1775
    %2021 = vmatpush1.bf16.msra.mxu0 %v1774
    %2022 = vmatprep.subr.bf16.mxu0 %v1779
    %2023 = vmatpush1.bf16.msra.mxu0 %v1778
    %2024 = vmatprep.subr.bf16.mxu0 %v1783
    %2025 = vmatpush1.bf16.msra.mxu0 %v1782
    %2026 = vmatprep.subr.bf16.mxu0 %v1787
    %2027 = vmatpush1.bf16.msra.mxu0 %v1786
    %2028 = vmatprep.subr.bf16.mxu0 %v1791
    %2029 = vmatpush1.bf16.msra.mxu0 %v1790
    %2030 = vmatprep.subr.bf16.mxu0 %v1795
    %2031 = vmatpush1.bf16.msra.mxu0 %v1794
    %2032 = vmatprep.subr.bf16.mxu0 %v1799
    %2033 = vmatpush1.bf16.msra.mxu0 %v1798
    %2034 = vmatprep.subr.bf16.mxu0 %v1803
    %2035 = vmatpush1.bf16.msra.mxu0 %v1802
    %2036 = vmatprep.subr.bf16.mxu0 %v1807
    %2037 = vmatpush1.bf16.msra.mxu0 %v1806
    %2038 = vmatprep.subr.bf16.mxu0 %v1811
    %2039 = vmatpush1.bf16.msra.mxu0 %v1810
    %2040 = vmatprep.subr.bf16.mxu0 %v1815
    %2041 = vmatpush1.bf16.msra.mxu0 %v1814
    %2042 = vmatprep.mubr.bf16.mxu0 %v1239
    %2043 = vmatmul.mubr.bf16.gmra.mrb[0].mxu0 %v1238
    %v2044 = vpop.f32.mrb[0].mxu0
    %v2045 = vadd.f32 %v186, %v2044
    %v2046 = vpop.f32.mrb[0].mxu0
    %v2047 = vadd.f32 %v188, %v2046
    %v2048 = vpop.f32.mrb[0].mxu0
    %v2049 = vadd.f32 %v190, %v2048
    %v2050 = vpop.f32.mrb[0].mxu0
    %v2051 = vadd.f32 %v192, %v2050
    %2052 = vdwg.mxu0
    %2053 = vmatprep.subr.bf16.mxu0 %v1819
    %2054 = vmatpush1.bf16.msra.mxu0 %v1818
    %2055 = vmatprep.subr.bf16.mxu0 %v1823
    %2056 = vmatpush1.bf16.msra.mxu0 %v1822
    %2057 = vmatprep.subr.bf16.mxu0 %v1827
    %2058 = vmatpush1.bf16.msra.mxu0 %v1826
    %2059 = vmatprep.subr.bf16.mxu0 %v1831
    %2060 = vmatpush1.bf16.msra.mxu0 %v1830
    %2061 = vmatprep.subr.bf16.mxu0 %v1835
    %2062 = vmatpush1.bf16.msra.mxu0 %v1834
    %2063 = vmatprep.subr.bf16.mxu0 %v1839
    %2064 = vmatpush1.bf16.msra.mxu0 %v1838
    %2065 = vmatprep.subr.bf16.mxu0 %v1843
    %2066 = vmatpush1.bf16.msra.mxu0 %v1842
    %2067 = vmatprep.subr.bf16.mxu0 %v1847
    %2068 = vmatpush1.bf16.msra.mxu0 %v1846
    %2069 = vmatprep.subr.bf16.mxu0 %v1851
    %2070 = vmatpush1.bf16.msra.mxu0 %v1850
    %2071 = vmatprep.subr.bf16.mxu0 %v1855
    %2072 = vmatpush1.bf16.msra.mxu0 %v1854
    %2073 = vmatprep.subr.bf16.mxu0 %v1859
    %2074 = vmatpush1.bf16.msra.mxu0 %v1858
    %2075 = vmatprep.subr.bf16.mxu0 %v1863
    %2076 = vmatpush1.bf16.msra.mxu0 %v1862
    %2077 = vmatprep.subr.bf16.mxu0 %v1867
    %2078 = vmatpush1.bf16.msra.mxu0 %v1866
    %2079 = vmatprep.subr.bf16.mxu0 %v1871
    %2080 = vmatpush1.bf16.msra.mxu0 %v1870
    %2081 = vmatprep.subr.bf16.mxu0 %v1875
    %2082 = vmatpush1.bf16.msra.mxu0 %v1874
    %2083 = vmatprep.subr.bf16.mxu0 %v1879
    %2084 = vmatpush1.bf16.msra.mxu0 %v1878
    %2085 = vmatprep.mubr.bf16.mxu0 %v1241
    %2086 = vmatmul.mubr.bf16.gmra.mrb[0].mxu0 %v1240
    %v2087 = vpop.f32.mrb[0].mxu0
    %v2088 = vadd.f32 %v2045, %v2087
    %v2089 = vpop.f32.mrb[0].mxu0
    %v2090 = vadd.f32 %v2047, %v2089
    %v2091 = vpop.f32.mrb[0].mxu0
    %v2092 = vadd.f32 %v2049, %v2091
    %v2093 = vpop.f32.mrb[0].mxu0
    %v2094 = vadd.f32 %v2051, %v2093
    %2095 = vdwg.mxu0
    %2096 = vmatprep.subr.bf16.mxu0 %v1757
    %2097 = vmatpush1.bf16.msra.mxu0 %v1756
    %2098 = vmatprep.subr.bf16.mxu0 %v1761
    %2099 = vmatpush1.bf16.msra.mxu0 %v1760
    %2100 = vmatprep.subr.bf16.mxu0 %v1765
    %2101 = vmatpush1.bf16.msra.mxu0 %v1764
    %2102 = vmatprep.subr.bf16.mxu0 %v1769
    %2103 = vmatpush1.bf16.msra.mxu0 %v1768
    %2104 = vmatprep.subr.bf16.mxu0 %v1773
    %2105 = vmatpush1.bf16.msra.mxu0 %v1772
    %2106 = vmatprep.subr.bf16.mxu0 %v1777
    %2107 = vmatpush1.bf16.msra.mxu0 %v1776
    %2108 = vmatprep.subr.bf16.mxu0 %v1781
    %2109 = vmatpush1.bf16.msra.mxu0 %v1780
    %2110 = vmatprep.subr.bf16.mxu0 %v1785
    %2111 = vmatpush1.bf16.msra.mxu0 %v1784
    %2112 = vmatprep.subr.bf16.mxu0 %v1789
    %2113 = vmatpush1.bf16.msra.mxu0 %v1788
    %2114 = vmatprep.subr.bf16.mxu0 %v1793
    %2115 = vmatpush1.bf16.msra.mxu0 %v1792
    %2116 = vmatprep.subr.bf16.mxu0 %v1797
    %2117 = vmatpush1.bf16.msra.mxu0 %v1796
    %2118 = vmatprep.subr.bf16.mxu0 %v1801
    %2119 = vmatpush1.bf16.msra.mxu0 %v1800
    %2120 = vmatprep.subr.bf16.mxu0 %v1805
    %2121 = vmatpush1.bf16.msra.mxu0 %v1804
    %2122 = vmatprep.subr.bf16.mxu0 %v1809
    %2123 = vmatpush1.bf16.msra.mxu0 %v1808
    %2124 = vmatprep.subr.bf16.mxu0 %v1813
    %2125 = vmatpush1.bf16.msra.mxu0 %v1812
    %2126 = vmatprep.subr.bf16.mxu0 %v1817
    %2127 = vmatpush1.bf16.msra.mxu0 %v1816
    %2128 = vmatprep.mubr.bf16.mxu0 %v1239
    %2129 = vmatmul.mubr.bf16.gmra.mrb[0].mxu0 %v1238
    %v2130 = vpop.f32.mrb[0].mxu0
    %v2131 = vadd.f32 %v229, %v2130
    %v2132 = vpop.f32.mrb[0].mxu0
    %v2133 = vadd.f32 %v231, %v2132
    %v2134 = vpop.f32.mrb[0].mxu0
    %v2135 = vadd.f32 %v233, %v2134
    %v2136 = vpop.f32.mrb[0].mxu0
    %v2137 = vadd.f32 %v235, %v2136
    %2138 = vdwg.mxu0
    %2139 = vmatprep.subr.bf16.mxu0 %v1821
    %2140 = vmatpush1.bf16.msra.mxu0 %v1820
    %2141 = vmatprep.subr.bf16.mxu0 %v1825
    %2142 = vmatpush1.bf16.msra.mxu0 %v1824
    %2143 = vmatprep.subr.bf16.mxu0 %v1829
    %2144 = vmatpush1.bf16.msra.mxu0 %v1828
    %2145 = vmatprep.subr.bf16.mxu0 %v1833
    %2146 = vmatpush1.bf16.msra.mxu0 %v1832
    %2147 = vmatprep.subr.bf16.mxu0 %v1837
    %2148 = vmatpush1.bf16.msra.mxu0 %v1836
    %2149 = vmatprep.subr.bf16.mxu0 %v1841
    %2150 = vmatpush1.bf16.msra.mxu0 %v1840
    %2151 = vmatprep.subr.bf16.mxu0 %v1845
    %2152 = vmatpush1.bf16.msra.mxu0 %v1844
    %2153 = vmatprep.subr.bf16.mxu0 %v1849
    %2154 = vmatpush1.bf16.msra.mxu0 %v1848
    %2155 = vmatprep.subr.bf16.mxu0 %v1853
    %2156 = vmatpush1.bf16.msra.mxu0 %v1852
    %2157 = vmatprep.subr.bf16.mxu0 %v1857
    %2158 = vmatpush1.bf16.msra.mxu0 %v1856
    %2159 = vmatprep.subr.bf16.mxu0 %v1861
    %2160 = vmatpush1.bf16.msra.mxu0 %v1860
    %2161 = vmatprep.subr.bf16.mxu0 %v1865
    %2162 = vmatpush1.bf16.msra.mxu0 %v1864
    %2163 = vmatprep.subr.bf16.mxu0 %v1869
    %2164 = vmatpush1.bf16.msra.mxu0 %v1868
    %2165 = vmatprep.subr.bf16.mxu0 %v1873
    %2166 = vmatpush1.bf16.msra.mxu0 %v1872
    %2167 = vmatprep.subr.bf16.mxu0 %v1877
    %2168 = vmatpush1.bf16.msra.mxu0 %v1876
    %2169 = vmatprep.subr.bf16.mxu0 %v1881
    %2170 = vmatpush1.bf16.msra.mxu0 %v1880
    %2171 = vmatprep.mubr.bf16.mxu0 %v1241
    %2172 = vmatmul.mubr.bf16.gmra.mrb[0].mxu0 %v1240
    %v2173 = vpop.f32.mrb[0].mxu0
    %v2174 = vadd.f32 %v2131, %v2173
    %v2175 = vpop.f32.mrb[0].mxu0
    %v2176 = vadd.f32 %v2133, %v2175
    %v2177 = vpop.f32.mrb[0].mxu0
    %v2178 = vadd.f32 %v2135, %v2177
    %v2179 = vpop.f32.mrb[0].mxu0
    %v2180 = vadd.f32 %v2137, %v2179
    %2181 = vdwg.mxu0
    %v2182 = vadd.f32 %v2088, %v2090
    %v2183 = vadd.f32 %v2182, %v2174
    %v2184 = vadd.f32 %v2183, %v2176
    %2185 = vadd.xlane.f32.xlu0 %v2184
    %v2186 = vpop.xlane.xlu0 %2185
    %v2187 = vadd.f32 %v2092, %v2094
    %v2188 = vadd.f32 %v2187, %v2178
    %v2189 = vadd.f32 %v2188, %v2180
    %2190 = vadd.xlane.f32.xlu0 %v2189
    %v2191 = vpop.xlane.xlu0 %2190
    %v2192 = vrcp.pop 512.0
    %v2193 = vmul.f32 %v2186, %v2192
    %v2194 = vmul.f32 %v2191, %v2192
    %v2195 = vsub.f32 %v2088, %v2193
    %v2196 = vsub.f32 %v2090, %v2193
    %v2197 = vsub.f32 %v2174, %v2193
    %v2198 = vsub.f32 %v2176, %v2193
    %v2199 = vsub.f32 %v2092, %v2194
    %v2200 = vsub.f32 %v2094, %v2194
    %v2201 = vsub.f32 %v2178, %v2194
    %v2202 = vsub.f32 %v2180, %v2194
    %v2203 = vmul.f32 %v2195, %v2195
    %v2204 = vmul.f32 %v2196, %v2196
    %v2205 = vmul.f32 %v2197, %v2197
    %v2206 = vmul.f32 %v2198, %v2198
    %v2207 = vmul.f32 %v2199, %v2199
    %v2208 = vmul.f32 %v2200, %v2200
    %v2209 = vmul.f32 %v2201, %v2201
    %v2210 = vmul.f32 %v2202, %v2202
    %v2211 = vadd.f32 %v2203, %v2204
    %v2212 = vadd.f32 %v2211, %v2205
    %v2213 = vadd.f32 %v2212, %v2206
    %2214 = vadd.xlane.f32.xlu0 %v2213
    %v2215 = vpop.xlane.xlu0 %2214
    %v2216 = vadd.f32 %v2207, %v2208
    %v2217 = vadd.f32 %v2216, %v2209
    %v2218 = vadd.f32 %v2217, %v2210
    %2219 = vadd.xlane.f32.xlu0 %v2218
    %v2220 = vpop.xlane.xlu0 %2219
    %v2221 = vmul.f32 %v2215, %v2192
    %v2222 = vmul.f32 %v2220, %v2192
    %v2223 = vadd.f32 %v2221, 1e-05
    %v2224 = vadd.f32 %v2222, 1e-05
    %v2225 = vrsqrt.pop %v2223
    %v2226 = vrsqrt.pop %v2224
    %v2227 = vmul.f32 %v2195, %v2225
    %v2228 = vmul.f32 %v2196, %v2225
    %v2229 = vmul.f32 %v2197, %v2225
    %v2230 = vmul.f32 %v2198, %v2225
    %v2231 = vmul.f32 %v2199, %v2226
    %v2232 = vmul.f32 %v2200, %v2226
    %v2233 = vmul.f32 %v2201, %v2226
    %v2234 = vmul.f32 %v2202, %v2226
    %v2235 = vpack.c.bf16 %v2231, %v2227
    %v2236 = vpack.c.bf16 %v2232, %v2228
    %v2237 = vpack.c.bf16 %v2233, %v2229
    %v2238 = vpack.c.bf16 %v2234, %v2230
    %v2239 = vld [vmem:[#allocation7] sm:$0xff]
    %v2240 = vld [vmem:[#allocation7 + $0x8] sm:$0xff]
    %v2241 = vld [vmem:[#allocation7 + $0x10] sm:$0xff]
    %v2242 = vld [vmem:[#allocation7 + $0x18] sm:$0xff]
    %v2243 = vld [vmem:[#allocation7 + $0x20] sm:$0xff]
    %v2244 = vld [vmem:[#allocation7 + $0x28] sm:$0xff]
    %v2245 = vld [vmem:[#allocation7 + $0x30] sm:$0xff]
    %v2246 = vld [vmem:[#allocation7 + $0x38] sm:$0xff]
    %v2247 = vld [vmem:[#allocation7 + $0x40] sm:$0xff]
    %v2248 = vld [vmem:[#allocation7 + $0x48] sm:$0xff]
    %v2249 = vld [vmem:[#allocation7 + $0x50] sm:$0xff]
    %v2250 = vld [vmem:[#allocation7 + $0x58] sm:$0xff]
    %v2251 = vld [vmem:[#allocation7 + $0x60] sm:$0xff]
    %v2252 = vld [vmem:[#allocation7 + $0x68] sm:$0xff]
    %v2253 = vld [vmem:[#allocation7 + $0x70] sm:$0xff]
    %v2254 = vld [vmem:[#allocation7 + $0x78] sm:$0xff]
    %v2255 = vld [vmem:[#allocation7 + $0x80] sm:$0xff]
    %v2256 = vld [vmem:[#allocation7 + $0x88] sm:$0xff]
    %v2257 = vld [vmem:[#allocation7 + $0x90] sm:$0xff]
    %v2258 = vld [vmem:[#allocation7 + $0x98] sm:$0xff]
    %v2259 = vld [vmem:[#allocation7 + $0xa0] sm:$0xff]
    %v2260 = vld [vmem:[#allocation7 + $0xa8] sm:$0xff]
    %v2261 = vld [vmem:[#allocation7 + $0xb0] sm:$0xff]
    %v2262 = vld [vmem:[#allocation7 + $0xb8] sm:$0xff]
    %v2263 = vld [vmem:[#allocation7 + $0xc0] sm:$0xff]
    %v2264 = vld [vmem:[#allocation7 + $0xc8] sm:$0xff]
    %v2265 = vld [vmem:[#allocation7 + $0xd0] sm:$0xff]
    %v2266 = vld [vmem:[#allocation7 + $0xd8] sm:$0xff]
    %v2267 = vld [vmem:[#allocation7 + $0xe0] sm:$0xff]
    %v2268 = vld [vmem:[#allocation7 + $0xe8] sm:$0xff]
    %v2269 = vld [vmem:[#allocation7 + $0xf0] sm:$0xff]
    %v2270 = vld [vmem:[#allocation7 + $0xf8] sm:$0xff]
    %v2271 = vld [vmem:[#allocation7 + $0x100] sm:$0xff]
    %v2272 = vld [vmem:[#allocation7 + $0x108] sm:$0xff]
    %v2273 = vld [vmem:[#allocation7 + $0x110] sm:$0xff]
    %v2274 = vld [vmem:[#allocation7 + $0x118] sm:$0xff]
    %v2275 = vld [vmem:[#allocation7 + $0x120] sm:$0xff]
    %v2276 = vld [vmem:[#allocation7 + $0x128] sm:$0xff]
    %v2277 = vld [vmem:[#allocation7 + $0x130] sm:$0xff]
    %v2278 = vld [vmem:[#allocation7 + $0x138] sm:$0xff]
    %v2279 = vld [vmem:[#allocation7 + $0x140] sm:$0xff]
    %v2280 = vld [vmem:[#allocation7 + $0x148] sm:$0xff]
    %v2281 = vld [vmem:[#allocation7 + $0x150] sm:$0xff]
    %v2282 = vld [vmem:[#allocation7 + $0x158] sm:$0xff]
    %v2283 = vld [vmem:[#allocation7 + $0x160] sm:$0xff]
    %v2284 = vld [vmem:[#allocation7 + $0x168] sm:$0xff]
    %v2285 = vld [vmem:[#allocation7 + $0x170] sm:$0xff]
    %v2286 = vld [vmem:[#allocation7 + $0x178] sm:$0xff]
    %v2287 = vld [vmem:[#allocation7 + $0x180] sm:$0xff]
    %v2288 = vld [vmem:[#allocation7 + $0x188] sm:$0xff]
    %v2289 = vld [vmem:[#allocation7 + $0x190] sm:$0xff]
    %v2290 = vld [vmem:[#allocation7 + $0x198] sm:$0xff]
    %v2291 = vld [vmem:[#allocation7 + $0x1a0] sm:$0xff]
    %v2292 = vld [vmem:[#allocation7 + $0x1a8] sm:$0xff]
    %v2293 = vld [vmem:[#allocation7 + $0x1b0] sm:$0xff]
    %v2294 = vld [vmem:[#allocation7 + $0x1b8] sm:$0xff]
    %v2295 = vld [vmem:[#allocation7 + $0x1c0] sm:$0xff]
    %v2296 = vld [vmem:[#allocation7 + $0x1c8] sm:$0xff]
    %v2297 = vld [vmem:[#allocation7 + $0x1d0] sm:$0xff]
    %v2298 = vld [vmem:[#allocation7 + $0x1d8] sm:$0xff]
    %v2299 = vld [vmem:[#allocation7 + $0x1e0] sm:$0xff]
    %v2300 = vld [vmem:[#allocation7 + $0x1e8] sm:$0xff]
    %v2301 = vld [vmem:[#allocation7 + $0x1f0] sm:$0xff]
    %v2302 = vld [vmem:[#allocation7 + $0x1f8] sm:$0xff]
    %v2303 = vld [vmem:[#allocation7 + $0x200] sm:$0xff]
    %v2304 = vld [vmem:[#allocation7 + $0x208] sm:$0xff]
    %v2305 = vld [vmem:[#allocation7 + $0x210] sm:$0xff]
    %v2306 = vld [vmem:[#allocation7 + $0x218] sm:$0xff]
    %v2307 = vld [vmem:[#allocation7 + $0x220] sm:$0xff]
    %v2308 = vld [vmem:[#allocation7 + $0x228] sm:$0xff]
    %v2309 = vld [vmem:[#allocation7 + $0x230] sm:$0xff]
    %v2310 = vld [vmem:[#allocation7 + $0x238] sm:$0xff]
    %v2311 = vld [vmem:[#allocation7 + $0x240] sm:$0xff]
    %v2312 = vld [vmem:[#allocation7 + $0x248] sm:$0xff]
    %v2313 = vld [vmem:[#allocation7 + $0x250] sm:$0xff]
    %v2314 = vld [vmem:[#allocation7 + $0x258] sm:$0xff]
    %v2315 = vld [vmem:[#allocation7 + $0x260] sm:$0xff]
    %v2316 = vld [vmem:[#allocation7 + $0x268] sm:$0xff]
    %v2317 = vld [vmem:[#allocation7 + $0x270] sm:$0xff]
    %v2318 = vld [vmem:[#allocation7 + $0x278] sm:$0xff]
    %v2319 = vld [vmem:[#allocation7 + $0x280] sm:$0xff]
    %v2320 = vld [vmem:[#allocation7 + $0x288] sm:$0xff]
    %v2321 = vld [vmem:[#allocation7 + $0x290] sm:$0xff]
    %v2322 = vld [vmem:[#allocation7 + $0x298] sm:$0xff]
    %v2323 = vld [vmem:[#allocation7 + $0x2a0] sm:$0xff]
    %v2324 = vld [vmem:[#allocation7 + $0x2a8] sm:$0xff]
    %v2325 = vld [vmem:[#allocation7 + $0x2b0] sm:$0xff]
    %v2326 = vld [vmem:[#allocation7 + $0x2b8] sm:$0xff]
    %v2327 = vld [vmem:[#allocation7 + $0x2c0] sm:$0xff]
    %v2328 = vld [vmem:[#allocation7 + $0x2c8] sm:$0xff]
    %v2329 = vld [vmem:[#allocation7 + $0x2d0] sm:$0xff]
    %v2330 = vld [vmem:[#allocation7 + $0x2d8] sm:$0xff]
    %v2331 = vld [vmem:[#allocation7 + $0x2e0] sm:$0xff]
    %v2332 = vld [vmem:[#allocation7 + $0x2e8] sm:$0xff]
    %v2333 = vld [vmem:[#allocation7 + $0x2f0] sm:$0xff]
    %v2334 = vld [vmem:[#allocation7 + $0x2f8] sm:$0xff]
    %v2335 = vld [vmem:[#allocation7 + $0x300] sm:$0xff]
    %v2336 = vld [vmem:[#allocation7 + $0x308] sm:$0xff]
    %v2337 = vld [vmem:[#allocation7 + $0x310] sm:$0xff]
    %v2338 = vld [vmem:[#allocation7 + $0x318] sm:$0xff]
    %v2339 = vld [vmem:[#allocation7 + $0x320] sm:$0xff]
    %v2340 = vld [vmem:[#allocation7 + $0x328] sm:$0xff]
    %v2341 = vld [vmem:[#allocation7 + $0x330] sm:$0xff]
    %v2342 = vld [vmem:[#allocation7 + $0x338] sm:$0xff]
    %v2343 = vld [vmem:[#allocation7 + $0x340] sm:$0xff]
    %v2344 = vld [vmem:[#allocation7 + $0x348] sm:$0xff]
    %v2345 = vld [vmem:[#allocation7 + $0x350] sm:$0xff]
    %v2346 = vld [vmem:[#allocation7 + $0x358] sm:$0xff]
    %v2347 = vld [vmem:[#allocation7 + $0x360] sm:$0xff]
    %v2348 = vld [vmem:[#allocation7 + $0x368] sm:$0xff]
    %v2349 = vld [vmem:[#allocation7 + $0x370] sm:$0xff]
    %v2350 = vld [vmem:[#allocation7 + $0x378] sm:$0xff]
    %v2351 = vld [vmem:[#allocation7 + $0x380] sm:$0xff]
    %v2352 = vld [vmem:[#allocation7 + $0x388] sm:$0xff]
    %v2353 = vld [vmem:[#allocation7 + $0x390] sm:$0xff]
    %v2354 = vld [vmem:[#allocation7 + $0x398] sm:$0xff]
    %v2355 = vld [vmem:[#allocation7 + $0x3a0] sm:$0xff]
    %v2356 = vld [vmem:[#allocation7 + $0x3a8] sm:$0xff]
    %v2357 = vld [vmem:[#allocation7 + $0x3b0] sm:$0xff]
    %v2358 = vld [vmem:[#allocation7 + $0x3b8] sm:$0xff]
    %v2359 = vld [vmem:[#allocation7 + $0x3c0] sm:$0xff]
    %v2360 = vld [vmem:[#allocation7 + $0x3c8] sm:$0xff]
    %v2361 = vld [vmem:[#allocation7 + $0x3d0] sm:$0xff]
    %v2362 = vld [vmem:[#allocation7 + $0x3d8] sm:$0xff]
    %v2363 = vld [vmem:[#allocation7 + $0x3e0] sm:$0xff]
    %v2364 = vld [vmem:[#allocation7 + $0x3e8] sm:$0xff]
    %v2365 = vld [vmem:[#allocation7 + $0x3f0] sm:$0xff]
    %v2366 = vld [vmem:[#allocation7 + $0x3f8] sm:$0xff]
    %v2367 = vld [vmem:[#allocation7 + $0x400] sm:$0xff]
    %v2368 = vld [vmem:[#allocation7 + $0x408] sm:$0xff]
    %v2369 = vld [vmem:[#allocation7 + $0x410] sm:$0xff]
    %v2370 = vld [vmem:[#allocation7 + $0x418] sm:$0xff]
    %v2371 = vld [vmem:[#allocation7 + $0x420] sm:$0xff]
    %v2372 = vld [vmem:[#allocation7 + $0x428] sm:$0xff]
    %v2373 = vld [vmem:[#allocation7 + $0x430] sm:$0xff]
    %v2374 = vld [vmem:[#allocation7 + $0x438] sm:$0xff]
    %v2375 = vld [vmem:[#allocation7 + $0x440] sm:$0xff]
    %v2376 = vld [vmem:[#allocation7 + $0x448] sm:$0xff]
    %v2377 = vld [vmem:[#allocation7 + $0x450] sm:$0xff]
    %v2378 = vld [vmem:[#allocation7 + $0x458] sm:$0xff]
    %v2379 = vld [vmem:[#allocation7 + $0x460] sm:$0xff]
    %v2380 = vld [vmem:[#allocation7 + $0x468] sm:$0xff]
    %v2381 = vld [vmem:[#allocation7 + $0x470] sm:$0xff]
    %v2382 = vld [vmem:[#allocation7 + $0x478] sm:$0xff]
    %v2383 = vld [vmem:[#allocation7 + $0x480] sm:$0xff]
    %v2384 = vld [vmem:[#allocation7 + $0x488] sm:$0xff]
    %v2385 = vld [vmem:[#allocation7 + $0x490] sm:$0xff]
    %v2386 = vld [vmem:[#allocation7 + $0x498] sm:$0xff]
    %v2387 = vld [vmem:[#allocation7 + $0x4a0] sm:$0xff]
    %v2388 = vld [vmem:[#allocation7 + $0x4a8] sm:$0xff]
    %v2389 = vld [vmem:[#allocation7 + $0x4b0] sm:$0xff]
    %v2390 = vld [vmem:[#allocation7 + $0x4b8] sm:$0xff]
    %v2391 = vld [vmem:[#allocation7 + $0x4c0] sm:$0xff]
    %v2392 = vld [vmem:[#allocation7 + $0x4c8] sm:$0xff]
    %v2393 = vld [vmem:[#allocation7 + $0x4d0] sm:$0xff]
    %v2394 = vld [vmem:[#allocation7 + $0x4d8] sm:$0xff]
    %v2395 = vld [vmem:[#allocation7 + $0x4e0] sm:$0xff]
    %v2396 = vld [vmem:[#allocation7 + $0x4e8] sm:$0xff]
    %v2397 = vld [vmem:[#allocation7 + $0x4f0] sm:$0xff]
    %v2398 = vld [vmem:[#allocation7 + $0x4f8] sm:$0xff]
    %v2399 = vld [vmem:[#allocation7 + $0x500] sm:$0xff]
    %v2400 = vld [vmem:[#allocation7 + $0x508] sm:$0xff]
    %v2401 = vld [vmem:[#allocation7 + $0x510] sm:$0xff]
    %v2402 = vld [vmem:[#allocation7 + $0x518] sm:$0xff]
    %v2403 = vld [vmem:[#allocation7 + $0x520] sm:$0xff]
    %v2404 = vld [vmem:[#allocation7 + $0x528] sm:$0xff]
    %v2405 = vld [vmem:[#allocation7 + $0x530] sm:$0xff]
    %v2406 = vld [vmem:[#allocation7 + $0x538] sm:$0xff]
    %v2407 = vld [vmem:[#allocation7 + $0x540] sm:$0xff]
    %v2408 = vld [vmem:[#allocation7 + $0x548] sm:$0xff]
    %v2409 = vld [vmem:[#allocation7 + $0x550] sm:$0xff]
    %v2410 = vld [vmem:[#allocation7 + $0x558] sm:$0xff]
    %v2411 = vld [vmem:[#allocation7 + $0x560] sm:$0xff]
    %v2412 = vld [vmem:[#allocation7 + $0x568] sm:$0xff]
    %v2413 = vld [vmem:[#allocation7 + $0x570] sm:$0xff]
    %v2414 = vld [vmem:[#allocation7 + $0x578] sm:$0xff]
    %v2415 = vld [vmem:[#allocation7 + $0x580] sm:$0xff]
    %v2416 = vld [vmem:[#allocation7 + $0x588] sm:$0xff]
    %v2417 = vld [vmem:[#allocation7 + $0x590] sm:$0xff]
    %v2418 = vld [vmem:[#allocation7 + $0x598] sm:$0xff]
    %v2419 = vld [vmem:[#allocation7 + $0x5a0] sm:$0xff]
    %v2420 = vld [vmem:[#allocation7 + $0x5a8] sm:$0xff]
    %v2421 = vld [vmem:[#allocation7 + $0x5b0] sm:$0xff]
    %v2422 = vld [vmem:[#allocation7 + $0x5b8] sm:$0xff]
    %v2423 = vld [vmem:[#allocation7 + $0x5c0] sm:$0xff]
    %v2424 = vld [vmem:[#allocation7 + $0x5c8] sm:$0xff]
    %v2425 = vld [vmem:[#allocation7 + $0x5d0] sm:$0xff]
    %v2426 = vld [vmem:[#allocation7 + $0x5d8] sm:$0xff]
    %v2427 = vld [vmem:[#allocation7 + $0x5e0] sm:$0xff]
    %v2428 = vld [vmem:[#allocation7 + $0x5e8] sm:$0xff]
    %v2429 = vld [vmem:[#allocation7 + $0x5f0] sm:$0xff]
    %v2430 = vld [vmem:[#allocation7 + $0x5f8] sm:$0xff]
    %v2431 = vld [vmem:[#allocation7 + $0x600] sm:$0xff]
    %v2432 = vld [vmem:[#allocation7 + $0x608] sm:$0xff]
    %v2433 = vld [vmem:[#allocation7 + $0x610] sm:$0xff]
    %v2434 = vld [vmem:[#allocation7 + $0x618] sm:$0xff]
    %v2435 = vld [vmem:[#allocation7 + $0x620] sm:$0xff]
    %v2436 = vld [vmem:[#allocation7 + $0x628] sm:$0xff]
    %v2437 = vld [vmem:[#allocation7 + $0x630] sm:$0xff]
    %v2438 = vld [vmem:[#allocation7 + $0x638] sm:$0xff]
    %v2439 = vld [vmem:[#allocation7 + $0x640] sm:$0xff]
    %v2440 = vld [vmem:[#allocation7 + $0x648] sm:$0xff]
    %v2441 = vld [vmem:[#allocation7 + $0x650] sm:$0xff]
    %v2442 = vld [vmem:[#allocation7 + $0x658] sm:$0xff]
    %v2443 = vld [vmem:[#allocation7 + $0x660] sm:$0xff]
    %v2444 = vld [vmem:[#allocation7 + $0x668] sm:$0xff]
    %v2445 = vld [vmem:[#allocation7 + $0x670] sm:$0xff]
    %v2446 = vld [vmem:[#allocation7 + $0x678] sm:$0xff]
    %v2447 = vld [vmem:[#allocation7 + $0x680] sm:$0xff]
    %v2448 = vld [vmem:[#allocation7 + $0x688] sm:$0xff]
    %v2449 = vld [vmem:[#allocation7 + $0x690] sm:$0xff]
    %v2450 = vld [vmem:[#allocation7 + $0x698] sm:$0xff]
    %v2451 = vld [vmem:[#allocation7 + $0x6a0] sm:$0xff]
    %v2452 = vld [vmem:[#allocation7 + $0x6a8] sm:$0xff]
    %v2453 = vld [vmem:[#allocation7 + $0x6b0] sm:$0xff]
    %v2454 = vld [vmem:[#allocation7 + $0x6b8] sm:$0xff]
    %v2455 = vld [vmem:[#allocation7 + $0x6c0] sm:$0xff]
    %v2456 = vld [vmem:[#allocation7 + $0x6c8] sm:$0xff]
    %v2457 = vld [vmem:[#allocation7 + $0x6d0] sm:$0xff]
    %v2458 = vld [vmem:[#allocation7 + $0x6d8] sm:$0xff]
    %v2459 = vld [vmem:[#allocation7 + $0x6e0] sm:$0xff]
    %v2460 = vld [vmem:[#allocation7 + $0x6e8] sm:$0xff]
    %v2461 = vld [vmem:[#allocation7 + $0x6f0] sm:$0xff]
    %v2462 = vld [vmem:[#allocation7 + $0x6f8] sm:$0xff]
    %v2463 = vld [vmem:[#allocation7 + $0x700] sm:$0xff]
    %v2464 = vld [vmem:[#allocation7 + $0x708] sm:$0xff]
    %v2465 = vld [vmem:[#allocation7 + $0x710] sm:$0xff]
    %v2466 = vld [vmem:[#allocation7 + $0x718] sm:$0xff]
    %v2467 = vld [vmem:[#allocation7 + $0x720] sm:$0xff]
    %v2468 = vld [vmem:[#allocation7 + $0x728] sm:$0xff]
    %v2469 = vld [vmem:[#allocation7 + $0x730] sm:$0xff]
    %v2470 = vld [vmem:[#allocation7 + $0x738] sm:$0xff]
    %v2471 = vld [vmem:[#allocation7 + $0x740] sm:$0xff]
    %v2472 = vld [vmem:[#allocation7 + $0x748] sm:$0xff]
    %v2473 = vld [vmem:[#allocation7 + $0x750] sm:$0xff]
    %v2474 = vld [vmem:[#allocation7 + $0x758] sm:$0xff]
    %v2475 = vld [vmem:[#allocation7 + $0x760] sm:$0xff]
    %v2476 = vld [vmem:[#allocation7 + $0x768] sm:$0xff]
    %v2477 = vld [vmem:[#allocation7 + $0x770] sm:$0xff]
    %v2478 = vld [vmem:[#allocation7 + $0x778] sm:$0xff]
    %v2479 = vld [vmem:[#allocation7 + $0x780] sm:$0xff]
    %v2480 = vld [vmem:[#allocation7 + $0x788] sm:$0xff]
    %v2481 = vld [vmem:[#allocation7 + $0x790] sm:$0xff]
    %v2482 = vld [vmem:[#allocation7 + $0x798] sm:$0xff]
    %v2483 = vld [vmem:[#allocation7 + $0x7a0] sm:$0xff]
    %v2484 = vld [vmem:[#allocation7 + $0x7a8] sm:$0xff]
    %v2485 = vld [vmem:[#allocation7 + $0x7b0] sm:$0xff]
    %v2486 = vld [vmem:[#allocation7 + $0x7b8] sm:$0xff]
    %v2487 = vld [vmem:[#allocation7 + $0x7c0] sm:$0xff]
    %v2488 = vld [vmem:[#allocation7 + $0x7c8] sm:$0xff]
    %v2489 = vld [vmem:[#allocation7 + $0x7d0] sm:$0xff]
    %v2490 = vld [vmem:[#allocation7 + $0x7d8] sm:$0xff]
    %v2491 = vld [vmem:[#allocation7 + $0x7e0] sm:$0xff]
    %v2492 = vld [vmem:[#allocation7 + $0x7e8] sm:$0xff]
    %v2493 = vld [vmem:[#allocation7 + $0x7f0] sm:$0xff]
    %v2494 = vld [vmem:[#allocation7 + $0x7f8] sm:$0xff]
    %v2495 = vld [vmem:[#allocation7 + $0x800] sm:$0xff]
    %v2496 = vld [vmem:[#allocation7 + $0x808] sm:$0xff]
    %v2497 = vld [vmem:[#allocation7 + $0x810] sm:$0xff]
    %v2498 = vld [vmem:[#allocation7 + $0x818] sm:$0xff]
    %v2499 = vld [vmem:[#allocation7 + $0x820] sm:$0xff]
    %v2500 = vld [vmem:[#allocation7 + $0x828] sm:$0xff]
    %v2501 = vld [vmem:[#allocation7 + $0x830] sm:$0xff]
    %v2502 = vld [vmem:[#allocation7 + $0x838] sm:$0xff]
    %v2503 = vld [vmem:[#allocation7 + $0x840] sm:$0xff]
    %v2504 = vld [vmem:[#allocation7 + $0x848] sm:$0xff]
    %v2505 = vld [vmem:[#allocation7 + $0x850] sm:$0xff]
    %v2506 = vld [vmem:[#allocation7 + $0x858] sm:$0xff]
    %v2507 = vld [vmem:[#allocation7 + $0x860] sm:$0xff]
    %v2508 = vld [vmem:[#allocation7 + $0x868] sm:$0xff]
    %v2509 = vld [vmem:[#allocation7 + $0x870] sm:$0xff]
    %v2510 = vld [vmem:[#allocation7 + $0x878] sm:$0xff]
    %v2511 = vld [vmem:[#allocation7 + $0x880] sm:$0xff]
    %v2512 = vld [vmem:[#allocation7 + $0x888] sm:$0xff]
    %v2513 = vld [vmem:[#allocation7 + $0x890] sm:$0xff]
    %v2514 = vld [vmem:[#allocation7 + $0x898] sm:$0xff]
    %v2515 = vld [vmem:[#allocation7 + $0x8a0] sm:$0xff]
    %v2516 = vld [vmem:[#allocation7 + $0x8a8] sm:$0xff]
    %v2517 = vld [vmem:[#allocation7 + $0x8b0] sm:$0xff]
    %v2518 = vld [vmem:[#allocation7 + $0x8b8] sm:$0xff]
    %v2519 = vld [vmem:[#allocation7 + $0x8c0] sm:$0xff]
    %v2520 = vld [vmem:[#allocation7 + $0x8c8] sm:$0xff]
    %v2521 = vld [vmem:[#allocation7 + $0x8d0] sm:$0xff]
    %v2522 = vld [vmem:[#allocation7 + $0x8d8] sm:$0xff]
    %v2523 = vld [vmem:[#allocation7 + $0x8e0] sm:$0xff]
    %v2524 = vld [vmem:[#allocation7 + $0x8e8] sm:$0xff]
    %v2525 = vld [vmem:[#allocation7 + $0x8f0] sm:$0xff]
    %v2526 = vld [vmem:[#allocation7 + $0x8f8] sm:$0xff]
    %v2527 = vld [vmem:[#allocation7 + $0x900] sm:$0xff]
    %v2528 = vld [vmem:[#allocation7 + $0x908] sm:$0xff]
    %v2529 = vld [vmem:[#allocation7 + $0x910] sm:$0xff]
    %v2530 = vld [vmem:[#allocation7 + $0x918] sm:$0xff]
    %v2531 = vld [vmem:[#allocation7 + $0x920] sm:$0xff]
    %v2532 = vld [vmem:[#allocation7 + $0x928] sm:$0xff]
    %v2533 = vld [vmem:[#allocation7 + $0x930] sm:$0xff]
    %v2534 = vld [vmem:[#allocation7 + $0x938] sm:$0xff]
    %v2535 = vld [vmem:[#allocation7 + $0x940] sm:$0xff]
    %v2536 = vld [vmem:[#allocation7 + $0x948] sm:$0xff]
    %v2537 = vld [vmem:[#allocation7 + $0x950] sm:$0xff]
    %v2538 = vld [vmem:[#allocation7 + $0x958] sm:$0xff]
    %v2539 = vld [vmem:[#allocation7 + $0x960] sm:$0xff]
    %v2540 = vld [vmem:[#allocation7 + $0x968] sm:$0xff]
    %v2541 = vld [vmem:[#allocation7 + $0x970] sm:$0xff]
    %v2542 = vld [vmem:[#allocation7 + $0x978] sm:$0xff]
    %v2543 = vld [vmem:[#allocation7 + $0x980] sm:$0xff]
    %v2544 = vld [vmem:[#allocation7 + $0x988] sm:$0xff]
    %v2545 = vld [vmem:[#allocation7 + $0x990] sm:$0xff]
    %v2546 = vld [vmem:[#allocation7 + $0x998] sm:$0xff]
    %v2547 = vld [vmem:[#allocation7 + $0x9a0] sm:$0xff]
    %v2548 = vld [vmem:[#allocation7 + $0x9a8] sm:$0xff]
    %v2549 = vld [vmem:[#allocation7 + $0x9b0] sm:$0xff]
    %v2550 = vld [vmem:[#allocation7 + $0x9b8] sm:$0xff]
    %v2551 = vld [vmem:[#allocation7 + $0x9c0] sm:$0xff]
    %v2552 = vld [vmem:[#allocation7 + $0x9c8] sm:$0xff]
    %v2553 = vld [vmem:[#allocation7 + $0x9d0] sm:$0xff]
    %v2554 = vld [vmem:[#allocation7 + $0x9d8] sm:$0xff]
    %v2555 = vld [vmem:[#allocation7 + $0x9e0] sm:$0xff]
    %v2556 = vld [vmem:[#allocation7 + $0x9e8] sm:$0xff]
    %v2557 = vld [vmem:[#allocation7 + $0x9f0] sm:$0xff]
    %v2558 = vld [vmem:[#allocation7 + $0x9f8] sm:$0xff]
    %v2559 = vld [vmem:[#allocation7 + $0xa00] sm:$0xff]
    %v2560 = vld [vmem:[#allocation7 + $0xa08] sm:$0xff]
    %v2561 = vld [vmem:[#allocation7 + $0xa10] sm:$0xff]
    %v2562 = vld [vmem:[#allocation7 + $0xa18] sm:$0xff]
    %v2563 = vld [vmem:[#allocation7 + $0xa20] sm:$0xff]
    %v2564 = vld [vmem:[#allocation7 + $0xa28] sm:$0xff]
    %v2565 = vld [vmem:[#allocation7 + $0xa30] sm:$0xff]
    %v2566 = vld [vmem:[#allocation7 + $0xa38] sm:$0xff]
    %v2567 = vld [vmem:[#allocation7 + $0xa40] sm:$0xff]
    %v2568 = vld [vmem:[#allocation7 + $0xa48] sm:$0xff]
    %v2569 = vld [vmem:[#allocation7 + $0xa50] sm:$0xff]
    %v2570 = vld [vmem:[#allocation7 + $0xa58] sm:$0xff]
    %v2571 = vld [vmem:[#allocation7 + $0xa60] sm:$0xff]
    %v2572 = vld [vmem:[#allocation7 + $0xa68] sm:$0xff]
    %v2573 = vld [vmem:[#allocation7 + $0xa70] sm:$0xff]
    %v2574 = vld [vmem:[#allocation7 + $0xa78] sm:$0xff]
    %v2575 = vld [vmem:[#allocation7 + $0xa80] sm:$0xff]
    %v2576 = vld [vmem:[#allocation7 + $0xa88] sm:$0xff]
    %v2577 = vld [vmem:[#allocation7 + $0xa90] sm:$0xff]
    %v2578 = vld [vmem:[#allocation7 + $0xa98] sm:$0xff]
    %v2579 = vld [vmem:[#allocation7 + $0xaa0] sm:$0xff]
    %v2580 = vld [vmem:[#allocation7 + $0xaa8] sm:$0xff]
    %v2581 = vld [vmem:[#allocation7 + $0xab0] sm:$0xff]
    %v2582 = vld [vmem:[#allocation7 + $0xab8] sm:$0xff]
    %v2583 = vld [vmem:[#allocation7 + $0xac0] sm:$0xff]
    %v2584 = vld [vmem:[#allocation7 + $0xac8] sm:$0xff]
    %v2585 = vld [vmem:[#allocation7 + $0xad0] sm:$0xff]
    %v2586 = vld [vmem:[#allocation7 + $0xad8] sm:$0xff]
    %v2587 = vld [vmem:[#allocation7 + $0xae0] sm:$0xff]
    %v2588 = vld [vmem:[#allocation7 + $0xae8] sm:$0xff]
    %v2589 = vld [vmem:[#allocation7 + $0xaf0] sm:$0xff]
    %v2590 = vld [vmem:[#allocation7 + $0xaf8] sm:$0xff]
    %v2591 = vld [vmem:[#allocation7 + $0xb00] sm:$0xff]
    %v2592 = vld [vmem:[#allocation7 + $0xb08] sm:$0xff]
    %v2593 = vld [vmem:[#allocation7 + $0xb10] sm:$0xff]
    %v2594 = vld [vmem:[#allocation7 + $0xb18] sm:$0xff]
    %v2595 = vld [vmem:[#allocation7 + $0xb20] sm:$0xff]
    %v2596 = vld [vmem:[#allocation7 + $0xb28] sm:$0xff]
    %v2597 = vld [vmem:[#allocation7 + $0xb30] sm:$0xff]
    %v2598 = vld [vmem:[#allocation7 + $0xb38] sm:$0xff]
    %v2599 = vld [vmem:[#allocation7 + $0xb40] sm:$0xff]
    %v2600 = vld [vmem:[#allocation7 + $0xb48] sm:$0xff]
    %v2601 = vld [vmem:[#allocation7 + $0xb50] sm:$0xff]
    %v2602 = vld [vmem:[#allocation7 + $0xb58] sm:$0xff]
    %v2603 = vld [vmem:[#allocation7 + $0xb60] sm:$0xff]
    %v2604 = vld [vmem:[#allocation7 + $0xb68] sm:$0xff]
    %v2605 = vld [vmem:[#allocation7 + $0xb70] sm:$0xff]
    %v2606 = vld [vmem:[#allocation7 + $0xb78] sm:$0xff]
    %v2607 = vld [vmem:[#allocation7 + $0xb80] sm:$0xff]
    %v2608 = vld [vmem:[#allocation7 + $0xb88] sm:$0xff]
    %v2609 = vld [vmem:[#allocation7 + $0xb90] sm:$0xff]
    %v2610 = vld [vmem:[#allocation7 + $0xb98] sm:$0xff]
    %v2611 = vld [vmem:[#allocation7 + $0xba0] sm:$0xff]
    %v2612 = vld [vmem:[#allocation7 + $0xba8] sm:$0xff]
    %v2613 = vld [vmem:[#allocation7 + $0xbb0] sm:$0xff]
    %v2614 = vld [vmem:[#allocation7 + $0xbb8] sm:$0xff]
    %v2615 = vld [vmem:[#allocation7 + $0xbc0] sm:$0xff]
    %v2616 = vld [vmem:[#allocation7 + $0xbc8] sm:$0xff]
    %v2617 = vld [vmem:[#allocation7 + $0xbd0] sm:$0xff]
    %v2618 = vld [vmem:[#allocation7 + $0xbd8] sm:$0xff]
    %v2619 = vld [vmem:[#allocation7 + $0xbe0] sm:$0xff]
    %v2620 = vld [vmem:[#allocation7 + $0xbe8] sm:$0xff]
    %v2621 = vld [vmem:[#allocation7 + $0xbf0] sm:$0xff]
    %v2622 = vld [vmem:[#allocation7 + $0xbf8] sm:$0xff]
    %v2623 = vld [vmem:[#allocation7 + $0xc00] sm:$0xff]
    %v2624 = vld [vmem:[#allocation7 + $0xc08] sm:$0xff]
    %v2625 = vld [vmem:[#allocation7 + $0xc10] sm:$0xff]
    %v2626 = vld [vmem:[#allocation7 + $0xc18] sm:$0xff]
    %v2627 = vld [vmem:[#allocation7 + $0xc20] sm:$0xff]
    %v2628 = vld [vmem:[#allocation7 + $0xc28] sm:$0xff]
    %v2629 = vld [vmem:[#allocation7 + $0xc30] sm:$0xff]
    %v2630 = vld [vmem:[#allocation7 + $0xc38] sm:$0xff]
    %v2631 = vld [vmem:[#allocation7 + $0xc40] sm:$0xff]
    %v2632 = vld [vmem:[#allocation7 + $0xc48] sm:$0xff]
    %v2633 = vld [vmem:[#allocation7 + $0xc50] sm:$0xff]
    %v2634 = vld [vmem:[#allocation7 + $0xc58] sm:$0xff]
    %v2635 = vld [vmem:[#allocation7 + $0xc60] sm:$0xff]
    %v2636 = vld [vmem:[#allocation7 + $0xc68] sm:$0xff]
    %v2637 = vld [vmem:[#allocation7 + $0xc70] sm:$0xff]
    %v2638 = vld [vmem:[#allocation7 + $0xc78] sm:$0xff]
    %v2639 = vld [vmem:[#allocation7 + $0xc80] sm:$0xff]
    %v2640 = vld [vmem:[#allocation7 + $0xc88] sm:$0xff]
    %v2641 = vld [vmem:[#allocation7 + $0xc90] sm:$0xff]
    %v2642 = vld [vmem:[#allocation7 + $0xc98] sm:$0xff]
    %v2643 = vld [vmem:[#allocation7 + $0xca0] sm:$0xff]
    %v2644 = vld [vmem:[#allocation7 + $0xca8] sm:$0xff]
    %v2645 = vld [vmem:[#allocation7 + $0xcb0] sm:$0xff]
    %v2646 = vld [vmem:[#allocation7 + $0xcb8] sm:$0xff]
    %v2647 = vld [vmem:[#allocation7 + $0xcc0] sm:$0xff]
    %v2648 = vld [vmem:[#allocation7 + $0xcc8] sm:$0xff]
    %v2649 = vld [vmem:[#allocation7 + $0xcd0] sm:$0xff]
    %v2650 = vld [vmem:[#allocation7 + $0xcd8] sm:$0xff]
    %v2651 = vld [vmem:[#allocation7 + $0xce0] sm:$0xff]
    %v2652 = vld [vmem:[#allocation7 + $0xce8] sm:$0xff]
    %v2653 = vld [vmem:[#allocation7 + $0xcf0] sm:$0xff]
    %v2654 = vld [vmem:[#allocation7 + $0xcf8] sm:$0xff]
    %v2655 = vld [vmem:[#allocation7 + $0xd00] sm:$0xff]
    %v2656 = vld [vmem:[#allocation7 + $0xd08] sm:$0xff]
    %v2657 = vld [vmem:[#allocation7 + $0xd10] sm:$0xff]
    %v2658 = vld [vmem:[#allocation7 + $0xd18] sm:$0xff]
    %v2659 = vld [vmem:[#allocation7 + $0xd20] sm:$0xff]
    %v2660 = vld [vmem:[#allocation7 + $0xd28] sm:$0xff]
    %v2661 = vld [vmem:[#allocation7 + $0xd30] sm:$0xff]
    %v2662 = vld [vmem:[#allocation7 + $0xd38] sm:$0xff]
    %v2663 = vld [vmem:[#allocation7 + $0xd40] sm:$0xff]
    %v2664 = vld [vmem:[#allocation7 + $0xd48] sm:$0xff]
    %v2665 = vld [vmem:[#allocation7 + $0xd50] sm:$0xff]
    %v2666 = vld [vmem:[#allocation7 + $0xd58] sm:$0xff]
    %v2667 = vld [vmem:[#allocation7 + $0xd60] sm:$0xff]
    %v2668 = vld [vmem:[#allocation7 + $0xd68] sm:$0xff]
    %v2669 = vld [vmem:[#allocation7 + $0xd70] sm:$0xff]
    %v2670 = vld [vmem:[#allocation7 + $0xd78] sm:$0xff]
    %v2671 = vld [vmem:[#allocation7 + $0xd80] sm:$0xff]
    %v2672 = vld [vmem:[#allocation7 + $0xd88] sm:$0xff]
    %v2673 = vld [vmem:[#allocation7 + $0xd90] sm:$0xff]
    %v2674 = vld [vmem:[#allocation7 + $0xd98] sm:$0xff]
    %v2675 = vld [vmem:[#allocation7 + $0xda0] sm:$0xff]
    %v2676 = vld [vmem:[#allocation7 + $0xda8] sm:$0xff]
    %v2677 = vld [vmem:[#allocation7 + $0xdb0] sm:$0xff]
    %v2678 = vld [vmem:[#allocation7 + $0xdb8] sm:$0xff]
    %v2679 = vld [vmem:[#allocation7 + $0xdc0] sm:$0xff]
    %v2680 = vld [vmem:[#allocation7 + $0xdc8] sm:$0xff]
    %v2681 = vld [vmem:[#allocation7 + $0xdd0] sm:$0xff]
    %v2682 = vld [vmem:[#allocation7 + $0xdd8] sm:$0xff]
    %v2683 = vld [vmem:[#allocation7 + $0xde0] sm:$0xff]
    %v2684 = vld [vmem:[#allocation7 + $0xde8] sm:$0xff]
    %v2685 = vld [vmem:[#allocation7 + $0xdf0] sm:$0xff]
    %v2686 = vld [vmem:[#allocation7 + $0xdf8] sm:$0xff]
    %v2687 = vld [vmem:[#allocation7 + $0xe00] sm:$0xff]
    %v2688 = vld [vmem:[#allocation7 + $0xe08] sm:$0xff]
    %v2689 = vld [vmem:[#allocation7 + $0xe10] sm:$0xff]
    %v2690 = vld [vmem:[#allocation7 + $0xe18] sm:$0xff]
    %v2691 = vld [vmem:[#allocation7 + $0xe20] sm:$0xff]
    %v2692 = vld [vmem:[#allocation7 + $0xe28] sm:$0xff]
    %v2693 = vld [vmem:[#allocation7 + $0xe30] sm:$0xff]
    %v2694 = vld [vmem:[#allocation7 + $0xe38] sm:$0xff]
    %v2695 = vld [vmem:[#allocation7 + $0xe40] sm:$0xff]
    %v2696 = vld [vmem:[#allocation7 + $0xe48] sm:$0xff]
    %v2697 = vld [vmem:[#allocation7 + $0xe50] sm:$0xff]
    %v2698 = vld [vmem:[#allocation7 + $0xe58] sm:$0xff]
    %v2699 = vld [vmem:[#allocation7 + $0xe60] sm:$0xff]
    %v2700 = vld [vmem:[#allocation7 + $0xe68] sm:$0xff]
    %v2701 = vld [vmem:[#allocation7 + $0xe70] sm:$0xff]
    %v2702 = vld [vmem:[#allocation7 + $0xe78] sm:$0xff]
    %v2703 = vld [vmem:[#allocation7 + $0xe80] sm:$0xff]
    %v2704 = vld [vmem:[#allocation7 + $0xe88] sm:$0xff]
    %v2705 = vld [vmem:[#allocation7 + $0xe90] sm:$0xff]
    %v2706 = vld [vmem:[#allocation7 + $0xe98] sm:$0xff]
    %v2707 = vld [vmem:[#allocation7 + $0xea0] sm:$0xff]
    %v2708 = vld [vmem:[#allocation7 + $0xea8] sm:$0xff]
    %v2709 = vld [vmem:[#allocation7 + $0xeb0] sm:$0xff]
    %v2710 = vld [vmem:[#allocation7 + $0xeb8] sm:$0xff]
    %v2711 = vld [vmem:[#allocation7 + $0xec0] sm:$0xff]
    %v2712 = vld [vmem:[#allocation7 + $0xec8] sm:$0xff]
    %v2713 = vld [vmem:[#allocation7 + $0xed0] sm:$0xff]
    %v2714 = vld [vmem:[#allocation7 + $0xed8] sm:$0xff]
    %v2715 = vld [vmem:[#allocation7 + $0xee0] sm:$0xff]
    %v2716 = vld [vmem:[#allocation7 + $0xee8] sm:$0xff]
    %v2717 = vld [vmem:[#allocation7 + $0xef0] sm:$0xff]
    %v2718 = vld [vmem:[#allocation7 + $0xef8] sm:$0xff]
    %v2719 = vld [vmem:[#allocation7 + $0xf00] sm:$0xff]
    %v2720 = vld [vmem:[#allocation7 + $0xf08] sm:$0xff]
    %v2721 = vld [vmem:[#allocation7 + $0xf10] sm:$0xff]
    %v2722 = vld [vmem:[#allocation7 + $0xf18] sm:$0xff]
    %v2723 = vld [vmem:[#allocation7 + $0xf20] sm:$0xff]
    %v2724 = vld [vmem:[#allocation7 + $0xf28] sm:$0xff]
    %v2725 = vld [vmem:[#allocation7 + $0xf30] sm:$0xff]
    %v2726 = vld [vmem:[#allocation7 + $0xf38] sm:$0xff]
    %v2727 = vld [vmem:[#allocation7 + $0xf40] sm:$0xff]
    %v2728 = vld [vmem:[#allocation7 + $0xf48] sm:$0xff]
    %v2729 = vld [vmem:[#allocation7 + $0xf50] sm:$0xff]
    %v2730 = vld [vmem:[#allocation7 + $0xf58] sm:$0xff]
    %v2731 = vld [vmem:[#allocation7 + $0xf60] sm:$0xff]
    %v2732 = vld [vmem:[#allocation7 + $0xf68] sm:$0xff]
    %v2733 = vld [vmem:[#allocation7 + $0xf70] sm:$0xff]
    %v2734 = vld [vmem:[#allocation7 + $0xf78] sm:$0xff]
    %v2735 = vld [vmem:[#allocation7 + $0xf80] sm:$0xff]
    %v2736 = vld [vmem:[#allocation7 + $0xf88] sm:$0xff]
    %v2737 = vld [vmem:[#allocation7 + $0xf90] sm:$0xff]
    %v2738 = vld [vmem:[#allocation7 + $0xf98] sm:$0xff]
    %v2739 = vld [vmem:[#allocation7 + $0xfa0] sm:$0xff]
    %v2740 = vld [vmem:[#allocation7 + $0xfa8] sm:$0xff]
    %v2741 = vld [vmem:[#allocation7 + $0xfb0] sm:$0xff]
    %v2742 = vld [vmem:[#allocation7 + $0xfb8] sm:$0xff]
    %v2743 = vld [vmem:[#allocation7 + $0xfc0] sm:$0xff]
    %v2744 = vld [vmem:[#allocation7 + $0xfc8] sm:$0xff]
    %v2745 = vld [vmem:[#allocation7 + $0xfd0] sm:$0xff]
    %v2746 = vld [vmem:[#allocation7 + $0xfd8] sm:$0xff]
    %v2747 = vld [vmem:[#allocation7 + $0xfe0] sm:$0xff]
    %v2748 = vld [vmem:[#allocation7 + $0xfe8] sm:$0xff]
    %v2749 = vld [vmem:[#allocation7 + $0xff0] sm:$0xff]
    %v2750 = vld [vmem:[#allocation7 + $0xff8] sm:$0xff]
    %v3263 = vunpack.c.l.b16 %v2239
    %v3264 = vunpack.c.h.b16 %v2239
    %v3265 = vunpack.c.l.b16 %v2240
    %v3266 = vunpack.c.h.b16 %v2240
    %v3267 = vunpack.c.l.b16 %v2241
    %v3268 = vunpack.c.h.b16 %v2241
    %v3269 = vunpack.c.l.b16 %v2242
    %v3270 = vunpack.c.h.b16 %v2242
    %v3271 = vunpack.c.l.b16 %v2243
    %v3272 = vunpack.c.h.b16 %v2243
    %v3273 = vunpack.c.l.b16 %v2244
    %v3274 = vunpack.c.h.b16 %v2244
    %v3275 = vunpack.c.l.b16 %v2245
    %v3276 = vunpack.c.h.b16 %v2245
    %v3277 = vunpack.c.l.b16 %v2246
    %v3278 = vunpack.c.h.b16 %v2246
    %v3279 = vunpack.c.l.b16 %v2247
    %v3280 = vunpack.c.h.b16 %v2247
    %v3281 = vunpack.c.l.b16 %v2248
    %v3282 = vunpack.c.h.b16 %v2248
    %v3283 = vunpack.c.l.b16 %v2249
    %v3284 = vunpack.c.h.b16 %v2249
    %v3285 = vunpack.c.l.b16 %v2250
    %v3286 = vunpack.c.h.b16 %v2250
    %v3287 = vunpack.c.l.b16 %v2251
    %v3288 = vunpack.c.h.b16 %v2251
    %v3289 = vunpack.c.l.b16 %v2252
    %v3290 = vunpack.c.h.b16 %v2252
    %v3291 = vunpack.c.l.b16 %v2253
    %v3292 = vunpack.c.h.b16 %v2253
    %v3293 = vunpack.c.l.b16 %v2254
    %v3294 = vunpack.c.h.b16 %v2254
    %v3295 = vunpack.c.l.b16 %v2255
    %v3296 = vunpack.c.h.b16 %v2255
    %v3297 = vunpack.c.l.b16 %v2256
    %v3298 = vunpack.c.h.b16 %v2256
    %v3299 = vunpack.c.l.b16 %v2257
    %v3300 = vunpack.c.h.b16 %v2257
    %v3301 = vunpack.c.l.b16 %v2258
    %v3302 = vunpack.c.h.b16 %v2258
    %v3303 = vunpack.c.l.b16 %v2259
    %v3304 = vunpack.c.h.b16 %v2259
    %v3305 = vunpack.c.l.b16 %v2260
    %v3306 = vunpack.c.h.b16 %v2260
    %v3307 = vunpack.c.l.b16 %v2261
    %v3308 = vunpack.c.h.b16 %v2261
    %v3309 = vunpack.c.l.b16 %v2262
    %v3310 = vunpack.c.h.b16 %v2262
    %v3311 = vunpack.c.l.b16 %v2263
    %v3312 = vunpack.c.h.b16 %v2263
    %v3313 = vunpack.c.l.b16 %v2264
    %v3314 = vunpack.c.h.b16 %v2264
    %v3315 = vunpack.c.l.b16 %v2265
    %v3316 = vunpack.c.h.b16 %v2265
    %v3317 = vunpack.c.l.b16 %v2266
    %v3318 = vunpack.c.h.b16 %v2266
    %v3319 = vunpack.c.l.b16 %v2267
    %v3320 = vunpack.c.h.b16 %v2267
    %v3321 = vunpack.c.l.b16 %v2268
    %v3322 = vunpack.c.h.b16 %v2268
    %v3323 = vunpack.c.l.b16 %v2269
    %v3324 = vunpack.c.h.b16 %v2269
    %v3325 = vunpack.c.l.b16 %v2270
    %v3326 = vunpack.c.h.b16 %v2270
    %v3327 = vunpack.c.l.b16 %v2271
    %v3328 = vunpack.c.h.b16 %v2271
    %v3329 = vunpack.c.l.b16 %v2272
    %v3330 = vunpack.c.h.b16 %v2272
    %v3331 = vunpack.c.l.b16 %v2273
    %v3332 = vunpack.c.h.b16 %v2273
    %v3333 = vunpack.c.l.b16 %v2274
    %v3334 = vunpack.c.h.b16 %v2274
    %v3335 = vunpack.c.l.b16 %v2275
    %v3336 = vunpack.c.h.b16 %v2275
    %v3337 = vunpack.c.l.b16 %v2276
    %v3338 = vunpack.c.h.b16 %v2276
    %v3339 = vunpack.c.l.b16 %v2277
    %v3340 = vunpack.c.h.b16 %v2277
    %v3341 = vunpack.c.l.b16 %v2278
    %v3342 = vunpack.c.h.b16 %v2278
    %v3343 = vunpack.c.l.b16 %v2279
    %v3344 = vunpack.c.h.b16 %v2279
    %v3345 = vunpack.c.l.b16 %v2280
    %v3346 = vunpack.c.h.b16 %v2280
    %v3347 = vunpack.c.l.b16 %v2281
    %v3348 = vunpack.c.h.b16 %v2281
    %v3349 = vunpack.c.l.b16 %v2282
    %v3350 = vunpack.c.h.b16 %v2282
    %v3351 = vunpack.c.l.b16 %v2283
    %v3352 = vunpack.c.h.b16 %v2283
    %v3353 = vunpack.c.l.b16 %v2284
    %v3354 = vunpack.c.h.b16 %v2284
    %v3355 = vunpack.c.l.b16 %v2285
    %v3356 = vunpack.c.h.b16 %v2285
    %v3357 = vunpack.c.l.b16 %v2286
    %v3358 = vunpack.c.h.b16 %v2286
    %v3359 = vunpack.c.l.b16 %v2287
    %v3360 = vunpack.c.h.b16 %v2287
    %v3361 = vunpack.c.l.b16 %v2288
    %v3362 = vunpack.c.h.b16 %v2288
    %v3363 = vunpack.c.l.b16 %v2289
    %v3364 = vunpack.c.h.b16 %v2289
    %v3365 = vunpack.c.l.b16 %v2290
    %v3366 = vunpack.c.h.b16 %v2290
    %v3367 = vunpack.c.l.b16 %v2291
    %v3368 = vunpack.c.h.b16 %v2291
    %v3369 = vunpack.c.l.b16 %v2292
    %v3370 = vunpack.c.h.b16 %v2292
    %v3371 = vunpack.c.l.b16 %v2293
    %v3372 = vunpack.c.h.b16 %v2293
    %v3373 = vunpack.c.l.b16 %v2294
    %v3374 = vunpack.c.h.b16 %v2294
    %v3375 = vunpack.c.l.b16 %v2295
    %v3376 = vunpack.c.h.b16 %v2295
    %v3377 = vunpack.c.l.b16 %v2296
    %v3378 = vunpack.c.h.b16 %v2296
    %v3379 = vunpack.c.l.b16 %v2297
    %v3380 = vunpack.c.h.b16 %v2297
    %v3381 = vunpack.c.l.b16 %v2298
    %v3382 = vunpack.c.h.b16 %v2298
    %v3383 = vunpack.c.l.b16 %v2299
    %v3384 = vunpack.c.h.b16 %v2299
    %v3385 = vunpack.c.l.b16 %v2300
    %v3386 = vunpack.c.h.b16 %v2300
    %v3387 = vunpack.c.l.b16 %v2301
    %v3388 = vunpack.c.h.b16 %v2301
    %v3389 = vunpack.c.l.b16 %v2302
    %v3390 = vunpack.c.h.b16 %v2302
    %v3391 = vunpack.c.l.b16 %v2303
    %v3392 = vunpack.c.h.b16 %v2303
    %v3393 = vunpack.c.l.b16 %v2304
    %v3394 = vunpack.c.h.b16 %v2304
    %v3395 = vunpack.c.l.b16 %v2305
    %v3396 = vunpack.c.h.b16 %v2305
    %v3397 = vunpack.c.l.b16 %v2306
    %v3398 = vunpack.c.h.b16 %v2306
    %v3399 = vunpack.c.l.b16 %v2307
    %v3400 = vunpack.c.h.b16 %v2307
    %v3401 = vunpack.c.l.b16 %v2308
    %v3402 = vunpack.c.h.b16 %v2308
    %v3403 = vunpack.c.l.b16 %v2309
    %v3404 = vunpack.c.h.b16 %v2309
    %v3405 = vunpack.c.l.b16 %v2310
    %v3406 = vunpack.c.h.b16 %v2310
    %v3407 = vunpack.c.l.b16 %v2311
    %v3408 = vunpack.c.h.b16 %v2311
    %v3409 = vunpack.c.l.b16 %v2312
    %v3410 = vunpack.c.h.b16 %v2312
    %v3411 = vunpack.c.l.b16 %v2313
    %v3412 = vunpack.c.h.b16 %v2313
    %v3413 = vunpack.c.l.b16 %v2314
    %v3414 = vunpack.c.h.b16 %v2314
    %v3415 = vunpack.c.l.b16 %v2315
    %v3416 = vunpack.c.h.b16 %v2315
    %v3417 = vunpack.c.l.b16 %v2316
    %v3418 = vunpack.c.h.b16 %v2316
    %v3419 = vunpack.c.l.b16 %v2317
    %v3420 = vunpack.c.h.b16 %v2317
    %v3421 = vunpack.c.l.b16 %v2318
    %v3422 = vunpack.c.h.b16 %v2318
    %v3423 = vunpack.c.l.b16 %v2319
    %v3424 = vunpack.c.h.b16 %v2319
    %v3425 = vunpack.c.l.b16 %v2320
    %v3426 = vunpack.c.h.b16 %v2320
    %v3427 = vunpack.c.l.b16 %v2321
    %v3428 = vunpack.c.h.b16 %v2321
    %v3429 = vunpack.c.l.b16 %v2322
    %v3430 = vunpack.c.h.b16 %v2322
    %v3431 = vunpack.c.l.b16 %v2323
    %v3432 = vunpack.c.h.b16 %v2323
    %v3433 = vunpack.c.l.b16 %v2324
    %v3434 = vunpack.c.h.b16 %v2324
    %v3435 = vunpack.c.l.b16 %v2325
    %v3436 = vunpack.c.h.b16 %v2325
    %v3437 = vunpack.c.l.b16 %v2326
    %v3438 = vunpack.c.h.b16 %v2326
    %v3439 = vunpack.c.l.b16 %v2327
    %v3440 = vunpack.c.h.b16 %v2327
    %v3441 = vunpack.c.l.b16 %v2328
    %v3442 = vunpack.c.h.b16 %v2328
    %v3443 = vunpack.c.l.b16 %v2329
    %v3444 = vunpack.c.h.b16 %v2329
    %v3445 = vunpack.c.l.b16 %v2330
    %v3446 = vunpack.c.h.b16 %v2330
    %v3447 = vunpack.c.l.b16 %v2331
    %v3448 = vunpack.c.h.b16 %v2331
    %v3449 = vunpack.c.l.b16 %v2332
    %v3450 = vunpack.c.h.b16 %v2332
    %v3451 = vunpack.c.l.b16 %v2333
    %v3452 = vunpack.c.h.b16 %v2333
    %v3453 = vunpack.c.l.b16 %v2334
    %v3454 = vunpack.c.h.b16 %v2334
    %v3455 = vunpack.c.l.b16 %v2335
    %v3456 = vunpack.c.h.b16 %v2335
    %v3457 = vunpack.c.l.b16 %v2336
    %v3458 = vunpack.c.h.b16 %v2336
    %v3459 = vunpack.c.l.b16 %v2337
    %v3460 = vunpack.c.h.b16 %v2337
    %v3461 = vunpack.c.l.b16 %v2338
    %v3462 = vunpack.c.h.b16 %v2338
    %v3463 = vunpack.c.l.b16 %v2339
    %v3464 = vunpack.c.h.b16 %v2339
    %v3465 = vunpack.c.l.b16 %v2340
    %v3466 = vunpack.c.h.b16 %v2340
    %v3467 = vunpack.c.l.b16 %v2341
    %v3468 = vunpack.c.h.b16 %v2341
    %v3469 = vunpack.c.l.b16 %v2342
    %v3470 = vunpack.c.h.b16 %v2342
    %v3471 = vunpack.c.l.b16 %v2343
    %v3472 = vunpack.c.h.b16 %v2343
    %v3473 = vunpack.c.l.b16 %v2344
    %v3474 = vunpack.c.h.b16 %v2344
    %v3475 = vunpack.c.l.b16 %v2345
    %v3476 = vunpack.c.h.b16 %v2345
    %v3477 = vunpack.c.l.b16 %v2346
    %v3478 = vunpack.c.h.b16 %v2346
    %v3479 = vunpack.c.l.b16 %v2347
    %v3480 = vunpack.c.h.b16 %v2347
    %v3481 = vunpack.c.l.b16 %v2348
    %v3482 = vunpack.c.h.b16 %v2348
    %v3483 = vunpack.c.l.b16 %v2349
    %v3484 = vunpack.c.h.b16 %v2349
    %v3485 = vunpack.c.l.b16 %v2350
    %v3486 = vunpack.c.h.b16 %v2350
    %v3487 = vunpack.c.l.b16 %v2351
    %v3488 = vunpack.c.h.b16 %v2351
    %v3489 = vunpack.c.l.b16 %v2352
    %v3490 = vunpack.c.h.b16 %v2352
    %v3491 = vunpack.c.l.b16 %v2353
    %v3492 = vunpack.c.h.b16 %v2353
    %v3493 = vunpack.c.l.b16 %v2354
    %v3494 = vunpack.c.h.b16 %v2354
    %v3495 = vunpack.c.l.b16 %v2355
    %v3496 = vunpack.c.h.b16 %v2355
    %v3497 = vunpack.c.l.b16 %v2356
    %v3498 = vunpack.c.h.b16 %v2356
    %v3499 = vunpack.c.l.b16 %v2357
    %v3500 = vunpack.c.h.b16 %v2357
    %v3501 = vunpack.c.l.b16 %v2358
    %v3502 = vunpack.c.h.b16 %v2358
    %v3503 = vunpack.c.l.b16 %v2359
    %v3504 = vunpack.c.h.b16 %v2359
    %v3505 = vunpack.c.l.b16 %v2360
    %v3506 = vunpack.c.h.b16 %v2360
    %v3507 = vunpack.c.l.b16 %v2361
    %v3508 = vunpack.c.h.b16 %v2361
    %v3509 = vunpack.c.l.b16 %v2362
    %v3510 = vunpack.c.h.b16 %v2362
    %v3511 = vunpack.c.l.b16 %v2363
    %v3512 = vunpack.c.h.b16 %v2363
    %v3513 = vunpack.c.l.b16 %v2364
    %v3514 = vunpack.c.h.b16 %v2364
    %v3515 = vunpack.c.l.b16 %v2365
    %v3516 = vunpack.c.h.b16 %v2365
    %v3517 = vunpack.c.l.b16 %v2366
    %v3518 = vunpack.c.h.b16 %v2366
    %v3519 = vunpack.c.l.b16 %v2367
    %v3520 = vunpack.c.h.b16 %v2367
    %v3521 = vunpack.c.l.b16 %v2368
    %v3522 = vunpack.c.h.b16 %v2368
    %v3523 = vunpack.c.l.b16 %v2369
    %v3524 = vunpack.c.h.b16 %v2369
    %v3525 = vunpack.c.l.b16 %v2370
    %v3526 = vunpack.c.h.b16 %v2370
    %v3527 = vunpack.c.l.b16 %v2371
    %v3528 = vunpack.c.h.b16 %v2371
    %v3529 = vunpack.c.l.b16 %v2372
    %v3530 = vunpack.c.h.b16 %v2372
    %v3531 = vunpack.c.l.b16 %v2373
    %v3532 = vunpack.c.h.b16 %v2373
    %v3533 = vunpack.c.l.b16 %v2374
    %v3534 = vunpack.c.h.b16 %v2374
    %v3535 = vunpack.c.l.b16 %v2375
    %v3536 = vunpack.c.h.b16 %v2375
    %v3537 = vunpack.c.l.b16 %v2376
    %v3538 = vunpack.c.h.b16 %v2376
    %v3539 = vunpack.c.l.b16 %v2377
    %v3540 = vunpack.c.h.b16 %v2377
    %v3541 = vunpack.c.l.b16 %v2378
    %v3542 = vunpack.c.h.b16 %v2378
    %v3543 = vunpack.c.l.b16 %v2379
    %v3544 = vunpack.c.h.b16 %v2379
    %v3545 = vunpack.c.l.b16 %v2380
    %v3546 = vunpack.c.h.b16 %v2380
    %v3547 = vunpack.c.l.b16 %v2381
    %v3548 = vunpack.c.h.b16 %v2381
    %v3549 = vunpack.c.l.b16 %v2382
    %v3550 = vunpack.c.h.b16 %v2382
    %v3551 = vunpack.c.l.b16 %v2383
    %v3552 = vunpack.c.h.b16 %v2383
    %v3553 = vunpack.c.l.b16 %v2384
    %v3554 = vunpack.c.h.b16 %v2384
    %v3555 = vunpack.c.l.b16 %v2385
    %v3556 = vunpack.c.h.b16 %v2385
    %v3557 = vunpack.c.l.b16 %v2386
    %v3558 = vunpack.c.h.b16 %v2386
    %v3559 = vunpack.c.l.b16 %v2387
    %v3560 = vunpack.c.h.b16 %v2387
    %v3561 = vunpack.c.l.b16 %v2388
    %v3562 = vunpack.c.h.b16 %v2388
    %v3563 = vunpack.c.l.b16 %v2389
    %v3564 = vunpack.c.h.b16 %v2389
    %v3565 = vunpack.c.l.b16 %v2390
    %v3566 = vunpack.c.h.b16 %v2390
    %v3567 = vunpack.c.l.b16 %v2391
    %v3568 = vunpack.c.h.b16 %v2391
    %v3569 = vunpack.c.l.b16 %v2392
    %v3570 = vunpack.c.h.b16 %v2392
    %v3571 = vunpack.c.l.b16 %v2393
    %v3572 = vunpack.c.h.b16 %v2393
    %v3573 = vunpack.c.l.b16 %v2394
    %v3574 = vunpack.c.h.b16 %v2394
    %v3575 = vunpack.c.l.b16 %v2395
    %v3576 = vunpack.c.h.b16 %v2395
    %v3577 = vunpack.c.l.b16 %v2396
    %v3578 = vunpack.c.h.b16 %v2396
    %v3579 = vunpack.c.l.b16 %v2397
    %v3580 = vunpack.c.h.b16 %v2397
    %v3581 = vunpack.c.l.b16 %v2398
    %v3582 = vunpack.c.h.b16 %v2398
    %v3583 = vunpack.c.l.b16 %v2399
    %v3584 = vunpack.c.h.b16 %v2399
    %v3585 = vunpack.c.l.b16 %v2400
    %v3586 = vunpack.c.h.b16 %v2400
    %v3587 = vunpack.c.l.b16 %v2401
    %v3588 = vunpack.c.h.b16 %v2401
    %v3589 = vunpack.c.l.b16 %v2402
    %v3590 = vunpack.c.h.b16 %v2402
    %v3591 = vunpack.c.l.b16 %v2403
    %v3592 = vunpack.c.h.b16 %v2403
    %v3593 = vunpack.c.l.b16 %v2404
    %v3594 = vunpack.c.h.b16 %v2404
    %v3595 = vunpack.c.l.b16 %v2405
    %v3596 = vunpack.c.h.b16 %v2405
    %v3597 = vunpack.c.l.b16 %v2406
    %v3598 = vunpack.c.h.b16 %v2406
    %v3599 = vunpack.c.l.b16 %v2407
    %v3600 = vunpack.c.h.b16 %v2407
    %v3601 = vunpack.c.l.b16 %v2408
    %v3602 = vunpack.c.h.b16 %v2408
    %v3603 = vunpack.c.l.b16 %v2409
    %v3604 = vunpack.c.h.b16 %v2409
    %v3605 = vunpack.c.l.b16 %v2410
    %v3606 = vunpack.c.h.b16 %v2410
    %v3607 = vunpack.c.l.b16 %v2411
    %v3608 = vunpack.c.h.b16 %v2411
    %v3609 = vunpack.c.l.b16 %v2412
    %v3610 = vunpack.c.h.b16 %v2412
    %v3611 = vunpack.c.l.b16 %v2413
    %v3612 = vunpack.c.h.b16 %v2413
    %v3613 = vunpack.c.l.b16 %v2414
    %v3614 = vunpack.c.h.b16 %v2414
    %v3615 = vunpack.c.l.b16 %v2415
    %v3616 = vunpack.c.h.b16 %v2415
    %v3617 = vunpack.c.l.b16 %v2416
    %v3618 = vunpack.c.h.b16 %v2416
    %v3619 = vunpack.c.l.b16 %v2417
    %v3620 = vunpack.c.h.b16 %v2417
    %v3621 = vunpack.c.l.b16 %v2418
    %v3622 = vunpack.c.h.b16 %v2418
    %v3623 = vunpack.c.l.b16 %v2419
    %v3624 = vunpack.c.h.b16 %v2419
    %v3625 = vunpack.c.l.b16 %v2420
    %v3626 = vunpack.c.h.b16 %v2420
    %v3627 = vunpack.c.l.b16 %v2421
    %v3628 = vunpack.c.h.b16 %v2421
    %v3629 = vunpack.c.l.b16 %v2422
    %v3630 = vunpack.c.h.b16 %v2422
    %v3631 = vunpack.c.l.b16 %v2423
    %v3632 = vunpack.c.h.b16 %v2423
    %v3633 = vunpack.c.l.b16 %v2424
    %v3634 = vunpack.c.h.b16 %v2424
    %v3635 = vunpack.c.l.b16 %v2425
    %v3636 = vunpack.c.h.b16 %v2425
    %v3637 = vunpack.c.l.b16 %v2426
    %v3638 = vunpack.c.h.b16 %v2426
    %v3639 = vunpack.c.l.b16 %v2427
    %v3640 = vunpack.c.h.b16 %v2427
    %v3641 = vunpack.c.l.b16 %v2428
    %v3642 = vunpack.c.h.b16 %v2428
    %v3643 = vunpack.c.l.b16 %v2429
    %v3644 = vunpack.c.h.b16 %v2429
    %v3645 = vunpack.c.l.b16 %v2430
    %v3646 = vunpack.c.h.b16 %v2430
    %v3647 = vunpack.c.l.b16 %v2431
    %v3648 = vunpack.c.h.b16 %v2431
    %v3649 = vunpack.c.l.b16 %v2432
    %v3650 = vunpack.c.h.b16 %v2432
    %v3651 = vunpack.c.l.b16 %v2433
    %v3652 = vunpack.c.h.b16 %v2433
    %v3653 = vunpack.c.l.b16 %v2434
    %v3654 = vunpack.c.h.b16 %v2434
    %v3655 = vunpack.c.l.b16 %v2435
    %v3656 = vunpack.c.h.b16 %v2435
    %v3657 = vunpack.c.l.b16 %v2436
    %v3658 = vunpack.c.h.b16 %v2436
    %v3659 = vunpack.c.l.b16 %v2437
    %v3660 = vunpack.c.h.b16 %v2437
    %v3661 = vunpack.c.l.b16 %v2438
    %v3662 = vunpack.c.h.b16 %v2438
    %v3663 = vunpack.c.l.b16 %v2439
    %v3664 = vunpack.c.h.b16 %v2439
    %v3665 = vunpack.c.l.b16 %v2440
    %v3666 = vunpack.c.h.b16 %v2440
    %v3667 = vunpack.c.l.b16 %v2441
    %v3668 = vunpack.c.h.b16 %v2441
    %v3669 = vunpack.c.l.b16 %v2442
    %v3670 = vunpack.c.h.b16 %v2442
    %v3671 = vunpack.c.l.b16 %v2443
    %v3672 = vunpack.c.h.b16 %v2443
    %v3673 = vunpack.c.l.b16 %v2444
    %v3674 = vunpack.c.h.b16 %v2444
    %v3675 = vunpack.c.l.b16 %v2445
    %v3676 = vunpack.c.h.b16 %v2445
    %v3677 = vunpack.c.l.b16 %v2446
    %v3678 = vunpack.c.h.b16 %v2446
    %v3679 = vunpack.c.l.b16 %v2447
    %v3680 = vunpack.c.h.b16 %v2447
    %v3681 = vunpack.c.l.b16 %v2448
    %v3682 = vunpack.c.h.b16 %v2448
    %v3683 = vunpack.c.l.b16 %v2449
    %v3684 = vunpack.c.h.b16 %v2449
    %v3685 = vunpack.c.l.b16 %v2450
    %v3686 = vunpack.c.h.b16 %v2450
    %v3687 = vunpack.c.l.b16 %v2451
    %v3688 = vunpack.c.h.b16 %v2451
    %v3689 = vunpack.c.l.b16 %v2452
    %v3690 = vunpack.c.h.b16 %v2452
    %v3691 = vunpack.c.l.b16 %v2453
    %v3692 = vunpack.c.h.b16 %v2453
    %v3693 = vunpack.c.l.b16 %v2454
    %v3694 = vunpack.c.h.b16 %v2454
    %v3695 = vunpack.c.l.b16 %v2455
    %v3696 = vunpack.c.h.b16 %v2455
    %v3697 = vunpack.c.l.b16 %v2456
    %v3698 = vunpack.c.h.b16 %v2456
    %v3699 = vunpack.c.l.b16 %v2457
    %v3700 = vunpack.c.h.b16 %v2457
    %v3701 = vunpack.c.l.b16 %v2458
    %v3702 = vunpack.c.h.b16 %v2458
    %v3703 = vunpack.c.l.b16 %v2459
    %v3704 = vunpack.c.h.b16 %v2459
    %v3705 = vunpack.c.l.b16 %v2460
    %v3706 = vunpack.c.h.b16 %v2460
    %v3707 = vunpack.c.l.b16 %v2461
    %v3708 = vunpack.c.h.b16 %v2461
    %v3709 = vunpack.c.l.b16 %v2462
    %v3710 = vunpack.c.h.b16 %v2462
    %v3711 = vunpack.c.l.b16 %v2463
    %v3712 = vunpack.c.h.b16 %v2463
    %v3713 = vunpack.c.l.b16 %v2464
    %v3714 = vunpack.c.h.b16 %v2464
    %v3715 = vunpack.c.l.b16 %v2465
    %v3716 = vunpack.c.h.b16 %v2465
    %v3717 = vunpack.c.l.b16 %v2466
    %v3718 = vunpack.c.h.b16 %v2466
    %v3719 = vunpack.c.l.b16 %v2467
    %v3720 = vunpack.c.h.b16 %v2467
    %v3721 = vunpack.c.l.b16 %v2468
    %v3722 = vunpack.c.h.b16 %v2468
    %v3723 = vunpack.c.l.b16 %v2469
    %v3724 = vunpack.c.h.b16 %v2469
    %v3725 = vunpack.c.l.b16 %v2470
    %v3726 = vunpack.c.h.b16 %v2470
    %v3727 = vunpack.c.l.b16 %v2471
    %v3728 = vunpack.c.h.b16 %v2471
    %v3729 = vunpack.c.l.b16 %v2472
    %v3730 = vunpack.c.h.b16 %v2472
    %v3731 = vunpack.c.l.b16 %v2473
    %v3732 = vunpack.c.h.b16 %v2473
    %v3733 = vunpack.c.l.b16 %v2474
    %v3734 = vunpack.c.h.b16 %v2474
    %v3735 = vunpack.c.l.b16 %v2475
    %v3736 = vunpack.c.h.b16 %v2475
    %v3737 = vunpack.c.l.b16 %v2476
    %v3738 = vunpack.c.h.b16 %v2476
    %v3739 = vunpack.c.l.b16 %v2477
    %v3740 = vunpack.c.h.b16 %v2477
    %v3741 = vunpack.c.l.b16 %v2478
    %v3742 = vunpack.c.h.b16 %v2478
    %v3743 = vunpack.c.l.b16 %v2479
    %v3744 = vunpack.c.h.b16 %v2479
    %v3745 = vunpack.c.l.b16 %v2480
    %v3746 = vunpack.c.h.b16 %v2480
    %v3747 = vunpack.c.l.b16 %v2481
    %v3748 = vunpack.c.h.b16 %v2481
    %v3749 = vunpack.c.l.b16 %v2482
    %v3750 = vunpack.c.h.b16 %v2482
    %v3751 = vunpack.c.l.b16 %v2483
    %v3752 = vunpack.c.h.b16 %v2483
    %v3753 = vunpack.c.l.b16 %v2484
    %v3754 = vunpack.c.h.b16 %v2484
    %v3755 = vunpack.c.l.b16 %v2485
    %v3756 = vunpack.c.h.b16 %v2485
    %v3757 = vunpack.c.l.b16 %v2486
    %v3758 = vunpack.c.h.b16 %v2486
    %v3759 = vunpack.c.l.b16 %v2487
    %v3760 = vunpack.c.h.b16 %v2487
    %v3761 = vunpack.c.l.b16 %v2488
    %v3762 = vunpack.c.h.b16 %v2488
    %v3763 = vunpack.c.l.b16 %v2489
    %v3764 = vunpack.c.h.b16 %v2489
    %v3765 = vunpack.c.l.b16 %v2490
    %v3766 = vunpack.c.h.b16 %v2490
    %v3767 = vunpack.c.l.b16 %v2491
    %v3768 = vunpack.c.h.b16 %v2491
    %v3769 = vunpack.c.l.b16 %v2492
    %v3770 = vunpack.c.h.b16 %v2492
    %v3771 = vunpack.c.l.b16 %v2493
    %v3772 = vunpack.c.h.b16 %v2493
    %v3773 = vunpack.c.l.b16 %v2494
    %v3774 = vunpack.c.h.b16 %v2494
    %v3775 = vunpack.c.l.b16 %v2495
    %v3776 = vunpack.c.h.b16 %v2495
    %v3777 = vunpack.c.l.b16 %v2496
    %v3778 = vunpack.c.h.b16 %v2496
    %v3779 = vunpack.c.l.b16 %v2497
    %v3780 = vunpack.c.h.b16 %v2497
    %v3781 = vunpack.c.l.b16 %v2498
    %v3782 = vunpack.c.h.b16 %v2498
    %v3783 = vunpack.c.l.b16 %v2499
    %v3784 = vunpack.c.h.b16 %v2499
    %v3785 = vunpack.c.l.b16 %v2500
    %v3786 = vunpack.c.h.b16 %v2500
    %v3787 = vunpack.c.l.b16 %v2501
    %v3788 = vunpack.c.h.b16 %v2501
    %v3789 = vunpack.c.l.b16 %v2502
    %v3790 = vunpack.c.h.b16 %v2502
    %v3791 = vunpack.c.l.b16 %v2503
    %v3792 = vunpack.c.h.b16 %v2503
    %v3793 = vunpack.c.l.b16 %v2504
    %v3794 = vunpack.c.h.b16 %v2504
    %v3795 = vunpack.c.l.b16 %v2505
    %v3796 = vunpack.c.h.b16 %v2505
    %v3797 = vunpack.c.l.b16 %v2506
    %v3798 = vunpack.c.h.b16 %v2506
    %v3799 = vunpack.c.l.b16 %v2507
    %v3800 = vunpack.c.h.b16 %v2507
    %v3801 = vunpack.c.l.b16 %v2508
    %v3802 = vunpack.c.h.b16 %v2508
    %v3803 = vunpack.c.l.b16 %v2509
    %v3804 = vunpack.c.h.b16 %v2509
    %v3805 = vunpack.c.l.b16 %v2510
    %v3806 = vunpack.c.h.b16 %v2510
    %v3807 = vunpack.c.l.b16 %v2511
    %v3808 = vunpack.c.h.b16 %v2511
    %v3809 = vunpack.c.l.b16 %v2512
    %v3810 = vunpack.c.h.b16 %v2512
    %v3811 = vunpack.c.l.b16 %v2513
    %v3812 = vunpack.c.h.b16 %v2513
    %v3813 = vunpack.c.l.b16 %v2514
    %v3814 = vunpack.c.h.b16 %v2514
    %v3815 = vunpack.c.l.b16 %v2515
    %v3816 = vunpack.c.h.b16 %v2515
    %v3817 = vunpack.c.l.b16 %v2516
    %v3818 = vunpack.c.h.b16 %v2516
    %v3819 = vunpack.c.l.b16 %v2517
    %v3820 = vunpack.c.h.b16 %v2517
    %v3821 = vunpack.c.l.b16 %v2518
    %v3822 = vunpack.c.h.b16 %v2518
    %v3823 = vunpack.c.l.b16 %v2519
    %v3824 = vunpack.c.h.b16 %v2519
    %v3825 = vunpack.c.l.b16 %v2520
    %v3826 = vunpack.c.h.b16 %v2520
    %v3827 = vunpack.c.l.b16 %v2521
    %v3828 = vunpack.c.h.b16 %v2521
    %v3829 = vunpack.c.l.b16 %v2522
    %v3830 = vunpack.c.h.b16 %v2522
    %v3831 = vunpack.c.l.b16 %v2523
    %v3832 = vunpack.c.h.b16 %v2523
    %v3833 = vunpack.c.l.b16 %v2524
    %v3834 = vunpack.c.h.b16 %v2524
    %v3835 = vunpack.c.l.b16 %v2525
    %v3836 = vunpack.c.h.b16 %v2525
    %v3837 = vunpack.c.l.b16 %v2526
    %v3838 = vunpack.c.h.b16 %v2526
    %v3839 = vunpack.c.l.b16 %v2527
    %v3840 = vunpack.c.h.b16 %v2527
    %v3841 = vunpack.c.l.b16 %v2528
    %v3842 = vunpack.c.h.b16 %v2528
    %v3843 = vunpack.c.l.b16 %v2529
    %v3844 = vunpack.c.h.b16 %v2529
    %v3845 = vunpack.c.l.b16 %v2530
    %v3846 = vunpack.c.h.b16 %v2530
    %v3847 = vunpack.c.l.b16 %v2531
    %v3848 = vunpack.c.h.b16 %v2531
    %v3849 = vunpack.c.l.b16 %v2532
    %v3850 = vunpack.c.h.b16 %v2532
    %v3851 = vunpack.c.l.b16 %v2533
    %v3852 = vunpack.c.h.b16 %v2533
    %v3853 = vunpack.c.l.b16 %v2534
    %v3854 = vunpack.c.h.b16 %v2534
    %v3855 = vunpack.c.l.b16 %v2535
    %v3856 = vunpack.c.h.b16 %v2535
    %v3857 = vunpack.c.l.b16 %v2536
    %v3858 = vunpack.c.h.b16 %v2536
    %v3859 = vunpack.c.l.b16 %v2537
    %v3860 = vunpack.c.h.b16 %v2537
    %v3861 = vunpack.c.l.b16 %v2538
    %v3862 = vunpack.c.h.b16 %v2538
    %v3863 = vunpack.c.l.b16 %v2539
    %v3864 = vunpack.c.h.b16 %v2539
    %v3865 = vunpack.c.l.b16 %v2540
    %v3866 = vunpack.c.h.b16 %v2540
    %v3867 = vunpack.c.l.b16 %v2541
    %v3868 = vunpack.c.h.b16 %v2541
    %v3869 = vunpack.c.l.b16 %v2542
    %v3870 = vunpack.c.h.b16 %v2542
    %v3871 = vunpack.c.l.b16 %v2543
    %v3872 = vunpack.c.h.b16 %v2543
    %v3873 = vunpack.c.l.b16 %v2544
    %v3874 = vunpack.c.h.b16 %v2544
    %v3875 = vunpack.c.l.b16 %v2545
    %v3876 = vunpack.c.h.b16 %v2545
    %v3877 = vunpack.c.l.b16 %v2546
    %v3878 = vunpack.c.h.b16 %v2546
    %v3879 = vunpack.c.l.b16 %v2547
    %v3880 = vunpack.c.h.b16 %v2547
    %v3881 = vunpack.c.l.b16 %v2548
    %v3882 = vunpack.c.h.b16 %v2548
    %v3883 = vunpack.c.l.b16 %v2549
    %v3884 = vunpack.c.h.b16 %v2549
    %v3885 = vunpack.c.l.b16 %v2550
    %v3886 = vunpack.c.h.b16 %v2550
    %v3887 = vunpack.c.l.b16 %v2551
    %v3888 = vunpack.c.h.b16 %v2551
    %v3889 = vunpack.c.l.b16 %v2552
    %v3890 = vunpack.c.h.b16 %v2552
    %v3891 = vunpack.c.l.b16 %v2553
    %v3892 = vunpack.c.h.b16 %v2553
    %v3893 = vunpack.c.l.b16 %v2554
    %v3894 = vunpack.c.h.b16 %v2554
    %v3895 = vunpack.c.l.b16 %v2555
    %v3896 = vunpack.c.h.b16 %v2555
    %v3897 = vunpack.c.l.b16 %v2556
    %v3898 = vunpack.c.h.b16 %v2556
    %v3899 = vunpack.c.l.b16 %v2557
    %v3900 = vunpack.c.h.b16 %v2557
    %v3901 = vunpack.c.l.b16 %v2558
    %v3902 = vunpack.c.h.b16 %v2558
    %v3903 = vunpack.c.l.b16 %v2559
    %v3904 = vunpack.c.h.b16 %v2559
    %v3905 = vunpack.c.l.b16 %v2560
    %v3906 = vunpack.c.h.b16 %v2560
    %v3907 = vunpack.c.l.b16 %v2561
    %v3908 = vunpack.c.h.b16 %v2561
    %v3909 = vunpack.c.l.b16 %v2562
    %v3910 = vunpack.c.h.b16 %v2562
    %v3911 = vunpack.c.l.b16 %v2563
    %v3912 = vunpack.c.h.b16 %v2563
    %v3913 = vunpack.c.l.b16 %v2564
    %v3914 = vunpack.c.h.b16 %v2564
    %v3915 = vunpack.c.l.b16 %v2565
    %v3916 = vunpack.c.h.b16 %v2565
    %v3917 = vunpack.c.l.b16 %v2566
    %v3918 = vunpack.c.h.b16 %v2566
    %v3919 = vunpack.c.l.b16 %v2567
    %v3920 = vunpack.c.h.b16 %v2567
    %v3921 = vunpack.c.l.b16 %v2568
    %v3922 = vunpack.c.h.b16 %v2568
    %v3923 = vunpack.c.l.b16 %v2569
    %v3924 = vunpack.c.h.b16 %v2569
    %v3925 = vunpack.c.l.b16 %v2570
    %v3926 = vunpack.c.h.b16 %v2570
    %v3927 = vunpack.c.l.b16 %v2571
    %v3928 = vunpack.c.h.b16 %v2571
    %v3929 = vunpack.c.l.b16 %v2572
    %v3930 = vunpack.c.h.b16 %v2572
    %v3931 = vunpack.c.l.b16 %v2573
    %v3932 = vunpack.c.h.b16 %v2573
    %v3933 = vunpack.c.l.b16 %v2574
    %v3934 = vunpack.c.h.b16 %v2574
    %v3935 = vunpack.c.l.b16 %v2575
    %v3936 = vunpack.c.h.b16 %v2575
    %v3937 = vunpack.c.l.b16 %v2576
    %v3938 = vunpack.c.h.b16 %v2576
    %v3939 = vunpack.c.l.b16 %v2577
    %v3940 = vunpack.c.h.b16 %v2577
    %v3941 = vunpack.c.l.b16 %v2578
    %v3942 = vunpack.c.h.b16 %v2578
    %v3943 = vunpack.c.l.b16 %v2579
    %v3944 = vunpack.c.h.b16 %v2579
    %v3945 = vunpack.c.l.b16 %v2580
    %v3946 = vunpack.c.h.b16 %v2580
    %v3947 = vunpack.c.l.b16 %v2581
    %v3948 = vunpack.c.h.b16 %v2581
    %v3949 = vunpack.c.l.b16 %v2582
    %v3950 = vunpack.c.h.b16 %v2582
    %v3951 = vunpack.c.l.b16 %v2583
    %v3952 = vunpack.c.h.b16 %v2583
    %v3953 = vunpack.c.l.b16 %v2584
    %v3954 = vunpack.c.h.b16 %v2584
    %v3955 = vunpack.c.l.b16 %v2585
    %v3956 = vunpack.c.h.b16 %v2585
    %v3957 = vunpack.c.l.b16 %v2586
    %v3958 = vunpack.c.h.b16 %v2586
    %v3959 = vunpack.c.l.b16 %v2587
    %v3960 = vunpack.c.h.b16 %v2587
    %v3961 = vunpack.c.l.b16 %v2588
    %v3962 = vunpack.c.h.b16 %v2588
    %v3963 = vunpack.c.l.b16 %v2589
    %v3964 = vunpack.c.h.b16 %v2589
    %v3965 = vunpack.c.l.b16 %v2590
    %v3966 = vunpack.c.h.b16 %v2590
    %v3967 = vunpack.c.l.b16 %v2591
    %v3968 = vunpack.c.h.b16 %v2591
    %v3969 = vunpack.c.l.b16 %v2592
    %v3970 = vunpack.c.h.b16 %v2592
    %v3971 = vunpack.c.l.b16 %v2593
    %v3972 = vunpack.c.h.b16 %v2593
    %v3973 = vunpack.c.l.b16 %v2594
    %v3974 = vunpack.c.h.b16 %v2594
    %v3975 = vunpack.c.l.b16 %v2595
    %v3976 = vunpack.c.h.b16 %v2595
    %v3977 = vunpack.c.l.b16 %v2596
    %v3978 = vunpack.c.h.b16 %v2596
    %v3979 = vunpack.c.l.b16 %v2597
    %v3980 = vunpack.c.h.b16 %v2597
    %v3981 = vunpack.c.l.b16 %v2598
    %v3982 = vunpack.c.h.b16 %v2598
    %v3983 = vunpack.c.l.b16 %v2599
    %v3984 = vunpack.c.h.b16 %v2599
    %v3985 = vunpack.c.l.b16 %v2600
    %v3986 = vunpack.c.h.b16 %v2600
    %v3987 = vunpack.c.l.b16 %v2601
    %v3988 = vunpack.c.h.b16 %v2601
    %v3989 = vunpack.c.l.b16 %v2602
    %v3990 = vunpack.c.h.b16 %v2602
    %v3991 = vunpack.c.l.b16 %v2603
    %v3992 = vunpack.c.h.b16 %v2603
    %v3993 = vunpack.c.l.b16 %v2604
    %v3994 = vunpack.c.h.b16 %v2604
    %v3995 = vunpack.c.l.b16 %v2605
    %v3996 = vunpack.c.h.b16 %v2605
    %v3997 = vunpack.c.l.b16 %v2606
    %v3998 = vunpack.c.h.b16 %v2606
    %v3999 = vunpack.c.l.b16 %v2607
    %v4000 = vunpack.c.h.b16 %v2607
    %v4001 = vunpack.c.l.b16 %v2608
    %v4002 = vunpack.c.h.b16 %v2608
    %v4003 = vunpack.c.l.b16 %v2609
    %v4004 = vunpack.c.h.b16 %v2609
    %v4005 = vunpack.c.l.b16 %v2610
    %v4006 = vunpack.c.h.b16 %v2610
    %v4007 = vunpack.c.l.b16 %v2611
    %v4008 = vunpack.c.h.b16 %v2611
    %v4009 = vunpack.c.l.b16 %v2612
    %v4010 = vunpack.c.h.b16 %v2612
    %v4011 = vunpack.c.l.b16 %v2613
    %v4012 = vunpack.c.h.b16 %v2613
    %v4013 = vunpack.c.l.b16 %v2614
    %v4014 = vunpack.c.h.b16 %v2614
    %v4015 = vunpack.c.l.b16 %v2615
    %v4016 = vunpack.c.h.b16 %v2615
    %v4017 = vunpack.c.l.b16 %v2616
    %v4018 = vunpack.c.h.b16 %v2616
    %v4019 = vunpack.c.l.b16 %v2617
    %v4020 = vunpack.c.h.b16 %v2617
    %v4021 = vunpack.c.l.b16 %v2618
    %v4022 = vunpack.c.h.b16 %v2618
    %v4023 = vunpack.c.l.b16 %v2619
    %v4024 = vunpack.c.h.b16 %v2619
    %v4025 = vunpack.c.l.b16 %v2620
    %v4026 = vunpack.c.h.b16 %v2620
    %v4027 = vunpack.c.l.b16 %v2621
    %v4028 = vunpack.c.h.b16 %v2621
    %v4029 = vunpack.c.l.b16 %v2622
    %v4030 = vunpack.c.h.b16 %v2622
    %v4031 = vunpack.c.l.b16 %v2623
    %v4032 = vunpack.c.h.b16 %v2623
    %v4033 = vunpack.c.l.b16 %v2624
    %v4034 = vunpack.c.h.b16 %v2624
    %v4035 = vunpack.c.l.b16 %v2625
    %v4036 = vunpack.c.h.b16 %v2625
    %v4037 = vunpack.c.l.b16 %v2626
    %v4038 = vunpack.c.h.b16 %v2626
    %v4039 = vunpack.c.l.b16 %v2627
    %v4040 = vunpack.c.h.b16 %v2627
    %v4041 = vunpack.c.l.b16 %v2628
    %v4042 = vunpack.c.h.b16 %v2628
    %v4043 = vunpack.c.l.b16 %v2629
    %v4044 = vunpack.c.h.b16 %v2629
    %v4045 = vunpack.c.l.b16 %v2630
    %v4046 = vunpack.c.h.b16 %v2630
    %v4047 = vunpack.c.l.b16 %v2631
    %v4048 = vunpack.c.h.b16 %v2631
    %v4049 = vunpack.c.l.b16 %v2632
    %v4050 = vunpack.c.h.b16 %v2632
    %v4051 = vunpack.c.l.b16 %v2633
    %v4052 = vunpack.c.h.b16 %v2633
    %v4053 = vunpack.c.l.b16 %v2634
    %v4054 = vunpack.c.h.b16 %v2634
    %v4055 = vunpack.c.l.b16 %v2635
    %v4056 = vunpack.c.h.b16 %v2635
    %v4057 = vunpack.c.l.b16 %v2636
    %v4058 = vunpack.c.h.b16 %v2636
    %v4059 = vunpack.c.l.b16 %v2637
    %v4060 = vunpack.c.h.b16 %v2637
    %v4061 = vunpack.c.l.b16 %v2638
    %v4062 = vunpack.c.h.b16 %v2638
    %v4063 = vunpack.c.l.b16 %v2639
    %v4064 = vunpack.c.h.b16 %v2639
    %v4065 = vunpack.c.l.b16 %v2640
    %v4066 = vunpack.c.h.b16 %v2640
    %v4067 = vunpack.c.l.b16 %v2641
    %v4068 = vunpack.c.h.b16 %v2641
    %v4069 = vunpack.c.l.b16 %v2642
    %v4070 = vunpack.c.h.b16 %v2642
    %v4071 = vunpack.c.l.b16 %v2643
    %v4072 = vunpack.c.h.b16 %v2643
    %v4073 = vunpack.c.l.b16 %v2644
    %v4074 = vunpack.c.h.b16 %v2644
    %v4075 = vunpack.c.l.b16 %v2645
    %v4076 = vunpack.c.h.b16 %v2645
    %v4077 = vunpack.c.l.b16 %v2646
    %v4078 = vunpack.c.h.b16 %v2646
    %v4079 = vunpack.c.l.b16 %v2647
    %v4080 = vunpack.c.h.b16 %v2647
    %v4081 = vunpack.c.l.b16 %v2648
    %v4082 = vunpack.c.h.b16 %v2648
    %v4083 = vunpack.c.l.b16 %v2649
    %v4084 = vunpack.c.h.b16 %v2649
    %v4085 = vunpack.c.l.b16 %v2650
    %v4086 = vunpack.c.h.b16 %v2650
    %v4087 = vunpack.c.l.b16 %v2651
    %v4088 = vunpack.c.h.b16 %v2651
    %v4089 = vunpack.c.l.b16 %v2652
    %v4090 = vunpack.c.h.b16 %v2652
    %v4091 = vunpack.c.l.b16 %v2653
    %v4092 = vunpack.c.h.b16 %v2653
    %v4093 = vunpack.c.l.b16 %v2654
    %v4094 = vunpack.c.h.b16 %v2654
    %v4095 = vunpack.c.l.b16 %v2655
    %v4096 = vunpack.c.h.b16 %v2655
    %v4097 = vunpack.c.l.b16 %v2656
    %v4098 = vunpack.c.h.b16 %v2656
    %v4099 = vunpack.c.l.b16 %v2657
    %v4100 = vunpack.c.h.b16 %v2657
    %v4101 = vunpack.c.l.b16 %v2658
    %v4102 = vunpack.c.h.b16 %v2658
    %v4103 = vunpack.c.l.b16 %v2659
    %v4104 = vunpack.c.h.b16 %v2659
    %v4105 = vunpack.c.l.b16 %v2660
    %v4106 = vunpack.c.h.b16 %v2660
    %v4107 = vunpack.c.l.b16 %v2661
    %v4108 = vunpack.c.h.b16 %v2661
    %v4109 = vunpack.c.l.b16 %v2662
    %v4110 = vunpack.c.h.b16 %v2662
    %v4111 = vunpack.c.l.b16 %v2663
    %v4112 = vunpack.c.h.b16 %v2663
    %v4113 = vunpack.c.l.b16 %v2664
    %v4114 = vunpack.c.h.b16 %v2664
    %v4115 = vunpack.c.l.b16 %v2665
    %v4116 = vunpack.c.h.b16 %v2665
    %v4117 = vunpack.c.l.b16 %v2666
    %v4118 = vunpack.c.h.b16 %v2666
    %v4119 = vunpack.c.l.b16 %v2667
    %v4120 = vunpack.c.h.b16 %v2667
    %v4121 = vunpack.c.l.b16 %v2668
    %v4122 = vunpack.c.h.b16 %v2668
    %v4123 = vunpack.c.l.b16 %v2669
    %v4124 = vunpack.c.h.b16 %v2669
    %v4125 = vunpack.c.l.b16 %v2670
    %v4126 = vunpack.c.h.b16 %v2670
    %v4127 = vunpack.c.l.b16 %v2671
    %v4128 = vunpack.c.h.b16 %v2671
    %v4129 = vunpack.c.l.b16 %v2672
    %v4130 = vunpack.c.h.b16 %v2672
    %v4131 = vunpack.c.l.b16 %v2673
    %v4132 = vunpack.c.h.b16 %v2673
    %v4133 = vunpack.c.l.b16 %v2674
    %v4134 = vunpack.c.h.b16 %v2674
    %v4135 = vunpack.c.l.b16 %v2675
    %v4136 = vunpack.c.h.b16 %v2675
    %v4137 = vunpack.c.l.b16 %v2676
    %v4138 = vunpack.c.h.b16 %v2676
    %v4139 = vunpack.c.l.b16 %v2677
    %v4140 = vunpack.c.h.b16 %v2677
    %v4141 = vunpack.c.l.b16 %v2678
    %v4142 = vunpack.c.h.b16 %v2678
    %v4143 = vunpack.c.l.b16 %v2679
    %v4144 = vunpack.c.h.b16 %v2679
    %v4145 = vunpack.c.l.b16 %v2680
    %v4146 = vunpack.c.h.b16 %v2680
    %v4147 = vunpack.c.l.b16 %v2681
    %v4148 = vunpack.c.h.b16 %v2681
    %v4149 = vunpack.c.l.b16 %v2682
    %v4150 = vunpack.c.h.b16 %v2682
    %v4151 = vunpack.c.l.b16 %v2683
    %v4152 = vunpack.c.h.b16 %v2683
    %v4153 = vunpack.c.l.b16 %v2684
    %v4154 = vunpack.c.h.b16 %v2684
    %v4155 = vunpack.c.l.b16 %v2685
    %v4156 = vunpack.c.h.b16 %v2685
    %v4157 = vunpack.c.l.b16 %v2686
    %v4158 = vunpack.c.h.b16 %v2686
    %v4159 = vunpack.c.l.b16 %v2687
    %v4160 = vunpack.c.h.b16 %v2687
    %v4161 = vunpack.c.l.b16 %v2688
    %v4162 = vunpack.c.h.b16 %v2688
    %v4163 = vunpack.c.l.b16 %v2689
    %v4164 = vunpack.c.h.b16 %v2689
    %v4165 = vunpack.c.l.b16 %v2690
    %v4166 = vunpack.c.h.b16 %v2690
    %v4167 = vunpack.c.l.b16 %v2691
    %v4168 = vunpack.c.h.b16 %v2691
    %v4169 = vunpack.c.l.b16 %v2692
    %v4170 = vunpack.c.h.b16 %v2692
    %v4171 = vunpack.c.l.b16 %v2693
    %v4172 = vunpack.c.h.b16 %v2693
    %v4173 = vunpack.c.l.b16 %v2694
    %v4174 = vunpack.c.h.b16 %v2694
    %v4175 = vunpack.c.l.b16 %v2695
    %v4176 = vunpack.c.h.b16 %v2695
    %v4177 = vunpack.c.l.b16 %v2696
    %v4178 = vunpack.c.h.b16 %v2696
    %v4179 = vunpack.c.l.b16 %v2697
    %v4180 = vunpack.c.h.b16 %v2697
    %v4181 = vunpack.c.l.b16 %v2698
    %v4182 = vunpack.c.h.b16 %v2698
    %v4183 = vunpack.c.l.b16 %v2699
    %v4184 = vunpack.c.h.b16 %v2699
    %v4185 = vunpack.c.l.b16 %v2700
    %v4186 = vunpack.c.h.b16 %v2700
    %v4187 = vunpack.c.l.b16 %v2701
    %v4188 = vunpack.c.h.b16 %v2701
    %v4189 = vunpack.c.l.b16 %v2702
    %v4190 = vunpack.c.h.b16 %v2702
    %v4191 = vunpack.c.l.b16 %v2703
    %v4192 = vunpack.c.h.b16 %v2703
    %v4193 = vunpack.c.l.b16 %v2704
    %v4194 = vunpack.c.h.b16 %v2704
    %v4195 = vunpack.c.l.b16 %v2705
    %v4196 = vunpack.c.h.b16 %v2705
    %v4197 = vunpack.c.l.b16 %v2706
    %v4198 = vunpack.c.h.b16 %v2706
    %v4199 = vunpack.c.l.b16 %v2707
    %v4200 = vunpack.c.h.b16 %v2707
    %v4201 = vunpack.c.l.b16 %v2708
    %v4202 = vunpack.c.h.b16 %v2708
    %v4203 = vunpack.c.l.b16 %v2709
    %v4204 = vunpack.c.h.b16 %v2709
    %v4205 = vunpack.c.l.b16 %v2710
    %v4206 = vunpack.c.h.b16 %v2710
    %v4207 = vunpack.c.l.b16 %v2711
    %v4208 = vunpack.c.h.b16 %v2711
    %v4209 = vunpack.c.l.b16 %v2712
    %v4210 = vunpack.c.h.b16 %v2712
    %v4211 = vunpack.c.l.b16 %v2713
    %v4212 = vunpack.c.h.b16 %v2713
    %v4213 = vunpack.c.l.b16 %v2714
    %v4214 = vunpack.c.h.b16 %v2714
    %v4215 = vunpack.c.l.b16 %v2715
    %v4216 = vunpack.c.h.b16 %v2715
    %v4217 = vunpack.c.l.b16 %v2716
    %v4218 = vunpack.c.h.b16 %v2716
    %v4219 = vunpack.c.l.b16 %v2717
    %v4220 = vunpack.c.h.b16 %v2717
    %v4221 = vunpack.c.l.b16 %v2718
    %v4222 = vunpack.c.h.b16 %v2718
    %v4223 = vunpack.c.l.b16 %v2719
    %v4224 = vunpack.c.h.b16 %v2719
    %v4225 = vunpack.c.l.b16 %v2720
    %v4226 = vunpack.c.h.b16 %v2720
    %v4227 = vunpack.c.l.b16 %v2721
    %v4228 = vunpack.c.h.b16 %v2721
    %v4229 = vunpack.c.l.b16 %v2722
    %v4230 = vunpack.c.h.b16 %v2722
    %v4231 = vunpack.c.l.b16 %v2723
    %v4232 = vunpack.c.h.b16 %v2723
    %v4233 = vunpack.c.l.b16 %v2724
    %v4234 = vunpack.c.h.b16 %v2724
    %v4235 = vunpack.c.l.b16 %v2725
    %v4236 = vunpack.c.h.b16 %v2725
    %v4237 = vunpack.c.l.b16 %v2726
    %v4238 = vunpack.c.h.b16 %v2726
    %v4239 = vunpack.c.l.b16 %v2727
    %v4240 = vunpack.c.h.b16 %v2727
    %v4241 = vunpack.c.l.b16 %v2728
    %v4242 = vunpack.c.h.b16 %v2728
    %v4243 = vunpack.c.l.b16 %v2729
    %v4244 = vunpack.c.h.b16 %v2729
    %v4245 = vunpack.c.l.b16 %v2730
    %v4246 = vunpack.c.h.b16 %v2730
    %v4247 = vunpack.c.l.b16 %v2731
    %v4248 = vunpack.c.h.b16 %v2731
    %v4249 = vunpack.c.l.b16 %v2732
    %v4250 = vunpack.c.h.b16 %v2732
    %v4251 = vunpack.c.l.b16 %v2733
    %v4252 = vunpack.c.h.b16 %v2733
    %v4253 = vunpack.c.l.b16 %v2734
    %v4254 = vunpack.c.h.b16 %v2734
    %v4255 = vunpack.c.l.b16 %v2735
    %v4256 = vunpack.c.h.b16 %v2735
    %v4257 = vunpack.c.l.b16 %v2736
    %v4258 = vunpack.c.h.b16 %v2736
    %v4259 = vunpack.c.l.b16 %v2737
    %v4260 = vunpack.c.h.b16 %v2737
    %v4261 = vunpack.c.l.b16 %v2738
    %v4262 = vunpack.c.h.b16 %v2738
    %v4263 = vunpack.c.l.b16 %v2739
    %v4264 = vunpack.c.h.b16 %v2739
    %v4265 = vunpack.c.l.b16 %v2740
    %v4266 = vunpack.c.h.b16 %v2740
    %v4267 = vunpack.c.l.b16 %v2741
    %v4268 = vunpack.c.h.b16 %v2741
    %v4269 = vunpack.c.l.b16 %v2742
    %v4270 = vunpack.c.h.b16 %v2742
    %v4271 = vunpack.c.l.b16 %v2743
    %v4272 = vunpack.c.h.b16 %v2743
    %v4273 = vunpack.c.l.b16 %v2744
    %v4274 = vunpack.c.h.b16 %v2744
    %v4275 = vunpack.c.l.b16 %v2745
    %v4276 = vunpack.c.h.b16 %v2745
    %v4277 = vunpack.c.l.b16 %v2746
    %v4278 = vunpack.c.h.b16 %v2746
    %v4279 = vunpack.c.l.b16 %v2747
    %v4280 = vunpack.c.h.b16 %v2747
    %v4281 = vunpack.c.l.b16 %v2748
    %v4282 = vunpack.c.h.b16 %v2748
    %v4283 = vunpack.c.l.b16 %v2749
    %v4284 = vunpack.c.h.b16 %v2749
    %v4285 = vunpack.c.l.b16 %v2750
    %v4286 = vunpack.c.h.b16 %v2750
    %v4287 = vpack.c.b16 %v3279, %v3263
    %v4288 = vpack.c.b16 %v3280, %v3264
    %v4289 = vpack.c.b16 %v3281, %v3265
    %v4290 = vpack.c.b16 %v3282, %v3266
    %v4291 = vpack.c.b16 %v3283, %v3267
    %v4292 = vpack.c.b16 %v3284, %v3268
    %v4293 = vpack.c.b16 %v3285, %v3269
    %v4294 = vpack.c.b16 %v3286, %v3270
    %v4295 = vpack.c.b16 %v3287, %v3271
    %v4296 = vpack.c.b16 %v3288, %v3272
    %v4297 = vpack.c.b16 %v3289, %v3273
    %v4298 = vpack.c.b16 %v3290, %v3274
    %v4299 = vpack.c.b16 %v3291, %v3275
    %v4300 = vpack.c.b16 %v3292, %v3276
    %v4301 = vpack.c.b16 %v3293, %v3277
    %v4302 = vpack.c.b16 %v3294, %v3278
    %v4303 = vpack.c.b16 %v3311, %v3295
    %v4304 = vpack.c.b16 %v3312, %v3296
    %v4305 = vpack.c.b16 %v3313, %v3297
    %v4306 = vpack.c.b16 %v3314, %v3298
    %v4307 = vpack.c.b16 %v3315, %v3299
    %v4308 = vpack.c.b16 %v3316, %v3300
    %v4309 = vpack.c.b16 %v3317, %v3301
    %v4310 = vpack.c.b16 %v3318, %v3302
    %v4311 = vpack.c.b16 %v3319, %v3303
    %v4312 = vpack.c.b16 %v3320, %v3304
    %v4313 = vpack.c.b16 %v3321, %v3305
    %v4314 = vpack.c.b16 %v3322, %v3306
    %v4315 = vpack.c.b16 %v3323, %v3307
    %v4316 = vpack.c.b16 %v3324, %v3308
    %v4317 = vpack.c.b16 %v3325, %v3309
    %v4318 = vpack.c.b16 %v3326, %v3310
    %v4319 = vpack.c.b16 %v3343, %v3327
    %v4320 = vpack.c.b16 %v3344, %v3328
    %v4321 = vpack.c.b16 %v3345, %v3329
    %v4322 = vpack.c.b16 %v3346, %v3330
    %v4323 = vpack.c.b16 %v3347, %v3331
    %v4324 = vpack.c.b16 %v3348, %v3332
    %v4325 = vpack.c.b16 %v3349, %v3333
    %v4326 = vpack.c.b16 %v3350, %v3334
    %v4327 = vpack.c.b16 %v3351, %v3335
    %v4328 = vpack.c.b16 %v3352, %v3336
    %v4329 = vpack.c.b16 %v3353, %v3337
    %v4330 = vpack.c.b16 %v3354, %v3338
    %v4331 = vpack.c.b16 %v3355, %v3339
    %v4332 = vpack.c.b16 %v3356, %v3340
    %v4333 = vpack.c.b16 %v3357, %v3341
    %v4334 = vpack.c.b16 %v3358, %v3342
    %v4335 = vpack.c.b16 %v3375, %v3359
    %v4336 = vpack.c.b16 %v3376, %v3360
    %v4337 = vpack.c.b16 %v3377, %v3361
    %v4338 = vpack.c.b16 %v3378, %v3362
    %v4339 = vpack.c.b16 %v3379, %v3363
    %v4340 = vpack.c.b16 %v3380, %v3364
    %v4341 = vpack.c.b16 %v3381, %v3365
    %v4342 = vpack.c.b16 %v3382, %v3366
    %v4343 = vpack.c.b16 %v3383, %v3367
    %v4344 = vpack.c.b16 %v3384, %v3368
    %v4345 = vpack.c.b16 %v3385, %v3369
    %v4346 = vpack.c.b16 %v3386, %v3370
    %v4347 = vpack.c.b16 %v3387, %v3371
    %v4348 = vpack.c.b16 %v3388, %v3372
    %v4349 = vpack.c.b16 %v3389, %v3373
    %v4350 = vpack.c.b16 %v3390, %v3374
    %v4351 = vpack.c.b16 %v3407, %v3391
    %v4352 = vpack.c.b16 %v3408, %v3392
    %v4353 = vpack.c.b16 %v3409, %v3393
    %v4354 = vpack.c.b16 %v3410, %v3394
    %v4355 = vpack.c.b16 %v3411, %v3395
    %v4356 = vpack.c.b16 %v3412, %v3396
    %v4357 = vpack.c.b16 %v3413, %v3397
    %v4358 = vpack.c.b16 %v3414, %v3398
    %v4359 = vpack.c.b16 %v3415, %v3399
    %v4360 = vpack.c.b16 %v3416, %v3400
    %v4361 = vpack.c.b16 %v3417, %v3401
    %v4362 = vpack.c.b16 %v3418, %v3402
    %v4363 = vpack.c.b16 %v3419, %v3403
    %v4364 = vpack.c.b16 %v3420, %v3404
    %v4365 = vpack.c.b16 %v3421, %v3405
    %v4366 = vpack.c.b16 %v3422, %v3406
    %v4367 = vpack.c.b16 %v3439, %v3423
    %v4368 = vpack.c.b16 %v3440, %v3424
    %v4369 = vpack.c.b16 %v3441, %v3425
    %v4370 = vpack.c.b16 %v3442, %v3426
    %v4371 = vpack.c.b16 %v3443, %v3427
    %v4372 = vpack.c.b16 %v3444, %v3428
    %v4373 = vpack.c.b16 %v3445, %v3429
    %v4374 = vpack.c.b16 %v3446, %v3430
    %v4375 = vpack.c.b16 %v3447, %v3431
    %v4376 = vpack.c.b16 %v3448, %v3432
    %v4377 = vpack.c.b16 %v3449, %v3433
    %v4378 = vpack.c.b16 %v3450, %v3434
    %v4379 = vpack.c.b16 %v3451, %v3435
    %v4380 = vpack.c.b16 %v3452, %v3436
    %v4381 = vpack.c.b16 %v3453, %v3437
    %v4382 = vpack.c.b16 %v3454, %v3438
    %v4383 = vpack.c.b16 %v3471, %v3455
    %v4384 = vpack.c.b16 %v3472, %v3456
    %v4385 = vpack.c.b16 %v3473, %v3457
    %v4386 = vpack.c.b16 %v3474, %v3458
    %v4387 = vpack.c.b16 %v3475, %v3459
    %v4388 = vpack.c.b16 %v3476, %v3460
    %v4389 = vpack.c.b16 %v3477, %v3461
    %v4390 = vpack.c.b16 %v3478, %v3462
    %v4391 = vpack.c.b16 %v3479, %v3463
    %v4392 = vpack.c.b16 %v3480, %v3464
    %v4393 = vpack.c.b16 %v3481, %v3465
    %v4394 = vpack.c.b16 %v3482, %v3466
    %v4395 = vpack.c.b16 %v3483, %v3467
    %v4396 = vpack.c.b16 %v3484, %v3468
    %v4397 = vpack.c.b16 %v3485, %v3469
    %v4398 = vpack.c.b16 %v3486, %v3470
    %v4399 = vpack.c.b16 %v3503, %v3487
    %v4400 = vpack.c.b16 %v3504, %v3488
    %v4401 = vpack.c.b16 %v3505, %v3489
    %v4402 = vpack.c.b16 %v3506, %v3490
    %v4403 = vpack.c.b16 %v3507, %v3491
    %v4404 = vpack.c.b16 %v3508, %v3492
    %v4405 = vpack.c.b16 %v3509, %v3493
    %v4406 = vpack.c.b16 %v3510, %v3494
    %v4407 = vpack.c.b16 %v3511, %v3495
    %v4408 = vpack.c.b16 %v3512, %v3496
    %v4409 = vpack.c.b16 %v3513, %v3497
    %v4410 = vpack.c.b16 %v3514, %v3498
    %v4411 = vpack.c.b16 %v3515, %v3499
    %v4412 = vpack.c.b16 %v3516, %v3500
    %v4413 = vpack.c.b16 %v3517, %v3501
    %v4414 = vpack.c.b16 %v3518, %v3502
    %v4415 = vpack.c.b16 %v3535, %v3519
    %v4416 = vpack.c.b16 %v3536, %v3520
    %v4417 = vpack.c.b16 %v3537, %v3521
    %v4418 = vpack.c.b16 %v3538, %v3522
    %v4419 = vpack.c.b16 %v3539, %v3523
    %v4420 = vpack.c.b16 %v3540, %v3524
    %v4421 = vpack.c.b16 %v3541, %v3525
    %v4422 = vpack.c.b16 %v3542, %v3526
    %v4423 = vpack.c.b16 %v3543, %v3527
    %v4424 = vpack.c.b16 %v3544, %v3528
    %v4425 = vpack.c.b16 %v3545, %v3529
    %v4426 = vpack.c.b16 %v3546, %v3530
    %v4427 = vpack.c.b16 %v3547, %v3531
    %v4428 = vpack.c.b16 %v3548, %v3532
    %v4429 = vpack.c.b16 %v3549, %v3533
    %v4430 = vpack.c.b16 %v3550, %v3534
    %v4431 = vpack.c.b16 %v3567, %v3551
    %v4432 = vpack.c.b16 %v3568, %v3552
    %v4433 = vpack.c.b16 %v3569, %v3553
    %v4434 = vpack.c.b16 %v3570, %v3554
    %v4435 = vpack.c.b16 %v3571, %v3555
    %v4436 = vpack.c.b16 %v3572, %v3556
    %v4437 = vpack.c.b16 %v3573, %v3557
    %v4438 = vpack.c.b16 %v3574, %v3558
    %v4439 = vpack.c.b16 %v3575, %v3559
    %v4440 = vpack.c.b16 %v3576, %v3560
    %v4441 = vpack.c.b16 %v3577, %v3561
    %v4442 = vpack.c.b16 %v3578, %v3562
    %v4443 = vpack.c.b16 %v3579, %v3563
    %v4444 = vpack.c.b16 %v3580, %v3564
    %v4445 = vpack.c.b16 %v3581, %v3565
    %v4446 = vpack.c.b16 %v3582, %v3566
    %v4447 = vpack.c.b16 %v3599, %v3583
    %v4448 = vpack.c.b16 %v3600, %v3584
    %v4449 = vpack.c.b16 %v3601, %v3585
    %v4450 = vpack.c.b16 %v3602, %v3586
    %v4451 = vpack.c.b16 %v3603, %v3587
    %v4452 = vpack.c.b16 %v3604, %v3588
    %v4453 = vpack.c.b16 %v3605, %v3589
    %v4454 = vpack.c.b16 %v3606, %v3590
    %v4455 = vpack.c.b16 %v3607, %v3591
    %v4456 = vpack.c.b16 %v3608, %v3592
    %v4457 = vpack.c.b16 %v3609, %v3593
    %v4458 = vpack.c.b16 %v3610, %v3594
    %v4459 = vpack.c.b16 %v3611, %v3595
    %v4460 = vpack.c.b16 %v3612, %v3596
    %v4461 = vpack.c.b16 %v3613, %v3597
    %v4462 = vpack.c.b16 %v3614, %v3598
    %v4463 = vpack.c.b16 %v3631, %v3615
    %v4464 = vpack.c.b16 %v3632, %v3616
    %v4465 = vpack.c.b16 %v3633, %v3617
    %v4466 = vpack.c.b16 %v3634, %v3618
    %v4467 = vpack.c.b16 %v3635, %v3619
    %v4468 = vpack.c.b16 %v3636, %v3620
    %v4469 = vpack.c.b16 %v3637, %v3621
    %v4470 = vpack.c.b16 %v3638, %v3622
    %v4471 = vpack.c.b16 %v3639, %v3623
    %v4472 = vpack.c.b16 %v3640, %v3624
    %v4473 = vpack.c.b16 %v3641, %v3625
    %v4474 = vpack.c.b16 %v3642, %v3626
    %v4475 = vpack.c.b16 %v3643, %v3627
    %v4476 = vpack.c.b16 %v3644, %v3628
    %v4477 = vpack.c.b16 %v3645, %v3629
    %v4478 = vpack.c.b16 %v3646, %v3630
    %v4479 = vpack.c.b16 %v3663, %v3647
    %v4480 = vpack.c.b16 %v3664, %v3648
    %v4481 = vpack.c.b16 %v3665, %v3649
    %v4482 = vpack.c.b16 %v3666, %v3650
    %v4483 = vpack.c.b16 %v3667, %v3651
    %v4484 = vpack.c.b16 %v3668, %v3652
    %v4485 = vpack.c.b16 %v3669, %v3653
    %v4486 = vpack.c.b16 %v3670, %v3654
    %v4487 = vpack.c.b16 %v3671, %v3655
    %v4488 = vpack.c.b16 %v3672, %v3656
    %v4489 = vpack.c.b16 %v3673, %v3657
    %v4490 = vpack.c.b16 %v3674, %v3658
    %v4491 = vpack.c.b16 %v3675, %v3659
    %v4492 = vpack.c.b16 %v3676, %v3660
    %v4493 = vpack.c.b16 %v3677, %v3661
    %v4494 = vpack.c.b16 %v3678, %v3662
    %v4495 = vpack.c.b16 %v3695, %v3679
    %v4496 = vpack.c.b16 %v3696, %v3680
    %v4497 = vpack.c.b16 %v3697, %v3681
    %v4498 = vpack.c.b16 %v3698, %v3682
    %v4499 = vpack.c.b16 %v3699, %v3683
    %v4500 = vpack.c.b16 %v3700, %v3684
    %v4501 = vpack.c.b16 %v3701, %v3685
    %v4502 = vpack.c.b16 %v3702, %v3686
    %v4503 = vpack.c.b16 %v3703, %v3687
    %v4504 = vpack.c.b16 %v3704, %v3688
    %v4505 = vpack.c.b16 %v3705, %v3689
    %v4506 = vpack.c.b16 %v3706, %v3690
    %v4507 = vpack.c.b16 %v3707, %v3691
    %v4508 = vpack.c.b16 %v3708, %v3692
    %v4509 = vpack.c.b16 %v3709, %v3693
    %v4510 = vpack.c.b16 %v3710, %v3694
    %v4511 = vpack.c.b16 %v3727, %v3711
    %v4512 = vpack.c.b16 %v3728, %v3712
    %v4513 = vpack.c.b16 %v3729, %v3713
    %v4514 = vpack.c.b16 %v3730, %v3714
    %v4515 = vpack.c.b16 %v3731, %v3715
    %v4516 = vpack.c.b16 %v3732, %v3716
    %v4517 = vpack.c.b16 %v3733, %v3717
    %v4518 = vpack.c.b16 %v3734, %v3718
    %v4519 = vpack.c.b16 %v3735, %v3719
    %v4520 = vpack.c.b16 %v3736, %v3720
    %v4521 = vpack.c.b16 %v3737, %v3721
    %v4522 = vpack.c.b16 %v3738, %v3722
    %v4523 = vpack.c.b16 %v3739, %v3723
    %v4524 = vpack.c.b16 %v3740, %v3724
    %v4525 = vpack.c.b16 %v3741, %v3725
    %v4526 = vpack.c.b16 %v3742, %v3726
    %v4527 = vpack.c.b16 %v3759, %v3743
    %v4528 = vpack.c.b16 %v3760, %v3744
    %v4529 = vpack.c.b16 %v3761, %v3745
    %v4530 = vpack.c.b16 %v3762, %v3746
    %v4531 = vpack.c.b16 %v3763, %v3747
    %v4532 = vpack.c.b16 %v3764, %v3748
    %v4533 = vpack.c.b16 %v3765, %v3749
    %v4534 = vpack.c.b16 %v3766, %v3750
    %v4535 = vpack.c.b16 %v3767, %v3751
    %v4536 = vpack.c.b16 %v3768, %v3752
    %v4537 = vpack.c.b16 %v3769, %v3753
    %v4538 = vpack.c.b16 %v3770, %v3754
    %v4539 = vpack.c.b16 %v3771, %v3755
    %v4540 = vpack.c.b16 %v3772, %v3756
    %v4541 = vpack.c.b16 %v3773, %v3757
    %v4542 = vpack.c.b16 %v3774, %v3758
    %v4543 = vpack.c.b16 %v3791, %v3775
    %v4544 = vpack.c.b16 %v3792, %v3776
    %v4545 = vpack.c.b16 %v3793, %v3777
    %v4546 = vpack.c.b16 %v3794, %v3778
    %v4547 = vpack.c.b16 %v3795, %v3779
    %v4548 = vpack.c.b16 %v3796, %v3780
    %v4549 = vpack.c.b16 %v3797, %v3781
    %v4550 = vpack.c.b16 %v3798, %v3782
    %v4551 = vpack.c.b16 %v3799, %v3783
    %v4552 = vpack.c.b16 %v3800, %v3784
    %v4553 = vpack.c.b16 %v3801, %v3785
    %v4554 = vpack.c.b16 %v3802, %v3786
    %v4555 = vpack.c.b16 %v3803, %v3787
    %v4556 = vpack.c.b16 %v3804, %v3788
    %v4557 = vpack.c.b16 %v3805, %v3789
    %v4558 = vpack.c.b16 %v3806, %v3790
    %v4559 = vpack.c.b16 %v3823, %v3807
    %v4560 = vpack.c.b16 %v3824, %v3808
    %v4561 = vpack.c.b16 %v3825, %v3809
    %v4562 = vpack.c.b16 %v3826, %v3810
    %v4563 = vpack.c.b16 %v3827, %v3811
    %v4564 = vpack.c.b16 %v3828, %v3812
    %v4565 = vpack.c.b16 %v3829, %v3813
    %v4566 = vpack.c.b16 %v3830, %v3814
    %v4567 = vpack.c.b16 %v3831, %v3815
    %v4568 = vpack.c.b16 %v3832, %v3816
    %v4569 = vpack.c.b16 %v3833, %v3817
    %v4570 = vpack.c.b16 %v3834, %v3818
    %v4571 = vpack.c.b16 %v3835, %v3819
    %v4572 = vpack.c.b16 %v3836, %v3820
    %v4573 = vpack.c.b16 %v3837, %v3821
    %v4574 = vpack.c.b16 %v3838, %v3822
    %v4575 = vpack.c.b16 %v3855, %v3839
    %v4576 = vpack.c.b16 %v3856, %v3840
    %v4577 = vpack.c.b16 %v3857, %v3841
    %v4578 = vpack.c.b16 %v3858, %v3842
    %v4579 = vpack.c.b16 %v3859, %v3843
    %v4580 = vpack.c.b16 %v3860, %v3844
    %v4581 = vpack.c.b16 %v3861, %v3845
    %v4582 = vpack.c.b16 %v3862, %v3846
    %v4583 = vpack.c.b16 %v3863, %v3847
    %v4584 = vpack.c.b16 %v3864, %v3848
    %v4585 = vpack.c.b16 %v3865, %v3849
    %v4586 = vpack.c.b16 %v3866, %v3850
    %v4587 = vpack.c.b16 %v3867, %v3851
    %v4588 = vpack.c.b16 %v3868, %v3852
    %v4589 = vpack.c.b16 %v3869, %v3853
    %v4590 = vpack.c.b16 %v3870, %v3854
    %v4591 = vpack.c.b16 %v3887, %v3871
    %v4592 = vpack.c.b16 %v3888, %v3872
    %v4593 = vpack.c.b16 %v3889, %v3873
    %v4594 = vpack.c.b16 %v3890, %v3874
    %v4595 = vpack.c.b16 %v3891, %v3875
    %v4596 = vpack.c.b16 %v3892, %v3876
    %v4597 = vpack.c.b16 %v3893, %v3877
    %v4598 = vpack.c.b16 %v3894, %v3878
    %v4599 = vpack.c.b16 %v3895, %v3879
    %v4600 = vpack.c.b16 %v3896, %v3880
    %v4601 = vpack.c.b16 %v3897, %v3881
    %v4602 = vpack.c.b16 %v3898, %v3882
    %v4603 = vpack.c.b16 %v3899, %v3883
    %v4604 = vpack.c.b16 %v3900, %v3884
    %v4605 = vpack.c.b16 %v3901, %v3885
    %v4606 = vpack.c.b16 %v3902, %v3886
    %v4607 = vpack.c.b16 %v3919, %v3903
    %v4608 = vpack.c.b16 %v3920, %v3904
    %v4609 = vpack.c.b16 %v3921, %v3905
    %v4610 = vpack.c.b16 %v3922, %v3906
    %v4611 = vpack.c.b16 %v3923, %v3907
    %v4612 = vpack.c.b16 %v3924, %v3908
    %v4613 = vpack.c.b16 %v3925, %v3909
    %v4614 = vpack.c.b16 %v3926, %v3910
    %v4615 = vpack.c.b16 %v3927, %v3911
    %v4616 = vpack.c.b16 %v3928, %v3912
    %v4617 = vpack.c.b16 %v3929, %v3913
    %v4618 = vpack.c.b16 %v3930, %v3914
    %v4619 = vpack.c.b16 %v3931, %v3915
    %v4620 = vpack.c.b16 %v3932, %v3916
    %v4621 = vpack.c.b16 %v3933, %v3917
    %v4622 = vpack.c.b16 %v3934, %v3918
    %v4623 = vpack.c.b16 %v3951, %v3935
    %v4624 = vpack.c.b16 %v3952, %v3936
    %v4625 = vpack.c.b16 %v3953, %v3937
    %v4626 = vpack.c.b16 %v3954, %v3938
    %v4627 = vpack.c.b16 %v3955, %v3939
    %v4628 = vpack.c.b16 %v3956, %v3940
    %v4629 = vpack.c.b16 %v3957, %v3941
    %v4630 = vpack.c.b16 %v3958, %v3942
    %v4631 = vpack.c.b16 %v3959, %v3943
    %v4632 = vpack.c.b16 %v3960, %v3944
    %v4633 = vpack.c.b16 %v3961, %v3945
    %v4634 = vpack.c.b16 %v3962, %v3946
    %v4635 = vpack.c.b16 %v3963, %v3947
    %v4636 = vpack.c.b16 %v3964, %v3948
    %v4637 = vpack.c.b16 %v3965, %v3949
    %v4638 = vpack.c.b16 %v3966, %v3950
    %v4639 = vpack.c.b16 %v3983, %v3967
    %v4640 = vpack.c.b16 %v3984, %v3968
    %v4641 = vpack.c.b16 %v3985, %v3969
    %v4642 = vpack.c.b16 %v3986, %v3970
    %v4643 = vpack.c.b16 %v3987, %v3971
    %v4644 = vpack.c.b16 %v3988, %v3972
    %v4645 = vpack.c.b16 %v3989, %v3973
    %v4646 = vpack.c.b16 %v3990, %v3974
    %v4647 = vpack.c.b16 %v3991, %v3975
    %v4648 = vpack.c.b16 %v3992, %v3976
    %v4649 = vpack.c.b16 %v3993, %v3977
    %v4650 = vpack.c.b16 %v3994, %v3978
    %v4651 = vpack.c.b16 %v3995, %v3979
    %v4652 = vpack.c.b16 %v3996, %v3980
    %v4653 = vpack.c.b16 %v3997, %v3981
    %v4654 = vpack.c.b16 %v3998, %v3982
    %v4655 = vpack.c.b16 %v4015, %v3999
    %v4656 = vpack.c.b16 %v4016, %v4000
    %v4657 = vpack.c.b16 %v4017, %v4001
    %v4658 = vpack.c.b16 %v4018, %v4002
    %v4659 = vpack.c.b16 %v4019, %v4003
    %v4660 = vpack.c.b16 %v4020, %v4004
    %v4661 = vpack.c.b16 %v4021, %v4005
    %v4662 = vpack.c.b16 %v4022, %v4006
    %v4663 = vpack.c.b16 %v4023, %v4007
    %v4664 = vpack.c.b16 %v4024, %v4008
    %v4665 = vpack.c.b16 %v4025, %v4009
    %v4666 = vpack.c.b16 %v4026, %v4010
    %v4667 = vpack.c.b16 %v4027, %v4011
    %v4668 = vpack.c.b16 %v4028, %v4012
    %v4669 = vpack.c.b16 %v4029, %v4013
    %v4670 = vpack.c.b16 %v4030, %v4014
    %v4671 = vpack.c.b16 %v4047, %v4031
    %v4672 = vpack.c.b16 %v4048, %v4032
    %v4673 = vpack.c.b16 %v4049, %v4033
    %v4674 = vpack.c.b16 %v4050, %v4034
    %v4675 = vpack.c.b16 %v4051, %v4035
    %v4676 = vpack.c.b16 %v4052, %v4036
    %v4677 = vpack.c.b16 %v4053, %v4037
    %v4678 = vpack.c.b16 %v4054, %v4038
    %v4679 = vpack.c.b16 %v4055, %v4039
    %v4680 = vpack.c.b16 %v4056, %v4040
    %v4681 = vpack.c.b16 %v4057, %v4041
    %v4682 = vpack.c.b16 %v4058, %v4042
    %v4683 = vpack.c.b16 %v4059, %v4043
    %v4684 = vpack.c.b16 %v4060, %v4044
    %v4685 = vpack.c.b16 %v4061, %v4045
    %v4686 = vpack.c.b16 %v4062, %v4046
    %v4687 = vpack.c.b16 %v4079, %v4063
    %v4688 = vpack.c.b16 %v4080, %v4064
    %v4689 = vpack.c.b16 %v4081, %v4065
    %v4690 = vpack.c.b16 %v4082, %v4066
    %v4691 = vpack.c.b16 %v4083, %v4067
    %v4692 = vpack.c.b16 %v4084, %v4068
    %v4693 = vpack.c.b16 %v4085, %v4069
    %v4694 = vpack.c.b16 %v4086, %v4070
    %v4695 = vpack.c.b16 %v4087, %v4071
    %v4696 = vpack.c.b16 %v4088, %v4072
    %v4697 = vpack.c.b16 %v4089, %v4073
    %v4698 = vpack.c.b16 %v4090, %v4074
    %v4699 = vpack.c.b16 %v4091, %v4075
    %v4700 = vpack.c.b16 %v4092, %v4076
    %v4701 = vpack.c.b16 %v4093, %v4077
    %v4702 = vpack.c.b16 %v4094, %v4078
    %v4703 = vpack.c.b16 %v4111, %v4095
    %v4704 = vpack.c.b16 %v4112, %v4096
    %v4705 = vpack.c.b16 %v4113, %v4097
    %v4706 = vpack.c.b16 %v4114, %v4098
    %v4707 = vpack.c.b16 %v4115, %v4099
    %v4708 = vpack.c.b16 %v4116, %v4100
    %v4709 = vpack.c.b16 %v4117, %v4101
    %v4710 = vpack.c.b16 %v4118, %v4102
    %v4711 = vpack.c.b16 %v4119, %v4103
    %v4712 = vpack.c.b16 %v4120, %v4104
    %v4713 = vpack.c.b16 %v4121, %v4105
    %v4714 = vpack.c.b16 %v4122, %v4106
    %v4715 = vpack.c.b16 %v4123, %v4107
    %v4716 = vpack.c.b16 %v4124, %v4108
    %v4717 = vpack.c.b16 %v4125, %v4109
    %v4718 = vpack.c.b16 %v4126, %v4110
    %v4719 = vpack.c.b16 %v4143, %v4127
    %v4720 = vpack.c.b16 %v4144, %v4128
    %v4721 = vpack.c.b16 %v4145, %v4129
    %v4722 = vpack.c.b16 %v4146, %v4130
    %v4723 = vpack.c.b16 %v4147, %v4131
    %v4724 = vpack.c.b16 %v4148, %v4132
    %v4725 = vpack.c.b16 %v4149, %v4133
    %v4726 = vpack.c.b16 %v4150, %v4134
    %v4727 = vpack.c.b16 %v4151, %v4135
    %v4728 = vpack.c.b16 %v4152, %v4136
    %v4729 = vpack.c.b16 %v4153, %v4137
    %v4730 = vpack.c.b16 %v4154, %v4138
    %v4731 = vpack.c.b16 %v4155, %v4139
    %v4732 = vpack.c.b16 %v4156, %v4140
    %v4733 = vpack.c.b16 %v4157, %v4141
    %v4734 = vpack.c.b16 %v4158, %v4142
    %v4735 = vpack.c.b16 %v4175, %v4159
    %v4736 = vpack.c.b16 %v4176, %v4160
    %v4737 = vpack.c.b16 %v4177, %v4161
    %v4738 = vpack.c.b16 %v4178, %v4162
    %v4739 = vpack.c.b16 %v4179, %v4163
    %v4740 = vpack.c.b16 %v4180, %v4164
    %v4741 = vpack.c.b16 %v4181, %v4165
    %v4742 = vpack.c.b16 %v4182, %v4166
    %v4743 = vpack.c.b16 %v4183, %v4167
    %v4744 = vpack.c.b16 %v4184, %v4168
    %v4745 = vpack.c.b16 %v4185, %v4169
    %v4746 = vpack.c.b16 %v4186, %v4170
    %v4747 = vpack.c.b16 %v4187, %v4171
    %v4748 = vpack.c.b16 %v4188, %v4172
    %v4749 = vpack.c.b16 %v4189, %v4173
    %v4750 = vpack.c.b16 %v4190, %v4174
    %v4751 = vpack.c.b16 %v4207, %v4191
    %v4752 = vpack.c.b16 %v4208, %v4192
    %v4753 = vpack.c.b16 %v4209, %v4193
    %v4754 = vpack.c.b16 %v4210, %v4194
    %v4755 = vpack.c.b16 %v4211, %v4195
    %v4756 = vpack.c.b16 %v4212, %v4196
    %v4757 = vpack.c.b16 %v4213, %v4197
    %v4758 = vpack.c.b16 %v4214, %v4198
    %v4759 = vpack.c.b16 %v4215, %v4199
    %v4760 = vpack.c.b16 %v4216, %v4200
    %v4761 = vpack.c.b16 %v4217, %v4201
    %v4762 = vpack.c.b16 %v4218, %v4202
    %v4763 = vpack.c.b16 %v4219, %v4203
    %v4764 = vpack.c.b16 %v4220, %v4204
    %v4765 = vpack.c.b16 %v4221, %v4205
    %v4766 = vpack.c.b16 %v4222, %v4206
    %v4767 = vpack.c.b16 %v4239, %v4223
    %v4768 = vpack.c.b16 %v4240, %v4224
    %v4769 = vpack.c.b16 %v4241, %v4225
    %v4770 = vpack.c.b16 %v4242, %v4226
    %v4771 = vpack.c.b16 %v4243, %v4227
    %v4772 = vpack.c.b16 %v4244, %v4228
    %v4773 = vpack.c.b16 %v4245, %v4229
    %v4774 = vpack.c.b16 %v4246, %v4230
    %v4775 = vpack.c.b16 %v4247, %v4231
    %v4776 = vpack.c.b16 %v4248, %v4232
    %v4777 = vpack.c.b16 %v4249, %v4233
    %v4778 = vpack.c.b16 %v4250, %v4234
    %v4779 = vpack.c.b16 %v4251, %v4235
    %v4780 = vpack.c.b16 %v4252, %v4236
    %v4781 = vpack.c.b16 %v4253, %v4237
    %v4782 = vpack.c.b16 %v4254, %v4238
    %v4783 = vpack.c.b16 %v4271, %v4255
    %v4784 = vpack.c.b16 %v4272, %v4256
    %v4785 = vpack.c.b16 %v4273, %v4257
    %v4786 = vpack.c.b16 %v4274, %v4258
    %v4787 = vpack.c.b16 %v4275, %v4259
    %v4788 = vpack.c.b16 %v4276, %v4260
    %v4789 = vpack.c.b16 %v4277, %v4261
    %v4790 = vpack.c.b16 %v4278, %v4262
    %v4791 = vpack.c.b16 %v4279, %v4263
    %v4792 = vpack.c.b16 %v4280, %v4264
    %v4793 = vpack.c.b16 %v4281, %v4265
    %v4794 = vpack.c.b16 %v4282, %v4266
    %v4795 = vpack.c.b16 %v4283, %v4267
    %v4796 = vpack.c.b16 %v4284, %v4268
    %v4797 = vpack.c.b16 %v4285, %v4269
    %v4798 = vpack.c.b16 %v4286, %v4270
    %5311 = vmatprep.subr.bf16.mxu0 %v4288
    %5312 = vmatpush1.bf16.msra.mxu0 %v4287
    %5313 = vmatprep.subr.bf16.mxu0 %v4304
    %5314 = vmatpush1.bf16.msra.mxu0 %v4303
    %5315 = vmatprep.subr.bf16.mxu0 %v4320
    %5316 = vmatpush1.bf16.msra.mxu0 %v4319
    %5317 = vmatprep.subr.bf16.mxu0 %v4336
    %5318 = vmatpush1.bf16.msra.mxu0 %v4335
    %5319 = vmatprep.subr.bf16.mxu0 %v4352
    %5320 = vmatpush1.bf16.msra.mxu0 %v4351
    %5321 = vmatprep.subr.bf16.mxu0 %v4368
    %5322 = vmatpush1.bf16.msra.mxu0 %v4367
    %5323 = vmatprep.subr.bf16.mxu0 %v4384
    %5324 = vmatpush1.bf16.msra.mxu0 %v4383
    %5325 = vmatprep.subr.bf16.mxu0 %v4400
    %5326 = vmatpush1.bf16.msra.mxu0 %v4399
    %5327 = vmatprep.subr.bf16.mxu0 %v4416
    %5328 = vmatpush1.bf16.msra.mxu0 %v4415
    %5329 = vmatprep.subr.bf16.mxu0 %v4432
    %5330 = vmatpush1.bf16.msra.mxu0 %v4431
    %5331 = vmatprep.subr.bf16.mxu0 %v4448
    %5332 = vmatpush1.bf16.msra.mxu0 %v4447
    %5333 = vmatprep.subr.bf16.mxu0 %v4464
    %5334 = vmatpush1.bf16.msra.mxu0 %v4463
    %5335 = vmatprep.subr.bf16.mxu0 %v4480
    %5336 = vmatpush1.bf16.msra.mxu0 %v4479
    %5337 = vmatprep.subr.bf16.mxu0 %v4496
    %5338 = vmatpush1.bf16.msra.mxu0 %v4495
    %5339 = vmatprep.subr.bf16.mxu0 %v4512
    %5340 = vmatpush1.bf16.msra.mxu0 %v4511
    %5341 = vmatprep.subr.bf16.mxu0 %v4528
    %5342 = vmatpush1.bf16.msra.mxu0 %v4527
    %5343 = vmatprep.mubr.bf16.mxu0 %v2236
    %5344 = vmatmul.mubr.bf16.gmra.mrb[0].mxu0 %v2235
    %v5345 = vpop.f32.mrb[0].mxu0
    %v5346 = vadd.f32 0.0, %v5345
    %v5347 = vpop.f32.mrb[0].mxu0
    %v5348 = vadd.f32 0.0, %v5347
    %v5349 = vpop.f32.mrb[0].mxu0
    %v5350 = vadd.f32 0.0, %v5349
    %v5351 = vpop.f32.mrb[0].mxu0
    %v5352 = vadd.f32 0.0, %v5351
    %5353 = vdwg.mxu0
    %5354 = vmatprep.subr.bf16.mxu0 %v4544
    %5355 = vmatpush1.bf16.msra.mxu0 %v4543
    %5356 = vmatprep.subr.bf16.mxu0 %v4560
    %5357 = vmatpush1.bf16.msra.mxu0 %v4559
    %5358 = vmatprep.subr.bf16.mxu0 %v4576
    %5359 = vmatpush1.bf16.msra.mxu0 %v4575
    %5360 = vmatprep.subr.bf16.mxu0 %v4592
    %5361 = vmatpush1.bf16.msra.mxu0 %v4591
    %5362 = vmatprep.subr.bf16.mxu0 %v4608
    %5363 = vmatpush1.bf16.msra.mxu0 %v4607
    %5364 = vmatprep.subr.bf16.mxu0 %v4624
    %5365 = vmatpush1.bf16.msra.mxu0 %v4623
    %5366 = vmatprep.subr.bf16.mxu0 %v4640
    %5367 = vmatpush1.bf16.msra.mxu0 %v4639
    %5368 = vmatprep.subr.bf16.mxu0 %v4656
    %5369 = vmatpush1.bf16.msra.mxu0 %v4655
    %5370 = vmatprep.subr.bf16.mxu0 %v4672
    %5371 = vmatpush1.bf16.msra.mxu0 %v4671
    %5372 = vmatprep.subr.bf16.mxu0 %v4688
    %5373 = vmatpush1.bf16.msra.mxu0 %v4687
    %5374 = vmatprep.subr.bf16.mxu0 %v4704
    %5375 = vmatpush1.bf16.msra.mxu0 %v4703
    %5376 = vmatprep.subr.bf16.mxu0 %v4720
    %5377 = vmatpush1.bf16.msra.mxu0 %v4719
    %5378 = vmatprep.subr.bf16.mxu0 %v4736
    %5379 = vmatpush1.bf16.msra.mxu0 %v4735
    %5380 = vmatprep.subr.bf16.mxu0 %v4752
    %5381 = vmatpush1.bf16.msra.mxu0 %v4751
    %5382 = vmatprep.subr.bf16.mxu0 %v4768
    %5383 = vmatpush1.bf16.msra.mxu0 %v4767
    %5384 = vmatprep.subr.bf16.mxu0 %v4784
    %5385 = vmatpush1.bf16.msra.mxu0 %v4783
    %5386 = vmatprep.mubr.bf16.mxu0 %v2238
    %5387 = vmatmul.mubr.bf16.gmra.mrb[0].mxu0 %v2237
    %v5388 = vpop.f32.mrb[0].mxu0
    %v5389 = vadd.f32 %v5346, %v5388
    %v5390 = vpop.f32.mrb[0].mxu0
    %v5391 = vadd.f32 %v5348, %v5390
    %v5392 = vpop.f32.mrb[0].mxu0
    %v5393 = vadd.f32 %v5350, %v5392
    %v5394 = vpop.f32.mrb[0].mxu0
    %v5395 = vadd.f32 %v5352, %v5394
    %5396 = vdwg.mxu0
    %5397 = vmatprep.subr.bf16.mxu0 %v4290
    %5398 = vmatpush1.bf16.msra.mxu0 %v4289
    %5399 = vmatprep.subr.bf16.mxu0 %v4306
    %5400 = vmatpush1.bf16.msra.mxu0 %v4305
    %5401 = vmatprep.subr.bf16.mxu0 %v4322
    %5402 = vmatpush1.bf16.msra.mxu0 %v4321
    %5403 = vmatprep.subr.bf16.mxu0 %v4338
    %5404 = vmatpush1.bf16.msra.mxu0 %v4337
    %5405 = vmatprep.subr.bf16.mxu0 %v4354
    %5406 = vmatpush1.bf16.msra.mxu0 %v4353
    %5407 = vmatprep.subr.bf16.mxu0 %v4370
    %5408 = vmatpush1.bf16.msra.mxu0 %v4369
    %5409 = vmatprep.subr.bf16.mxu0 %v4386
    %5410 = vmatpush1.bf16.msra.mxu0 %v4385
    %5411 = vmatprep.subr.bf16.mxu0 %v4402
    %5412 = vmatpush1.bf16.msra.mxu0 %v4401
    %5413 = vmatprep.subr.bf16.mxu0 %v4418
    %5414 = vmatpush1.bf16.msra.mxu0 %v4417
    %5415 = vmatprep.subr.bf16.mxu0 %v4434
    %5416 = vmatpush1.bf16.msra.mxu0 %v4433
    %5417 = vmatprep.subr.bf16.mxu0 %v4450
    %5418 = vmatpush1.bf16.msra.mxu0 %v4449
    %5419 = vmatprep.subr.bf16.mxu0 %v4466
    %5420 = vmatpush1.bf16.msra.mxu0 %v4465
    %5421 = vmatprep.subr.bf16.mxu0 %v4482
    %5422 = vmatpush1.bf16.msra.mxu0 %v4481
    %5423 = vmatprep.subr.bf16.mxu0 %v4498
    %5424 = vmatpush1.bf16.msra.mxu0 %v4497
    %5425 = vmatprep.subr.bf16.mxu0 %v4514
    %5426 = vmatpush1.bf16.msra.mxu0 %v4513
    %5427 = vmatprep.subr.bf16.mxu0 %v4530
    %5428 = vmatpush1.bf16.msra.mxu0 %v4529
    %5429 = vmatprep.mubr.bf16.mxu0 %v2236
    %5430 = vmatmul.mubr.bf16.gmra.mrb[0].mxu0 %v2235
    %v5431 = vpop.f32.mrb[0].mxu0
    %v5432 = vadd.f32 0.0, %v5431
    %v5433 = vpop.f32.mrb[0].mxu0
    %v5434 = vadd.f32 0.0, %v5433
    %v5435 = vpop.f32.mrb[0].mxu0
    %v5436 = vadd.f32 0.0, %v5435
    %v5437 = vpop.f32.mrb[0].mxu0
    %v5438 = vadd.f32 0.0, %v5437
    %5439 = vdwg.mxu0
    %5440 = vmatprep.subr.bf16.mxu0 %v4546
    %5441 = vmatpush1.bf16.msra.mxu0 %v4545
    %5442 = vmatprep.subr.bf16.mxu0 %v4562
    %5443 = vmatpush1.bf16.msra.mxu0 %v4561
    %5444 = vmatprep.subr.bf16.mxu0 %v4578
    %5445 = vmatpush1.bf16.msra.mxu0 %v4577
    %5446 = vmatprep.subr.bf16.mxu0 %v4594
    %5447 = vmatpush1.bf16.msra.mxu0 %v4593
    %5448 = vmatprep.subr.bf16.mxu0 %v4610
    %5449 = vmatpush1.bf16.msra.mxu0 %v4609
    %5450 = vmatprep.subr.bf16.mxu0 %v4626
    %5451 = vmatpush1.bf16.msra.mxu0 %v4625
    %5452 = vmatprep.subr.bf16.mxu0 %v4642
    %5453 = vmatpush1.bf16.msra.mxu0 %v4641
    %5454 = vmatprep.subr.bf16.mxu0 %v4658
    %5455 = vmatpush1.bf16.msra.mxu0 %v4657
    %5456 = vmatprep.subr.bf16.mxu0 %v4674
    %5457 = vmatpush1.bf16.msra.mxu0 %v4673
    %5458 = vmatprep.subr.bf16.mxu0 %v4690
    %5459 = vmatpush1.bf16.msra.mxu0 %v4689
    %5460 = vmatprep.subr.bf16.mxu0 %v4706
    %5461 = vmatpush1.bf16.msra.mxu0 %v4705
    %5462 = vmatprep.subr.bf16.mxu0 %v4722
    %5463 = vmatpush1.bf16.msra.mxu0 %v4721
    %5464 = vmatprep.subr.bf16.mxu0 %v4738
    %5465 = vmatpush1.bf16.msra.mxu0 %v4737
    %5466 = vmatprep.subr.bf16.mxu0 %v4754
    %5467 = vmatpush1.bf16.msra.mxu0 %v4753
    %5468 = vmatprep.subr.bf16.mxu0 %v4770
    %5469 = vmatpush1.bf16.msra.mxu0 %v4769
    %5470 = vmatprep.subr.bf16.mxu0 %v4786
    %5471 = vmatpush1.bf16.msra.mxu0 %v4785
    %5472 = vmatprep.mubr.bf16.mxu0 %v2238
    %5473 = vmatmul.mubr.bf16.gmra.mrb[0].mxu0 %v2237
    %v5474 = vpop.f32.mrb[0].mxu0
    %v5475 = vadd.f32 %v5432, %v5474
    %v5476 = vpop.f32.mrb[0].mxu0
    %v5477 = vadd.f32 %v5434, %v5476
    %v5478 = vpop.f32.mrb[0].mxu0
    %v5479 = vadd.f32 %v5436, %v5478
    %v5480 = vpop.f32.mrb[0].mxu0
    %v5481 = vadd.f32 %v5438, %v5480
    %5482 = vdwg.mxu0
    %5483 = vmatprep.subr.bf16.mxu0 %v4292
    %5484 = vmatpush1.bf16.msra.mxu0 %v4291
    %5485 = vmatprep.subr.bf16.mxu0 %v4308
    %5486 = vmatpush1.bf16.msra.mxu0 %v4307
    %5487 = vmatprep.subr.bf16.mxu0 %v4324
    %5488 = vmatpush1.bf16.msra.mxu0 %v4323
    %5489 = vmatprep.subr.bf16.mxu0 %v4340
    %5490 = vmatpush1.bf16.msra.mxu0 %v4339
    %5491 = vmatprep.subr.bf16.mxu0 %v4356
    %5492 = vmatpush1.bf16.msra.mxu0 %v4355
    %5493 = vmatprep.subr.bf16.mxu0 %v4372
    %5494 = vmatpush1.bf16.msra.mxu0 %v4371
    %5495 = vmatprep.subr.bf16.mxu0 %v4388
    %5496 = vmatpush1.bf16.msra.mxu0 %v4387
    %5497 = vmatprep.subr.bf16.mxu0 %v4404
    %5498 = vmatpush1.bf16.msra.mxu0 %v4403
    %5499 = vmatprep.subr.bf16.mxu0 %v4420
    %5500 = vmatpush1.bf16.msra.mxu0 %v4419
    %5501 = vmatprep.subr.bf16.mxu0 %v4436
    %5502 = vmatpush1.bf16.msra.mxu0 %v4435
    %5503 = vmatprep.subr.bf16.mxu0 %v4452
    %5504 = vmatpush1.bf16.msra.mxu0 %v4451
    %5505 = vmatprep.subr.bf16.mxu0 %v4468
    %5506 = vmatpush1.bf16.msra.mxu0 %v4467
    %5507 = vmatprep.subr.bf16.mxu0 %v4484
    %5508 = vmatpush1.bf16.msra.mxu0 %v4483
    %5509 = vmatprep.subr.bf16.mxu0 %v4500
    %5510 = vmatpush1.bf16.msra.mxu0 %v4499
    %5511 = vmatprep.subr.bf16.mxu0 %v4516
    %5512 = vmatpush1.bf16.msra.mxu0 %v4515
    %5513 = vmatprep.subr.bf16.mxu0 %v4532
    %5514 = vmatpush1.bf16.msra.mxu0 %v4531
    %5515 = vmatprep.mubr.bf16.mxu0 %v2236
    %5516 = vmatmul.mubr.bf16.gmra.mrb[0].mxu0 %v2235
    %v5517 = vpop.f32.mrb[0].mxu0
    %v5518 = vadd.f32 0.0, %v5517
    %v5519 = vpop.f32.mrb[0].mxu0
    %v5520 = vadd.f32 0.0, %v5519
    %v5521 = vpop.f32.mrb[0].mxu0
    %v5522 = vadd.f32 0.0, %v5521
    %v5523 = vpop.f32.mrb[0].mxu0
    %v5524 = vadd.f32 0.0, %v5523
    %5525 = vdwg.mxu0
    %5526 = vmatprep.subr.bf16.mxu0 %v4548
    %5527 = vmatpush1.bf16.msra.mxu0 %v4547
    %5528 = vmatprep.subr.bf16.mxu0 %v4564
    %5529 = vmatpush1.bf16.msra.mxu0 %v4563
    %5530 = vmatprep.subr.bf16.mxu0 %v4580
    %5531 = vmatpush1.bf16.msra.mxu0 %v4579
    %5532 = vmatprep.subr.bf16.mxu0 %v4596
    %5533 = vmatpush1.bf16.msra.mxu0 %v4595
    %5534 = vmatprep.subr.bf16.mxu0 %v4612
    %5535 = vmatpush1.bf16.msra.mxu0 %v4611
    %5536 = vmatprep.subr.bf16.mxu0 %v4628
    %5537 = vmatpush1.bf16.msra.mxu0 %v4627
    %5538 = vmatprep.subr.bf16.mxu0 %v4644
    %5539 = vmatpush1.bf16.msra.mxu0 %v4643
    %5540 = vmatprep.subr.bf16.mxu0 %v4660
    %5541 = vmatpush1.bf16.msra.mxu0 %v4659
    %5542 = vmatprep.subr.bf16.mxu0 %v4676
    %5543 = vmatpush1.bf16.msra.mxu0 %v4675
    %5544 = vmatprep.subr.bf16.mxu0 %v4692
    %5545 = vmatpush1.bf16.msra.mxu0 %v4691
    %5546 = vmatprep.subr.bf16.mxu0 %v4708
    %5547 = vmatpush1.bf16.msra.mxu0 %v4707
    %5548 = vmatprep.subr.bf16.mxu0 %v4724
    %5549 = vmatpush1.bf16.msra.mxu0 %v4723
    %5550 = vmatprep.subr.bf16.mxu0 %v4740
    %5551 = vmatpush1.bf16.msra.mxu0 %v4739
    %5552 = vmatprep.subr.bf16.mxu0 %v4756
    %5553 = vmatpush1.bf16.msra.mxu0 %v4755
    %5554 = vmatprep.subr.bf16.mxu0 %v4772
    %5555 = vmatpush1.bf16.msra.mxu0 %v4771
    %5556 = vmatprep.subr.bf16.mxu0 %v4788
    %5557 = vmatpush1.bf16.msra.mxu0 %v4787
    %5558 = vmatprep.mubr.bf16.mxu0 %v2238
    %5559 = vmatmul.mubr.bf16.gmra.mrb[0].mxu0 %v2237
    %v5560 = vpop.f32.mrb[0].mxu0
    %v5561 = vadd.f32 %v5518, %v5560
    %v5562 = vpop.f32.mrb[0].mxu0
    %v5563 = vadd.f32 %v5520, %v5562
    %v5564 = vpop.f32.mrb[0].mxu0
    %v5565 = vadd.f32 %v5522, %v5564
    %v5566 = vpop.f32.mrb[0].mxu0
    %v5567 = vadd.f32 %v5524, %v5566
    %5568 = vdwg.mxu0
    %5569 = vmatprep.subr.bf16.mxu0 %v4294
    %5570 = vmatpush1.bf16.msra.mxu0 %v4293
    %5571 = vmatprep.subr.bf16.mxu0 %v4310
    %5572 = vmatpush1.bf16.msra.mxu0 %v4309
    %5573 = vmatprep.subr.bf16.mxu0 %v4326
    %5574 = vmatpush1.bf16.msra.mxu0 %v4325
    %5575 = vmatprep.subr.bf16.mxu0 %v4342
    %5576 = vmatpush1.bf16.msra.mxu0 %v4341
    %5577 = vmatprep.subr.bf16.mxu0 %v4358
    %5578 = vmatpush1.bf16.msra.mxu0 %v4357
    %5579 = vmatprep.subr.bf16.mxu0 %v4374
    %5580 = vmatpush1.bf16.msra.mxu0 %v4373
    %5581 = vmatprep.subr.bf16.mxu0 %v4390
    %5582 = vmatpush1.bf16.msra.mxu0 %v4389
    %5583 = vmatprep.subr.bf16.mxu0 %v4406
    %5584 = vmatpush1.bf16.msra.mxu0 %v4405
    %5585 = vmatprep.subr.bf16.mxu0 %v4422
    %5586 = vmatpush1.bf16.msra.mxu0 %v4421
    %5587 = vmatprep.subr.bf16.mxu0 %v4438
    %5588 = vmatpush1.bf16.msra.mxu0 %v4437
    %5589 = vmatprep.subr.bf16.mxu0 %v4454
    %5590 = vmatpush1.bf16.msra.mxu0 %v4453
    %5591 = vmatprep.subr.bf16.mxu0 %v4470
    %5592 = vmatpush1.bf16.msra.mxu0 %v4469
    %5593 = vmatprep.subr.bf16.mxu0 %v4486
    %5594 = vmatpush1.bf16.msra.mxu0 %v4485
    %5595 = vmatprep.subr.bf16.mxu0 %v4502
    %5596 = vmatpush1.bf16.msra.mxu0 %v4501
    %5597 = vmatprep.subr.bf16.mxu0 %v4518
    %5598 = vmatpush1.bf16.msra.mxu0 %v4517
    %5599 = vmatprep.subr.bf16.mxu0 %v4534
    %5600 = vmatpush1.bf16.msra.mxu0 %v4533
    %5601 = vmatprep.mubr.bf16.mxu0 %v2236
    %5602 = vmatmul.mubr.bf16.gmra.mrb[0].mxu0 %v2235
    %v5603 = vpop.f32.mrb[0].mxu0
    %v5604 = vadd.f32 0.0, %v5603
    %v5605 = vpop.f32.mrb[0].mxu0
    %v5606 = vadd.f32 0.0, %v5605
    %v5607 = vpop.f32.mrb[0].mxu0
    %v5608 = vadd.f32 0.0, %v5607
    %v5609 = vpop.f32.mrb[0].mxu0
    %v5610 = vadd.f32 0.0, %v5609
    %5611 = vdwg.mxu0
    %5612 = vmatprep.subr.bf16.mxu0 %v4550
    %5613 = vmatpush1.bf16.msra.mxu0 %v4549
    %5614 = vmatprep.subr.bf16.mxu0 %v4566
    %5615 = vmatpush1.bf16.msra.mxu0 %v4565
    %5616 = vmatprep.subr.bf16.mxu0 %v4582
    %5617 = vmatpush1.bf16.msra.mxu0 %v4581
    %5618 = vmatprep.subr.bf16.mxu0 %v4598
    %5619 = vmatpush1.bf16.msra.mxu0 %v4597
    %5620 = vmatprep.subr.bf16.mxu0 %v4614
    %5621 = vmatpush1.bf16.msra.mxu0 %v4613
    %5622 = vmatprep.subr.bf16.mxu0 %v4630
    %5623 = vmatpush1.bf16.msra.mxu0 %v4629
    %5624 = vmatprep.subr.bf16.mxu0 %v4646
    %5625 = vmatpush1.bf16.msra.mxu0 %v4645
    %5626 = vmatprep.subr.bf16.mxu0 %v4662
    %5627 = vmatpush1.bf16.msra.mxu0 %v4661
    %5628 = vmatprep.subr.bf16.mxu0 %v4678
    %5629 = vmatpush1.bf16.msra.mxu0 %v4677
    %5630 = vmatprep.subr.bf16.mxu0 %v4694
    %5631 = vmatpush1.bf16.msra.mxu0 %v4693
    %5632 = vmatprep.subr.bf16.mxu0 %v4710
    %5633 = vmatpush1.bf16.msra.mxu0 %v4709
    %5634 = vmatprep.subr.bf16.mxu0 %v4726
    %5635 = vmatpush1.bf16.msra.mxu0 %v4725
    %5636 = vmatprep.subr.bf16.mxu0 %v4742
    %5637 = vmatpush1.bf16.msra.mxu0 %v4741
    %5638 = vmatprep.subr.bf16.mxu0 %v4758
    %5639 = vmatpush1.bf16.msra.mxu0 %v4757
    %5640 = vmatprep.subr.bf16.mxu0 %v4774
    %5641 = vmatpush1.bf16.msra.mxu0 %v4773
    %5642 = vmatprep.subr.bf16.mxu0 %v4790
    %5643 = vmatpush1.bf16.msra.mxu0 %v4789
    %5644 = vmatprep.mubr.bf16.mxu0 %v2238
    %5645 = vmatmul.mubr.bf16.gmra.mrb[0].mxu0 %v2237
    %v5646 = vpop.f32.mrb[0].mxu0
    %v5647 = vadd.f32 %v5604, %v5646
    %v5648 = vpop.f32.mrb[0].mxu0
    %v5649 = vadd.f32 %v5606, %v5648
    %v5650 = vpop.f32.mrb[0].mxu0
    %v5651 = vadd.f32 %v5608, %v5650
    %v5652 = vpop.f32.mrb[0].mxu0
    %v5653 = vadd.f32 %v5610, %v5652
    %5654 = vdwg.mxu0
    %5655 = vmatprep.subr.bf16.mxu0 %v4296
    %5656 = vmatpush1.bf16.msra.mxu0 %v4295
    %5657 = vmatprep.subr.bf16.mxu0 %v4312
    %5658 = vmatpush1.bf16.msra.mxu0 %v4311
    %5659 = vmatprep.subr.bf16.mxu0 %v4328
    %5660 = vmatpush1.bf16.msra.mxu0 %v4327
    %5661 = vmatprep.subr.bf16.mxu0 %v4344
    %5662 = vmatpush1.bf16.msra.mxu0 %v4343
    %5663 = vmatprep.subr.bf16.mxu0 %v4360
    %5664 = vmatpush1.bf16.msra.mxu0 %v4359
    %5665 = vmatprep.subr.bf16.mxu0 %v4376
    %5666 = vmatpush1.bf16.msra.mxu0 %v4375
    %5667 = vmatprep.subr.bf16.mxu0 %v4392
    %5668 = vmatpush1.bf16.msra.mxu0 %v4391
    %5669 = vmatprep.subr.bf16.mxu0 %v4408
    %5670 = vmatpush1.bf16.msra.mxu0 %v4407
    %5671 = vmatprep.subr.bf16.mxu0 %v4424
    %5672 = vmatpush1.bf16.msra.mxu0 %v4423
    %5673 = vmatprep.subr.bf16.mxu0 %v4440
    %5674 = vmatpush1.bf16.msra.mxu0 %v4439
    %5675 = vmatprep.subr.bf16.mxu0 %v4456
    %5676 = vmatpush1.bf16.msra.mxu0 %v4455
    %5677 = vmatprep.subr.bf16.mxu0 %v4472
    %5678 = vmatpush1.bf16.msra.mxu0 %v4471
    %5679 = vmatprep.subr.bf16.mxu0 %v4488
    %5680 = vmatpush1.bf16.msra.mxu0 %v4487
    %5681 = vmatprep.subr.bf16.mxu0 %v4504
    %5682 = vmatpush1.bf16.msra.mxu0 %v4503
    %5683 = vmatprep.subr.bf16.mxu0 %v4520
    %5684 = vmatpush1.bf16.msra.mxu0 %v4519
    %5685 = vmatprep.subr.bf16.mxu0 %v4536
    %5686 = vmatpush1.bf16.msra.mxu0 %v4535
    %5687 = vmatprep.mubr.bf16.mxu0 %v2236
    %5688 = vmatmul.mubr.bf16.gmra.mrb[0].mxu0 %v2235
    %v5689 = vpop.f32.mrb[0].mxu0
    %v5690 = vadd.f32 0.0, %v5689
    %v5691 = vpop.f32.mrb[0].mxu0
    %v5692 = vadd.f32 0.0, %v5691
    %v5693 = vpop.f32.mrb[0].mxu0
    %v5694 = vadd.f32 0.0, %v5693
    %v5695 = vpop.f32.mrb[0].mxu0
    %v5696 = vadd.f32 0.0, %v5695
    %5697 = vdwg.mxu0
    %5698 = vmatprep.subr.bf16.mxu0 %v4552
    %5699 = vmatpush1.bf16.msra.mxu0 %v4551
    %5700 = vmatprep.subr.bf16.mxu0 %v4568
    %5701 = vmatpush1.bf16.msra.mxu0 %v4567
    %5702 = vmatprep.subr.bf16.mxu0 %v4584
    %5703 = vmatpush1.bf16.msra.mxu0 %v4583
    %5704 = vmatprep.subr.bf16.mxu0 %v4600
    %5705 = vmatpush1.bf16.msra.mxu0 %v4599
    %5706 = vmatprep.subr.bf16.mxu0 %v4616
    %5707 = vmatpush1.bf16.msra.mxu0 %v4615
    %5708 = vmatprep.subr.bf16.mxu0 %v4632
    %5709 = vmatpush1.bf16.msra.mxu0 %v4631
    %5710 = vmatprep.subr.bf16.mxu0 %v4648
    %5711 = vmatpush1.bf16.msra.mxu0 %v4647
    %5712 = vmatprep.subr.bf16.mxu0 %v4664
    %5713 = vmatpush1.bf16.msra.mxu0 %v4663
    %5714 = vmatprep.subr.bf16.mxu0 %v4680
    %5715 = vmatpush1.bf16.msra.mxu0 %v4679
    %5716 = vmatprep.subr.bf16.mxu0 %v4696
    %5717 = vmatpush1.bf16.msra.mxu0 %v4695
    %5718 = vmatprep.subr.bf16.mxu0 %v4712
    %5719 = vmatpush1.bf16.msra.mxu0 %v4711
    %5720 = vmatprep.subr.bf16.mxu0 %v4728
    %5721 = vmatpush1.bf16.msra.mxu0 %v4727
    %5722 = vmatprep.subr.bf16.mxu0 %v4744
    %5723 = vmatpush1.bf16.msra.mxu0 %v4743
    %5724 = vmatprep.subr.bf16.mxu0 %v4760
    %5725 = vmatpush1.bf16.msra.mxu0 %v4759
    %5726 = vmatprep.subr.bf16.mxu0 %v4776
    %5727 = vmatpush1.bf16.msra.mxu0 %v4775
    %5728 = vmatprep.subr.bf16.mxu0 %v4792
    %5729 = vmatpush1.bf16.msra.mxu0 %v4791
    %5730 = vmatprep.mubr.bf16.mxu0 %v2238
    %5731 = vmatmul.mubr.bf16.gmra.mrb[0].mxu0 %v2237
    %v5732 = vpop.f32.mrb[0].mxu0
    %v5733 = vadd.f32 %v5690, %v5732
    %v5734 = vpop.f32.mrb[0].mxu0
    %v5735 = vadd.f32 %v5692, %v5734
    %v5736 = vpop.f32.mrb[0].mxu0
    %v5737 = vadd.f32 %v5694, %v5736
    %v5738 = vpop.f32.mrb[0].mxu0
    %v5739 = vadd.f32 %v5696, %v5738
    %5740 = vdwg.mxu0
    %5741 = vmatprep.subr.bf16.mxu0 %v4298
    %5742 = vmatpush1.bf16.msra.mxu0 %v4297
    %5743 = vmatprep.subr.bf16.mxu0 %v4314
    %5744 = vmatpush1.bf16.msra.mxu0 %v4313
    %5745 = vmatprep.subr.bf16.mxu0 %v4330
    %5746 = vmatpush1.bf16.msra.mxu0 %v4329
    %5747 = vmatprep.subr.bf16.mxu0 %v4346
    %5748 = vmatpush1.bf16.msra.mxu0 %v4345
    %5749 = vmatprep.subr.bf16.mxu0 %v4362
    %5750 = vmatpush1.bf16.msra.mxu0 %v4361
    %5751 = vmatprep.subr.bf16.mxu0 %v4378
    %5752 = vmatpush1.bf16.msra.mxu0 %v4377
    %5753 = vmatprep.subr.bf16.mxu0 %v4394
    %5754 = vmatpush1.bf16.msra.mxu0 %v4393
    %5755 = vmatprep.subr.bf16.mxu0 %v4410
    %5756 = vmatpush1.bf16.msra.mxu0 %v4409
    %5757 = vmatprep.subr.bf16.mxu0 %v4426
    %5758 = vmatpush1.bf16.msra.mxu0 %v4425
    %5759 = vmatprep.subr.bf16.mxu0 %v4442
    %5760 = vmatpush1.bf16.msra.mxu0 %v4441
    %5761 = vmatprep.subr.bf16.mxu0 %v4458
    %5762 = vmatpush1.bf16.msra.mxu0 %v4457
    %5763 = vmatprep.subr.bf16.mxu0 %v4474
    %5764 = vmatpush1.bf16.msra.mxu0 %v4473
    %5765 = vmatprep.subr.bf16.mxu0 %v4490
    %5766 = vmatpush1.bf16.msra.mxu0 %v4489
    %5767 = vmatprep.subr.bf16.mxu0 %v4506
    %5768 = vmatpush1.bf16.msra.mxu0 %v4505
    %5769 = vmatprep.subr.bf16.mxu0 %v4522
    %5770 = vmatpush1.bf16.msra.mxu0 %v4521
    %5771 = vmatprep.subr.bf16.mxu0 %v4538
    %5772 = vmatpush1.bf16.msra.mxu0 %v4537
    %5773 = vmatprep.mubr.bf16.mxu0 %v2236
    %5774 = vmatmul.mubr.bf16.gmra.mrb[0].mxu0 %v2235
    %v5775 = vpop.f32.mrb[0].mxu0
    %v5776 = vadd.f32 0.0, %v5775
    %v5777 = vpop.f32.mrb[0].mxu0
    %v5778 = vadd.f32 0.0, %v5777
    %v5779 = vpop.f32.mrb[0].mxu0
    %v5780 = vadd.f32 0.0, %v5779
    %v5781 = vpop.f32.mrb[0].mxu0
    %v5782 = vadd.f32 0.0, %v5781
    %5783 = vdwg.mxu0
    %5784 = vmatprep.subr.bf16.mxu0 %v4554
    %5785 = vmatpush1.bf16.msra.mxu0 %v4553
    %5786 = vmatprep.subr.bf16.mxu0 %v4570
    %5787 = vmatpush1.bf16.msra.mxu0 %v4569
    %5788 = vmatprep.subr.bf16.mxu0 %v4586
    %5789 = vmatpush1.bf16.msra.mxu0 %v4585
    %5790 = vmatprep.subr.bf16.mxu0 %v4602
    %5791 = vmatpush1.bf16.msra.mxu0 %v4601
    %5792 = vmatprep.subr.bf16.mxu0 %v4618
    %5793 = vmatpush1.bf16.msra.mxu0 %v4617
    %5794 = vmatprep.subr.bf16.mxu0 %v4634
    %5795 = vmatpush1.bf16.msra.mxu0 %v4633
    %5796 = vmatprep.subr.bf16.mxu0 %v4650
    %5797 = vmatpush1.bf16.msra.mxu0 %v4649
    %5798 = vmatprep.subr.bf16.mxu0 %v4666
    %5799 = vmatpush1.bf16.msra.mxu0 %v4665
    %5800 = vmatprep.subr.bf16.mxu0 %v4682
    %5801 = vmatpush1.bf16.msra.mxu0 %v4681
    %5802 = vmatprep.subr.bf16.mxu0 %v4698
    %5803 = vmatpush1.bf16.msra.mxu0 %v4697
    %5804 = vmatprep.subr.bf16.mxu0 %v4714
    %5805 = vmatpush1.bf16.msra.mxu0 %v4713
    %5806 = vmatprep.subr.bf16.mxu0 %v4730
    %5807 = vmatpush1.bf16.msra.mxu0 %v4729
    %5808 = vmatprep.subr.bf16.mxu0 %v4746
    %5809 = vmatpush1.bf16.msra.mxu0 %v4745
    %5810 = vmatprep.subr.bf16.mxu0 %v4762
    %5811 = vmatpush1.bf16.msra.mxu0 %v4761
    %5812 = vmatprep.subr.bf16.mxu0 %v4778
    %5813 = vmatpush1.bf16.msra.mxu0 %v4777
    %5814 = vmatprep.subr.bf16.mxu0 %v4794
    %5815 = vmatpush1.bf16.msra.mxu0 %v4793
    %5816 = vmatprep.mubr.bf16.mxu0 %v2238
    %5817 = vmatmul.mubr.bf16.gmra.mrb[0].mxu0 %v2237
    %v5818 = vpop.f32.mrb[0].mxu0
    %v5819 = vadd.f32 %v5776, %v5818
    %v5820 = vpop.f32.mrb[0].mxu0
    %v5821 = vadd.f32 %v5778, %v5820
    %v5822 = vpop.f32.mrb[0].mxu0
    %v5823 = vadd.f32 %v5780, %v5822
    %v5824 = vpop.f32.mrb[0].mxu0
    %v5825 = vadd.f32 %v5782, %v5824
    %5826 = vdwg.mxu0
    %5827 = vmatprep.subr.bf16.mxu0 %v4300
    %5828 = vmatpush1.bf16.msra.mxu0 %v4299
    %5829 = vmatprep.subr.bf16.mxu0 %v4316
    %5830 = vmatpush1.bf16.msra.mxu0 %v4315
    %5831 = vmatprep.subr.bf16.mxu0 %v4332
    %5832 = vmatpush1.bf16.msra.mxu0 %v4331
    %5833 = vmatprep.subr.bf16.mxu0 %v4348
    %5834 = vmatpush1.bf16.msra.mxu0 %v4347
    %5835 = vmatprep.subr.bf16.mxu0 %v4364
    %5836 = vmatpush1.bf16.msra.mxu0 %v4363
    %5837 = vmatprep.subr.bf16.mxu0 %v4380
    %5838 = vmatpush1.bf16.msra.mxu0 %v4379
    %5839 = vmatprep.subr.bf16.mxu0 %v4396
    %5840 = vmatpush1.bf16.msra.mxu0 %v4395
    %5841 = vmatprep.subr.bf16.mxu0 %v4412
    %5842 = vmatpush1.bf16.msra.mxu0 %v4411
    %5843 = vmatprep.subr.bf16.mxu0 %v4428
    %5844 = vmatpush1.bf16.msra.mxu0 %v4427
    %5845 = vmatprep.subr.bf16.mxu0 %v4444
    %5846 = vmatpush1.bf16.msra.mxu0 %v4443
    %5847 = vmatprep.subr.bf16.mxu0 %v4460
    %5848 = vmatpush1.bf16.msra.mxu0 %v4459
    %5849 = vmatprep.subr.bf16.mxu0 %v4476
    %5850 = vmatpush1.bf16.msra.mxu0 %v4475
    %5851 = vmatprep.subr.bf16.mxu0 %v4492
    %5852 = vmatpush1.bf16.msra.mxu0 %v4491
    %5853 = vmatprep.subr.bf16.mxu0 %v4508
    %5854 = vmatpush1.bf16.msra.mxu0 %v4507
    %5855 = vmatprep.subr.bf16.mxu0 %v4524
    %5856 = vmatpush1.bf16.msra.mxu0 %v4523
    %5857 = vmatprep.subr.bf16.mxu0 %v4540
    %5858 = vmatpush1.bf16.msra.mxu0 %v4539
    %5859 = vmatprep.mubr.bf16.mxu0 %v2236
    %5860 = vmatmul.mubr.bf16.gmra.mrb[0].mxu0 %v2235
    %v5861 = vpop.f32.mrb[0].mxu0
    %v5862 = vadd.f32 0.0, %v5861
    %v5863 = vpop.f32.mrb[0].mxu0
    %v5864 = vadd.f32 0.0, %v5863
    %v5865 = vpop.f32.mrb[0].mxu0
    %v5866 = vadd.f32 0.0, %v5865
    %v5867 = vpop.f32.mrb[0].mxu0
    %v5868 = vadd.f32 0.0, %v5867
    %5869 = vdwg.mxu0
    %5870 = vmatprep.subr.bf16.mxu0 %v4556
    %5871 = vmatpush1.bf16.msra.mxu0 %v4555
    %5872 = vmatprep.subr.bf16.mxu0 %v4572
    %5873 = vmatpush1.bf16.msra.mxu0 %v4571
    %5874 = vmatprep.subr.bf16.mxu0 %v4588
    %5875 = vmatpush1.bf16.msra.mxu0 %v4587
    %5876 = vmatprep.subr.bf16.mxu0 %v4604
    %5877 = vmatpush1.bf16.msra.mxu0 %v4603
    %5878 = vmatprep.subr.bf16.mxu0 %v4620
    %5879 = vmatpush1.bf16.msra.mxu0 %v4619
    %5880 = vmatprep.subr.bf16.mxu0 %v4636
    %5881 = vmatpush1.bf16.msra.mxu0 %v4635
    %5882 = vmatprep.subr.bf16.mxu0 %v4652
    %5883 = vmatpush1.bf16.msra.mxu0 %v4651
    %5884 = vmatprep.subr.bf16.mxu0 %v4668
    %5885 = vmatpush1.bf16.msra.mxu0 %v4667
    %5886 = vmatprep.subr.bf16.mxu0 %v4684
    %5887 = vmatpush1.bf16.msra.mxu0 %v4683
    %5888 = vmatprep.subr.bf16.mxu0 %v4700
    %5889 = vmatpush1.bf16.msra.mxu0 %v4699
    %5890 = vmatprep.subr.bf16.mxu0 %v4716
    %5891 = vmatpush1.bf16.msra.mxu0 %v4715
    %5892 = vmatprep.subr.bf16.mxu0 %v4732
    %5893 = vmatpush1.bf16.msra.mxu0 %v4731
    %5894 = vmatprep.subr.bf16.mxu0 %v4748
    %5895 = vmatpush1.bf16.msra.mxu0 %v4747
    %5896 = vmatprep.subr.bf16.mxu0 %v4764
    %5897 = vmatpush1.bf16.msra.mxu0 %v4763
    %5898 = vmatprep.subr.bf16.mxu0 %v4780
    %5899 = vmatpush1.bf16.msra.mxu0 %v4779
    %5900 = vmatprep.subr.bf16.mxu0 %v4796
    %5901 = vmatpush1.bf16.msra.mxu0 %v4795
    %5902 = vmatprep.mubr.bf16.mxu0 %v2238
    %5903 = vmatmul.mubr.bf16.gmra.mrb[0].mxu0 %v2237
    %v5904 = vpop.f32.mrb[0].mxu0
    %v5905 = vadd.f32 %v5862, %v5904
    %v5906 = vpop.f32.mrb[0].mxu0
    %v5907 = vadd.f32 %v5864, %v5906
    %v5908 = vpop.f32.mrb[0].mxu0
    %v5909 = vadd.f32 %v5866, %v5908
    %v5910 = vpop.f32.mrb[0].mxu0
    %v5911 = vadd.f32 %v5868, %v5910
    %5912 = vdwg.mxu0
    %5913 = vmatprep.subr.bf16.mxu0 %v4302
    %5914 = vmatpush1.bf16.msra.mxu0 %v4301
    %5915 = vmatprep.subr.bf16.mxu0 %v4318
    %5916 = vmatpush1.bf16.msra.mxu0 %v4317
    %5917 = vmatprep.subr.bf16.mxu0 %v4334
    %5918 = vmatpush1.bf16.msra.mxu0 %v4333
    %5919 = vmatprep.subr.bf16.mxu0 %v4350
    %5920 = vmatpush1.bf16.msra.mxu0 %v4349
    %5921 = vmatprep.subr.bf16.mxu0 %v4366
    %5922 = vmatpush1.bf16.msra.mxu0 %v4365
    %5923 = vmatprep.subr.bf16.mxu0 %v4382
    %5924 = vmatpush1.bf16.msra.mxu0 %v4381
    %5925 = vmatprep.subr.bf16.mxu0 %v4398
    %5926 = vmatpush1.bf16.msra.mxu0 %v4397
    %5927 = vmatprep.subr.bf16.mxu0 %v4414
    %5928 = vmatpush1.bf16.msra.mxu0 %v4413
    %5929 = vmatprep.subr.bf16.mxu0 %v4430
    %5930 = vmatpush1.bf16.msra.mxu0 %v4429
    %5931 = vmatprep.subr.bf16.mxu0 %v4446
    %5932 = vmatpush1.bf16.msra.mxu0 %v4445
    %5933 = vmatprep.subr.bf16.mxu0 %v4462
    %5934 = vmatpush1.bf16.msra.mxu0 %v4461
    %5935 = vmatprep.subr.bf16.mxu0 %v4478
    %5936 = vmatpush1.bf16.msra.mxu0 %v4477
    %5937 = vmatprep.subr.bf16.mxu0 %v4494
    %5938 = vmatpush1.bf16.msra.mxu0 %v4493
    %5939 = vmatprep.subr.bf16.mxu0 %v4510
    %5940 = vmatpush1.bf16.msra.mxu0 %v4509
    %5941 = vmatprep.subr.bf16.mxu0 %v4526
    %5942 = vmatpush1.bf16.msra.mxu0 %v4525
    %5943 = vmatprep.subr.bf16.mxu0 %v4542
    %5944 = vmatpush1.bf16.msra.mxu0 %v4541
    %5945 = vmatprep.mubr.bf16.mxu0 %v2236
    %5946 = vmatmul.mubr.bf16.gmra.mrb[0].mxu0 %v2235
    %v5947 = vpop.f32.mrb[0].mxu0
    %v5948 = vadd.f32 0.0, %v5947
    %v5949 = vpop.f32.mrb[0].mxu0
    %v5950 = vadd.f32 0.0, %v5949
    %v5951 = vpop.f32.mrb[0].mxu0
    %v5952 = vadd.f32 0.0, %v5951
    %v5953 = vpop.f32.mrb[0].mxu0
    %v5954 = vadd.f32 0.0, %v5953
    %5955 = vdwg.mxu0
    %5956 = vmatprep.subr.bf16.mxu0 %v4558
    %5957 = vmatpush1.bf16.msra.mxu0 %v4557
    %5958 = vmatprep.subr.bf16.mxu0 %v4574
    %5959 = vmatpush1.bf16.msra.mxu0 %v4573
    %5960 = vmatprep.subr.bf16.mxu0 %v4590
    %5961 = vmatpush1.bf16.msra.mxu0 %v4589
    %5962 = vmatprep.subr.bf16.mxu0 %v4606
    %5963 = vmatpush1.bf16.msra.mxu0 %v4605
    %5964 = vmatprep.subr.bf16.mxu0 %v4622
    %5965 = vmatpush1.bf16.msra.mxu0 %v4621
    %5966 = vmatprep.subr.bf16.mxu0 %v4638
    %5967 = vmatpush1.bf16.msra.mxu0 %v4637
    %5968 = vmatprep.subr.bf16.mxu0 %v4654
    %5969 = vmatpush1.bf16.msra.mxu0 %v4653
    %5970 = vmatprep.subr.bf16.mxu0 %v4670
    %5971 = vmatpush1.bf16.msra.mxu0 %v4669
    %5972 = vmatprep.subr.bf16.mxu0 %v4686
    %5973 = vmatpush1.bf16.msra.mxu0 %v4685
    %5974 = vmatprep.subr.bf16.mxu0 %v4702
    %5975 = vmatpush1.bf16.msra.mxu0 %v4701
    %5976 = vmatprep.subr.bf16.mxu0 %v4718
    %5977 = vmatpush1.bf16.msra.mxu0 %v4717
    %5978 = vmatprep.subr.bf16.mxu0 %v4734
    %5979 = vmatpush1.bf16.msra.mxu0 %v4733
    %5980 = vmatprep.subr.bf16.mxu0 %v4750
    %5981 = vmatpush1.bf16.msra.mxu0 %v4749
    %5982 = vmatprep.subr.bf16.mxu0 %v4766
    %5983 = vmatpush1.bf16.msra.mxu0 %v4765
    %5984 = vmatprep.subr.bf16.mxu0 %v4782
    %5985 = vmatpush1.bf16.msra.mxu0 %v4781
    %5986 = vmatprep.subr.bf16.mxu0 %v4798
    %5987 = vmatpush1.bf16.msra.mxu0 %v4797
    %5988 = vmatprep.mubr.bf16.mxu0 %v2238
    %5989 = vmatmul.mubr.bf16.gmra.mrb[0].mxu0 %v2237
    %v5990 = vpop.f32.mrb[0].mxu0
    %v5991 = vadd.f32 %v5948, %v5990
    %v5992 = vpop.f32.mrb[0].mxu0
    %v5993 = vadd.f32 %v5950, %v5992
    %v5994 = vpop.f32.mrb[0].mxu0
    %v5995 = vadd.f32 %v5952, %v5994
    %v5996 = vpop.f32.mrb[0].mxu0
    %v5997 = vadd.f32 %v5954, %v5996
    %5998 = vdwg.mxu0
    %v5999 = vmax.f32 %v5389, 0.0
    %v6000 = vmax.f32 %v5391, 0.0
    %v6001 = vmax.f32 %v5475, 0.0
    %v6002 = vmax.f32 %v5477, 0.0
    %v6003 = vmax.f32 %v5561, 0.0
    %v6004 = vmax.f32 %v5563, 0.0
    %v6005 = vmax.f32 %v5647, 0.0
    %v6006 = vmax.f32 %v5649, 0.0
    %v6007 = vmax.f32 %v5733, 0.0
    %v6008 = vmax.f32 %v5735, 0.0
    %v6009 = vmax.f32 %v5819, 0.0
    %v6010 = vmax.f32 %v5821, 0.0
    %v6011 = vmax.f32 %v5905, 0.0
    %v6012 = vmax.f32 %v5907, 0.0
    %v6013 = vmax.f32 %v5991, 0.0
    %v6014 = vmax.f32 %v5993, 0.0
    %v6015 = vmax.f32 %v5393, 0.0
    %v6016 = vmax.f32 %v5395, 0.0
    %v6017 = vmax.f32 %v5479, 0.0
    %v6018 = vmax.f32 %v5481, 0.0
    %v6019 = vmax.f32 %v5565, 0.0
    %v6020 = vmax.f32 %v5567, 0.0
    %v6021 = vmax.f32 %v5651, 0.0
    %v6022 = vmax.f32 %v5653, 0.0
    %v6023 = vmax.f32 %v5737, 0.0
    %v6024 = vmax.f32 %v5739, 0.0
    %v6025 = vmax.f32 %v5823, 0.0
    %v6026 = vmax.f32 %v5825, 0.0
    %v6027 = vmax.f32 %v5909, 0.0
    %v6028 = vmax.f32 %v5911, 0.0
    %v6029 = vmax.f32 %v5995, 0.0
    %v6030 = vmax.f32 %v5997, 0.0
    %v6031 = vpack.c.bf16 %v6015, %v5999
    %v6032 = vpack.c.bf16 %v6016, %v6000
    %v6033 = vpack.c.bf16 %v6017, %v6001
    %v6034 = vpack.c.bf16 %v6018, %v6002
    %v6035 = vpack.c.bf16 %v6019, %v6003
    %v6036 = vpack.c.bf16 %v6020, %v6004
    %v6037 = vpack.c.bf16 %v6021, %v6005
    %v6038 = vpack.c.bf16 %v6022, %v6006
    %v6039 = vpack.c.bf16 %v6023, %v6007
    %v6040 = vpack.c.bf16 %v6024, %v6008
    %v6041 = vpack.c.bf16 %v6025, %v6009
    %v6042 = vpack.c.bf16 %v6026, %v6010
    %v6043 = vpack.c.bf16 %v6027, %v6011
    %v6044 = vpack.c.bf16 %v6028, %v6012
    %v6045 = vpack.c.bf16 %v6029, %v6013
    %v6046 = vpack.c.bf16 %v6030, %v6014
    %v6047 = vld [vmem:[#allocation9] sm:$0xff]
    %v6048 = vld [vmem:[#allocation9 + $0x8] sm:$0xff]
    %v6049 = vld [vmem:[#allocation9 + $0x10] sm:$0xff]
    %v6050 = vld [vmem:[#allocation9 + $0x18] sm:$0xff]
    %v6051 = vld [vmem:[#allocation9 + $0x20] sm:$0xff]
    %v6052 = vld [vmem:[#allocation9 + $0x28] sm:$0xff]
    %v6053 = vld [vmem:[#allocation9 + $0x30] sm:$0xff]
    %v6054 = vld [vmem:[#allocation9 + $0x38] sm:$0xff]
    %v6055 = vld [vmem:[#allocation9 + $0x40] sm:$0xff]
    %v6056 = vld [vmem:[#allocation9 + $0x48] sm:$0xff]
    %v6057 = vld [vmem:[#allocation9 + $0x50] sm:$0xff]
    %v6058 = vld [vmem:[#allocation9 + $0x58] sm:$0xff]
    %v6059 = vld [vmem:[#allocation9 + $0x60] sm:$0xff]
    %v6060 = vld [vmem:[#allocation9 + $0x68] sm:$0xff]
    %v6061 = vld [vmem:[#allocation9 + $0x70] sm:$0xff]
    %v6062 = vld [vmem:[#allocation9 + $0x78] sm:$0xff]
    %v6063 = vld [vmem:[#allocation9 + $0x80] sm:$0xff]
    %v6064 = vld [vmem:[#allocation9 + $0x88] sm:$0xff]
    %v6065 = vld [vmem:[#allocation9 + $0x90] sm:$0xff]
    %v6066 = vld [vmem:[#allocation9 + $0x98] sm:$0xff]
    %v6067 = vld [vmem:[#allocation9 + $0xa0] sm:$0xff]
    %v6068 = vld [vmem:[#allocation9 + $0xa8] sm:$0xff]
    %v6069 = vld [vmem:[#allocation9 + $0xb0] sm:$0xff]
    %v6070 = vld [vmem:[#allocation9 + $0xb8] sm:$0xff]
    %v6071 = vld [vmem:[#allocation9 + $0xc0] sm:$0xff]
    %v6072 = vld [vmem:[#allocation9 + $0xc8] sm:$0xff]
    %v6073 = vld [vmem:[#allocation9 + $0xd0] sm:$0xff]
    %v6074 = vld [vmem:[#allocation9 + $0xd8] sm:$0xff]
    %v6075 = vld [vmem:[#allocation9 + $0xe0] sm:$0xff]
    %v6076 = vld [vmem:[#allocation9 + $0xe8] sm:$0xff]
    %v6077 = vld [vmem:[#allocation9 + $0xf0] sm:$0xff]
    %v6078 = vld [vmem:[#allocation9 + $0xf8] sm:$0xff]
    %v6079 = vld [vmem:[#allocation9 + $0x100] sm:$0xff]
    %v6080 = vld [vmem:[#allocation9 + $0x108] sm:$0xff]
    %v6081 = vld [vmem:[#allocation9 + $0x110] sm:$0xff]
    %v6082 = vld [vmem:[#allocation9 + $0x118] sm:$0xff]
    %v6083 = vld [vmem:[#allocation9 + $0x120] sm:$0xff]
    %v6084 = vld [vmem:[#allocation9 + $0x128] sm:$0xff]
    %v6085 = vld [vmem:[#allocation9 + $0x130] sm:$0xff]
    %v6086 = vld [vmem:[#allocation9 + $0x138] sm:$0xff]
    %v6087 = vld [vmem:[#allocation9 + $0x140] sm:$0xff]
    %v6088 = vld [vmem:[#allocation9 + $0x148] sm:$0xff]
    %v6089 = vld [vmem:[#allocation9 + $0x150] sm:$0xff]
    %v6090 = vld [vmem:[#allocation9 + $0x158] sm:$0xff]
    %v6091 = vld [vmem:[#allocation9 + $0x160] sm:$0xff]
    %v6092 = vld [vmem:[#allocation9 + $0x168] sm:$0xff]
    %v6093 = vld [vmem:[#allocation9 + $0x170] sm:$0xff]
    %v6094 = vld [vmem:[#allocation9 + $0x178] sm:$0xff]
    %v6095 = vld [vmem:[#allocation9 + $0x180] sm:$0xff]
    %v6096 = vld [vmem:[#allocation9 + $0x188] sm:$0xff]
    %v6097 = vld [vmem:[#allocation9 + $0x190] sm:$0xff]
    %v6098 = vld [vmem:[#allocation9 + $0x198] sm:$0xff]
    %v6099 = vld [vmem:[#allocation9 + $0x1a0] sm:$0xff]
    %v6100 = vld [vmem:[#allocation9 + $0x1a8] sm:$0xff]
    %v6101 = vld [vmem:[#allocation9 + $0x1b0] sm:$0xff]
    %v6102 = vld [vmem:[#allocation9 + $0x1b8] sm:$0xff]
    %v6103 = vld [vmem:[#allocation9 + $0x1c0] sm:$0xff]
    %v6104 = vld [vmem:[#allocation9 + $0x1c8] sm:$0xff]
    %v6105 = vld [vmem:[#allocation9 + $0x1d0] sm:$0xff]
    %v6106 = vld [vmem:[#allocation9 + $0x1d8] sm:$0xff]
    %v6107 = vld [vmem:[#allocation9 + $0x1e0] sm:$0xff]
    %v6108 = vld [vmem:[#allocation9 + $0x1e8] sm:$0xff]
    %v6109 = vld [vmem:[#allocation9 + $0x1f0] sm:$0xff]
    %v6110 = vld [vmem:[#allocation9 + $0x1f8] sm:$0xff]
    %v6111 = vld [vmem:[#allocation9 + $0x200] sm:$0xff]
    %v6112 = vld [vmem:[#allocation9 + $0x208] sm:$0xff]
    %v6113 = vld [vmem:[#allocation9 + $0x210] sm:$0xff]
    %v6114 = vld [vmem:[#allocation9 + $0x218] sm:$0xff]
    %v6115 = vld [vmem:[#allocation9 + $0x220] sm:$0xff]
    %v6116 = vld [vmem:[#allocation9 + $0x228] sm:$0xff]
    %v6117 = vld [vmem:[#allocation9 + $0x230] sm:$0xff]
    %v6118 = vld [vmem:[#allocation9 + $0x238] sm:$0xff]
    %v6119 = vld [vmem:[#allocation9 + $0x240] sm:$0xff]
    %v6120 = vld [vmem:[#allocation9 + $0x248] sm:$0xff]
    %v6121 = vld [vmem:[#allocation9 + $0x250] sm:$0xff]
    %v6122 = vld [vmem:[#allocation9 + $0x258] sm:$0xff]
    %v6123 = vld [vmem:[#allocation9 + $0x260] sm:$0xff]
    %v6124 = vld [vmem:[#allocation9 + $0x268] sm:$0xff]
    %v6125 = vld [vmem:[#allocation9 + $0x270] sm:$0xff]
    %v6126 = vld [vmem:[#allocation9 + $0x278] sm:$0xff]
    %v6127 = vld [vmem:[#allocation9 + $0x280] sm:$0xff]
    %v6128 = vld [vmem:[#allocation9 + $0x288] sm:$0xff]
    %v6129 = vld [vmem:[#allocation9 + $0x290] sm:$0xff]
    %v6130 = vld [vmem:[#allocation9 + $0x298] sm:$0xff]
    %v6131 = vld [vmem:[#allocation9 + $0x2a0] sm:$0xff]
    %v6132 = vld [vmem:[#allocation9 + $0x2a8] sm:$0xff]
    %v6133 = vld [vmem:[#allocation9 + $0x2b0] sm:$0xff]
    %v6134 = vld [vmem:[#allocation9 + $0x2b8] sm:$0xff]
    %v6135 = vld [vmem:[#allocation9 + $0x2c0] sm:$0xff]
    %v6136 = vld [vmem:[#allocation9 + $0x2c8] sm:$0xff]
    %v6137 = vld [vmem:[#allocation9 + $0x2d0] sm:$0xff]
    %v6138 = vld [vmem:[#allocation9 + $0x2d8] sm:$0xff]
    %v6139 = vld [vmem:[#allocation9 + $0x2e0] sm:$0xff]
    %v6140 = vld [vmem:[#allocation9 + $0x2e8] sm:$0xff]
    %v6141 = vld [vmem:[#allocation9 + $0x2f0] sm:$0xff]
    %v6142 = vld [vmem:[#allocation9 + $0x2f8] sm:$0xff]
    %v6143 = vld [vmem:[#allocation9 + $0x300] sm:$0xff]
    %v6144 = vld [vmem:[#allocation9 + $0x308] sm:$0xff]
    %v6145 = vld [vmem:[#allocation9 + $0x310] sm:$0xff]
    %v6146 = vld [vmem:[#allocation9 + $0x318] sm:$0xff]
    %v6147 = vld [vmem:[#allocation9 + $0x320] sm:$0xff]
    %v6148 = vld [vmem:[#allocation9 + $0x328] sm:$0xff]
    %v6149 = vld [vmem:[#allocation9 + $0x330] sm:$0xff]
    %v6150 = vld [vmem:[#allocation9 + $0x338] sm:$0xff]
    %v6151 = vld [vmem:[#allocation9 + $0x340] sm:$0xff]
    %v6152 = vld [vmem:[#allocation9 + $0x348] sm:$0xff]
    %v6153 = vld [vmem:[#allocation9 + $0x350] sm:$0xff]
    %v6154 = vld [vmem:[#allocation9 + $0x358] sm:$0xff]
    %v6155 = vld [vmem:[#allocation9 + $0x360] sm:$0xff]
    %v6156 = vld [vmem:[#allocation9 + $0x368] sm:$0xff]
    %v6157 = vld [vmem:[#allocation9 + $0x370] sm:$0xff]
    %v6158 = vld [vmem:[#allocation9 + $0x378] sm:$0xff]
    %v6159 = vld [vmem:[#allocation9 + $0x380] sm:$0xff]
    %v6160 = vld [vmem:[#allocation9 + $0x388] sm:$0xff]
    %v6161 = vld [vmem:[#allocation9 + $0x390] sm:$0xff]
    %v6162 = vld [vmem:[#allocation9 + $0x398] sm:$0xff]
    %v6163 = vld [vmem:[#allocation9 + $0x3a0] sm:$0xff]
    %v6164 = vld [vmem:[#allocation9 + $0x3a8] sm:$0xff]
    %v6165 = vld [vmem:[#allocation9 + $0x3b0] sm:$0xff]
    %v6166 = vld [vmem:[#allocation9 + $0x3b8] sm:$0xff]
    %v6167 = vld [vmem:[#allocation9 + $0x3c0] sm:$0xff]
    %v6168 = vld [vmem:[#allocation9 + $0x3c8] sm:$0xff]
    %v6169 = vld [vmem:[#allocation9 + $0x3d0] sm:$0xff]
    %v6170 = vld [vmem:[#allocation9 + $0x3d8] sm:$0xff]
    %v6171 = vld [vmem:[#allocation9 + $0x3e0] sm:$0xff]
    %v6172 = vld [vmem:[#allocation9 + $0x3e8] sm:$0xff]
    %v6173 = vld [vmem:[#allocation9 + $0x3f0] sm:$0xff]
    %v6174 = vld [vmem:[#allocation9 + $0x3f8] sm:$0xff]
    %v6175 = vld [vmem:[#allocation9 + $0x400] sm:$0xff]
    %v6176 = vld [vmem:[#allocation9 + $0x408] sm:$0xff]
    %v6177 = vld [vmem:[#allocation9 + $0x410] sm:$0xff]
    %v6178 = vld [vmem:[#allocation9 + $0x418] sm:$0xff]
    %v6179 = vld [vmem:[#allocation9 + $0x420] sm:$0xff]
    %v6180 = vld [vmem:[#allocation9 + $0x428] sm:$0xff]
    %v6181 = vld [vmem:[#allocation9 + $0x430] sm:$0xff]
    %v6182 = vld [vmem:[#allocation9 + $0x438] sm:$0xff]
    %v6183 = vld [vmem:[#allocation9 + $0x440] sm:$0xff]
    %v6184 = vld [vmem:[#allocation9 + $0x448] sm:$0xff]
    %v6185 = vld [vmem:[#allocation9 + $0x450] sm:$0xff]
    %v6186 = vld [vmem:[#allocation9 + $0x458] sm:$0xff]
    %v6187 = vld [vmem:[#allocation9 + $0x460] sm:$0xff]
    %v6188 = vld [vmem:[#allocation9 + $0x468] sm:$0xff]
    %v6189 = vld [vmem:[#allocation9 + $0x470] sm:$0xff]
    %v6190 = vld [vmem:[#allocation9 + $0x478] sm:$0xff]
    %v6191 = vld [vmem:[#allocation9 + $0x480] sm:$0xff]
    %v6192 = vld [vmem:[#allocation9 + $0x488] sm:$0xff]
    %v6193 = vld [vmem:[#allocation9 + $0x490] sm:$0xff]
    %v6194 = vld [vmem:[#allocation9 + $0x498] sm:$0xff]
    %v6195 = vld [vmem:[#allocation9 + $0x4a0] sm:$0xff]
    %v6196 = vld [vmem:[#allocation9 + $0x4a8] sm:$0xff]
    %v6197 = vld [vmem:[#allocation9 + $0x4b0] sm:$0xff]
    %v6198 = vld [vmem:[#allocation9 + $0x4b8] sm:$0xff]
    %v6199 = vld [vmem:[#allocation9 + $0x4c0] sm:$0xff]
    %v6200 = vld [vmem:[#allocation9 + $0x4c8] sm:$0xff]
    %v6201 = vld [vmem:[#allocation9 + $0x4d0] sm:$0xff]
    %v6202 = vld [vmem:[#allocation9 + $0x4d8] sm:$0xff]
    %v6203 = vld [vmem:[#allocation9 + $0x4e0] sm:$0xff]
    %v6204 = vld [vmem:[#allocation9 + $0x4e8] sm:$0xff]
    %v6205 = vld [vmem:[#allocation9 + $0x4f0] sm:$0xff]
    %v6206 = vld [vmem:[#allocation9 + $0x4f8] sm:$0xff]
    %v6207 = vld [vmem:[#allocation9 + $0x500] sm:$0xff]
    %v6208 = vld [vmem:[#allocation9 + $0x508] sm:$0xff]
    %v6209 = vld [vmem:[#allocation9 + $0x510] sm:$0xff]
    %v6210 = vld [vmem:[#allocation9 + $0x518] sm:$0xff]
    %v6211 = vld [vmem:[#allocation9 + $0x520] sm:$0xff]
    %v6212 = vld [vmem:[#allocation9 + $0x528] sm:$0xff]
    %v6213 = vld [vmem:[#allocation9 + $0x530] sm:$0xff]
    %v6214 = vld [vmem:[#allocation9 + $0x538] sm:$0xff]
    %v6215 = vld [vmem:[#allocation9 + $0x540] sm:$0xff]
    %v6216 = vld [vmem:[#allocation9 + $0x548] sm:$0xff]
    %v6217 = vld [vmem:[#allocation9 + $0x550] sm:$0xff]
    %v6218 = vld [vmem:[#allocation9 + $0x558] sm:$0xff]
    %v6219 = vld [vmem:[#allocation9 + $0x560] sm:$0xff]
    %v6220 = vld [vmem:[#allocation9 + $0x568] sm:$0xff]
    %v6221 = vld [vmem:[#allocation9 + $0x570] sm:$0xff]
    %v6222 = vld [vmem:[#allocation9 + $0x578] sm:$0xff]
    %v6223 = vld [vmem:[#allocation9 + $0x580] sm:$0xff]
    %v6224 = vld [vmem:[#allocation9 + $0x588] sm:$0xff]
    %v6225 = vld [vmem:[#allocation9 + $0x590] sm:$0xff]
    %v6226 = vld [vmem:[#allocation9 + $0x598] sm:$0xff]
    %v6227 = vld [vmem:[#allocation9 + $0x5a0] sm:$0xff]
    %v6228 = vld [vmem:[#allocation9 + $0x5a8] sm:$0xff]
    %v6229 = vld [vmem:[#allocation9 + $0x5b0] sm:$0xff]
    %v6230 = vld [vmem:[#allocation9 + $0x5b8] sm:$0xff]
    %v6231 = vld [vmem:[#allocation9 + $0x5c0] sm:$0xff]
    %v6232 = vld [vmem:[#allocation9 + $0x5c8] sm:$0xff]
    %v6233 = vld [vmem:[#allocation9 + $0x5d0] sm:$0xff]
    %v6234 = vld [vmem:[#allocation9 + $0x5d8] sm:$0xff]
    %v6235 = vld [vmem:[#allocation9 + $0x5e0] sm:$0xff]
    %v6236 = vld [vmem:[#allocation9 + $0x5e8] sm:$0xff]
    %v6237 = vld [vmem:[#allocation9 + $0x5f0] sm:$0xff]
    %v6238 = vld [vmem:[#allocation9 + $0x5f8] sm:$0xff]
    %v6239 = vld [vmem:[#allocation9 + $0x600] sm:$0xff]
    %v6240 = vld [vmem:[#allocation9 + $0x608] sm:$0xff]
    %v6241 = vld [vmem:[#allocation9 + $0x610] sm:$0xff]
    %v6242 = vld [vmem:[#allocation9 + $0x618] sm:$0xff]
    %v6243 = vld [vmem:[#allocation9 + $0x620] sm:$0xff]
    %v6244 = vld [vmem:[#allocation9 + $0x628] sm:$0xff]
    %v6245 = vld [vmem:[#allocation9 + $0x630] sm:$0xff]
    %v6246 = vld [vmem:[#allocation9 + $0x638] sm:$0xff]
    %v6247 = vld [vmem:[#allocation9 + $0x640] sm:$0xff]
    %v6248 = vld [vmem:[#allocation9 + $0x648] sm:$0xff]
    %v6249 = vld [vmem:[#allocation9 + $0x650] sm:$0xff]
    %v6250 = vld [vmem:[#allocation9 + $0x658] sm:$0xff]
    %v6251 = vld [vmem:[#allocation9 + $0x660] sm:$0xff]
    %v6252 = vld [vmem:[#allocation9 + $0x668] sm:$0xff]
    %v6253 = vld [vmem:[#allocation9 + $0x670] sm:$0xff]
    %v6254 = vld [vmem:[#allocation9 + $0x678] sm:$0xff]
    %v6255 = vld [vmem:[#allocation9 + $0x680] sm:$0xff]
    %v6256 = vld [vmem:[#allocation9 + $0x688] sm:$0xff]
    %v6257 = vld [vmem:[#allocation9 + $0x690] sm:$0xff]
    %v6258 = vld [vmem:[#allocation9 + $0x698] sm:$0xff]
    %v6259 = vld [vmem:[#allocation9 + $0x6a0] sm:$0xff]
    %v6260 = vld [vmem:[#allocation9 + $0x6a8] sm:$0xff]
    %v6261 = vld [vmem:[#allocation9 + $0x6b0] sm:$0xff]
    %v6262 = vld [vmem:[#allocation9 + $0x6b8] sm:$0xff]
    %v6263 = vld [vmem:[#allocation9 + $0x6c0] sm:$0xff]
    %v6264 = vld [vmem:[#allocation9 + $0x6c8] sm:$0xff]
    %v6265 = vld [vmem:[#allocation9 + $0x6d0] sm:$0xff]
    %v6266 = vld [vmem:[#allocation9 + $0x6d8] sm:$0xff]
    %v6267 = vld [vmem:[#allocation9 + $0x6e0] sm:$0xff]
    %v6268 = vld [vmem:[#allocation9 + $0x6e8] sm:$0xff]
    %v6269 = vld [vmem:[#allocation9 + $0x6f0] sm:$0xff]
    %v6270 = vld [vmem:[#allocation9 + $0x6f8] sm:$0xff]
    %v6271 = vld [vmem:[#allocation9 + $0x700] sm:$0xff]
    %v6272 = vld [vmem:[#allocation9 + $0x708] sm:$0xff]
    %v6273 = vld [vmem:[#allocation9 + $0x710] sm:$0xff]
    %v6274 = vld [vmem:[#allocation9 + $0x718] sm:$0xff]
    %v6275 = vld [vmem:[#allocation9 + $0x720] sm:$0xff]
    %v6276 = vld [vmem:[#allocation9 + $0x728] sm:$0xff]
    %v6277 = vld [vmem:[#allocation9 + $0x730] sm:$0xff]
    %v6278 = vld [vmem:[#allocation9 + $0x738] sm:$0xff]
    %v6279 = vld [vmem:[#allocation9 + $0x740] sm:$0xff]
    %v6280 = vld [vmem:[#allocation9 + $0x748] sm:$0xff]
    %v6281 = vld [vmem:[#allocation9 + $0x750] sm:$0xff]
    %v6282 = vld [vmem:[#allocation9 + $0x758] sm:$0xff]
    %v6283 = vld [vmem:[#allocation9 + $0x760] sm:$0xff]
    %v6284 = vld [vmem:[#allocation9 + $0x768] sm:$0xff]
    %v6285 = vld [vmem:[#allocation9 + $0x770] sm:$0xff]
    %v6286 = vld [vmem:[#allocation9 + $0x778] sm:$0xff]
    %v6287 = vld [vmem:[#allocation9 + $0x780] sm:$0xff]
    %v6288 = vld [vmem:[#allocation9 + $0x788] sm:$0xff]
    %v6289 = vld [vmem:[#allocation9 + $0x790] sm:$0xff]
    %v6290 = vld [vmem:[#allocation9 + $0x798] sm:$0xff]
    %v6291 = vld [vmem:[#allocation9 + $0x7a0] sm:$0xff]
    %v6292 = vld [vmem:[#allocation9 + $0x7a8] sm:$0xff]
    %v6293 = vld [vmem:[#allocation9 + $0x7b0] sm:$0xff]
    %v6294 = vld [vmem:[#allocation9 + $0x7b8] sm:$0xff]
    %v6295 = vld [vmem:[#allocation9 + $0x7c0] sm:$0xff]
    %v6296 = vld [vmem:[#allocation9 + $0x7c8] sm:$0xff]
    %v6297 = vld [vmem:[#allocation9 + $0x7d0] sm:$0xff]
    %v6298 = vld [vmem:[#allocation9 + $0x7d8] sm:$0xff]
    %v6299 = vld [vmem:[#allocation9 + $0x7e0] sm:$0xff]
    %v6300 = vld [vmem:[#allocation9 + $0x7e8] sm:$0xff]
    %v6301 = vld [vmem:[#allocation9 + $0x7f0] sm:$0xff]
    %v6302 = vld [vmem:[#allocation9 + $0x7f8] sm:$0xff]
    %v6303 = vld [vmem:[#allocation9 + $0x800] sm:$0xff]
    %v6304 = vld [vmem:[#allocation9 + $0x808] sm:$0xff]
    %v6305 = vld [vmem:[#allocation9 + $0x810] sm:$0xff]
    %v6306 = vld [vmem:[#allocation9 + $0x818] sm:$0xff]
    %v6307 = vld [vmem:[#allocation9 + $0x820] sm:$0xff]
    %v6308 = vld [vmem:[#allocation9 + $0x828] sm:$0xff]
    %v6309 = vld [vmem:[#allocation9 + $0x830] sm:$0xff]
    %v6310 = vld [vmem:[#allocation9 + $0x838] sm:$0xff]
    %v6311 = vld [vmem:[#allocation9 + $0x840] sm:$0xff]
    %v6312 = vld [vmem:[#allocation9 + $0x848] sm:$0xff]
    %v6313 = vld [vmem:[#allocation9 + $0x850] sm:$0xff]
    %v6314 = vld [vmem:[#allocation9 + $0x858] sm:$0xff]
    %v6315 = vld [vmem:[#allocation9 + $0x860] sm:$0xff]
    %v6316 = vld [vmem:[#allocation9 + $0x868] sm:$0xff]
    %v6317 = vld [vmem:[#allocation9 + $0x870] sm:$0xff]
    %v6318 = vld [vmem:[#allocation9 + $0x878] sm:$0xff]
    %v6319 = vld [vmem:[#allocation9 + $0x880] sm:$0xff]
    %v6320 = vld [vmem:[#allocation9 + $0x888] sm:$0xff]
    %v6321 = vld [vmem:[#allocation9 + $0x890] sm:$0xff]
    %v6322 = vld [vmem:[#allocation9 + $0x898] sm:$0xff]
    %v6323 = vld [vmem:[#allocation9 + $0x8a0] sm:$0xff]
    %v6324 = vld [vmem:[#allocation9 + $0x8a8] sm:$0xff]
    %v6325 = vld [vmem:[#allocation9 + $0x8b0] sm:$0xff]
    %v6326 = vld [vmem:[#allocation9 + $0x8b8] sm:$0xff]
    %v6327 = vld [vmem:[#allocation9 + $0x8c0] sm:$0xff]
    %v6328 = vld [vmem:[#allocation9 + $0x8c8] sm:$0xff]
    %v6329 = vld [vmem:[#allocation9 + $0x8d0] sm:$0xff]
    %v6330 = vld [vmem:[#allocation9 + $0x8d8] sm:$0xff]
    %v6331 = vld [vmem:[#allocation9 + $0x8e0] sm:$0xff]
    %v6332 = vld [vmem:[#allocation9 + $0x8e8] sm:$0xff]
    %v6333 = vld [vmem:[#allocation9 + $0x8f0] sm:$0xff]
    %v6334 = vld [vmem:[#allocation9 + $0x8f8] sm:$0xff]
    %v6335 = vld [vmem:[#allocation9 + $0x900] sm:$0xff]
    %v6336 = vld [vmem:[#allocation9 + $0x908] sm:$0xff]
    %v6337 = vld [vmem:[#allocation9 + $0x910] sm:$0xff]
    %v6338 = vld [vmem:[#allocation9 + $0x918] sm:$0xff]
    %v6339 = vld [vmem:[#allocation9 + $0x920] sm:$0xff]
    %v6340 = vld [vmem:[#allocation9 + $0x928] sm:$0xff]
    %v6341 = vld [vmem:[#allocation9 + $0x930] sm:$0xff]
    %v6342 = vld [vmem:[#allocation9 + $0x938] sm:$0xff]
    %v6343 = vld [vmem:[#allocation9 + $0x940] sm:$0xff]
    %v6344 = vld [vmem:[#allocation9 + $0x948] sm:$0xff]
    %v6345 = vld [vmem:[#allocation9 + $0x950] sm:$0xff]
    %v6346 = vld [vmem:[#allocation9 + $0x958] sm:$0xff]
    %v6347 = vld [vmem:[#allocation9 + $0x960] sm:$0xff]
    %v6348 = vld [vmem:[#allocation9 + $0x968] sm:$0xff]
    %v6349 = vld [vmem:[#allocation9 + $0x970] sm:$0xff]
    %v6350 = vld [vmem:[#allocation9 + $0x978] sm:$0xff]
    %v6351 = vld [vmem:[#allocation9 + $0x980] sm:$0xff]
    %v6352 = vld [vmem:[#allocation9 + $0x988] sm:$0xff]
    %v6353 = vld [vmem:[#allocation9 + $0x990] sm:$0xff]
    %v6354 = vld [vmem:[#allocation9 + $0x998] sm:$0xff]
    %v6355 = vld [vmem:[#allocation9 + $0x9a0] sm:$0xff]
    %v6356 = vld [vmem:[#allocation9 + $0x9a8] sm:$0xff]
    %v6357 = vld [vmem:[#allocation9 + $0x9b0] sm:$0xff]
    %v6358 = vld [vmem:[#allocation9 + $0x9b8] sm:$0xff]
    %v6359 = vld [vmem:[#allocation9 + $0x9c0] sm:$0xff]
    %v6360 = vld [vmem:[#allocation9 + $0x9c8] sm:$0xff]
    %v6361 = vld [vmem:[#allocation9 + $0x9d0] sm:$0xff]
    %v6362 = vld [vmem:[#allocation9 + $0x9d8] sm:$0xff]
    %v6363 = vld [vmem:[#allocation9 + $0x9e0] sm:$0xff]
    %v6364 = vld [vmem:[#allocation9 + $0x9e8] sm:$0xff]
    %v6365 = vld [vmem:[#allocation9 + $0x9f0] sm:$0xff]
    %v6366 = vld [vmem:[#allocation9 + $0x9f8] sm:$0xff]
    %v6367 = vld [vmem:[#allocation9 + $0xa00] sm:$0xff]
    %v6368 = vld [vmem:[#allocation9 + $0xa08] sm:$0xff]
    %v6369 = vld [vmem:[#allocation9 + $0xa10] sm:$0xff]
    %v6370 = vld [vmem:[#allocation9 + $0xa18] sm:$0xff]
    %v6371 = vld [vmem:[#allocation9 + $0xa20] sm:$0xff]
    %v6372 = vld [vmem:[#allocation9 + $0xa28] sm:$0xff]
    %v6373 = vld [vmem:[#allocation9 + $0xa30] sm:$0xff]
    %v6374 = vld [vmem:[#allocation9 + $0xa38] sm:$0xff]
    %v6375 = vld [vmem:[#allocation9 + $0xa40] sm:$0xff]
    %v6376 = vld [vmem:[#allocation9 + $0xa48] sm:$0xff]
    %v6377 = vld [vmem:[#allocation9 + $0xa50] sm:$0xff]
    %v6378 = vld [vmem:[#allocation9 + $0xa58] sm:$0xff]
    %v6379 = vld [vmem:[#allocation9 + $0xa60] sm:$0xff]
    %v6380 = vld [vmem:[#allocation9 + $0xa68] sm:$0xff]
    %v6381 = vld [vmem:[#allocation9 + $0xa70] sm:$0xff]
    %v6382 = vld [vmem:[#allocation9 + $0xa78] sm:$0xff]
    %v6383 = vld [vmem:[#allocation9 + $0xa80] sm:$0xff]
    %v6384 = vld [vmem:[#allocation9 + $0xa88] sm:$0xff]
    %v6385 = vld [vmem:[#allocation9 + $0xa90] sm:$0xff]
    %v6386 = vld [vmem:[#allocation9 + $0xa98] sm:$0xff]
    %v6387 = vld [vmem:[#allocation9 + $0xaa0] sm:$0xff]
    %v6388 = vld [vmem:[#allocation9 + $0xaa8] sm:$0xff]
    %v6389 = vld [vmem:[#allocation9 + $0xab0] sm:$0xff]
    %v6390 = vld [vmem:[#allocation9 + $0xab8] sm:$0xff]
    %v6391 = vld [vmem:[#allocation9 + $0xac0] sm:$0xff]
    %v6392 = vld [vmem:[#allocation9 + $0xac8] sm:$0xff]
    %v6393 = vld [vmem:[#allocation9 + $0xad0] sm:$0xff]
    %v6394 = vld [vmem:[#allocation9 + $0xad8] sm:$0xff]
    %v6395 = vld [vmem:[#allocation9 + $0xae0] sm:$0xff]
    %v6396 = vld [vmem:[#allocation9 + $0xae8] sm:$0xff]
    %v6397 = vld [vmem:[#allocation9 + $0xaf0] sm:$0xff]
    %v6398 = vld [vmem:[#allocation9 + $0xaf8] sm:$0xff]
    %v6399 = vld [vmem:[#allocation9 + $0xb00] sm:$0xff]
    %v6400 = vld [vmem:[#allocation9 + $0xb08] sm:$0xff]
    %v6401 = vld [vmem:[#allocation9 + $0xb10] sm:$0xff]
    %v6402 = vld [vmem:[#allocation9 + $0xb18] sm:$0xff]
    %v6403 = vld [vmem:[#allocation9 + $0xb20] sm:$0xff]
    %v6404 = vld [vmem:[#allocation9 + $0xb28] sm:$0xff]
    %v6405 = vld [vmem:[#allocation9 + $0xb30] sm:$0xff]
    %v6406 = vld [vmem:[#allocation9 + $0xb38] sm:$0xff]
    %v6407 = vld [vmem:[#allocation9 + $0xb40] sm:$0xff]
    %v6408 = vld [vmem:[#allocation9 + $0xb48] sm:$0xff]
    %v6409 = vld [vmem:[#allocation9 + $0xb50] sm:$0xff]
    %v6410 = vld [vmem:[#allocation9 + $0xb58] sm:$0xff]
    %v6411 = vld [vmem:[#allocation9 + $0xb60] sm:$0xff]
    %v6412 = vld [vmem:[#allocation9 + $0xb68] sm:$0xff]
    %v6413 = vld [vmem:[#allocation9 + $0xb70] sm:$0xff]
    %v6414 = vld [vmem:[#allocation9 + $0xb78] sm:$0xff]
    %v6415 = vld [vmem:[#allocation9 + $0xb80] sm:$0xff]
    %v6416 = vld [vmem:[#allocation9 + $0xb88] sm:$0xff]
    %v6417 = vld [vmem:[#allocation9 + $0xb90] sm:$0xff]
    %v6418 = vld [vmem:[#allocation9 + $0xb98] sm:$0xff]
    %v6419 = vld [vmem:[#allocation9 + $0xba0] sm:$0xff]
    %v6420 = vld [vmem:[#allocation9 + $0xba8] sm:$0xff]
    %v6421 = vld [vmem:[#allocation9 + $0xbb0] sm:$0xff]
    %v6422 = vld [vmem:[#allocation9 + $0xbb8] sm:$0xff]
    %v6423 = vld [vmem:[#allocation9 + $0xbc0] sm:$0xff]
    %v6424 = vld [vmem:[#allocation9 + $0xbc8] sm:$0xff]
    %v6425 = vld [vmem:[#allocation9 + $0xbd0] sm:$0xff]
    %v6426 = vld [vmem:[#allocation9 + $0xbd8] sm:$0xff]
    %v6427 = vld [vmem:[#allocation9 + $0xbe0] sm:$0xff]
    %v6428 = vld [vmem:[#allocation9 + $0xbe8] sm:$0xff]
    %v6429 = vld [vmem:[#allocation9 + $0xbf0] sm:$0xff]
    %v6430 = vld [vmem:[#allocation9 + $0xbf8] sm:$0xff]
    %v6431 = vld [vmem:[#allocation9 + $0xc00] sm:$0xff]
    %v6432 = vld [vmem:[#allocation9 + $0xc08] sm:$0xff]
    %v6433 = vld [vmem:[#allocation9 + $0xc10] sm:$0xff]
    %v6434 = vld [vmem:[#allocation9 + $0xc18] sm:$0xff]
    %v6435 = vld [vmem:[#allocation9 + $0xc20] sm:$0xff]
    %v6436 = vld [vmem:[#allocation9 + $0xc28] sm:$0xff]
    %v6437 = vld [vmem:[#allocation9 + $0xc30] sm:$0xff]
    %v6438 = vld [vmem:[#allocation9 + $0xc38] sm:$0xff]
    %v6439 = vld [vmem:[#allocation9 + $0xc40] sm:$0xff]
    %v6440 = vld [vmem:[#allocation9 + $0xc48] sm:$0xff]
    %v6441 = vld [vmem:[#allocation9 + $0xc50] sm:$0xff]
    %v6442 = vld [vmem:[#allocation9 + $0xc58] sm:$0xff]
    %v6443 = vld [vmem:[#allocation9 + $0xc60] sm:$0xff]
    %v6444 = vld [vmem:[#allocation9 + $0xc68] sm:$0xff]
    %v6445 = vld [vmem:[#allocation9 + $0xc70] sm:$0xff]
    %v6446 = vld [vmem:[#allocation9 + $0xc78] sm:$0xff]
    %v6447 = vld [vmem:[#allocation9 + $0xc80] sm:$0xff]
    %v6448 = vld [vmem:[#allocation9 + $0xc88] sm:$0xff]
    %v6449 = vld [vmem:[#allocation9 + $0xc90] sm:$0xff]
    %v6450 = vld [vmem:[#allocation9 + $0xc98] sm:$0xff]
    %v6451 = vld [vmem:[#allocation9 + $0xca0] sm:$0xff]
    %v6452 = vld [vmem:[#allocation9 + $0xca8] sm:$0xff]
    %v6453 = vld [vmem:[#allocation9 + $0xcb0] sm:$0xff]
    %v6454 = vld [vmem:[#allocation9 + $0xcb8] sm:$0xff]
    %v6455 = vld [vmem:[#allocation9 + $0xcc0] sm:$0xff]
    %v6456 = vld [vmem:[#allocation9 + $0xcc8] sm:$0xff]
    %v6457 = vld [vmem:[#allocation9 + $0xcd0] sm:$0xff]
    %v6458 = vld [vmem:[#allocation9 + $0xcd8] sm:$0xff]
    %v6459 = vld [vmem:[#allocation9 + $0xce0] sm:$0xff]
    %v6460 = vld [vmem:[#allocation9 + $0xce8] sm:$0xff]
    %v6461 = vld [vmem:[#allocation9 + $0xcf0] sm:$0xff]
    %v6462 = vld [vmem:[#allocation9 + $0xcf8] sm:$0xff]
    %v6463 = vld [vmem:[#allocation9 + $0xd00] sm:$0xff]
    %v6464 = vld [vmem:[#allocation9 + $0xd08] sm:$0xff]
    %v6465 = vld [vmem:[#allocation9 + $0xd10] sm:$0xff]
    %v6466 = vld [vmem:[#allocation9 + $0xd18] sm:$0xff]
    %v6467 = vld [vmem:[#allocation9 + $0xd20] sm:$0xff]
    %v6468 = vld [vmem:[#allocation9 + $0xd28] sm:$0xff]
    %v6469 = vld [vmem:[#allocation9 + $0xd30] sm:$0xff]
    %v6470 = vld [vmem:[#allocation9 + $0xd38] sm:$0xff]
    %v6471 = vld [vmem:[#allocation9 + $0xd40] sm:$0xff]
    %v6472 = vld [vmem:[#allocation9 + $0xd48] sm:$0xff]
    %v6473 = vld [vmem:[#allocation9 + $0xd50] sm:$0xff]
    %v6474 = vld [vmem:[#allocation9 + $0xd58] sm:$0xff]
    %v6475 = vld [vmem:[#allocation9 + $0xd60] sm:$0xff]
    %v6476 = vld [vmem:[#allocation9 + $0xd68] sm:$0xff]
    %v6477 = vld [vmem:[#allocation9 + $0xd70] sm:$0xff]
    %v6478 = vld [vmem:[#allocation9 + $0xd78] sm:$0xff]
    %v6479 = vld [vmem:[#allocation9 + $0xd80] sm:$0xff]
    %v6480 = vld [vmem:[#allocation9 + $0xd88] sm:$0xff]
    %v6481 = vld [vmem:[#allocation9 + $0xd90] sm:$0xff]
    %v6482 = vld [vmem:[#allocation9 + $0xd98] sm:$0xff]
    %v6483 = vld [vmem:[#allocation9 + $0xda0] sm:$0xff]
    %v6484 = vld [vmem:[#allocation9 + $0xda8] sm:$0xff]
    %v6485 = vld [vmem:[#allocation9 + $0xdb0] sm:$0xff]
    %v6486 = vld [vmem:[#allocation9 + $0xdb8] sm:$0xff]
    %v6487 = vld [vmem:[#allocation9 + $0xdc0] sm:$0xff]
    %v6488 = vld [vmem:[#allocation9 + $0xdc8] sm:$0xff]
    %v6489 = vld [vmem:[#allocation9 + $0xdd0] sm:$0xff]
    %v6490 = vld [vmem:[#allocation9 + $0xdd8] sm:$0xff]
    %v6491 = vld [vmem:[#allocation9 + $0xde0] sm:$0xff]
    %v6492 = vld [vmem:[#allocation9 + $0xde8] sm:$0xff]
    %v6493 = vld [vmem:[#allocation9 + $0xdf0] sm:$0xff]
    %v6494 = vld [vmem:[#allocation9 + $0xdf8] sm:$0xff]
    %v6495 = vld [vmem:[#allocation9 + $0xe00] sm:$0xff]
    %v6496 = vld [vmem:[#allocation9 + $0xe08] sm:$0xff]
    %v6497 = vld [vmem:[#allocation9 + $0xe10] sm:$0xff]
    %v6498 = vld [vmem:[#allocation9 + $0xe18] sm:$0xff]
    %v6499 = vld [vmem:[#allocation9 + $0xe20] sm:$0xff]
    %v6500 = vld [vmem:[#allocation9 + $0xe28] sm:$0xff]
    %v6501 = vld [vmem:[#allocation9 + $0xe30] sm:$0xff]
    %v6502 = vld [vmem:[#allocation9 + $0xe38] sm:$0xff]
    %v6503 = vld [vmem:[#allocation9 + $0xe40] sm:$0xff]
    %v6504 = vld [vmem:[#allocation9 + $0xe48] sm:$0xff]
    %v6505 = vld [vmem:[#allocation9 + $0xe50] sm:$0xff]
    %v6506 = vld [vmem:[#allocation9 + $0xe58] sm:$0xff]
    %v6507 = vld [vmem:[#allocation9 + $0xe60] sm:$0xff]
    %v6508 = vld [vmem:[#allocation9 + $0xe68] sm:$0xff]
    %v6509 = vld [vmem:[#allocation9 + $0xe70] sm:$0xff]
    %v6510 = vld [vmem:[#allocation9 + $0xe78] sm:$0xff]
    %v6511 = vld [vmem:[#allocation9 + $0xe80] sm:$0xff]
    %v6512 = vld [vmem:[#allocation9 + $0xe88] sm:$0xff]
    %v6513 = vld [vmem:[#allocation9 + $0xe90] sm:$0xff]
    %v6514 = vld [vmem:[#allocation9 + $0xe98] sm:$0xff]
    %v6515 = vld [vmem:[#allocation9 + $0xea0] sm:$0xff]
    %v6516 = vld [vmem:[#allocation9 + $0xea8] sm:$0xff]
    %v6517 = vld [vmem:[#allocation9 + $0xeb0] sm:$0xff]
    %v6518 = vld [vmem:[#allocation9 + $0xeb8] sm:$0xff]
    %v6519 = vld [vmem:[#allocation9 + $0xec0] sm:$0xff]
    %v6520 = vld [vmem:[#allocation9 + $0xec8] sm:$0xff]
    %v6521 = vld [vmem:[#allocation9 + $0xed0] sm:$0xff]
    %v6522 = vld [vmem:[#allocation9 + $0xed8] sm:$0xff]
    %v6523 = vld [vmem:[#allocation9 + $0xee0] sm:$0xff]
    %v6524 = vld [vmem:[#allocation9 + $0xee8] sm:$0xff]
    %v6525 = vld [vmem:[#allocation9 + $0xef0] sm:$0xff]
    %v6526 = vld [vmem:[#allocation9 + $0xef8] sm:$0xff]
    %v6527 = vld [vmem:[#allocation9 + $0xf00] sm:$0xff]
    %v6528 = vld [vmem:[#allocation9 + $0xf08] sm:$0xff]
    %v6529 = vld [vmem:[#allocation9 + $0xf10] sm:$0xff]
    %v6530 = vld [vmem:[#allocation9 + $0xf18] sm:$0xff]
    %v6531 = vld [vmem:[#allocation9 + $0xf20] sm:$0xff]
    %v6532 = vld [vmem:[#allocation9 + $0xf28] sm:$0xff]
    %v6533 = vld [vmem:[#allocation9 + $0xf30] sm:$0xff]
    %v6534 = vld [vmem:[#allocation9 + $0xf38] sm:$0xff]
    %v6535 = vld [vmem:[#allocation9 + $0xf40] sm:$0xff]
    %v6536 = vld [vmem:[#allocation9 + $0xf48] sm:$0xff]
    %v6537 = vld [vmem:[#allocation9 + $0xf50] sm:$0xff]
    %v6538 = vld [vmem:[#allocation9 + $0xf58] sm:$0xff]
    %v6539 = vld [vmem:[#allocation9 + $0xf60] sm:$0xff]
    %v6540 = vld [vmem:[#allocation9 + $0xf68] sm:$0xff]
    %v6541 = vld [vmem:[#allocation9 + $0xf70] sm:$0xff]
    %v6542 = vld [vmem:[#allocation9 + $0xf78] sm:$0xff]
    %v6543 = vld [vmem:[#allocation9 + $0xf80] sm:$0xff]
    %v6544 = vld [vmem:[#allocation9 + $0xf88] sm:$0xff]
    %v6545 = vld [vmem:[#allocation9 + $0xf90] sm:$0xff]
    %v6546 = vld [vmem:[#allocation9 + $0xf98] sm:$0xff]
    %v6547 = vld [vmem:[#allocation9 + $0xfa0] sm:$0xff]
    %v6548 = vld [vmem:[#allocation9 + $0xfa8] sm:$0xff]
    %v6549 = vld [vmem:[#allocation9 + $0xfb0] sm:$0xff]
    %v6550 = vld [vmem:[#allocation9 + $0xfb8] sm:$0xff]
    %v6551 = vld [vmem:[#allocation9 + $0xfc0] sm:$0xff]
    %v6552 = vld [vmem:[#allocation9 + $0xfc8] sm:$0xff]
    %v6553 = vld [vmem:[#allocation9 + $0xfd0] sm:$0xff]
    %v6554 = vld [vmem:[#allocation9 + $0xfd8] sm:$0xff]
    %v6555 = vld [vmem:[#allocation9 + $0xfe0] sm:$0xff]
    %v6556 = vld [vmem:[#allocation9 + $0xfe8] sm:$0xff]
    %v6557 = vld [vmem:[#allocation9 + $0xff0] sm:$0xff]
    %v6558 = vld [vmem:[#allocation9 + $0xff8] sm:$0xff]
    %v7071 = vunpack.c.l.b16 %v6047
    %v7072 = vunpack.c.h.b16 %v6047
    %v7073 = vunpack.c.l.b16 %v6048
    %v7074 = vunpack.c.h.b16 %v6048
    %v7075 = vunpack.c.l.b16 %v6049
    %v7076 = vunpack.c.h.b16 %v6049
    %v7077 = vunpack.c.l.b16 %v6050
    %v7078 = vunpack.c.h.b16 %v6050
    %v7079 = vunpack.c.l.b16 %v6051
    %v7080 = vunpack.c.h.b16 %v6051
    %v7081 = vunpack.c.l.b16 %v6052
    %v7082 = vunpack.c.h.b16 %v6052
    %v7083 = vunpack.c.l.b16 %v6053
    %v7084 = vunpack.c.h.b16 %v6053
    %v7085 = vunpack.c.l.b16 %v6054
    %v7086 = vunpack.c.h.b16 %v6054
    %v7087 = vunpack.c.l.b16 %v6055
    %v7088 = vunpack.c.h.b16 %v6055
    %v7089 = vunpack.c.l.b16 %v6056
    %v7090 = vunpack.c.h.b16 %v6056
    %v7091 = vunpack.c.l.b16 %v6057
    %v7092 = vunpack.c.h.b16 %v6057
    %v7093 = vunpack.c.l.b16 %v6058
    %v7094 = vunpack.c.h.b16 %v6058
    %v7095 = vunpack.c.l.b16 %v6059
    %v7096 = vunpack.c.h.b16 %v6059
    %v7097 = vunpack.c.l.b16 %v6060
    %v7098 = vunpack.c.h.b16 %v6060
    %v7099 = vunpack.c.l.b16 %v6061
    %v7100 = vunpack.c.h.b16 %v6061
    %v7101 = vunpack.c.l.b16 %v6062
    %v7102 = vunpack.c.h.b16 %v6062
    %v7103 = vunpack.c.l.b16 %v6063
    %v7104 = vunpack.c.h.b16 %v6063
    %v7105 = vunpack.c.l.b16 %v6064
    %v7106 = vunpack.c.h.b16 %v6064
    %v7107 = vunpack.c.l.b16 %v6065
    %v7108 = vunpack.c.h.b16 %v6065
    %v7109 = vunpack.c.l.b16 %v6066
    %v7110 = vunpack.c.h.b16 %v6066
    %v7111 = vunpack.c.l.b16 %v6067
    %v7112 = vunpack.c.h.b16 %v6067
    %v7113 = vunpack.c.l.b16 %v6068
    %v7114 = vunpack.c.h.b16 %v6068
    %v7115 = vunpack.c.l.b16 %v6069
    %v7116 = vunpack.c.h.b16 %v6069
    %v7117 = vunpack.c.l.b16 %v6070
    %v7118 = vunpack.c.h.b16 %v6070
    %v7119 = vunpack.c.l.b16 %v6071
    %v7120 = vunpack.c.h.b16 %v6071
    %v7121 = vunpack.c.l.b16 %v6072
    %v7122 = vunpack.c.h.b16 %v6072
    %v7123 = vunpack.c.l.b16 %v6073
    %v7124 = vunpack.c.h.b16 %v6073
    %v7125 = vunpack.c.l.b16 %v6074
    %v7126 = vunpack.c.h.b16 %v6074
    %v7127 = vunpack.c.l.b16 %v6075
    %v7128 = vunpack.c.h.b16 %v6075
    %v7129 = vunpack.c.l.b16 %v6076
    %v7130 = vunpack.c.h.b16 %v6076
    %v7131 = vunpack.c.l.b16 %v6077
    %v7132 = vunpack.c.h.b16 %v6077
    %v7133 = vunpack.c.l.b16 %v6078
    %v7134 = vunpack.c.h.b16 %v6078
    %v7135 = vunpack.c.l.b16 %v6079
    %v7136 = vunpack.c.h.b16 %v6079
    %v7137 = vunpack.c.l.b16 %v6080
    %v7138 = vunpack.c.h.b16 %v6080
    %v7139 = vunpack.c.l.b16 %v6081
    %v7140 = vunpack.c.h.b16 %v6081
    %v7141 = vunpack.c.l.b16 %v6082
    %v7142 = vunpack.c.h.b16 %v6082
    %v7143 = vunpack.c.l.b16 %v6083
    %v7144 = vunpack.c.h.b16 %v6083
    %v7145 = vunpack.c.l.b16 %v6084
    %v7146 = vunpack.c.h.b16 %v6084
    %v7147 = vunpack.c.l.b16 %v6085
    %v7148 = vunpack.c.h.b16 %v6085
    %v7149 = vunpack.c.l.b16 %v6086
    %v7150 = vunpack.c.h.b16 %v6086
    %v7151 = vunpack.c.l.b16 %v6087
    %v7152 = vunpack.c.h.b16 %v6087
    %v7153 = vunpack.c.l.b16 %v6088
    %v7154 = vunpack.c.h.b16 %v6088
    %v7155 = vunpack.c.l.b16 %v6089
    %v7156 = vunpack.c.h.b16 %v6089
    %v7157 = vunpack.c.l.b16 %v6090
    %v7158 = vunpack.c.h.b16 %v6090
    %v7159 = vunpack.c.l.b16 %v6091
    %v7160 = vunpack.c.h.b16 %v6091
    %v7161 = vunpack.c.l.b16 %v6092
    %v7162 = vunpack.c.h.b16 %v6092
    %v7163 = vunpack.c.l.b16 %v6093
    %v7164 = vunpack.c.h.b16 %v6093
    %v7165 = vunpack.c.l.b16 %v6094
    %v7166 = vunpack.c.h.b16 %v6094
    %v7167 = vunpack.c.l.b16 %v6095
    %v7168 = vunpack.c.h.b16 %v6095
    %v7169 = vunpack.c.l.b16 %v6096
    %v7170 = vunpack.c.h.b16 %v6096
    %v7171 = vunpack.c.l.b16 %v6097
    %v7172 = vunpack.c.h.b16 %v6097
    %v7173 = vunpack.c.l.b16 %v6098
    %v7174 = vunpack.c.h.b16 %v6098
    %v7175 = vunpack.c.l.b16 %v6099
    %v7176 = vunpack.c.h.b16 %v6099
    %v7177 = vunpack.c.l.b16 %v6100
    %v7178 = vunpack.c.h.b16 %v6100
    %v7179 = vunpack.c.l.b16 %v6101
    %v7180 = vunpack.c.h.b16 %v6101
    %v7181 = vunpack.c.l.b16 %v6102
    %v7182 = vunpack.c.h.b16 %v6102
    %v7183 = vunpack.c.l.b16 %v6103
    %v7184 = vunpack.c.h.b16 %v6103
    %v7185 = vunpack.c.l.b16 %v6104
    %v7186 = vunpack.c.h.b16 %v6104
    %v7187 = vunpack.c.l.b16 %v6105
    %v7188 = vunpack.c.h.b16 %v6105
    %v7189 = vunpack.c.l.b16 %v6106
    %v7190 = vunpack.c.h.b16 %v6106
    %v7191 = vunpack.c.l.b16 %v6107
    %v7192 = vunpack.c.h.b16 %v6107
    %v7193 = vunpack.c.l.b16 %v6108
    %v7194 = vunpack.c.h.b16 %v6108
    %v7195 = vunpack.c.l.b16 %v6109
    %v7196 = vunpack.c.h.b16 %v6109
    %v7197 = vunpack.c.l.b16 %v6110
    %v7198 = vunpack.c.h.b16 %v6110
    %v7199 = vunpack.c.l.b16 %v6111
    %v7200 = vunpack.c.h.b16 %v6111
    %v7201 = vunpack.c.l.b16 %v6112
    %v7202 = vunpack.c.h.b16 %v6112
    %v7203 = vunpack.c.l.b16 %v6113
    %v7204 = vunpack.c.h.b16 %v6113
    %v7205 = vunpack.c.l.b16 %v6114
    %v7206 = vunpack.c.h.b16 %v6114
    %v7207 = vunpack.c.l.b16 %v6115
    %v7208 = vunpack.c.h.b16 %v6115
    %v7209 = vunpack.c.l.b16 %v6116
    %v7210 = vunpack.c.h.b16 %v6116
    %v7211 = vunpack.c.l.b16 %v6117
    %v7212 = vunpack.c.h.b16 %v6117
    %v7213 = vunpack.c.l.b16 %v6118
    %v7214 = vunpack.c.h.b16 %v6118
    %v7215 = vunpack.c.l.b16 %v6119
    %v7216 = vunpack.c.h.b16 %v6119
    %v7217 = vunpack.c.l.b16 %v6120
    %v7218 = vunpack.c.h.b16 %v6120
    %v7219 = vunpack.c.l.b16 %v6121
    %v7220 = vunpack.c.h.b16 %v6121
    %v7221 = vunpack.c.l.b16 %v6122
    %v7222 = vunpack.c.h.b16 %v6122
    %v7223 = vunpack.c.l.b16 %v6123
    %v7224 = vunpack.c.h.b16 %v6123
    %v7225 = vunpack.c.l.b16 %v6124
    %v7226 = vunpack.c.h.b16 %v6124
    %v7227 = vunpack.c.l.b16 %v6125
    %v7228 = vunpack.c.h.b16 %v6125
    %v7229 = vunpack.c.l.b16 %v6126
    %v7230 = vunpack.c.h.b16 %v6126
    %v7231 = vunpack.c.l.b16 %v6127
    %v7232 = vunpack.c.h.b16 %v6127
    %v7233 = vunpack.c.l.b16 %v6128
    %v7234 = vunpack.c.h.b16 %v6128
    %v7235 = vunpack.c.l.b16 %v6129
    %v7236 = vunpack.c.h.b16 %v6129
    %v7237 = vunpack.c.l.b16 %v6130
    %v7238 = vunpack.c.h.b16 %v6130
    %v7239 = vunpack.c.l.b16 %v6131
    %v7240 = vunpack.c.h.b16 %v6131
    %v7241 = vunpack.c.l.b16 %v6132
    %v7242 = vunpack.c.h.b16 %v6132
    %v7243 = vunpack.c.l.b16 %v6133
    %v7244 = vunpack.c.h.b16 %v6133
    %v7245 = vunpack.c.l.b16 %v6134
    %v7246 = vunpack.c.h.b16 %v6134
    %v7247 = vunpack.c.l.b16 %v6135
    %v7248 = vunpack.c.h.b16 %v6135
    %v7249 = vunpack.c.l.b16 %v6136
    %v7250 = vunpack.c.h.b16 %v6136
    %v7251 = vunpack.c.l.b16 %v6137
    %v7252 = vunpack.c.h.b16 %v6137
    %v7253 = vunpack.c.l.b16 %v6138
    %v7254 = vunpack.c.h.b16 %v6138
    %v7255 = vunpack.c.l.b16 %v6139
    %v7256 = vunpack.c.h.b16 %v6139
    %v7257 = vunpack.c.l.b16 %v6140
    %v7258 = vunpack.c.h.b16 %v6140
    %v7259 = vunpack.c.l.b16 %v6141
    %v7260 = vunpack.c.h.b16 %v6141
    %v7261 = vunpack.c.l.b16 %v6142
    %v7262 = vunpack.c.h.b16 %v6142
    %v7263 = vunpack.c.l.b16 %v6143
    %v7264 = vunpack.c.h.b16 %v6143
    %v7265 = vunpack.c.l.b16 %v6144
    %v7266 = vunpack.c.h.b16 %v6144
    %v7267 = vunpack.c.l.b16 %v6145
    %v7268 = vunpack.c.h.b16 %v6145
    %v7269 = vunpack.c.l.b16 %v6146
    %v7270 = vunpack.c.h.b16 %v6146
    %v7271 = vunpack.c.l.b16 %v6147
    %v7272 = vunpack.c.h.b16 %v6147
    %v7273 = vunpack.c.l.b16 %v6148
    %v7274 = vunpack.c.h.b16 %v6148
    %v7275 = vunpack.c.l.b16 %v6149
    %v7276 = vunpack.c.h.b16 %v6149
    %v7277 = vunpack.c.l.b16 %v6150
    %v7278 = vunpack.c.h.b16 %v6150
    %v7279 = vunpack.c.l.b16 %v6151
    %v7280 = vunpack.c.h.b16 %v6151
    %v7281 = vunpack.c.l.b16 %v6152
    %v7282 = vunpack.c.h.b16 %v6152
    %v7283 = vunpack.c.l.b16 %v6153
    %v7284 = vunpack.c.h.b16 %v6153
    %v7285 = vunpack.c.l.b16 %v6154
    %v7286 = vunpack.c.h.b16 %v6154
    %v7287 = vunpack.c.l.b16 %v6155
    %v7288 = vunpack.c.h.b16 %v6155
    %v7289 = vunpack.c.l.b16 %v6156
    %v7290 = vunpack.c.h.b16 %v6156
    %v7291 = vunpack.c.l.b16 %v6157
    %v7292 = vunpack.c.h.b16 %v6157
    %v7293 = vunpack.c.l.b16 %v6158
    %v7294 = vunpack.c.h.b16 %v6158
    %v7295 = vunpack.c.l.b16 %v6159
    %v7296 = vunpack.c.h.b16 %v6159
    %v7297 = vunpack.c.l.b16 %v6160
    %v7298 = vunpack.c.h.b16 %v6160
    %v7299 = vunpack.c.l.b16 %v6161
    %v7300 = vunpack.c.h.b16 %v6161
    %v7301 = vunpack.c.l.b16 %v6162
    %v7302 = vunpack.c.h.b16 %v6162
    %v7303 = vunpack.c.l.b16 %v6163
    %v7304 = vunpack.c.h.b16 %v6163
    %v7305 = vunpack.c.l.b16 %v6164
    %v7306 = vunpack.c.h.b16 %v6164
    %v7307 = vunpack.c.l.b16 %v6165
    %v7308 = vunpack.c.h.b16 %v6165
    %v7309 = vunpack.c.l.b16 %v6166
    %v7310 = vunpack.c.h.b16 %v6166
    %v7311 = vunpack.c.l.b16 %v6167
    %v7312 = vunpack.c.h.b16 %v6167
    %v7313 = vunpack.c.l.b16 %v6168
    %v7314 = vunpack.c.h.b16 %v6168
    %v7315 = vunpack.c.l.b16 %v6169
    %v7316 = vunpack.c.h.b16 %v6169
    %v7317 = vunpack.c.l.b16 %v6170
    %v7318 = vunpack.c.h.b16 %v6170
    %v7319 = vunpack.c.l.b16 %v6171
    %v7320 = vunpack.c.h.b16 %v6171
    %v7321 = vunpack.c.l.b16 %v6172
    %v7322 = vunpack.c.h.b16 %v6172
    %v7323 = vunpack.c.l.b16 %v6173
    %v7324 = vunpack.c.h.b16 %v6173
    %v7325 = vunpack.c.l.b16 %v6174
    %v7326 = vunpack.c.h.b16 %v6174
    %v7327 = vunpack.c.l.b16 %v6175
    %v7328 = vunpack.c.h.b16 %v6175
    %v7329 = vunpack.c.l.b16 %v6176
    %v7330 = vunpack.c.h.b16 %v6176
    %v7331 = vunpack.c.l.b16 %v6177
    %v7332 = vunpack.c.h.b16 %v6177
    %v7333 = vunpack.c.l.b16 %v6178
    %v7334 = vunpack.c.h.b16 %v6178
    %v7335 = vunpack.c.l.b16 %v6179
    %v7336 = vunpack.c.h.b16 %v6179
    %v7337 = vunpack.c.l.b16 %v6180
    %v7338 = vunpack.c.h.b16 %v6180
    %v7339 = vunpack.c.l.b16 %v6181
    %v7340 = vunpack.c.h.b16 %v6181
    %v7341 = vunpack.c.l.b16 %v6182
    %v7342 = vunpack.c.h.b16 %v6182
    %v7343 = vunpack.c.l.b16 %v6183
    %v7344 = vunpack.c.h.b16 %v6183
    %v7345 = vunpack.c.l.b16 %v6184
    %v7346 = vunpack.c.h.b16 %v6184
    %v7347 = vunpack.c.l.b16 %v6185
    %v7348 = vunpack.c.h.b16 %v6185
    %v7349 = vunpack.c.l.b16 %v6186
    %v7350 = vunpack.c.h.b16 %v6186
    %v7351 = vunpack.c.l.b16 %v6187
    %v7352 = vunpack.c.h.b16 %v6187
    %v7353 = vunpack.c.l.b16 %v6188
    %v7354 = vunpack.c.h.b16 %v6188
    %v7355 = vunpack.c.l.b16 %v6189
    %v7356 = vunpack.c.h.b16 %v6189
    %v7357 = vunpack.c.l.b16 %v6190
    %v7358 = vunpack.c.h.b16 %v6190
    %v7359 = vunpack.c.l.b16 %v6191
    %v7360 = vunpack.c.h.b16 %v6191
    %v7361 = vunpack.c.l.b16 %v6192
    %v7362 = vunpack.c.h.b16 %v6192
    %v7363 = vunpack.c.l.b16 %v6193
    %v7364 = vunpack.c.h.b16 %v6193
    %v7365 = vunpack.c.l.b16 %v6194
    %v7366 = vunpack.c.h.b16 %v6194
    %v7367 = vunpack.c.l.b16 %v6195
    %v7368 = vunpack.c.h.b16 %v6195
    %v7369 = vunpack.c.l.b16 %v6196
    %v7370 = vunpack.c.h.b16 %v6196
    %v7371 = vunpack.c.l.b16 %v6197
    %v7372 = vunpack.c.h.b16 %v6197
    %v7373 = vunpack.c.l.b16 %v6198
    %v7374 = vunpack.c.h.b16 %v6198
    %v7375 = vunpack.c.l.b16 %v6199
    %v7376 = vunpack.c.h.b16 %v6199
    %v7377 = vunpack.c.l.b16 %v6200
    %v7378 = vunpack.c.h.b16 %v6200
    %v7379 = vunpack.c.l.b16 %v6201
    %v7380 = vunpack.c.h.b16 %v6201
    %v7381 = vunpack.c.l.b16 %v6202
    %v7382 = vunpack.c.h.b16 %v6202
    %v7383 = vunpack.c.l.b16 %v6203
    %v7384 = vunpack.c.h.b16 %v6203
    %v7385 = vunpack.c.l.b16 %v6204
    %v7386 = vunpack.c.h.b16 %v6204
    %v7387 = vunpack.c.l.b16 %v6205
    %v7388 = vunpack.c.h.b16 %v6205
    %v7389 = vunpack.c.l.b16 %v6206
    %v7390 = vunpack.c.h.b16 %v6206
    %v7391 = vunpack.c.l.b16 %v6207
    %v7392 = vunpack.c.h.b16 %v6207
    %v7393 = vunpack.c.l.b16 %v6208
    %v7394 = vunpack.c.h.b16 %v6208
    %v7395 = vunpack.c.l.b16 %v6209
    %v7396 = vunpack.c.h.b16 %v6209
    %v7397 = vunpack.c.l.b16 %v6210
    %v7398 = vunpack.c.h.b16 %v6210
    %v7399 = vunpack.c.l.b16 %v6211
    %v7400 = vunpack.c.h.b16 %v6211
    %v7401 = vunpack.c.l.b16 %v6212
    %v7402 = vunpack.c.h.b16 %v6212
    %v7403 = vunpack.c.l.b16 %v6213
    %v7404 = vunpack.c.h.b16 %v6213
    %v7405 = vunpack.c.l.b16 %v6214
    %v7406 = vunpack.c.h.b16 %v6214
    %v7407 = vunpack.c.l.b16 %v6215
    %v7408 = vunpack.c.h.b16 %v6215
    %v7409 = vunpack.c.l.b16 %v6216
    %v7410 = vunpack.c.h.b16 %v6216
    %v7411 = vunpack.c.l.b16 %v6217
    %v7412 = vunpack.c.h.b16 %v6217
    %v7413 = vunpack.c.l.b16 %v6218
    %v7414 = vunpack.c.h.b16 %v6218
    %v7415 = vunpack.c.l.b16 %v6219
    %v7416 = vunpack.c.h.b16 %v6219
    %v7417 = vunpack.c.l.b16 %v6220
    %v7418 = vunpack.c.h.b16 %v6220
    %v7419 = vunpack.c.l.b16 %v6221
    %v7420 = vunpack.c.h.b16 %v6221
    %v7421 = vunpack.c.l.b16 %v6222
    %v7422 = vunpack.c.h.b16 %v6222
    %v7423 = vunpack.c.l.b16 %v6223
    %v7424 = vunpack.c.h.b16 %v6223
    %v7425 = vunpack.c.l.b16 %v6224
    %v7426 = vunpack.c.h.b16 %v6224
    %v7427 = vunpack.c.l.b16 %v6225
    %v7428 = vunpack.c.h.b16 %v6225
    %v7429 = vunpack.c.l.b16 %v6226
    %v7430 = vunpack.c.h.b16 %v6226
    %v7431 = vunpack.c.l.b16 %v6227
    %v7432 = vunpack.c.h.b16 %v6227
    %v7433 = vunpack.c.l.b16 %v6228
    %v7434 = vunpack.c.h.b16 %v6228
    %v7435 = vunpack.c.l.b16 %v6229
    %v7436 = vunpack.c.h.b16 %v6229
    %v7437 = vunpack.c.l.b16 %v6230
    %v7438 = vunpack.c.h.b16 %v6230
    %v7439 = vunpack.c.l.b16 %v6231
    %v7440 = vunpack.c.h.b16 %v6231
    %v7441 = vunpack.c.l.b16 %v6232
    %v7442 = vunpack.c.h.b16 %v6232
    %v7443 = vunpack.c.l.b16 %v6233
    %v7444 = vunpack.c.h.b16 %v6233
    %v7445 = vunpack.c.l.b16 %v6234
    %v7446 = vunpack.c.h.b16 %v6234
    %v7447 = vunpack.c.l.b16 %v6235
    %v7448 = vunpack.c.h.b16 %v6235
    %v7449 = vunpack.c.l.b16 %v6236
    %v7450 = vunpack.c.h.b16 %v6236
    %v7451 = vunpack.c.l.b16 %v6237
    %v7452 = vunpack.c.h.b16 %v6237
    %v7453 = vunpack.c.l.b16 %v6238
    %v7454 = vunpack.c.h.b16 %v6238
    %v7455 = vunpack.c.l.b16 %v6239
    %v7456 = vunpack.c.h.b16 %v6239
    %v7457 = vunpack.c.l.b16 %v6240
    %v7458 = vunpack.c.h.b16 %v6240
    %v7459 = vunpack.c.l.b16 %v6241
    %v7460 = vunpack.c.h.b16 %v6241
    %v7461 = vunpack.c.l.b16 %v6242
    %v7462 = vunpack.c.h.b16 %v6242
    %v7463 = vunpack.c.l.b16 %v6243
    %v7464 = vunpack.c.h.b16 %v6243
    %v7465 = vunpack.c.l.b16 %v6244
    %v7466 = vunpack.c.h.b16 %v6244
    %v7467 = vunpack.c.l.b16 %v6245
    %v7468 = vunpack.c.h.b16 %v6245
    %v7469 = vunpack.c.l.b16 %v6246
    %v7470 = vunpack.c.h.b16 %v6246
    %v7471 = vunpack.c.l.b16 %v6247
    %v7472 = vunpack.c.h.b16 %v6247
    %v7473 = vunpack.c.l.b16 %v6248
    %v7474 = vunpack.c.h.b16 %v6248
    %v7475 = vunpack.c.l.b16 %v6249
    %v7476 = vunpack.c.h.b16 %v6249
    %v7477 = vunpack.c.l.b16 %v6250
    %v7478 = vunpack.c.h.b16 %v6250
    %v7479 = vunpack.c.l.b16 %v6251
    %v7480 = vunpack.c.h.b16 %v6251
    %v7481 = vunpack.c.l.b16 %v6252
    %v7482 = vunpack.c.h.b16 %v6252
    %v7483 = vunpack.c.l.b16 %v6253
    %v7484 = vunpack.c.h.b16 %v6253
    %v7485 = vunpack.c.l.b16 %v6254
    %v7486 = vunpack.c.h.b16 %v6254
    %v7487 = vunpack.c.l.b16 %v6255
    %v7488 = vunpack.c.h.b16 %v6255
    %v7489 = vunpack.c.l.b16 %v6256
    %v7490 = vunpack.c.h.b16 %v6256
    %v7491 = vunpack.c.l.b16 %v6257
    %v7492 = vunpack.c.h.b16 %v6257
    %v7493 = vunpack.c.l.b16 %v6258
    %v7494 = vunpack.c.h.b16 %v6258
    %v7495 = vunpack.c.l.b16 %v6259
    %v7496 = vunpack.c.h.b16 %v6259
    %v7497 = vunpack.c.l.b16 %v6260
    %v7498 = vunpack.c.h.b16 %v6260
    %v7499 = vunpack.c.l.b16 %v6261
    %v7500 = vunpack.c.h.b16 %v6261
    %v7501 = vunpack.c.l.b16 %v6262
    %v7502 = vunpack.c.h.b16 %v6262
    %v7503 = vunpack.c.l.b16 %v6263
    %v7504 = vunpack.c.h.b16 %v6263
    %v7505 = vunpack.c.l.b16 %v6264
    %v7506 = vunpack.c.h.b16 %v6264
    %v7507 = vunpack.c.l.b16 %v6265
    %v7508 = vunpack.c.h.b16 %v6265
    %v7509 = vunpack.c.l.b16 %v6266
    %v7510 = vunpack.c.h.b16 %v6266
    %v7511 = vunpack.c.l.b16 %v6267
    %v7512 = vunpack.c.h.b16 %v6267
    %v7513 = vunpack.c.l.b16 %v6268
    %v7514 = vunpack.c.h.b16 %v6268
    %v7515 = vunpack.c.l.b16 %v6269
    %v7516 = vunpack.c.h.b16 %v6269
    %v7517 = vunpack.c.l.b16 %v6270
    %v7518 = vunpack.c.h.b16 %v6270
    %v7519 = vunpack.c.l.b16 %v6271
    %v7520 = vunpack.c.h.b16 %v6271
    %v7521 = vunpack.c.l.b16 %v6272
    %v7522 = vunpack.c.h.b16 %v6272
    %v7523 = vunpack.c.l.b16 %v6273
    %v7524 = vunpack.c.h.b16 %v6273
    %v7525 = vunpack.c.l.b16 %v6274
    %v7526 = vunpack.c.h.b16 %v6274
    %v7527 = vunpack.c.l.b16 %v6275
    %v7528 = vunpack.c.h.b16 %v6275
    %v7529 = vunpack.c.l.b16 %v6276
    %v7530 = vunpack.c.h.b16 %v6276
    %v7531 = vunpack.c.l.b16 %v6277
    %v7532 = vunpack.c.h.b16 %v6277
    %v7533 = vunpack.c.l.b16 %v6278
    %v7534 = vunpack.c.h.b16 %v6278
    %v7535 = vunpack.c.l.b16 %v6279
    %v7536 = vunpack.c.h.b16 %v6279
    %v7537 = vunpack.c.l.b16 %v6280
    %v7538 = vunpack.c.h.b16 %v6280
    %v7539 = vunpack.c.l.b16 %v6281
    %v7540 = vunpack.c.h.b16 %v6281
    %v7541 = vunpack.c.l.b16 %v6282
    %v7542 = vunpack.c.h.b16 %v6282
    %v7543 = vunpack.c.l.b16 %v6283
    %v7544 = vunpack.c.h.b16 %v6283
    %v7545 = vunpack.c.l.b16 %v6284
    %v7546 = vunpack.c.h.b16 %v6284
    %v7547 = vunpack.c.l.b16 %v6285
    %v7548 = vunpack.c.h.b16 %v6285
    %v7549 = vunpack.c.l.b16 %v6286
    %v7550 = vunpack.c.h.b16 %v6286
    %v7551 = vunpack.c.l.b16 %v6287
    %v7552 = vunpack.c.h.b16 %v6287
    %v7553 = vunpack.c.l.b16 %v6288
    %v7554 = vunpack.c.h.b16 %v6288
    %v7555 = vunpack.c.l.b16 %v6289
    %v7556 = vunpack.c.h.b16 %v6289
    %v7557 = vunpack.c.l.b16 %v6290
    %v7558 = vunpack.c.h.b16 %v6290
    %v7559 = vunpack.c.l.b16 %v6291
    %v7560 = vunpack.c.h.b16 %v6291
    %v7561 = vunpack.c.l.b16 %v6292
    %v7562 = vunpack.c.h.b16 %v6292
    %v7563 = vunpack.c.l.b16 %v6293
    %v7564 = vunpack.c.h.b16 %v6293
    %v7565 = vunpack.c.l.b16 %v6294
    %v7566 = vunpack.c.h.b16 %v6294
    %v7567 = vunpack.c.l.b16 %v6295
    %v7568 = vunpack.c.h.b16 %v6295
    %v7569 = vunpack.c.l.b16 %v6296
    %v7570 = vunpack.c.h.b16 %v6296
    %v7571 = vunpack.c.l.b16 %v6297
    %v7572 = vunpack.c.h.b16 %v6297
    %v7573 = vunpack.c.l.b16 %v6298
    %v7574 = vunpack.c.h.b16 %v6298
    %v7575 = vunpack.c.l.b16 %v6299
    %v7576 = vunpack.c.h.b16 %v6299
    %v7577 = vunpack.c.l.b16 %v6300
    %v7578 = vunpack.c.h.b16 %v6300
    %v7579 = vunpack.c.l.b16 %v6301
    %v7580 = vunpack.c.h.b16 %v6301
    %v7581 = vunpack.c.l.b16 %v6302
    %v7582 = vunpack.c.h.b16 %v6302
    %v7583 = vunpack.c.l.b16 %v6303
    %v7584 = vunpack.c.h.b16 %v6303
    %v7585 = vunpack.c.l.b16 %v6304
    %v7586 = vunpack.c.h.b16 %v6304
    %v7587 = vunpack.c.l.b16 %v6305
    %v7588 = vunpack.c.h.b16 %v6305
    %v7589 = vunpack.c.l.b16 %v6306
    %v7590 = vunpack.c.h.b16 %v6306
    %v7591 = vunpack.c.l.b16 %v6307
    %v7592 = vunpack.c.h.b16 %v6307
    %v7593 = vunpack.c.l.b16 %v6308
    %v7594 = vunpack.c.h.b16 %v6308
    %v7595 = vunpack.c.l.b16 %v6309
    %v7596 = vunpack.c.h.b16 %v6309
    %v7597 = vunpack.c.l.b16 %v6310
    %v7598 = vunpack.c.h.b16 %v6310
    %v7599 = vunpack.c.l.b16 %v6311
    %v7600 = vunpack.c.h.b16 %v6311
    %v7601 = vunpack.c.l.b16 %v6312
    %v7602 = vunpack.c.h.b16 %v6312
    %v7603 = vunpack.c.l.b16 %v6313
    %v7604 = vunpack.c.h.b16 %v6313
    %v7605 = vunpack.c.l.b16 %v6314
    %v7606 = vunpack.c.h.b16 %v6314
    %v7607 = vunpack.c.l.b16 %v6315
    %v7608 = vunpack.c.h.b16 %v6315
    %v7609 = vunpack.c.l.b16 %v6316
    %v7610 = vunpack.c.h.b16 %v6316
    %v7611 = vunpack.c.l.b16 %v6317
    %v7612 = vunpack.c.h.b16 %v6317
    %v7613 = vunpack.c.l.b16 %v6318
    %v7614 = vunpack.c.h.b16 %v6318
    %v7615 = vunpack.c.l.b16 %v6319
    %v7616 = vunpack.c.h.b16 %v6319
    %v7617 = vunpack.c.l.b16 %v6320
    %v7618 = vunpack.c.h.b16 %v6320
    %v7619 = vunpack.c.l.b16 %v6321
    %v7620 = vunpack.c.h.b16 %v6321
    %v7621 = vunpack.c.l.b16 %v6322
    %v7622 = vunpack.c.h.b16 %v6322
    %v7623 = vunpack.c.l.b16 %v6323
    %v7624 = vunpack.c.h.b16 %v6323
    %v7625 = vunpack.c.l.b16 %v6324
    %v7626 = vunpack.c.h.b16 %v6324
    %v7627 = vunpack.c.l.b16 %v6325
    %v7628 = vunpack.c.h.b16 %v6325
    %v7629 = vunpack.c.l.b16 %v6326
    %v7630 = vunpack.c.h.b16 %v6326
    %v7631 = vunpack.c.l.b16 %v6327
    %v7632 = vunpack.c.h.b16 %v6327
    %v7633 = vunpack.c.l.b16 %v6328
    %v7634 = vunpack.c.h.b16 %v6328
    %v7635 = vunpack.c.l.b16 %v6329
    %v7636 = vunpack.c.h.b16 %v6329
    %v7637 = vunpack.c.l.b16 %v6330
    %v7638 = vunpack.c.h.b16 %v6330
    %v7639 = vunpack.c.l.b16 %v6331
    %v7640 = vunpack.c.h.b16 %v6331
    %v7641 = vunpack.c.l.b16 %v6332
    %v7642 = vunpack.c.h.b16 %v6332
    %v7643 = vunpack.c.l.b16 %v6333
    %v7644 = vunpack.c.h.b16 %v6333
    %v7645 = vunpack.c.l.b16 %v6334
    %v7646 = vunpack.c.h.b16 %v6334
    %v7647 = vunpack.c.l.b16 %v6335
    %v7648 = vunpack.c.h.b16 %v6335
    %v7649 = vunpack.c.l.b16 %v6336
    %v7650 = vunpack.c.h.b16 %v6336
    %v7651 = vunpack.c.l.b16 %v6337
    %v7652 = vunpack.c.h.b16 %v6337
    %v7653 = vunpack.c.l.b16 %v6338
    %v7654 = vunpack.c.h.b16 %v6338
    %v7655 = vunpack.c.l.b16 %v6339
    %v7656 = vunpack.c.h.b16 %v6339
    %v7657 = vunpack.c.l.b16 %v6340
    %v7658 = vunpack.c.h.b16 %v6340
    %v7659 = vunpack.c.l.b16 %v6341
    %v7660 = vunpack.c.h.b16 %v6341
    %v7661 = vunpack.c.l.b16 %v6342
    %v7662 = vunpack.c.h.b16 %v6342
    %v7663 = vunpack.c.l.b16 %v6343
    %v7664 = vunpack.c.h.b16 %v6343
    %v7665 = vunpack.c.l.b16 %v6344
    %v7666 = vunpack.c.h.b16 %v6344
    %v7667 = vunpack.c.l.b16 %v6345
    %v7668 = vunpack.c.h.b16 %v6345
    %v7669 = vunpack.c.l.b16 %v6346
    %v7670 = vunpack.c.h.b16 %v6346
    %v7671 = vunpack.c.l.b16 %v6347
    %v7672 = vunpack.c.h.b16 %v6347
    %v7673 = vunpack.c.l.b16 %v6348
    %v7674 = vunpack.c.h.b16 %v6348
    %v7675 = vunpack.c.l.b16 %v6349
    %v7676 = vunpack.c.h.b16 %v6349
    %v7677 = vunpack.c.l.b16 %v6350
    %v7678 = vunpack.c.h.b16 %v6350
    %v7679 = vunpack.c.l.b16 %v6351
    %v7680 = vunpack.c.h.b16 %v6351
    %v7681 = vunpack.c.l.b16 %v6352
    %v7682 = vunpack.c.h.b16 %v6352
    %v7683 = vunpack.c.l.b16 %v6353
    %v7684 = vunpack.c.h.b16 %v6353
    %v7685 = vunpack.c.l.b16 %v6354
    %v7686 = vunpack.c.h.b16 %v6354
    %v7687 = vunpack.c.l.b16 %v6355
    %v7688 = vunpack.c.h.b16 %v6355
    %v7689 = vunpack.c.l.b16 %v6356
    %v7690 = vunpack.c.h.b16 %v6356
    %v7691 = vunpack.c.l.b16 %v6357
    %v7692 = vunpack.c.h.b16 %v6357
    %v7693 = vunpack.c.l.b16 %v6358
    %v7694 = vunpack.c.h.b16 %v6358
    %v7695 = vunpack.c.l.b16 %v6359
    %v7696 = vunpack.c.h.b16 %v6359
    %v7697 = vunpack.c.l.b16 %v6360
    %v7698 = vunpack.c.h.b16 %v6360
    %v7699 = vunpack.c.l.b16 %v6361
    %v7700 = vunpack.c.h.b16 %v6361
    %v7701 = vunpack.c.l.b16 %v6362
    %v7702 = vunpack.c.h.b16 %v6362
    %v7703 = vunpack.c.l.b16 %v6363
    %v7704 = vunpack.c.h.b16 %v6363
    %v7705 = vunpack.c.l.b16 %v6364
    %v7706 = vunpack.c.h.b16 %v6364
    %v7707 = vunpack.c.l.b16 %v6365
    %v7708 = vunpack.c.h.b16 %v6365
    %v7709 = vunpack.c.l.b16 %v6366
    %v7710 = vunpack.c.h.b16 %v6366
    %v7711 = vunpack.c.l.b16 %v6367
    %v7712 = vunpack.c.h.b16 %v6367
    %v7713 = vunpack.c.l.b16 %v6368
    %v7714 = vunpack.c.h.b16 %v6368
    %v7715 = vunpack.c.l.b16 %v6369
    %v7716 = vunpack.c.h.b16 %v6369
    %v7717 = vunpack.c.l.b16 %v6370
    %v7718 = vunpack.c.h.b16 %v6370
    %v7719 = vunpack.c.l.b16 %v6371
    %v7720 = vunpack.c.h.b16 %v6371
    %v7721 = vunpack.c.l.b16 %v6372
    %v7722 = vunpack.c.h.b16 %v6372
    %v7723 = vunpack.c.l.b16 %v6373
    %v7724 = vunpack.c.h.b16 %v6373
    %v7725 = vunpack.c.l.b16 %v6374
    %v7726 = vunpack.c.h.b16 %v6374
    %v7727 = vunpack.c.l.b16 %v6375
    %v7728 = vunpack.c.h.b16 %v6375
    %v7729 = vunpack.c.l.b16 %v6376
    %v7730 = vunpack.c.h.b16 %v6376
    %v7731 = vunpack.c.l.b16 %v6377
    %v7732 = vunpack.c.h.b16 %v6377
    %v7733 = vunpack.c.l.b16 %v6378
    %v7734 = vunpack.c.h.b16 %v6378
    %v7735 = vunpack.c.l.b16 %v6379
    %v7736 = vunpack.c.h.b16 %v6379
    %v7737 = vunpack.c.l.b16 %v6380
    %v7738 = vunpack.c.h.b16 %v6380
    %v7739 = vunpack.c.l.b16 %v6381
    %v7740 = vunpack.c.h.b16 %v6381
    %v7741 = vunpack.c.l.b16 %v6382
    %v7742 = vunpack.c.h.b16 %v6382
    %v7743 = vunpack.c.l.b16 %v6383
    %v7744 = vunpack.c.h.b16 %v6383
    %v7745 = vunpack.c.l.b16 %v6384
    %v7746 = vunpack.c.h.b16 %v6384
    %v7747 = vunpack.c.l.b16 %v6385
    %v7748 = vunpack.c.h.b16 %v6385
    %v7749 = vunpack.c.l.b16 %v6386
    %v7750 = vunpack.c.h.b16 %v6386
    %v7751 = vunpack.c.l.b16 %v6387
    %v7752 = vunpack.c.h.b16 %v6387
    %v7753 = vunpack.c.l.b16 %v6388
    %v7754 = vunpack.c.h.b16 %v6388
    %v7755 = vunpack.c.l.b16 %v6389
    %v7756 = vunpack.c.h.b16 %v6389
    %v7757 = vunpack.c.l.b16 %v6390
    %v7758 = vunpack.c.h.b16 %v6390
    %v7759 = vunpack.c.l.b16 %v6391
    %v7760 = vunpack.c.h.b16 %v6391
    %v7761 = vunpack.c.l.b16 %v6392
    %v7762 = vunpack.c.h.b16 %v6392
    %v7763 = vunpack.c.l.b16 %v6393
    %v7764 = vunpack.c.h.b16 %v6393
    %v7765 = vunpack.c.l.b16 %v6394
    %v7766 = vunpack.c.h.b16 %v6394
    %v7767 = vunpack.c.l.b16 %v6395
    %v7768 = vunpack.c.h.b16 %v6395
    %v7769 = vunpack.c.l.b16 %v6396
    %v7770 = vunpack.c.h.b16 %v6396
    %v7771 = vunpack.c.l.b16 %v6397
    %v7772 = vunpack.c.h.b16 %v6397
    %v7773 = vunpack.c.l.b16 %v6398
    %v7774 = vunpack.c.h.b16 %v6398
    %v7775 = vunpack.c.l.b16 %v6399
    %v7776 = vunpack.c.h.b16 %v6399
    %v7777 = vunpack.c.l.b16 %v6400
    %v7778 = vunpack.c.h.b16 %v6400
    %v7779 = vunpack.c.l.b16 %v6401
    %v7780 = vunpack.c.h.b16 %v6401
    %v7781 = vunpack.c.l.b16 %v6402
    %v7782 = vunpack.c.h.b16 %v6402
    %v7783 = vunpack.c.l.b16 %v6403
    %v7784 = vunpack.c.h.b16 %v6403
    %v7785 = vunpack.c.l.b16 %v6404
    %v7786 = vunpack.c.h.b16 %v6404
    %v7787 = vunpack.c.l.b16 %v6405
    %v7788 = vunpack.c.h.b16 %v6405
    %v7789 = vunpack.c.l.b16 %v6406
    %v7790 = vunpack.c.h.b16 %v6406
    %v7791 = vunpack.c.l.b16 %v6407
    %v7792 = vunpack.c.h.b16 %v6407
    %v7793 = vunpack.c.l.b16 %v6408
    %v7794 = vunpack.c.h.b16 %v6408
    %v7795 = vunpack.c.l.b16 %v6409
    %v7796 = vunpack.c.h.b16 %v6409
    %v7797 = vunpack.c.l.b16 %v6410
    %v7798 = vunpack.c.h.b16 %v6410
    %v7799 = vunpack.c.l.b16 %v6411
    %v7800 = vunpack.c.h.b16 %v6411
    %v7801 = vunpack.c.l.b16 %v6412
    %v7802 = vunpack.c.h.b16 %v6412
    %v7803 = vunpack.c.l.b16 %v6413
    %v7804 = vunpack.c.h.b16 %v6413
    %v7805 = vunpack.c.l.b16 %v6414
    %v7806 = vunpack.c.h.b16 %v6414
    %v7807 = vunpack.c.l.b16 %v6415
    %v7808 = vunpack.c.h.b16 %v6415
    %v7809 = vunpack.c.l.b16 %v6416
    %v7810 = vunpack.c.h.b16 %v6416
    %v7811 = vunpack.c.l.b16 %v6417
    %v7812 = vunpack.c.h.b16 %v6417
    %v7813 = vunpack.c.l.b16 %v6418
    %v7814 = vunpack.c.h.b16 %v6418
    %v7815 = vunpack.c.l.b16 %v6419
    %v7816 = vunpack.c.h.b16 %v6419
    %v7817 = vunpack.c.l.b16 %v6420
    %v7818 = vunpack.c.h.b16 %v6420
    %v7819 = vunpack.c.l.b16 %v6421
    %v7820 = vunpack.c.h.b16 %v6421
    %v7821 = vunpack.c.l.b16 %v6422
    %v7822 = vunpack.c.h.b16 %v6422
    %v7823 = vunpack.c.l.b16 %v6423
    %v7824 = vunpack.c.h.b16 %v6423
    %v7825 = vunpack.c.l.b16 %v6424
    %v7826 = vunpack.c.h.b16 %v6424
    %v7827 = vunpack.c.l.b16 %v6425
    %v7828 = vunpack.c.h.b16 %v6425
    %v7829 = vunpack.c.l.b16 %v6426
    %v7830 = vunpack.c.h.b16 %v6426
    %v7831 = vunpack.c.l.b16 %v6427
    %v7832 = vunpack.c.h.b16 %v6427
    %v7833 = vunpack.c.l.b16 %v6428
    %v7834 = vunpack.c.h.b16 %v6428
    %v7835 = vunpack.c.l.b16 %v6429
    %v7836 = vunpack.c.h.b16 %v6429
    %v7837 = vunpack.c.l.b16 %v6430
    %v7838 = vunpack.c.h.b16 %v6430
    %v7839 = vunpack.c.l.b16 %v6431
    %v7840 = vunpack.c.h.b16 %v6431
    %v7841 = vunpack.c.l.b16 %v6432
    %v7842 = vunpack.c.h.b16 %v6432
    %v7843 = vunpack.c.l.b16 %v6433
    %v7844 = vunpack.c.h.b16 %v6433
    %v7845 = vunpack.c.l.b16 %v6434
    %v7846 = vunpack.c.h.b16 %v6434
    %v7847 = vunpack.c.l.b16 %v6435
    %v7848 = vunpack.c.h.b16 %v6435
    %v7849 = vunpack.c.l.b16 %v6436
    %v7850 = vunpack.c.h.b16 %v6436
    %v7851 = vunpack.c.l.b16 %v6437
    %v7852 = vunpack.c.h.b16 %v6437
    %v7853 = vunpack.c.l.b16 %v6438
    %v7854 = vunpack.c.h.b16 %v6438
    %v7855 = vunpack.c.l.b16 %v6439
    %v7856 = vunpack.c.h.b16 %v6439
    %v7857 = vunpack.c.l.b16 %v6440
    %v7858 = vunpack.c.h.b16 %v6440
    %v7859 = vunpack.c.l.b16 %v6441
    %v7860 = vunpack.c.h.b16 %v6441
    %v7861 = vunpack.c.l.b16 %v6442
    %v7862 = vunpack.c.h.b16 %v6442
    %v7863 = vunpack.c.l.b16 %v6443
    %v7864 = vunpack.c.h.b16 %v6443
    %v7865 = vunpack.c.l.b16 %v6444
    %v7866 = vunpack.c.h.b16 %v6444
    %v7867 = vunpack.c.l.b16 %v6445
    %v7868 = vunpack.c.h.b16 %v6445
    %v7869 = vunpack.c.l.b16 %v6446
    %v7870 = vunpack.c.h.b16 %v6446
    %v7871 = vunpack.c.l.b16 %v6447
    %v7872 = vunpack.c.h.b16 %v6447
    %v7873 = vunpack.c.l.b16 %v6448
    %v7874 = vunpack.c.h.b16 %v6448
    %v7875 = vunpack.c.l.b16 %v6449
    %v7876 = vunpack.c.h.b16 %v6449
    %v7877 = vunpack.c.l.b16 %v6450
    %v7878 = vunpack.c.h.b16 %v6450
    %v7879 = vunpack.c.l.b16 %v6451
    %v7880 = vunpack.c.h.b16 %v6451
    %v7881 = vunpack.c.l.b16 %v6452
    %v7882 = vunpack.c.h.b16 %v6452
    %v7883 = vunpack.c.l.b16 %v6453
    %v7884 = vunpack.c.h.b16 %v6453
    %v7885 = vunpack.c.l.b16 %v6454
    %v7886 = vunpack.c.h.b16 %v6454
    %v7887 = vunpack.c.l.b16 %v6455
    %v7888 = vunpack.c.h.b16 %v6455
    %v7889 = vunpack.c.l.b16 %v6456
    %v7890 = vunpack.c.h.b16 %v6456
    %v7891 = vunpack.c.l.b16 %v6457
    %v7892 = vunpack.c.h.b16 %v6457
    %v7893 = vunpack.c.l.b16 %v6458
    %v7894 = vunpack.c.h.b16 %v6458
    %v7895 = vunpack.c.l.b16 %v6459
    %v7896 = vunpack.c.h.b16 %v6459
    %v7897 = vunpack.c.l.b16 %v6460
    %v7898 = vunpack.c.h.b16 %v6460
    %v7899 = vunpack.c.l.b16 %v6461
    %v7900 = vunpack.c.h.b16 %v6461
    %v7901 = vunpack.c.l.b16 %v6462
    %v7902 = vunpack.c.h.b16 %v6462
    %v7903 = vunpack.c.l.b16 %v6463
    %v7904 = vunpack.c.h.b16 %v6463
    %v7905 = vunpack.c.l.b16 %v6464
    %v7906 = vunpack.c.h.b16 %v6464
    %v7907 = vunpack.c.l.b16 %v6465
    %v7908 = vunpack.c.h.b16 %v6465
    %v7909 = vunpack.c.l.b16 %v6466
    %v7910 = vunpack.c.h.b16 %v6466
    %v7911 = vunpack.c.l.b16 %v6467
    %v7912 = vunpack.c.h.b16 %v6467
    %v7913 = vunpack.c.l.b16 %v6468
    %v7914 = vunpack.c.h.b16 %v6468
    %v7915 = vunpack.c.l.b16 %v6469
    %v7916 = vunpack.c.h.b16 %v6469
    %v7917 = vunpack.c.l.b16 %v6470
    %v7918 = vunpack.c.h.b16 %v6470
    %v7919 = vunpack.c.l.b16 %v6471
    %v7920 = vunpack.c.h.b16 %v6471
    %v7921 = vunpack.c.l.b16 %v6472
    %v7922 = vunpack.c.h.b16 %v6472
    %v7923 = vunpack.c.l.b16 %v6473
    %v7924 = vunpack.c.h.b16 %v6473
    %v7925 = vunpack.c.l.b16 %v6474
    %v7926 = vunpack.c.h.b16 %v6474
    %v7927 = vunpack.c.l.b16 %v6475
    %v7928 = vunpack.c.h.b16 %v6475
    %v7929 = vunpack.c.l.b16 %v6476
    %v7930 = vunpack.c.h.b16 %v6476
    %v7931 = vunpack.c.l.b16 %v6477
    %v7932 = vunpack.c.h.b16 %v6477
    %v7933 = vunpack.c.l.b16 %v6478
    %v7934 = vunpack.c.h.b16 %v6478
    %v7935 = vunpack.c.l.b16 %v6479
    %v7936 = vunpack.c.h.b16 %v6479
    %v7937 = vunpack.c.l.b16 %v6480
    %v7938 = vunpack.c.h.b16 %v6480
    %v7939 = vunpack.c.l.b16 %v6481
    %v7940 = vunpack.c.h.b16 %v6481
    %v7941 = vunpack.c.l.b16 %v6482
    %v7942 = vunpack.c.h.b16 %v6482
    %v7943 = vunpack.c.l.b16 %v6483
    %v7944 = vunpack.c.h.b16 %v6483
    %v7945 = vunpack.c.l.b16 %v6484
    %v7946 = vunpack.c.h.b16 %v6484
    %v7947 = vunpack.c.l.b16 %v6485
    %v7948 = vunpack.c.h.b16 %v6485
    %v7949 = vunpack.c.l.b16 %v6486
    %v7950 = vunpack.c.h.b16 %v6486
    %v7951 = vunpack.c.l.b16 %v6487
    %v7952 = vunpack.c.h.b16 %v6487
    %v7953 = vunpack.c.l.b16 %v6488
    %v7954 = vunpack.c.h.b16 %v6488
    %v7955 = vunpack.c.l.b16 %v6489
    %v7956 = vunpack.c.h.b16 %v6489
    %v7957 = vunpack.c.l.b16 %v6490
    %v7958 = vunpack.c.h.b16 %v6490
    %v7959 = vunpack.c.l.b16 %v6491
    %v7960 = vunpack.c.h.b16 %v6491
    %v7961 = vunpack.c.l.b16 %v6492
    %v7962 = vunpack.c.h.b16 %v6492
    %v7963 = vunpack.c.l.b16 %v6493
    %v7964 = vunpack.c.h.b16 %v6493
    %v7965 = vunpack.c.l.b16 %v6494
    %v7966 = vunpack.c.h.b16 %v6494
    %v7967 = vunpack.c.l.b16 %v6495
    %v7968 = vunpack.c.h.b16 %v6495
    %v7969 = vunpack.c.l.b16 %v6496
    %v7970 = vunpack.c.h.b16 %v6496
    %v7971 = vunpack.c.l.b16 %v6497
    %v7972 = vunpack.c.h.b16 %v6497
    %v7973 = vunpack.c.l.b16 %v6498
    %v7974 = vunpack.c.h.b16 %v6498
    %v7975 = vunpack.c.l.b16 %v6499
    %v7976 = vunpack.c.h.b16 %v6499
    %v7977 = vunpack.c.l.b16 %v6500
    %v7978 = vunpack.c.h.b16 %v6500
    %v7979 = vunpack.c.l.b16 %v6501
    %v7980 = vunpack.c.h.b16 %v6501
    %v7981 = vunpack.c.l.b16 %v6502
    %v7982 = vunpack.c.h.b16 %v6502
    %v7983 = vunpack.c.l.b16 %v6503
    %v7984 = vunpack.c.h.b16 %v6503
    %v7985 = vunpack.c.l.b16 %v6504
    %v7986 = vunpack.c.h.b16 %v6504
    %v7987 = vunpack.c.l.b16 %v6505
    %v7988 = vunpack.c.h.b16 %v6505
    %v7989 = vunpack.c.l.b16 %v6506
    %v7990 = vunpack.c.h.b16 %v6506
    %v7991 = vunpack.c.l.b16 %v6507
    %v7992 = vunpack.c.h.b16 %v6507
    %v7993 = vunpack.c.l.b16 %v6508
    %v7994 = vunpack.c.h.b16 %v6508
    %v7995 = vunpack.c.l.b16 %v6509
    %v7996 = vunpack.c.h.b16 %v6509
    %v7997 = vunpack.c.l.b16 %v6510
    %v7998 = vunpack.c.h.b16 %v6510
    %v7999 = vunpack.c.l.b16 %v6511
    %v8000 = vunpack.c.h.b16 %v6511
    %v8001 = vunpack.c.l.b16 %v6512
    %v8002 = vunpack.c.h.b16 %v6512
    %v8003 = vunpack.c.l.b16 %v6513
    %v8004 = vunpack.c.h.b16 %v6513
    %v8005 = vunpack.c.l.b16 %v6514
    %v8006 = vunpack.c.h.b16 %v6514
    %v8007 = vunpack.c.l.b16 %v6515
    %v8008 = vunpack.c.h.b16 %v6515
    %v8009 = vunpack.c.l.b16 %v6516
    %v8010 = vunpack.c.h.b16 %v6516
    %v8011 = vunpack.c.l.b16 %v6517
    %v8012 = vunpack.c.h.b16 %v6517
    %v8013 = vunpack.c.l.b16 %v6518
    %v8014 = vunpack.c.h.b16 %v6518
    %v8015 = vunpack.c.l.b16 %v6519
    %v8016 = vunpack.c.h.b16 %v6519
    %v8017 = vunpack.c.l.b16 %v6520
    %v8018 = vunpack.c.h.b16 %v6520
    %v8019 = vunpack.c.l.b16 %v6521
    %v8020 = vunpack.c.h.b16 %v6521
    %v8021 = vunpack.c.l.b16 %v6522
    %v8022 = vunpack.c.h.b16 %v6522
    %v8023 = vunpack.c.l.b16 %v6523
    %v8024 = vunpack.c.h.b16 %v6523
    %v8025 = vunpack.c.l.b16 %v6524
    %v8026 = vunpack.c.h.b16 %v6524
    %v8027 = vunpack.c.l.b16 %v6525
    %v8028 = vunpack.c.h.b16 %v6525
    %v8029 = vunpack.c.l.b16 %v6526
    %v8030 = vunpack.c.h.b16 %v6526
    %v8031 = vunpack.c.l.b16 %v6527
    %v8032 = vunpack.c.h.b16 %v6527
    %v8033 = vunpack.c.l.b16 %v6528
    %v8034 = vunpack.c.h.b16 %v6528
    %v8035 = vunpack.c.l.b16 %v6529
    %v8036 = vunpack.c.h.b16 %v6529
    %v8037 = vunpack.c.l.b16 %v6530
    %v8038 = vunpack.c.h.b16 %v6530
    %v8039 = vunpack.c.l.b16 %v6531
    %v8040 = vunpack.c.h.b16 %v6531
    %v8041 = vunpack.c.l.b16 %v6532
    %v8042 = vunpack.c.h.b16 %v6532
    %v8043 = vunpack.c.l.b16 %v6533
    %v8044 = vunpack.c.h.b16 %v6533
    %v8045 = vunpack.c.l.b16 %v6534
    %v8046 = vunpack.c.h.b16 %v6534
    %v8047 = vunpack.c.l.b16 %v6535
    %v8048 = vunpack.c.h.b16 %v6535
    %v8049 = vunpack.c.l.b16 %v6536
    %v8050 = vunpack.c.h.b16 %v6536
    %v8051 = vunpack.c.l.b16 %v6537
    %v8052 = vunpack.c.h.b16 %v6537
    %v8053 = vunpack.c.l.b16 %v6538
    %v8054 = vunpack.c.h.b16 %v6538
    %v8055 = vunpack.c.l.b16 %v6539
    %v8056 = vunpack.c.h.b16 %v6539
    %v8057 = vunpack.c.l.b16 %v6540
    %v8058 = vunpack.c.h.b16 %v6540
    %v8059 = vunpack.c.l.b16 %v6541
    %v8060 = vunpack.c.h.b16 %v6541
    %v8061 = vunpack.c.l.b16 %v6542
    %v8062 = vunpack.c.h.b16 %v6542
    %v8063 = vunpack.c.l.b16 %v6543
    %v8064 = vunpack.c.h.b16 %v6543
    %v8065 = vunpack.c.l.b16 %v6544
    %v8066 = vunpack.c.h.b16 %v6544
    %v8067 = vunpack.c.l.b16 %v6545
    %v8068 = vunpack.c.h.b16 %v6545
    %v8069 = vunpack.c.l.b16 %v6546
    %v8070 = vunpack.c.h.b16 %v6546
    %v8071 = vunpack.c.l.b16 %v6547
    %v8072 = vunpack.c.h.b16 %v6547
    %v8073 = vunpack.c.l.b16 %v6548
    %v8074 = vunpack.c.h.b16 %v6548
    %v8075 = vunpack.c.l.b16 %v6549
    %v8076 = vunpack.c.h.b16 %v6549
    %v8077 = vunpack.c.l.b16 %v6550
    %v8078 = vunpack.c.h.b16 %v6550
    %v8079 = vunpack.c.l.b16 %v6551
    %v8080 = vunpack.c.h.b16 %v6551
    %v8081 = vunpack.c.l.b16 %v6552
    %v8082 = vunpack.c.h.b16 %v6552
    %v8083 = vunpack.c.l.b16 %v6553
    %v8084 = vunpack.c.h.b16 %v6553
    %v8085 = vunpack.c.l.b16 %v6554
    %v8086 = vunpack.c.h.b16 %v6554
    %v8087 = vunpack.c.l.b16 %v6555
    %v8088 = vunpack.c.h.b16 %v6555
    %v8089 = vunpack.c.l.b16 %v6556
    %v8090 = vunpack.c.h.b16 %v6556
    %v8091 = vunpack.c.l.b16 %v6557
    %v8092 = vunpack.c.h.b16 %v6557
    %v8093 = vunpack.c.l.b16 %v6558
    %v8094 = vunpack.c.h.b16 %v6558
    %v8095 = vpack.c.b16 %v7075, %v7071
    %v8096 = vpack.c.b16 %v7076, %v7072
    %v8097 = vpack.c.b16 %v7077, %v7073
    %v8098 = vpack.c.b16 %v7078, %v7074
    %v8099 = vpack.c.b16 %v7083, %v7079
    %v8100 = vpack.c.b16 %v7084, %v7080
    %v8101 = vpack.c.b16 %v7085, %v7081
    %v8102 = vpack.c.b16 %v7086, %v7082
    %v8103 = vpack.c.b16 %v7091, %v7087
    %v8104 = vpack.c.b16 %v7092, %v7088
    %v8105 = vpack.c.b16 %v7093, %v7089
    %v8106 = vpack.c.b16 %v7094, %v7090
    %v8107 = vpack.c.b16 %v7099, %v7095
    %v8108 = vpack.c.b16 %v7100, %v7096
    %v8109 = vpack.c.b16 %v7101, %v7097
    %v8110 = vpack.c.b16 %v7102, %v7098
    %v8111 = vpack.c.b16 %v7107, %v7103
    %v8112 = vpack.c.b16 %v7108, %v7104
    %v8113 = vpack.c.b16 %v7109, %v7105
    %v8114 = vpack.c.b16 %v7110, %v7106
    %v8115 = vpack.c.b16 %v7115, %v7111
    %v8116 = vpack.c.b16 %v7116, %v7112
    %v8117 = vpack.c.b16 %v7117, %v7113
    %v8118 = vpack.c.b16 %v7118, %v7114
    %v8119 = vpack.c.b16 %v7123, %v7119
    %v8120 = vpack.c.b16 %v7124, %v7120
    %v8121 = vpack.c.b16 %v7125, %v7121
    %v8122 = vpack.c.b16 %v7126, %v7122
    %v8123 = vpack.c.b16 %v7131, %v7127
    %v8124 = vpack.c.b16 %v7132, %v7128
    %v8125 = vpack.c.b16 %v7133, %v7129
    %v8126 = vpack.c.b16 %v7134, %v7130
    %v8127 = vpack.c.b16 %v7139, %v7135
    %v8128 = vpack.c.b16 %v7140, %v7136
    %v8129 = vpack.c.b16 %v7141, %v7137
    %v8130 = vpack.c.b16 %v7142, %v7138
    %v8131 = vpack.c.b16 %v7147, %v7143
    %v8132 = vpack.c.b16 %v7148, %v7144
    %v8133 = vpack.c.b16 %v7149, %v7145
    %v8134 = vpack.c.b16 %v7150, %v7146
    %v8135 = vpack.c.b16 %v7155, %v7151
    %v8136 = vpack.c.b16 %v7156, %v7152
    %v8137 = vpack.c.b16 %v7157, %v7153
    %v8138 = vpack.c.b16 %v7158, %v7154
    %v8139 = vpack.c.b16 %v7163, %v7159
    %v8140 = vpack.c.b16 %v7164, %v7160
    %v8141 = vpack.c.b16 %v7165, %v7161
    %v8142 = vpack.c.b16 %v7166, %v7162
    %v8143 = vpack.c.b16 %v7171, %v7167
    %v8144 = vpack.c.b16 %v7172, %v7168
    %v8145 = vpack.c.b16 %v7173, %v7169
    %v8146 = vpack.c.b16 %v7174, %v7170
    %v8147 = vpack.c.b16 %v7179, %v7175
    %v8148 = vpack.c.b16 %v7180, %v7176
    %v8149 = vpack.c.b16 %v7181, %v7177
    %v8150 = vpack.c.b16 %v7182, %v7178
    %v8151 = vpack.c.b16 %v7187, %v7183
    %v8152 = vpack.c.b16 %v7188, %v7184
    %v8153 = vpack.c.b16 %v7189, %v7185
    %v8154 = vpack.c.b16 %v7190, %v7186
    %v8155 = vpack.c.b16 %v7195, %v7191
    %v8156 = vpack.c.b16 %v7196, %v7192
    %v8157 = vpack.c.b16 %v7197, %v7193
    %v8158 = vpack.c.b16 %v7198, %v7194
    %v8159 = vpack.c.b16 %v7203, %v7199
    %v8160 = vpack.c.b16 %v7204, %v7200
    %v8161 = vpack.c.b16 %v7205, %v7201
    %v8162 = vpack.c.b16 %v7206, %v7202
    %v8163 = vpack.c.b16 %v7211, %v7207
    %v8164 = vpack.c.b16 %v7212, %v7208
    %v8165 = vpack.c.b16 %v7213, %v7209
    %v8166 = vpack.c.b16 %v7214, %v7210
    %v8167 = vpack.c.b16 %v7219, %v7215
    %v8168 = vpack.c.b16 %v7220, %v7216
    %v8169 = vpack.c.b16 %v7221, %v7217
    %v8170 = vpack.c.b16 %v7222, %v7218
    %v8171 = vpack.c.b16 %v7227, %v7223
    %v8172 = vpack.c.b16 %v7228, %v7224
    %v8173 = vpack.c.b16 %v7229, %v7225
    %v8174 = vpack.c.b16 %v7230, %v7226
    %v8175 = vpack.c.b16 %v7235, %v7231
    %v8176 = vpack.c.b16 %v7236, %v7232
    %v8177 = vpack.c.b16 %v7237, %v7233
    %v8178 = vpack.c.b16 %v7238, %v7234
    %v8179 = vpack.c.b16 %v7243, %v7239
    %v8180 = vpack.c.b16 %v7244, %v7240
    %v8181 = vpack.c.b16 %v7245, %v7241
    %v8182 = vpack.c.b16 %v7246, %v7242
    %v8183 = vpack.c.b16 %v7251, %v7247
    %v8184 = vpack.c.b16 %v7252, %v7248
    %v8185 = vpack.c.b16 %v7253, %v7249
    %v8186 = vpack.c.b16 %v7254, %v7250
    %v8187 = vpack.c.b16 %v7259, %v7255
    %v8188 = vpack.c.b16 %v7260, %v7256
    %v8189 = vpack.c.b16 %v7261, %v7257
    %v8190 = vpack.c.b16 %v7262, %v7258
    %v8191 = vpack.c.b16 %v7267, %v7263
    %v8192 = vpack.c.b16 %v7268, %v7264
    %v8193 = vpack.c.b16 %v7269, %v7265
    %v8194 = vpack.c.b16 %v7270, %v7266
    %v8195 = vpack.c.b16 %v7275, %v7271
    %v8196 = vpack.c.b16 %v7276, %v7272
    %v8197 = vpack.c.b16 %v7277, %v7273
    %v8198 = vpack.c.b16 %v7278, %v7274
    %v8199 = vpack.c.b16 %v7283, %v7279
    %v8200 = vpack.c.b16 %v7284, %v7280
    %v8201 = vpack.c.b16 %v7285, %v7281
    %v8202 = vpack.c.b16 %v7286, %v7282
    %v8203 = vpack.c.b16 %v7291, %v7287
    %v8204 = vpack.c.b16 %v7292, %v7288
    %v8205 = vpack.c.b16 %v7293, %v7289
    %v8206 = vpack.c.b16 %v7294, %v7290
    %v8207 = vpack.c.b16 %v7299, %v7295
    %v8208 = vpack.c.b16 %v7300, %v7296
    %v8209 = vpack.c.b16 %v7301, %v7297
    %v8210 = vpack.c.b16 %v7302, %v7298
    %v8211 = vpack.c.b16 %v7307, %v7303
    %v8212 = vpack.c.b16 %v7308, %v7304
    %v8213 = vpack.c.b16 %v7309, %v7305
    %v8214 = vpack.c.b16 %v7310, %v7306
    %v8215 = vpack.c.b16 %v7315, %v7311
    %v8216 = vpack.c.b16 %v7316, %v7312
    %v8217 = vpack.c.b16 %v7317, %v7313
    %v8218 = vpack.c.b16 %v7318, %v7314
    %v8219 = vpack.c.b16 %v7323, %v7319
    %v8220 = vpack.c.b16 %v7324, %v7320
    %v8221 = vpack.c.b16 %v7325, %v7321
    %v8222 = vpack.c.b16 %v7326, %v7322
    %v8223 = vpack.c.b16 %v7331, %v7327
    %v8224 = vpack.c.b16 %v7332, %v7328
    %v8225 = vpack.c.b16 %v7333, %v7329
    %v8226 = vpack.c.b16 %v7334, %v7330
    %v8227 = vpack.c.b16 %v7339, %v7335
    %v8228 = vpack.c.b16 %v7340, %v7336
    %v8229 = vpack.c.b16 %v7341, %v7337
    %v8230 = vpack.c.b16 %v7342, %v7338
    %v8231 = vpack.c.b16 %v7347, %v7343
    %v8232 = vpack.c.b16 %v7348, %v7344
    %v8233 = vpack.c.b16 %v7349, %v7345
    %v8234 = vpack.c.b16 %v7350, %v7346
    %v8235 = vpack.c.b16 %v7355, %v7351
    %v8236 = vpack.c.b16 %v7356, %v7352
    %v8237 = vpack.c.b16 %v7357, %v7353
    %v8238 = vpack.c.b16 %v7358, %v7354
    %v8239 = vpack.c.b16 %v7363, %v7359
    %v8240 = vpack.c.b16 %v7364, %v7360
    %v8241 = vpack.c.b16 %v7365, %v7361
    %v8242 = vpack.c.b16 %v7366, %v7362
    %v8243 = vpack.c.b16 %v7371, %v7367
    %v8244 = vpack.c.b16 %v7372, %v7368
    %v8245 = vpack.c.b16 %v7373, %v7369
    %v8246 = vpack.c.b16 %v7374, %v7370
    %v8247 = vpack.c.b16 %v7379, %v7375
    %v8248 = vpack.c.b16 %v7380, %v7376
    %v8249 = vpack.c.b16 %v7381, %v7377
    %v8250 = vpack.c.b16 %v7382, %v7378
    %v8251 = vpack.c.b16 %v7387, %v7383
    %v8252 = vpack.c.b16 %v7388, %v7384
    %v8253 = vpack.c.b16 %v7389, %v7385
    %v8254 = vpack.c.b16 %v7390, %v7386
    %v8255 = vpack.c.b16 %v7395, %v7391
    %v8256 = vpack.c.b16 %v7396, %v7392
    %v8257 = vpack.c.b16 %v7397, %v7393
    %v8258 = vpack.c.b16 %v7398, %v7394
    %v8259 = vpack.c.b16 %v7403, %v7399
    %v8260 = vpack.c.b16 %v7404, %v7400
    %v8261 = vpack.c.b16 %v7405, %v7401
    %v8262 = vpack.c.b16 %v7406, %v7402
    %v8263 = vpack.c.b16 %v7411, %v7407
    %v8264 = vpack.c.b16 %v7412, %v7408
    %v8265 = vpack.c.b16 %v7413, %v7409
    %v8266 = vpack.c.b16 %v7414, %v7410
    %v8267 = vpack.c.b16 %v7419, %v7415
    %v8268 = vpack.c.b16 %v7420, %v7416
    %v8269 = vpack.c.b16 %v7421, %v7417
    %v8270 = vpack.c.b16 %v7422, %v7418
    %v8271 = vpack.c.b16 %v7427, %v7423
    %v8272 = vpack.c.b16 %v7428, %v7424
    %v8273 = vpack.c.b16 %v7429, %v7425
    %v8274 = vpack.c.b16 %v7430, %v7426
    %v8275 = vpack.c.b16 %v7435, %v7431
    %v8276 = vpack.c.b16 %v7436, %v7432
    %v8277 = vpack.c.b16 %v7437, %v7433
    %v8278 = vpack.c.b16 %v7438, %v7434
    %v8279 = vpack.c.b16 %v7443, %v7439
    %v8280 = vpack.c.b16 %v7444, %v7440
    %v8281 = vpack.c.b16 %v7445, %v7441
    %v8282 = vpack.c.b16 %v7446, %v7442
    %v8283 = vpack.c.b16 %v7451, %v7447
    %v8284 = vpack.c.b16 %v7452, %v7448
    %v8285 = vpack.c.b16 %v7453, %v7449
    %v8286 = vpack.c.b16 %v7454, %v7450
    %v8287 = vpack.c.b16 %v7459, %v7455
    %v8288 = vpack.c.b16 %v7460, %v7456
    %v8289 = vpack.c.b16 %v7461, %v7457
    %v8290 = vpack.c.b16 %v7462, %v7458
    %v8291 = vpack.c.b16 %v7467, %v7463
    %v8292 = vpack.c.b16 %v7468, %v7464
    %v8293 = vpack.c.b16 %v7469, %v7465
    %v8294 = vpack.c.b16 %v7470, %v7466
    %v8295 = vpack.c.b16 %v7475, %v7471
    %v8296 = vpack.c.b16 %v7476, %v7472
    %v8297 = vpack.c.b16 %v7477, %v7473
    %v8298 = vpack.c.b16 %v7478, %v7474
    %v8299 = vpack.c.b16 %v7483, %v7479
    %v8300 = vpack.c.b16 %v7484, %v7480
    %v8301 = vpack.c.b16 %v7485, %v7481
    %v8302 = vpack.c.b16 %v7486, %v7482
    %v8303 = vpack.c.b16 %v7491, %v7487
    %v8304 = vpack.c.b16 %v7492, %v7488
    %v8305 = vpack.c.b16 %v7493, %v7489
    %v8306 = vpack.c.b16 %v7494, %v7490
    %v8307 = vpack.c.b16 %v7499, %v7495
    %v8308 = vpack.c.b16 %v7500, %v7496
    %v8309 = vpack.c.b16 %v7501, %v7497
    %v8310 = vpack.c.b16 %v7502, %v7498
    %v8311 = vpack.c.b16 %v7507, %v7503
    %v8312 = vpack.c.b16 %v7508, %v7504
    %v8313 = vpack.c.b16 %v7509, %v7505
    %v8314 = vpack.c.b16 %v7510, %v7506
    %v8315 = vpack.c.b16 %v7515, %v7511
    %v8316 = vpack.c.b16 %v7516, %v7512
    %v8317 = vpack.c.b16 %v7517, %v7513
    %v8318 = vpack.c.b16 %v7518, %v7514
    %v8319 = vpack.c.b16 %v7523, %v7519
    %v8320 = vpack.c.b16 %v7524, %v7520
    %v8321 = vpack.c.b16 %v7525, %v7521
    %v8322 = vpack.c.b16 %v7526, %v7522
    %v8323 = vpack.c.b16 %v7531, %v7527
    %v8324 = vpack.c.b16 %v7532, %v7528
    %v8325 = vpack.c.b16 %v7533, %v7529
    %v8326 = vpack.c.b16 %v7534, %v7530
    %v8327 = vpack.c.b16 %v7539, %v7535
    %v8328 = vpack.c.b16 %v7540, %v7536
    %v8329 = vpack.c.b16 %v7541, %v7537
    %v8330 = vpack.c.b16 %v7542, %v7538
    %v8331 = vpack.c.b16 %v7547, %v7543
    %v8332 = vpack.c.b16 %v7548, %v7544
    %v8333 = vpack.c.b16 %v7549, %v7545
    %v8334 = vpack.c.b16 %v7550, %v7546
    %v8335 = vpack.c.b16 %v7555, %v7551
    %v8336 = vpack.c.b16 %v7556, %v7552
    %v8337 = vpack.c.b16 %v7557, %v7553
    %v8338 = vpack.c.b16 %v7558, %v7554
    %v8339 = vpack.c.b16 %v7563, %v7559
    %v8340 = vpack.c.b16 %v7564, %v7560
    %v8341 = vpack.c.b16 %v7565, %v7561
    %v8342 = vpack.c.b16 %v7566, %v7562
    %v8343 = vpack.c.b16 %v7571, %v7567
    %v8344 = vpack.c.b16 %v7572, %v7568
    %v8345 = vpack.c.b16 %v7573, %v7569
    %v8346 = vpack.c.b16 %v7574, %v7570
    %v8347 = vpack.c.b16 %v7579, %v7575
    %v8348 = vpack.c.b16 %v7580, %v7576
    %v8349 = vpack.c.b16 %v7581, %v7577
    %v8350 = vpack.c.b16 %v7582, %v7578
    %v8351 = vpack.c.b16 %v7587, %v7583
    %v8352 = vpack.c.b16 %v7588, %v7584
    %v8353 = vpack.c.b16 %v7589, %v7585
    %v8354 = vpack.c.b16 %v7590, %v7586
    %v8355 = vpack.c.b16 %v7595, %v7591
    %v8356 = vpack.c.b16 %v7596, %v7592
    %v8357 = vpack.c.b16 %v7597, %v7593
    %v8358 = vpack.c.b16 %v7598, %v7594
    %v8359 = vpack.c.b16 %v7603, %v7599
    %v8360 = vpack.c.b16 %v7604, %v7600
    %v8361 = vpack.c.b16 %v7605, %v7601
    %v8362 = vpack.c.b16 %v7606, %v7602
    %v8363 = vpack.c.b16 %v7611, %v7607
    %v8364 = vpack.c.b16 %v7612, %v7608
    %v8365 = vpack.c.b16 %v7613, %v7609
    %v8366 = vpack.c.b16 %v7614, %v7610
    %v8367 = vpack.c.b16 %v7619, %v7615
    %v8368 = vpack.c.b16 %v7620, %v7616
    %v8369 = vpack.c.b16 %v7621, %v7617
    %v8370 = vpack.c.b16 %v7622, %v7618
    %v8371 = vpack.c.b16 %v7627, %v7623
    %v8372 = vpack.c.b16 %v7628, %v7624
    %v8373 = vpack.c.b16 %v7629, %v7625
    %v8374 = vpack.c.b16 %v7630, %v7626
    %v8375 = vpack.c.b16 %v7635, %v7631
    %v8376 = vpack.c.b16 %v7636, %v7632
    %v8377 = vpack.c.b16 %v7637, %v7633
    %v8378 = vpack.c.b16 %v7638, %v7634
    %v8379 = vpack.c.b16 %v7643, %v7639
    %v8380 = vpack.c.b16 %v7644, %v7640
    %v8381 = vpack.c.b16 %v7645, %v7641
    %v8382 = vpack.c.b16 %v7646, %v7642
    %v8383 = vpack.c.b16 %v7651, %v7647
    %v8384 = vpack.c.b16 %v7652, %v7648
    %v8385 = vpack.c.b16 %v7653, %v7649
    %v8386 = vpack.c.b16 %v7654, %v7650
    %v8387 = vpack.c.b16 %v7659, %v7655
    %v8388 = vpack.c.b16 %v7660, %v7656
    %v8389 = vpack.c.b16 %v7661, %v7657
    %v8390 = vpack.c.b16 %v7662, %v7658
    %v8391 = vpack.c.b16 %v7667, %v7663
    %v8392 = vpack.c.b16 %v7668, %v7664
    %v8393 = vpack.c.b16 %v7669, %v7665
    %v8394 = vpack.c.b16 %v7670, %v7666
    %v8395 = vpack.c.b16 %v7675, %v7671
    %v8396 = vpack.c.b16 %v7676, %v7672
    %v8397 = vpack.c.b16 %v7677, %v7673
    %v8398 = vpack.c.b16 %v7678, %v7674
    %v8399 = vpack.c.b16 %v7683, %v7679
    %v8400 = vpack.c.b16 %v7684, %v7680
    %v8401 = vpack.c.b16 %v7685, %v7681
    %v8402 = vpack.c.b16 %v7686, %v7682
    %v8403 = vpack.c.b16 %v7691, %v7687
    %v8404 = vpack.c.b16 %v7692, %v7688
    %v8405 = vpack.c.b16 %v7693, %v7689
    %v8406 = vpack.c.b16 %v7694, %v7690
    %v8407 = vpack.c.b16 %v7699, %v7695
    %v8408 = vpack.c.b16 %v7700, %v7696
    %v8409 = vpack.c.b16 %v7701, %v7697
    %v8410 = vpack.c.b16 %v7702, %v7698
    %v8411 = vpack.c.b16 %v7707, %v7703
    %v8412 = vpack.c.b16 %v7708, %v7704
    %v8413 = vpack.c.b16 %v7709, %v7705
    %v8414 = vpack.c.b16 %v7710, %v7706
    %v8415 = vpack.c.b16 %v7715, %v7711
    %v8416 = vpack.c.b16 %v7716, %v7712
    %v8417 = vpack.c.b16 %v7717, %v7713
    %v8418 = vpack.c.b16 %v7718, %v7714
    %v8419 = vpack.c.b16 %v7723, %v7719
    %v8420 = vpack.c.b16 %v7724, %v7720
    %v8421 = vpack.c.b16 %v7725, %v7721
    %v8422 = vpack.c.b16 %v7726, %v7722
    %v8423 = vpack.c.b16 %v7731, %v7727
    %v8424 = vpack.c.b16 %v7732, %v7728
    %v8425 = vpack.c.b16 %v7733, %v7729
    %v8426 = vpack.c.b16 %v7734, %v7730
    %v8427 = vpack.c.b16 %v7739, %v7735
    %v8428 = vpack.c.b16 %v7740, %v7736
    %v8429 = vpack.c.b16 %v7741, %v7737
    %v8430 = vpack.c.b16 %v7742, %v7738
    %v8431 = vpack.c.b16 %v7747, %v7743
    %v8432 = vpack.c.b16 %v7748, %v7744
    %v8433 = vpack.c.b16 %v7749, %v7745
    %v8434 = vpack.c.b16 %v7750, %v7746
    %v8435 = vpack.c.b16 %v7755, %v7751
    %v8436 = vpack.c.b16 %v7756, %v7752
    %v8437 = vpack.c.b16 %v7757, %v7753
    %v8438 = vpack.c.b16 %v7758, %v7754
    %v8439 = vpack.c.b16 %v7763, %v7759
    %v8440 = vpack.c.b16 %v7764, %v7760
    %v8441 = vpack.c.b16 %v7765, %v7761
    %v8442 = vpack.c.b16 %v7766, %v7762
    %v8443 = vpack.c.b16 %v7771, %v7767
    %v8444 = vpack.c.b16 %v7772, %v7768
    %v8445 = vpack.c.b16 %v7773, %v7769
    %v8446 = vpack.c.b16 %v7774, %v7770
    %v8447 = vpack.c.b16 %v7779, %v7775
    %v8448 = vpack.c.b16 %v7780, %v7776
    %v8449 = vpack.c.b16 %v7781, %v7777
    %v8450 = vpack.c.b16 %v7782, %v7778
    %v8451 = vpack.c.b16 %v7787, %v7783
    %v8452 = vpack.c.b16 %v7788, %v7784
    %v8453 = vpack.c.b16 %v7789, %v7785
    %v8454 = vpack.c.b16 %v7790, %v7786
    %v8455 = vpack.c.b16 %v7795, %v7791
    %v8456 = vpack.c.b16 %v7796, %v7792
    %v8457 = vpack.c.b16 %v7797, %v7793
    %v8458 = vpack.c.b16 %v7798, %v7794
    %v8459 = vpack.c.b16 %v7803, %v7799
    %v8460 = vpack.c.b16 %v7804, %v7800
    %v8461 = vpack.c.b16 %v7805, %v7801
    %v8462 = vpack.c.b16 %v7806, %v7802
    %v8463 = vpack.c.b16 %v7811, %v7807
    %v8464 = vpack.c.b16 %v7812, %v7808
    %v8465 = vpack.c.b16 %v7813, %v7809
    %v8466 = vpack.c.b16 %v7814, %v7810
    %v8467 = vpack.c.b16 %v7819, %v7815
    %v8468 = vpack.c.b16 %v7820, %v7816
    %v8469 = vpack.c.b16 %v7821, %v7817
    %v8470 = vpack.c.b16 %v7822, %v7818
    %v8471 = vpack.c.b16 %v7827, %v7823
    %v8472 = vpack.c.b16 %v7828, %v7824
    %v8473 = vpack.c.b16 %v7829, %v7825
    %v8474 = vpack.c.b16 %v7830, %v7826
    %v8475 = vpack.c.b16 %v7835, %v7831
    %v8476 = vpack.c.b16 %v7836, %v7832
    %v8477 = vpack.c.b16 %v7837, %v7833
    %v8478 = vpack.c.b16 %v7838, %v7834
    %v8479 = vpack.c.b16 %v7843, %v7839
    %v8480 = vpack.c.b16 %v7844, %v7840
    %v8481 = vpack.c.b16 %v7845, %v7841
    %v8482 = vpack.c.b16 %v7846, %v7842
    %v8483 = vpack.c.b16 %v7851, %v7847
    %v8484 = vpack.c.b16 %v7852, %v7848
    %v8485 = vpack.c.b16 %v7853, %v7849
    %v8486 = vpack.c.b16 %v7854, %v7850
    %v8487 = vpack.c.b16 %v7859, %v7855
    %v8488 = vpack.c.b16 %v7860, %v7856
    %v8489 = vpack.c.b16 %v7861, %v7857
    %v8490 = vpack.c.b16 %v7862, %v7858
    %v8491 = vpack.c.b16 %v7867, %v7863
    %v8492 = vpack.c.b16 %v7868, %v7864
    %v8493 = vpack.c.b16 %v7869, %v7865
    %v8494 = vpack.c.b16 %v7870, %v7866
    %v8495 = vpack.c.b16 %v7875, %v7871
    %v8496 = vpack.c.b16 %v7876, %v7872
    %v8497 = vpack.c.b16 %v7877, %v7873
    %v8498 = vpack.c.b16 %v7878, %v7874
    %v8499 = vpack.c.b16 %v7883, %v7879
    %v8500 = vpack.c.b16 %v7884, %v7880
    %v8501 = vpack.c.b16 %v7885, %v7881
    %v8502 = vpack.c.b16 %v7886, %v7882
    %v8503 = vpack.c.b16 %v7891, %v7887
    %v8504 = vpack.c.b16 %v7892, %v7888
    %v8505 = vpack.c.b16 %v7893, %v7889
    %v8506 = vpack.c.b16 %v7894, %v7890
    %v8507 = vpack.c.b16 %v7899, %v7895
    %v8508 = vpack.c.b16 %v7900, %v7896
    %v8509 = vpack.c.b16 %v7901, %v7897
    %v8510 = vpack.c.b16 %v7902, %v7898
    %v8511 = vpack.c.b16 %v7907, %v7903
    %v8512 = vpack.c.b16 %v7908, %v7904
    %v8513 = vpack.c.b16 %v7909, %v7905
    %v8514 = vpack.c.b16 %v7910, %v7906
    %v8515 = vpack.c.b16 %v7915, %v7911
    %v8516 = vpack.c.b16 %v7916, %v7912
    %v8517 = vpack.c.b16 %v7917, %v7913
    %v8518 = vpack.c.b16 %v7918, %v7914
    %v8519 = vpack.c.b16 %v7923, %v7919
    %v8520 = vpack.c.b16 %v7924, %v7920
    %v8521 = vpack.c.b16 %v7925, %v7921
    %v8522 = vpack.c.b16 %v7926, %v7922
    %v8523 = vpack.c.b16 %v7931, %v7927
    %v8524 = vpack.c.b16 %v7932, %v7928
    %v8525 = vpack.c.b16 %v7933, %v7929
    %v8526 = vpack.c.b16 %v7934, %v7930
    %v8527 = vpack.c.b16 %v7939, %v7935
    %v8528 = vpack.c.b16 %v7940, %v7936
    %v8529 = vpack.c.b16 %v7941, %v7937
    %v8530 = vpack.c.b16 %v7942, %v7938
    %v8531 = vpack.c.b16 %v7947, %v7943
    %v8532 = vpack.c.b16 %v7948, %v7944
    %v8533 = vpack.c.b16 %v7949, %v7945
    %v8534 = vpack.c.b16 %v7950, %v7946
    %v8535 = vpack.c.b16 %v7955, %v7951
    %v8536 = vpack.c.b16 %v7956, %v7952
    %v8537 = vpack.c.b16 %v7957, %v7953
    %v8538 = vpack.c.b16 %v7958, %v7954
    %v8539 = vpack.c.b16 %v7963, %v7959
    %v8540 = vpack.c.b16 %v7964, %v7960
    %v8541 = vpack.c.b16 %v7965, %v7961
    %v8542 = vpack.c.b16 %v7966, %v7962
    %v8543 = vpack.c.b16 %v7971, %v7967
    %v8544 = vpack.c.b16 %v7972, %v7968
    %v8545 = vpack.c.b16 %v7973, %v7969
    %v8546 = vpack.c.b16 %v7974, %v7970
    %v8547 = vpack.c.b16 %v7979, %v7975
    %v8548 = vpack.c.b16 %v7980, %v7976
    %v8549 = vpack.c.b16 %v7981, %v7977
    %v8550 = vpack.c.b16 %v7982, %v7978
    %v8551 = vpack.c.b16 %v7987, %v7983
    %v8552 = vpack.c.b16 %v7988, %v7984
    %v8553 = vpack.c.b16 %v7989, %v7985
    %v8554 = vpack.c.b16 %v7990, %v7986
    %v8555 = vpack.c.b16 %v7995, %v7991
    %v8556 = vpack.c.b16 %v7996, %v7992
    %v8557 = vpack.c.b16 %v7997, %v7993
    %v8558 = vpack.c.b16 %v7998, %v7994
    %v8559 = vpack.c.b16 %v8003, %v7999
    %v8560 = vpack.c.b16 %v8004, %v8000
    %v8561 = vpack.c.b16 %v8005, %v8001
    %v8562 = vpack.c.b16 %v8006, %v8002
    %v8563 = vpack.c.b16 %v8011, %v8007
    %v8564 = vpack.c.b16 %v8012, %v8008
    %v8565 = vpack.c.b16 %v8013, %v8009
    %v8566 = vpack.c.b16 %v8014, %v8010
    %v8567 = vpack.c.b16 %v8019, %v8015
    %v8568 = vpack.c.b16 %v8020, %v8016
    %v8569 = vpack.c.b16 %v8021, %v8017
    %v8570 = vpack.c.b16 %v8022, %v8018
    %v8571 = vpack.c.b16 %v8027, %v8023
    %v8572 = vpack.c.b16 %v8028, %v8024
    %v8573 = vpack.c.b16 %v8029, %v8025
    %v8574 = vpack.c.b16 %v8030, %v8026
    %v8575 = vpack.c.b16 %v8035, %v8031
    %v8576 = vpack.c.b16 %v8036, %v8032
    %v8577 = vpack.c.b16 %v8037, %v8033
    %v8578 = vpack.c.b16 %v8038, %v8034
    %v8579 = vpack.c.b16 %v8043, %v8039
    %v8580 = vpack.c.b16 %v8044, %v8040
    %v8581 = vpack.c.b16 %v8045, %v8041
    %v8582 = vpack.c.b16 %v8046, %v8042
    %v8583 = vpack.c.b16 %v8051, %v8047
    %v8584 = vpack.c.b16 %v8052, %v8048
    %v8585 = vpack.c.b16 %v8053, %v8049
    %v8586 = vpack.c.b16 %v8054, %v8050
    %v8587 = vpack.c.b16 %v8059, %v8055
    %v8588 = vpack.c.b16 %v8060, %v8056
    %v8589 = vpack.c.b16 %v8061, %v8057
    %v8590 = vpack.c.b16 %v8062, %v8058
    %v8591 = vpack.c.b16 %v8067, %v8063
    %v8592 = vpack.c.b16 %v8068, %v8064
    %v8593 = vpack.c.b16 %v8069, %v8065
    %v8594 = vpack.c.b16 %v8070, %v8066
    %v8595 = vpack.c.b16 %v8075, %v8071
    %v8596 = vpack.c.b16 %v8076, %v8072
    %v8597 = vpack.c.b16 %v8077, %v8073
    %v8598 = vpack.c.b16 %v8078, %v8074
    %v8599 = vpack.c.b16 %v8083, %v8079
    %v8600 = vpack.c.b16 %v8084, %v8080
    %v8601 = vpack.c.b16 %v8085, %v8081
    %v8602 = vpack.c.b16 %v8086, %v8082
    %v8603 = vpack.c.b16 %v8091, %v8087
    %v8604 = vpack.c.b16 %v8092, %v8088
    %v8605 = vpack.c.b16 %v8093, %v8089
    %v8606 = vpack.c.b16 %v8094, %v8090
    %9119 = vmatprep.subr.bf16.mxu0 %v8096
    %9120 = vmatpush1.bf16.msra.mxu0 %v8095
    %9121 = vmatprep.subr.bf16.mxu0 %v8100
    %9122 = vmatpush1.bf16.msra.mxu0 %v8099
    %9123 = vmatprep.subr.bf16.mxu0 %v8104
    %9124 = vmatpush1.bf16.msra.mxu0 %v8103
    %9125 = vmatprep.subr.bf16.mxu0 %v8108
    %9126 = vmatpush1.bf16.msra.mxu0 %v8107
    %9127 = vmatprep.subr.bf16.mxu0 %v8112
    %9128 = vmatpush1.bf16.msra.mxu0 %v8111
    %9129 = vmatprep.subr.bf16.mxu0 %v8116
    %9130 = vmatpush1.bf16.msra.mxu0 %v8115
    %9131 = vmatprep.subr.bf16.mxu0 %v8120
    %9132 = vmatpush1.bf16.msra.mxu0 %v8119
    %9133 = vmatprep.subr.bf16.mxu0 %v8124
    %9134 = vmatpush1.bf16.msra.mxu0 %v8123
    %9135 = vmatprep.subr.bf16.mxu0 %v8128
    %9136 = vmatpush1.bf16.msra.mxu0 %v8127
    %9137 = vmatprep.subr.bf16.mxu0 %v8132
    %9138 = vmatpush1.bf16.msra.mxu0 %v8131
    %9139 = vmatprep.subr.bf16.mxu0 %v8136
    %9140 = vmatpush1.bf16.msra.mxu0 %v8135
    %9141 = vmatprep.subr.bf16.mxu0 %v8140
    %9142 = vmatpush1.bf16.msra.mxu0 %v8139
    %9143 = vmatprep.subr.bf16.mxu0 %v8144
    %9144 = vmatpush1.bf16.msra.mxu0 %v8143
    %9145 = vmatprep.subr.bf16.mxu0 %v8148
    %9146 = vmatpush1.bf16.msra.mxu0 %v8147
    %9147 = vmatprep.subr.bf16.mxu0 %v8152
    %9148 = vmatpush1.bf16.msra.mxu0 %v8151
    %9149 = vmatprep.subr.bf16.mxu0 %v8156
    %9150 = vmatpush1.bf16.msra.mxu0 %v8155
    %9151 = vmatprep.mubr.bf16.mxu0 %v6032
    %9152 = vmatmul.mubr.bf16.gmra.mrb[0].mxu0 %v6031
    %v9153 = vpop.f32.mrb[0].mxu0
    %v9154 = vadd.f32 %v2227, %v9153
    %v9155 = vpop.f32.mrb[0].mxu0
    %v9156 = vadd.f32 %v2228, %v9155
    %v9157 = vpop.f32.mrb[0].mxu0
    %v9158 = vadd.f32 %v2231, %v9157
    %v9159 = vpop.f32.mrb[0].mxu0
    %v9160 = vadd.f32 %v2232, %v9159
    %9161 = vdwg.mxu0
    %9162 = vmatprep.subr.bf16.mxu0 %v8160
    %9163 = vmatpush1.bf16.msra.mxu0 %v8159
    %9164 = vmatprep.subr.bf16.mxu0 %v8164
    %9165 = vmatpush1.bf16.msra.mxu0 %v8163
    %9166 = vmatprep.subr.bf16.mxu0 %v8168
    %9167 = vmatpush1.bf16.msra.mxu0 %v8167
    %9168 = vmatprep.subr.bf16.mxu0 %v8172
    %9169 = vmatpush1.bf16.msra.mxu0 %v8171
    %9170 = vmatprep.subr.bf16.mxu0 %v8176
    %9171 = vmatpush1.bf16.msra.mxu0 %v8175
    %9172 = vmatprep.subr.bf16.mxu0 %v8180
    %9173 = vmatpush1.bf16.msra.mxu0 %v8179
    %9174 = vmatprep.subr.bf16.mxu0 %v8184
    %9175 = vmatpush1.bf16.msra.mxu0 %v8183
    %9176 = vmatprep.subr.bf16.mxu0 %v8188
    %9177 = vmatpush1.bf16.msra.mxu0 %v8187
    %9178 = vmatprep.subr.bf16.mxu0 %v8192
    %9179 = vmatpush1.bf16.msra.mxu0 %v8191
    %9180 = vmatprep.subr.bf16.mxu0 %v8196
    %9181 = vmatpush1.bf16.msra.mxu0 %v8195
    %9182 = vmatprep.subr.bf16.mxu0 %v8200
    %9183 = vmatpush1.bf16.msra.mxu0 %v8199
    %9184 = vmatprep.subr.bf16.mxu0 %v8204
    %9185 = vmatpush1.bf16.msra.mxu0 %v8203
    %9186 = vmatprep.subr.bf16.mxu0 %v8208
    %9187 = vmatpush1.bf16.msra.mxu0 %v8207
    %9188 = vmatprep.subr.bf16.mxu0 %v8212
    %9189 = vmatpush1.bf16.msra.mxu0 %v8211
    %9190 = vmatprep.subr.bf16.mxu0 %v8216
    %9191 = vmatpush1.bf16.msra.mxu0 %v8215
    %9192 = vmatprep.subr.bf16.mxu0 %v8220
    %9193 = vmatpush1.bf16.msra.mxu0 %v8219
    %9194 = vmatprep.mubr.bf16.mxu0 %v6034
    %9195 = vmatmul.mubr.bf16.gmra.mrb[0].mxu0 %v6033
    %v9196 = vpop.f32.mrb[0].mxu0
    %v9197 = vadd.f32 %v9154, %v9196
    %v9198 = vpop.f32.mrb[0].mxu0
    %v9199 = vadd.f32 %v9156, %v9198
    %v9200 = vpop.f32.mrb[0].mxu0
    %v9201 = vadd.f32 %v9158, %v9200
    %v9202 = vpop.f32.mrb[0].mxu0
    %v9203 = vadd.f32 %v9160, %v9202
    %9204 = vdwg.mxu0
    %9205 = vmatprep.subr.bf16.mxu0 %v8224
    %9206 = vmatpush1.bf16.msra.mxu0 %v8223
    %9207 = vmatprep.subr.bf16.mxu0 %v8228
    %9208 = vmatpush1.bf16.msra.mxu0 %v8227
    %9209 = vmatprep.subr.bf16.mxu0 %v8232
    %9210 = vmatpush1.bf16.msra.mxu0 %v8231
    %9211 = vmatprep.subr.bf16.mxu0 %v8236
    %9212 = vmatpush1.bf16.msra.mxu0 %v8235
    %9213 = vmatprep.subr.bf16.mxu0 %v8240
    %9214 = vmatpush1.bf16.msra.mxu0 %v8239
    %9215 = vmatprep.subr.bf16.mxu0 %v8244
    %9216 = vmatpush1.bf16.msra.mxu0 %v8243
    %9217 = vmatprep.subr.bf16.mxu0 %v8248
    %9218 = vmatpush1.bf16.msra.mxu0 %v8247
    %9219 = vmatprep.subr.bf16.mxu0 %v8252
    %9220 = vmatpush1.bf16.msra.mxu0 %v8251
    %9221 = vmatprep.subr.bf16.mxu0 %v8256
    %9222 = vmatpush1.bf16.msra.mxu0 %v8255
    %9223 = vmatprep.subr.bf16.mxu0 %v8260
    %9224 = vmatpush1.bf16.msra.mxu0 %v8259
    %9225 = vmatprep.subr.bf16.mxu0 %v8264
    %9226 = vmatpush1.bf16.msra.mxu0 %v8263
    %9227 = vmatprep.subr.bf16.mxu0 %v8268
    %9228 = vmatpush1.bf16.msra.mxu0 %v8267
    %9229 = vmatprep.subr.bf16.mxu0 %v8272
    %9230 = vmatpush1.bf16.msra.mxu0 %v8271
    %9231 = vmatprep.subr.bf16.mxu0 %v8276
    %9232 = vmatpush1.bf16.msra.mxu0 %v8275
    %9233 = vmatprep.subr.bf16.mxu0 %v8280
    %9234 = vmatpush1.bf16.msra.mxu0 %v8279
    %9235 = vmatprep.subr.bf16.mxu0 %v8284
    %9236 = vmatpush1.bf16.msra.mxu0 %v8283
    %9237 = vmatprep.mubr.bf16.mxu0 %v6036
    %9238 = vmatmul.mubr.bf16.gmra.mrb[0].mxu0 %v6035
    %v9239 = vpop.f32.mrb[0].mxu0
    %v9240 = vadd.f32 %v9197, %v9239
    %v9241 = vpop.f32.mrb[0].mxu0
    %v9242 = vadd.f32 %v9199, %v9241
    %v9243 = vpop.f32.mrb[0].mxu0
    %v9244 = vadd.f32 %v9201, %v9243
    %v9245 = vpop.f32.mrb[0].mxu0
    %v9246 = vadd.f32 %v9203, %v9245
    %9247 = vdwg.mxu0
    %9248 = vmatprep.subr.bf16.mxu0 %v8288
    %9249 = vmatpush1.bf16.msra.mxu0 %v8287
    %9250 = vmatprep.subr.bf16.mxu0 %v8292
    %9251 = vmatpush1.bf16.msra.mxu0 %v8291
    %9252 = vmatprep.subr.bf16.mxu0 %v8296
    %9253 = vmatpush1.bf16.msra.mxu0 %v8295
    %9254 = vmatprep.subr.bf16.mxu0 %v8300
    %9255 = vmatpush1.bf16.msra.mxu0 %v8299
    %9256 = vmatprep.subr.bf16.mxu0 %v8304
    %9257 = vmatpush1.bf16.msra.mxu0 %v8303
    %9258 = vmatprep.subr.bf16.mxu0 %v8308
    %9259 = vmatpush1.bf16.msra.mxu0 %v8307
    %9260 = vmatprep.subr.bf16.mxu0 %v8312
    %9261 = vmatpush1.bf16.msra.mxu0 %v8311
    %9262 = vmatprep.subr.bf16.mxu0 %v8316
    %9263 = vmatpush1.bf16.msra.mxu0 %v8315
    %9264 = vmatprep.subr.bf16.mxu0 %v8320
    %9265 = vmatpush1.bf16.msra.mxu0 %v8319
    %9266 = vmatprep.subr.bf16.mxu0 %v8324
    %9267 = vmatpush1.bf16.msra.mxu0 %v8323
    %9268 = vmatprep.subr.bf16.mxu0 %v8328
    %9269 = vmatpush1.bf16.msra.mxu0 %v8327
    %9270 = vmatprep.subr.bf16.mxu0 %v8332
    %9271 = vmatpush1.bf16.msra.mxu0 %v8331
    %9272 = vmatprep.subr.bf16.mxu0 %v8336
    %9273 = vmatpush1.bf16.msra.mxu0 %v8335
    %9274 = vmatprep.subr.bf16.mxu0 %v8340
    %9275 = vmatpush1.bf16.msra.mxu0 %v8339
    %9276 = vmatprep.subr.bf16.mxu0 %v8344
    %9277 = vmatpush1.bf16.msra.mxu0 %v8343
    %9278 = vmatprep.subr.bf16.mxu0 %v8348
    %9279 = vmatpush1.bf16.msra.mxu0 %v8347
    %9280 = vmatprep.mubr.bf16.mxu0 %v6038
    %9281 = vmatmul.mubr.bf16.gmra.mrb[0].mxu0 %v6037
    %v9282 = vpop.f32.mrb[0].mxu0
    %v9283 = vadd.f32 %v9240, %v9282
    %v9284 = vpop.f32.mrb[0].mxu0
    %v9285 = vadd.f32 %v9242, %v9284
    %v9286 = vpop.f32.mrb[0].mxu0
    %v9287 = vadd.f32 %v9244, %v9286
    %v9288 = vpop.f32.mrb[0].mxu0
    %v9289 = vadd.f32 %v9246, %v9288
    %9290 = vdwg.mxu0
    %9291 = vmatprep.subr.bf16.mxu0 %v8352
    %9292 = vmatpush1.bf16.msra.mxu0 %v8351
    %9293 = vmatprep.subr.bf16.mxu0 %v8356
    %9294 = vmatpush1.bf16.msra.mxu0 %v8355
    %9295 = vmatprep.subr.bf16.mxu0 %v8360
    %9296 = vmatpush1.bf16.msra.mxu0 %v8359
    %9297 = vmatprep.subr.bf16.mxu0 %v8364
    %9298 = vmatpush1.bf16.msra.mxu0 %v8363
    %9299 = vmatprep.subr.bf16.mxu0 %v8368
    %9300 = vmatpush1.bf16.msra.mxu0 %v8367
    %9301 = vmatprep.subr.bf16.mxu0 %v8372
    %9302 = vmatpush1.bf16.msra.mxu0 %v8371
    %9303 = vmatprep.subr.bf16.mxu0 %v8376
    %9304 = vmatpush1.bf16.msra.mxu0 %v8375
    %9305 = vmatprep.subr.bf16.mxu0 %v8380
    %9306 = vmatpush1.bf16.msra.mxu0 %v8379
    %9307 = vmatprep.subr.bf16.mxu0 %v8384
    %9308 = vmatpush1.bf16.msra.mxu0 %v8383
    %9309 = vmatprep.subr.bf16.mxu0 %v8388
    %9310 = vmatpush1.bf16.msra.mxu0 %v8387
    %9311 = vmatprep.subr.bf16.mxu0 %v8392
    %9312 = vmatpush1.bf16.msra.mxu0 %v8391
    %9313 = vmatprep.subr.bf16.mxu0 %v8396
    %9314 = vmatpush1.bf16.msra.mxu0 %v8395
    %9315 = vmatprep.subr.bf16.mxu0 %v8400
    %9316 = vmatpush1.bf16.msra.mxu0 %v8399
    %9317 = vmatprep.subr.bf16.mxu0 %v8404
    %9318 = vmatpush1.bf16.msra.mxu0 %v8403
    %9319 = vmatprep.subr.bf16.mxu0 %v8408
    %9320 = vmatpush1.bf16.msra.mxu0 %v8407
    %9321 = vmatprep.subr.bf16.mxu0 %v8412
    %9322 = vmatpush1.bf16.msra.mxu0 %v8411
    %9323 = vmatprep.mubr.bf16.mxu0 %v6040
    %9324 = vmatmul.mubr.bf16.gmra.mrb[0].mxu0 %v6039
    %v9325 = vpop.f32.mrb[0].mxu0
    %v9326 = vadd.f32 %v9283, %v9325
    %v9327 = vpop.f32.mrb[0].mxu0
    %v9328 = vadd.f32 %v9285, %v9327
    %v9329 = vpop.f32.mrb[0].mxu0
    %v9330 = vadd.f32 %v9287, %v9329
    %v9331 = vpop.f32.mrb[0].mxu0
    %v9332 = vadd.f32 %v9289, %v9331
    %9333 = vdwg.mxu0
    %9334 = vmatprep.subr.bf16.mxu0 %v8416
    %9335 = vmatpush1.bf16.msra.mxu0 %v8415
    %9336 = vmatprep.subr.bf16.mxu0 %v8420
    %9337 = vmatpush1.bf16.msra.mxu0 %v8419
    %9338 = vmatprep.subr.bf16.mxu0 %v8424
    %9339 = vmatpush1.bf16.msra.mxu0 %v8423
    %9340 = vmatprep.subr.bf16.mxu0 %v8428
    %9341 = vmatpush1.bf16.msra.mxu0 %v8427
    %9342 = vmatprep.subr.bf16.mxu0 %v8432
    %9343 = vmatpush1.bf16.msra.mxu0 %v8431
    %9344 = vmatprep.subr.bf16.mxu0 %v8436
    %9345 = vmatpush1.bf16.msra.mxu0 %v8435
    %9346 = vmatprep.subr.bf16.mxu0 %v8440
    %9347 = vmatpush1.bf16.msra.mxu0 %v8439
    %9348 = vmatprep.subr.bf16.mxu0 %v8444
    %9349 = vmatpush1.bf16.msra.mxu0 %v8443
    %9350 = vmatprep.subr.bf16.mxu0 %v8448
    %9351 = vmatpush1.bf16.msra.mxu0 %v8447
    %9352 = vmatprep.subr.bf16.mxu0 %v8452
    %9353 = vmatpush1.bf16.msra.mxu0 %v8451
    %9354 = vmatprep.subr.bf16.mxu0 %v8456
    %9355 = vmatpush1.bf16.msra.mxu0 %v8455
    %9356 = vmatprep.subr.bf16.mxu0 %v8460
    %9357 = vmatpush1.bf16.msra.mxu0 %v8459
    %9358 = vmatprep.subr.bf16.mxu0 %v8464
    %9359 = vmatpush1.bf16.msra.mxu0 %v8463
    %9360 = vmatprep.subr.bf16.mxu0 %v8468
    %9361 = vmatpush1.bf16.msra.mxu0 %v8467
    %9362 = vmatprep.subr.bf16.mxu0 %v8472
    %9363 = vmatpush1.bf16.msra.mxu0 %v8471
    %9364 = vmatprep.subr.bf16.mxu0 %v8476
    %9365 = vmatpush1.bf16.msra.mxu0 %v8475
    %9366 = vmatprep.mubr.bf16.mxu0 %v6042
    %9367 = vmatmul.mubr.bf16.gmra.mrb[0].mxu0 %v6041
    %v9368 = vpop.f32.mrb[0].mxu0
    %v9369 = vadd.f32 %v9326, %v9368
    %v9370 = vpop.f32.mrb[0].mxu0
    %v9371 = vadd.f32 %v9328, %v9370
    %v9372 = vpop.f32.mrb[0].mxu0
    %v9373 = vadd.f32 %v9330, %v9372
    %v9374 = vpop.f32.mrb[0].mxu0
    %v9375 = vadd.f32 %v9332, %v9374
    %9376 = vdwg.mxu0
    %9377 = vmatprep.subr.bf16.mxu0 %v8480
    %9378 = vmatpush1.bf16.msra.mxu0 %v8479
    %9379 = vmatprep.subr.bf16.mxu0 %v8484
    %9380 = vmatpush1.bf16.msra.mxu0 %v8483
    %9381 = vmatprep.subr.bf16.mxu0 %v8488
    %9382 = vmatpush1.bf16.msra.mxu0 %v8487
    %9383 = vmatprep.subr.bf16.mxu0 %v8492
    %9384 = vmatpush1.bf16.msra.mxu0 %v8491
    %9385 = vmatprep.subr.bf16.mxu0 %v8496
    %9386 = vmatpush1.bf16.msra.mxu0 %v8495
    %9387 = vmatprep.subr.bf16.mxu0 %v8500
    %9388 = vmatpush1.bf16.msra.mxu0 %v8499
    %9389 = vmatprep.subr.bf16.mxu0 %v8504
    %9390 = vmatpush1.bf16.msra.mxu0 %v8503
    %9391 = vmatprep.subr.bf16.mxu0 %v8508
    %9392 = vmatpush1.bf16.msra.mxu0 %v8507
    %9393 = vmatprep.subr.bf16.mxu0 %v8512
    %9394 = vmatpush1.bf16.msra.mxu0 %v8511
    %9395 = vmatprep.subr.bf16.mxu0 %v8516
    %9396 = vmatpush1.bf16.msra.mxu0 %v8515
    %9397 = vmatprep.subr.bf16.mxu0 %v8520
    %9398 = vmatpush1.bf16.msra.mxu0 %v8519
    %9399 = vmatprep.subr.bf16.mxu0 %v8524
    %9400 = vmatpush1.bf16.msra.mxu0 %v8523
    %9401 = vmatprep.subr.bf16.mxu0 %v8528
    %9402 = vmatpush1.bf16.msra.mxu0 %v8527
    %9403 = vmatprep.subr.bf16.mxu0 %v8532
    %9404 = vmatpush1.bf16.msra.mxu0 %v8531
    %9405 = vmatprep.subr.bf16.mxu0 %v8536
    %9406 = vmatpush1.bf16.msra.mxu0 %v8535
    %9407 = vmatprep.subr.bf16.mxu0 %v8540
    %9408 = vmatpush1.bf16.msra.mxu0 %v8539
    %9409 = vmatprep.mubr.bf16.mxu0 %v6044
    %9410 = vmatmul.mubr.bf16.gmra.mrb[0].mxu0 %v6043
    %v9411 = vpop.f32.mrb[0].mxu0
    %v9412 = vadd.f32 %v9369, %v9411
    %v9413 = vpop.f32.mrb[0].mxu0
    %v9414 = vadd.f32 %v9371, %v9413
    %v9415 = vpop.f32.mrb[0].mxu0
    %v9416 = vadd.f32 %v9373, %v9415
    %v9417 = vpop.f32.mrb[0].mxu0
    %v9418 = vadd.f32 %v9375, %v9417
    %9419 = vdwg.mxu0
    %9420 = vmatprep.subr.bf16.mxu0 %v8544
    %9421 = vmatpush1.bf16.msra.mxu0 %v8543
    %9422 = vmatprep.subr.bf16.mxu0 %v8548
    %9423 = vmatpush1.bf16.msra.mxu0 %v8547
    %9424 = vmatprep.subr.bf16.mxu0 %v8552
    %9425 = vmatpush1.bf16.msra.mxu0 %v8551
    %9426 = vmatprep.subr.bf16.mxu0 %v8556
    %9427 = vmatpush1.bf16.msra.mxu0 %v8555
    %9428 = vmatprep.subr.bf16.mxu0 %v8560
    %9429 = vmatpush1.bf16.msra.mxu0 %v8559
    %9430 = vmatprep.subr.bf16.mxu0 %v8564
    %9431 = vmatpush1.bf16.msra.mxu0 %v8563
    %9432 = vmatprep.subr.bf16.mxu0 %v8568
    %9433 = vmatpush1.bf16.msra.mxu0 %v8567
    %9434 = vmatprep.subr.bf16.mxu0 %v8572
    %9435 = vmatpush1.bf16.msra.mxu0 %v8571
    %9436 = vmatprep.subr.bf16.mxu0 %v8576
    %9437 = vmatpush1.bf16.msra.mxu0 %v8575
    %9438 = vmatprep.subr.bf16.mxu0 %v8580
    %9439 = vmatpush1.bf16.msra.mxu0 %v8579
    %9440 = vmatprep.subr.bf16.mxu0 %v8584
    %9441 = vmatpush1.bf16.msra.mxu0 %v8583
    %9442 = vmatprep.subr.bf16.mxu0 %v8588
    %9443 = vmatpush1.bf16.msra.mxu0 %v8587
    %9444 = vmatprep.subr.bf16.mxu0 %v8592
    %9445 = vmatpush1.bf16.msra.mxu0 %v8591
    %9446 = vmatprep.subr.bf16.mxu0 %v8596
    %9447 = vmatpush1.bf16.msra.mxu0 %v8595
    %9448 = vmatprep.subr.bf16.mxu0 %v8600
    %9449 = vmatpush1.bf16.msra.mxu0 %v8599
    %9450 = vmatprep.subr.bf16.mxu0 %v8604
    %9451 = vmatpush1.bf16.msra.mxu0 %v8603
    %9452 = vmatprep.mubr.bf16.mxu0 %v6046
    %9453 = vmatmul.mubr.bf16.gmra.mrb[0].mxu0 %v6045
    %v9454 = vpop.f32.mrb[0].mxu0
    %v9455 = vadd.f32 %v9412, %v9454
    %v9456 = vpop.f32.mrb[0].mxu0
    %v9457 = vadd.f32 %v9414, %v9456
    %v9458 = vpop.f32.mrb[0].mxu0
    %v9459 = vadd.f32 %v9416, %v9458
    %v9460 = vpop.f32.mrb[0].mxu0
    %v9461 = vadd.f32 %v9418, %v9460
    %9462 = vdwg.mxu0
    %9463 = vmatprep.subr.bf16.mxu0 %v8098
    %9464 = vmatpush1.bf16.msra.mxu0 %v8097
    %9465 = vmatprep.subr.bf16.mxu0 %v8102
    %9466 = vmatpush1.bf16.msra.mxu0 %v8101
    %9467 = vmatprep.subr.bf16.mxu0 %v8106
    %9468 = vmatpush1.bf16.msra.mxu0 %v8105
    %9469 = vmatprep.subr.bf16.mxu0 %v8110
    %9470 = vmatpush1.bf16.msra.mxu0 %v8109
    %9471 = vmatprep.subr.bf16.mxu0 %v8114
    %9472 = vmatpush1.bf16.msra.mxu0 %v8113
    %9473 = vmatprep.subr.bf16.mxu0 %v8118
    %9474 = vmatpush1.bf16.msra.mxu0 %v8117
    %9475 = vmatprep.subr.bf16.mxu0 %v8122
    %9476 = vmatpush1.bf16.msra.mxu0 %v8121
    %9477 = vmatprep.subr.bf16.mxu0 %v8126
    %9478 = vmatpush1.bf16.msra.mxu0 %v8125
    %9479 = vmatprep.subr.bf16.mxu0 %v8130
    %9480 = vmatpush1.bf16.msra.mxu0 %v8129
    %9481 = vmatprep.subr.bf16.mxu0 %v8134
    %9482 = vmatpush1.bf16.msra.mxu0 %v8133
    %9483 = vmatprep.subr.bf16.mxu0 %v8138
    %9484 = vmatpush1.bf16.msra.mxu0 %v8137
    %9485 = vmatprep.subr.bf16.mxu0 %v8142
    %9486 = vmatpush1.bf16.msra.mxu0 %v8141
    %9487 = vmatprep.subr.bf16.mxu0 %v8146
    %9488 = vmatpush1.bf16.msra.mxu0 %v8145
    %9489 = vmatprep.subr.bf16.mxu0 %v8150
    %9490 = vmatpush1.bf16.msra.mxu0 %v8149
    %9491 = vmatprep.subr.bf16.mxu0 %v8154
    %9492 = vmatpush1.bf16.msra.mxu0 %v8153
    %9493 = vmatprep.subr.bf16.mxu0 %v8158
    %9494 = vmatpush1.bf16.msra.mxu0 %v8157
    %9495 = vmatprep.mubr.bf16.mxu0 %v6032
    %9496 = vmatmul.mubr.bf16.gmra.mrb[0].mxu0 %v6031
    %v9497 = vpop.f32.mrb[0].mxu0
    %v9498 = vadd.f32 %v2229, %v9497
    %v9499 = vpop.f32.mrb[0].mxu0
    %v9500 = vadd.f32 %v2230, %v9499
    %v9501 = vpop.f32.mrb[0].mxu0
    %v9502 = vadd.f32 %v2233, %v9501
    %v9503 = vpop.f32.mrb[0].mxu0
    %v9504 = vadd.f32 %v2234, %v9503
    %9505 = vdwg.mxu0
    %9506 = vmatprep.subr.bf16.mxu0 %v8162
    %9507 = vmatpush1.bf16.msra.mxu0 %v8161
    %9508 = vmatprep.subr.bf16.mxu0 %v8166
    %9509 = vmatpush1.bf16.msra.mxu0 %v8165
    %9510 = vmatprep.subr.bf16.mxu0 %v8170
    %9511 = vmatpush1.bf16.msra.mxu0 %v8169
    %9512 = vmatprep.subr.bf16.mxu0 %v8174
    %9513 = vmatpush1.bf16.msra.mxu0 %v8173
    %9514 = vmatprep.subr.bf16.mxu0 %v8178
    %9515 = vmatpush1.bf16.msra.mxu0 %v8177
    %9516 = vmatprep.subr.bf16.mxu0 %v8182
    %9517 = vmatpush1.bf16.msra.mxu0 %v8181
    %9518 = vmatprep.subr.bf16.mxu0 %v8186
    %9519 = vmatpush1.bf16.msra.mxu0 %v8185
    %9520 = vmatprep.subr.bf16.mxu0 %v8190
    %9521 = vmatpush1.bf16.msra.mxu0 %v8189
    %9522 = vmatprep.subr.bf16.mxu0 %v8194
    %9523 = vmatpush1.bf16.msra.mxu0 %v8193
    %9524 = vmatprep.subr.bf16.mxu0 %v8198
    %9525 = vmatpush1.bf16.msra.mxu0 %v8197
    %9526 = vmatprep.subr.bf16.mxu0 %v8202
    %9527 = vmatpush1.bf16.msra.mxu0 %v8201
    %9528 = vmatprep.subr.bf16.mxu0 %v8206
    %9529 = vmatpush1.bf16.msra.mxu0 %v8205
    %9530 = vmatprep.subr.bf16.mxu0 %v8210
    %9531 = vmatpush1.bf16.msra.mxu0 %v8209
    %9532 = vmatprep.subr.bf16.mxu0 %v8214
    %9533 = vmatpush1.bf16.msra.mxu0 %v8213
    %9534 = vmatprep.subr.bf16.mxu0 %v8218
    %9535 = vmatpush1.bf16.msra.mxu0 %v8217
    %9536 = vmatprep.subr.bf16.mxu0 %v8222
    %9537 = vmatpush1.bf16.msra.mxu0 %v8221
    %9538 = vmatprep.mubr.bf16.mxu0 %v6034
    %9539 = vmatmul.mubr.bf16.gmra.mrb[0].mxu0 %v6033
    %v9540 = vpop.f32.mrb[0].mxu0
    %v9541 = vadd.f32 %v9498, %v9540
    %v9542 = vpop.f32.mrb[0].mxu0
    %v9543 = vadd.f32 %v9500, %v9542
    %v9544 = vpop.f32.mrb[0].mxu0
    %v9545 = vadd.f32 %v9502, %v9544
    %v9546 = vpop.f32.mrb[0].mxu0
    %v9547 = vadd.f32 %v9504, %v9546
    %9548 = vdwg.mxu0
    %9549 = vmatprep.subr.bf16.mxu0 %v8226
    %9550 = vmatpush1.bf16.msra.mxu0 %v8225
    %9551 = vmatprep.subr.bf16.mxu0 %v8230
    %9552 = vmatpush1.bf16.msra.mxu0 %v8229
    %9553 = vmatprep.subr.bf16.mxu0 %v8234
    %9554 = vmatpush1.bf16.msra.mxu0 %v8233
    %9555 = vmatprep.subr.bf16.mxu0 %v8238
    %9556 = vmatpush1.bf16.msra.mxu0 %v8237
    %9557 = vmatprep.subr.bf16.mxu0 %v8242
    %9558 = vmatpush1.bf16.msra.mxu0 %v8241
    %9559 = vmatprep.subr.bf16.mxu0 %v8246
    %9560 = vmatpush1.bf16.msra.mxu0 %v8245
    %9561 = vmatprep.subr.bf16.mxu0 %v8250
    %9562 = vmatpush1.bf16.msra.mxu0 %v8249
    %9563 = vmatprep.subr.bf16.mxu0 %v8254
    %9564 = vmatpush1.bf16.msra.mxu0 %v8253
    %9565 = vmatprep.subr.bf16.mxu0 %v8258
    %9566 = vmatpush1.bf16.msra.mxu0 %v8257
    %9567 = vmatprep.subr.bf16.mxu0 %v8262
    %9568 = vmatpush1.bf16.msra.mxu0 %v8261
    %9569 = vmatprep.subr.bf16.mxu0 %v8266
    %9570 = vmatpush1.bf16.msra.mxu0 %v8265
    %9571 = vmatprep.subr.bf16.mxu0 %v8270
    %9572 = vmatpush1.bf16.msra.mxu0 %v8269
    %9573 = vmatprep.subr.bf16.mxu0 %v8274
    %9574 = vmatpush1.bf16.msra.mxu0 %v8273
    %9575 = vmatprep.subr.bf16.mxu0 %v8278
    %9576 = vmatpush1.bf16.msra.mxu0 %v8277
    %9577 = vmatprep.subr.bf16.mxu0 %v8282
    %9578 = vmatpush1.bf16.msra.mxu0 %v8281
    %9579 = vmatprep.subr.bf16.mxu0 %v8286
    %9580 = vmatpush1.bf16.msra.mxu0 %v8285
    %9581 = vmatprep.mubr.bf16.mxu0 %v6036
    %9582 = vmatmul.mubr.bf16.gmra.mrb[0].mxu0 %v6035
    %v9583 = vpop.f32.mrb[0].mxu0
    %v9584 = vadd.f32 %v9541, %v9583
    %v9585 = vpop.f32.mrb[0].mxu0
    %v9586 = vadd.f32 %v9543, %v9585
    %v9587 = vpop.f32.mrb[0].mxu0
    %v9588 = vadd.f32 %v9545, %v9587
    %v9589 = vpop.f32.mrb[0].mxu0
    %v9590 = vadd.f32 %v9547, %v9589
    %9591 = vdwg.mxu0
    %9592 = vmatprep.subr.bf16.mxu0 %v8290
    %9593 = vmatpush1.bf16.msra.mxu0 %v8289
    %9594 = vmatprep.subr.bf16.mxu0 %v8294
    %9595 = vmatpush1.bf16.msra.mxu0 %v8293
    %9596 = vmatprep.subr.bf16.mxu0 %v8298
    %9597 = vmatpush1.bf16.msra.mxu0 %v8297
    %9598 = vmatprep.subr.bf16.mxu0 %v8302
    %9599 = vmatpush1.bf16.msra.mxu0 %v8301
    %9600 = vmatprep.subr.bf16.mxu0 %v8306
    %9601 = vmatpush1.bf16.msra.mxu0 %v8305
    %9602 = vmatprep.subr.bf16.mxu0 %v8310
    %9603 = vmatpush1.bf16.msra.mxu0 %v8309
    %9604 = vmatprep.subr.bf16.mxu0 %v8314
    %9605 = vmatpush1.bf16.msra.mxu0 %v8313
    %9606 = vmatprep.subr.bf16.mxu0 %v8318
    %9607 = vmatpush1.bf16.msra.mxu0 %v8317
    %9608 = vmatprep.subr.bf16.mxu0 %v8322
    %9609 = vmatpush1.bf16.msra.mxu0 %v8321
    %9610 = vmatprep.subr.bf16.mxu0 %v8326
    %9611 = vmatpush1.bf16.msra.mxu0 %v8325
    %9612 = vmatprep.subr.bf16.mxu0 %v8330
    %9613 = vmatpush1.bf16.msra.mxu0 %v8329
    %9614 = vmatprep.subr.bf16.mxu0 %v8334
    %9615 = vmatpush1.bf16.msra.mxu0 %v8333
    %9616 = vmatprep.subr.bf16.mxu0 %v8338
    %9617 = vmatpush1.bf16.msra.mxu0 %v8337
    %9618 = vmatprep.subr.bf16.mxu0 %v8342
    %9619 = vmatpush1.bf16.msra.mxu0 %v8341
    %9620 = vmatprep.subr.bf16.mxu0 %v8346
    %9621 = vmatpush1.bf16.msra.mxu0 %v8345
    %9622 = vmatprep.subr.bf16.mxu0 %v8350
    %9623 = vmatpush1.bf16.msra.mxu0 %v8349
    %9624 = vmatprep.mubr.bf16.mxu0 %v6038
    %9625 = vmatmul.mubr.bf16.gmra.mrb[0].mxu0 %v6037
    %v9626 = vpop.f32.mrb[0].mxu0
    %v9627 = vadd.f32 %v9584, %v9626
    %v9628 = vpop.f32.mrb[0].mxu0
    %v9629 = vadd.f32 %v9586, %v9628
    %v9630 = vpop.f32.mrb[0].mxu0
    %v9631 = vadd.f32 %v9588, %v9630
    %v9632 = vpop.f32.mrb[0].mxu0
    %v9633 = vadd.f32 %v9590, %v9632
    %9634 = vdwg.mxu0
    %9635 = vmatprep.subr.bf16.mxu0 %v8354
    %9636 = vmatpush1.bf16.msra.mxu0 %v8353
    %9637 = vmatprep.subr.bf16.mxu0 %v8358
    %9638 = vmatpush1.bf16.msra.mxu0 %v8357
    %9639 = vmatprep.subr.bf16.mxu0 %v8362
    %9640 = vmatpush1.bf16.msra.mxu0 %v8361
    %9641 = vmatprep.subr.bf16.mxu0 %v8366
    %9642 = vmatpush1.bf16.msra.mxu0 %v8365
    %9643 = vmatprep.subr.bf16.mxu0 %v8370
    %9644 = vmatpush1.bf16.msra.mxu0 %v8369
    %9645 = vmatprep.subr.bf16.mxu0 %v8374
    %9646 = vmatpush1.bf16.msra.mxu0 %v8373
    %9647 = vmatprep.subr.bf16.mxu0 %v8378
    %9648 = vmatpush1.bf16.msra.mxu0 %v8377
    %9649 = vmatprep.subr.bf16.mxu0 %v8382
    %9650 = vmatpush1.bf16.msra.mxu0 %v8381
    %9651 = vmatprep.subr.bf16.mxu0 %v8386
    %9652 = vmatpush1.bf16.msra.mxu0 %v8385
    %9653 = vmatprep.subr.bf16.mxu0 %v8390
    %9654 = vmatpush1.bf16.msra.mxu0 %v8389
    %9655 = vmatprep.subr.bf16.mxu0 %v8394
    %9656 = vmatpush1.bf16.msra.mxu0 %v8393
    %9657 = vmatprep.subr.bf16.mxu0 %v8398
    %9658 = vmatpush1.bf16.msra.mxu0 %v8397
    %9659 = vmatprep.subr.bf16.mxu0 %v8402
    %9660 = vmatpush1.bf16.msra.mxu0 %v8401
    %9661 = vmatprep.subr.bf16.mxu0 %v8406
    %9662 = vmatpush1.bf16.msra.mxu0 %v8405
    %9663 = vmatprep.subr.bf16.mxu0 %v8410
    %9664 = vmatpush1.bf16.msra.mxu0 %v8409
    %9665 = vmatprep.subr.bf16.mxu0 %v8414
    %9666 = vmatpush1.bf16.msra.mxu0 %v8413
    %9667 = vmatprep.mubr.bf16.mxu0 %v6040
    %9668 = vmatmul.mubr.bf16.gmra.mrb[0].mxu0 %v6039
    %v9669 = vpop.f32.mrb[0].mxu0
    %v9670 = vadd.f32 %v9627, %v9669
    %v9671 = vpop.f32.mrb[0].mxu0
    %v9672 = vadd.f32 %v9629, %v9671
    %v9673 = vpop.f32.mrb[0].mxu0
    %v9674 = vadd.f32 %v9631, %v9673
    %v9675 = vpop.f32.mrb[0].mxu0
    %v9676 = vadd.f32 %v9633, %v9675
    %9677 = vdwg.mxu0
    %9678 = vmatprep.subr.bf16.mxu0 %v8418
    %9679 = vmatpush1.bf16.msra.mxu0 %v8417
    %9680 = vmatprep.subr.bf16.mxu0 %v8422
    %9681 = vmatpush1.bf16.msra.mxu0 %v8421
    %9682 = vmatprep.subr.bf16.mxu0 %v8426
    %9683 = vmatpush1.bf16.msra.mxu0 %v8425
    %9684 = vmatprep.subr.bf16.mxu0 %v8430
    %9685 = vmatpush1.bf16.msra.mxu0 %v8429
    %9686 = vmatprep.subr.bf16.mxu0 %v8434
    %9687 = vmatpush1.bf16.msra.mxu0 %v8433
    %9688 = vmatprep.subr.bf16.mxu0 %v8438
    %9689 = vmatpush1.bf16.msra.mxu0 %v8437
    %9690 = vmatprep.subr.bf16.mxu0 %v8442
    %9691 = vmatpush1.bf16.msra.mxu0 %v8441
    %9692 = vmatprep.subr.bf16.mxu0 %v8446
    %9693 = vmatpush1.bf16.msra.mxu0 %v8445
    %9694 = vmatprep.subr.bf16.mxu0 %v8450
    %9695 = vmatpush1.bf16.msra.mxu0 %v8449
    %9696 = vmatprep.subr.bf16.mxu0 %v8454
    %9697 = vmatpush1.bf16.msra.mxu0 %v8453
    %9698 = vmatprep.subr.bf16.mxu0 %v8458
    %9699 = vmatpush1.bf16.msra.mxu0 %v8457
    %9700 = vmatprep.subr.bf16.mxu0 %v8462
    %9701 = vmatpush1.bf16.msra.mxu0 %v8461
    %9702 = vmatprep.subr.bf16.mxu0 %v8466
    %9703 = vmatpush1.bf16.msra.mxu0 %v8465
    %9704 = vmatprep.subr.bf16.mxu0 %v8470
    %9705 = vmatpush1.bf16.msra.mxu0 %v8469
    %9706 = vmatprep.subr.bf16.mxu0 %v8474
    %9707 = vmatpush1.bf16.msra.mxu0 %v8473
    %9708 = vmatprep.subr.bf16.mxu0 %v8478
    %9709 = vmatpush1.bf16.msra.mxu0 %v8477
    %9710 = vmatprep.mubr.bf16.mxu0 %v6042
    %9711 = vmatmul.mubr.bf16.gmra.mrb[0].mxu0 %v6041
    %v9712 = vpop.f32.mrb[0].mxu0
    %v9713 = vadd.f32 %v9670, %v9712
    %v9714 = vpop.f32.mrb[0].mxu0
    %v9715 = vadd.f32 %v9672, %v9714
    %v9716 = vpop.f32.mrb[0].mxu0
    %v9717 = vadd.f32 %v9674, %v9716
    %v9718 = vpop.f32.mrb[0].mxu0
    %v9719 = vadd.f32 %v9676, %v9718
    %9720 = vdwg.mxu0
    %9721 = vmatprep.subr.bf16.mxu0 %v8482
    %9722 = vmatpush1.bf16.msra.mxu0 %v8481
    %9723 = vmatprep.subr.bf16.mxu0 %v8486
    %9724 = vmatpush1.bf16.msra.mxu0 %v8485
    %9725 = vmatprep.subr.bf16.mxu0 %v8490
    %9726 = vmatpush1.bf16.msra.mxu0 %v8489
    %9727 = vmatprep.subr.bf16.mxu0 %v8494
    %9728 = vmatpush1.bf16.msra.mxu0 %v8493
    %9729 = vmatprep.subr.bf16.mxu0 %v8498
    %9730 = vmatpush1.bf16.msra.mxu0 %v8497
    %9731 = vmatprep.subr.bf16.mxu0 %v8502
    %9732 = vmatpush1.bf16.msra.mxu0 %v8501
    %9733 = vmatprep.subr.bf16.mxu0 %v8506
    %9734 = vmatpush1.bf16.msra.mxu0 %v8505
    %9735 = vmatprep.subr.bf16.mxu0 %v8510
    %9736 = vmatpush1.bf16.msra.mxu0 %v8509
    %9737 = vmatprep.subr.bf16.mxu0 %v8514
    %9738 = vmatpush1.bf16.msra.mxu0 %v8513
    %9739 = vmatprep.subr.bf16.mxu0 %v8518
    %9740 = vmatpush1.bf16.msra.mxu0 %v8517
    %9741 = vmatprep.subr.bf16.mxu0 %v8522
    %9742 = vmatpush1.bf16.msra.mxu0 %v8521
    %9743 = vmatprep.subr.bf16.mxu0 %v8526
    %9744 = vmatpush1.bf16.msra.mxu0 %v8525
    %9745 = vmatprep.subr.bf16.mxu0 %v8530
    %9746 = vmatpush1.bf16.msra.mxu0 %v8529
    %9747 = vmatprep.subr.bf16.mxu0 %v8534
    %9748 = vmatpush1.bf16.msra.mxu0 %v8533
    %9749 = vmatprep.subr.bf16.mxu0 %v8538
    %9750 = vmatpush1.bf16.msra.mxu0 %v8537
    %9751 = vmatprep.subr.bf16.mxu0 %v8542
    %9752 = vmatpush1.bf16.msra.mxu0 %v8541
    %9753 = vmatprep.mubr.bf16.mxu0 %v6044
    %9754 = vmatmul.mubr.bf16.gmra.mrb[0].mxu0 %v6043
    %v9755 = vpop.f32.mrb[0].mxu0
    %v9756 = vadd.f32 %v9713, %v9755
    %v9757 = vpop.f32.mrb[0].mxu0
    %v9758 = vadd.f32 %v9715, %v9757
    %v9759 = vpop.f32.mrb[0].mxu0
    %v9760 = vadd.f32 %v9717, %v9759
    %v9761 = vpop.f32.mrb[0].mxu0
    %v9762 = vadd.f32 %v9719, %v9761
    %9763 = vdwg.mxu0
    %9764 = vmatprep.subr.bf16.mxu0 %v8546
    %9765 = vmatpush1.bf16.msra.mxu0 %v8545
    %9766 = vmatprep.subr.bf16.mxu0 %v8550
    %9767 = vmatpush1.bf16.msra.mxu0 %v8549
    %9768 = vmatprep.subr.bf16.mxu0 %v8554
    %9769 = vmatpush1.bf16.msra.mxu0 %v8553
    %9770 = vmatprep.subr.bf16.mxu0 %v8558
    %9771 = vmatpush1.bf16.msra.mxu0 %v8557
    %9772 = vmatprep.subr.bf16.mxu0 %v8562
    %9773 = vmatpush1.bf16.msra.mxu0 %v8561
    %9774 = vmatprep.subr.bf16.mxu0 %v8566
    %9775 = vmatpush1.bf16.msra.mxu0 %v8565
    %9776 = vmatprep.subr.bf16.mxu0 %v8570
    %9777 = vmatpush1.bf16.msra.mxu0 %v8569
    %9778 = vmatprep.subr.bf16.mxu0 %v8574
    %9779 = vmatpush1.bf16.msra.mxu0 %v8573
    %9780 = vmatprep.subr.bf16.mxu0 %v8578
    %9781 = vmatpush1.bf16.msra.mxu0 %v8577
    %9782 = vmatprep.subr.bf16.mxu0 %v8582
    %9783 = vmatpush1.bf16.msra.mxu0 %v8581
    %9784 = vmatprep.subr.bf16.mxu0 %v8586
    %9785 = vmatpush1.bf16.msra.mxu0 %v8585
    %9786 = vmatprep.subr.bf16.mxu0 %v8590
    %9787 = vmatpush1.bf16.msra.mxu0 %v8589
    %9788 = vmatprep.subr.bf16.mxu0 %v8594
    %9789 = vmatpush1.bf16.msra.mxu0 %v8593
    %9790 = vmatprep.subr.bf16.mxu0 %v8598
    %9791 = vmatpush1.bf16.msra.mxu0 %v8597
    %9792 = vmatprep.subr.bf16.mxu0 %v8602
    %9793 = vmatpush1.bf16.msra.mxu0 %v8601
    %9794 = vmatprep.subr.bf16.mxu0 %v8606
    %9795 = vmatpush1.bf16.msra.mxu0 %v8605
    %9796 = vmatprep.mubr.bf16.mxu0 %v6046
    %9797 = vmatmul.mubr.bf16.gmra.mrb[0].mxu0 %v6045
    %v9798 = vpop.f32.mrb[0].mxu0
    %v9799 = vadd.f32 %v9756, %v9798
    %v9800 = vpop.f32.mrb[0].mxu0
    %v9801 = vadd.f32 %v9758, %v9800
    %v9802 = vpop.f32.mrb[0].mxu0
    %v9803 = vadd.f32 %v9760, %v9802
    %v9804 = vpop.f32.mrb[0].mxu0
    %v9805 = vadd.f32 %v9762, %v9804
    %9806 = vdwg.mxu0
    %v9807 = vadd.f32 %v9455, %v9457
    %v9808 = vadd.f32 %v9807, %v9799
    %v9809 = vadd.f32 %v9808, %v9801
    %9810 = vadd.xlane.f32.xlu0 %v9809
    %v9811 = vpop.xlane.xlu0 %9810
    %v9812 = vadd.f32 %v9459, %v9461
    %v9813 = vadd.f32 %v9812, %v9803
    %v9814 = vadd.f32 %v9813, %v9805
    %9815 = vadd.xlane.f32.xlu0 %v9814
    %v9816 = vpop.xlane.xlu0 %9815
    %v9817 = vmul.f32 %v9811, %v2192
    %v9818 = vmul.f32 %v9816, %v2192
    %v9819 = vsub.f32 %v9455, %v9817
    %v9820 = vsub.f32 %v9457, %v9817
    %v9821 = vsub.f32 %v9799, %v9817
    %v9822 = vsub.f32 %v9801, %v9817
    %v9823 = vsub.f32 %v9459, %v9818
    %v9824 = vsub.f32 %v9461, %v9818
    %v9825 = vsub.f32 %v9803, %v9818
    %v9826 = vsub.f32 %v9805, %v9818
    %v9827 = vmul.f32 %v9819, %v9819
    %v9828 = vmul.f32 %v9820, %v9820
    %v9829 = vmul.f32 %v9821, %v9821
    %v9830 = vmul.f32 %v9822, %v9822
    %v9831 = vmul.f32 %v9823, %v9823
    %v9832 = vmul.f32 %v9824, %v9824
    %v9833 = vmul.f32 %v9825, %v9825
    %v9834 = vmul.f32 %v9826, %v9826
    %v9835 = vadd.f32 %v9827, %v9828
    %v9836 = vadd.f32 %v9835, %v9829
    %v9837 = vadd.f32 %v9836, %v9830
    %9838 = vadd.xlane.f32.xlu0 %v9837
    %v9839 = vpop.xlane.xlu0 %9838
    %v9840 = vadd.f32 %v9831, %v9832
    %v9841 = vadd.f32 %v9840, %v9833
    %v9842 = vadd.f32 %v9841, %v9834
    %9843 = vadd.xlane.f32.xlu0 %v9842
    %v9844 = vpop.xlane.xlu0 %9843
    %v9845 = vmul.f32 %v9839, %v2192
    %v9846 = vmul.f32 %v9844, %v2192
    %v9847 = vadd.f32 %v9845, 1e-05
    %v9848 = vadd.f32 %v9846, 1e-05
    %v9849 = vrsqrt.pop %v9847
    %v9850 = vrsqrt.pop %v9848
    %v9851 = vmul.f32 %v9819, %v9849
    %v9852 = vmul.f32 %v9820, %v9849
    %v9853 = vmul.f32 %v9821, %v9849
    %v9854 = vmul.f32 %v9822, %v9849
    %v9855 = vmul.f32 %v9823, %v9850
    %v9856 = vmul.f32 %v9824, %v9850
    %v9857 = vmul.f32 %v9825, %v9850
    %v9858 = vmul.f32 %v9826, %v9850
    %v9859 = vld [vmem:[#allocation10] sm:$0xf]
    %v9861 = vlaneseq
    %v9862 = vshrl.u32 %v9861, 7
    %v9863 = vsub.s32 0, %v9862
    %v9864 = vrot.slane %v9859, %v9863
    %v9865 = vlaneseq
    %v9866 = vshrl.u32 %v9865, 7
    %v9867 = vsub.s32 1, %v9866
    %v9868 = vrot.slane %v9859, %v9867
    %v9869 = vlaneseq
    %v9870 = vshrl.u32 %v9869, 7
    %v9871 = vsub.s32 2, %v9870
    %v9872 = vrot.slane %v9859, %v9871
    %v9873 = vlaneseq
    %v9874 = vshrl.u32 %v9873, 7
    %v9875 = vsub.s32 3, %v9874
    %v9876 = vrot.slane %v9859, %v9875
    %v9881 = vmul.f32 %v9851, %v9864
    %v9882 = vmul.f32 %v9852, %v9868
    %v9883 = vmul.f32 %v9853, %v9872
    %v9884 = vmul.f32 %v9854, %v9876
    %v9885 = vmul.f32 %v9855, %v9864
    %v9886 = vmul.f32 %v9856, %v9868
    %v9887 = vmul.f32 %v9857, %v9872
    %v9888 = vmul.f32 %v9858, %v9876
    %v9889 = vadd.f32 %v9881, %v9882
    %v9890 = vadd.f32 %v9889, %v9883
    %v9891 = vadd.f32 %v9890, %v9884
    %9892 = vadd.xlane.f32.xlu0 %v9891
    %v9893 = vpop.xlane.xlu0 %9892
    %v9894 = vadd.f32 %v9885, %v9886
    %v9895 = vadd.f32 %v9894, %v9887
    %v9896 = vadd.f32 %v9895, %v9888
    %9897 = vadd.xlane.f32.xlu0 %v9896
    %v9898 = vpop.xlane.xlu0 %9897
    %vm9899 = vcmask 7168
    %9900 = vst.msk [vmem:[%s8] sm:$0xff] %vm9899, %v9893
    %9901 = vst.msk [vmem:[%s8 + $0x8] sm:$0xff] %vm9899, %v9898
    // Predicated region
    $region58: #{transformer_forward.1} parent=1 // pred_check
      _
    $region59: #{transformer_forward.1} parent=1 // pred_check_branch
      %9903 = sbr.rel (0) target = $region61
    $region60: #{transformer_forward.1} parent=1 // pred_region
      _
    $region61: #{transformer_forward.1} parent=1 // pred_fallthru
      _
    // Predicated region
    $region62: #{transformer_forward.1} parent=1 // pred_check
      _
    $region63: #{transformer_forward.1} parent=1 // pred_check_branch
      %9905 = sbr.rel (0) target = $region65
    $region64: #{transformer_forward.1} parent=1 // pred_region
      _
    $region65: #{transformer_forward.1} parent=1 // pred_fallthru
      _
    %9906 = vsyncpa [#allocation3], 1
    %9907 = vsyncpa [#allocation5], 1
    %9908 = vsyncpa [#allocation8], 1
    %9909 = vsyncpa [#allocation11], 1

</llo_original>
